<compile_context>
chip_gen: v7x
topology: tpu7x:2x2x1
jax: 0.10.0
libtpu: 0.0.40
codegen_flags: <defaults>
</compile_context>

<pallas_src>
import jax
import jax.numpy as jnp
from jax import lax
from jax.experimental import pallas as pl
from jax.experimental.pallas import tpu as pltpu


# ------------------------------ math helpers ---------------------------------

_SQRT_2_OVER_PI = 0.7978845608028654


def _gelu(x):
    # tanh-approximate GELU (EUP-friendly).
    # TODO(synk): torch.nn.GELU() default is the exact erf form; the tanh
    # approximation deviates by ~1e-3 absolute at worst.
    return 0.5 * x * (1.0 + jnp.tanh(_SQRT_2_OVER_PI * (x + 0.044715 * x * x * x)))


def _sigmoid(x):
    # exact identity sigmoid(x) = 0.5*(1 + tanh(x/2)); tanh is a single EUP op.
    return 0.5 * (jnp.tanh(0.5 * x) + 1.0)


# ------------------------------ slab layout -----------------------------------

def _align8(n):
    return ((n + 7) // 8) * 8


def _layout(din, h, dout, f1):
    """Row offsets (all 8-aligned block starts) for the three parameter slabs."""
    # slab 0: width 2H, the fused [r|z] gate blocks + pre-summed r|z biases
    rz = {}
    rz["enc_wih"] = 0
    rz["enc_whh"] = _align8(rz["enc_wih"] + din)
    rz["dec_wih"] = _align8(rz["enc_whh"] + h)
    rz["dec_whh"] = _align8(rz["dec_wih"] + dout)
    rz["enc_b"] = _align8(rz["dec_whh"] + h)     # b_ih_rz + b_hh_rz (encoder)
    rz["dec_b"] = rz["enc_b"] + 8                # b_ih_rz + b_hh_rz (decoder)
    rz["rows"] = _align8(rz["dec_b"] + 1)
    # slab 1: width max(H, F1), the [n] gate blocks + fc1 / layernorm params
    wn = {}
    wn["enc_wih"] = 0
    wn["enc_whh"] = _align8(wn["enc_wih"] + din)
    wn["dec_wih"] = _align8(wn["enc_whh"] + h)
    wn["dec_whh"] = _align8(wn["dec_wih"] + dout)
    wn["fc1_w"] = _align8(wn["dec_whh"] + h)
    wn["misc"] = _align8(wn["fc1_w"] + h)        # 7 rows, see pack_params
    wn["rows"] = _align8(wn["misc"] + 7)
    wn["width"] = max(h, f1)
    # slab 2: width Dout, fc2 weight + bias
    f2 = {"w": 0, "b": f1, "rows": _align8(f1 + 1)}
    return rz, wn, f2


def pack_params(p, *, input_dim, hidden_dim, output_dim, fc_dim):
    """Pack PyTorch-convention parameters into 3 VMEM slabs.

    Expected PyTorch layouts:
      GRU:    weight_ih (3H, in), weight_hh (3H, H), bias_* (3H,), gate order r|z|n
      Linear: weight (out, in), bias (out,)
      LayerNorm: gamma/beta (dim,)
    """
    din, h, dout, f1 = input_dim, hidden_dim, output_dim, fc_dim
    lrz, lwn, lf2 = _layout(din, h, dout, f1)
    f32 = jnp.float32

    def w_split(w):  # (3H, in) -> transposed (in, 2H) rz-block, (in, H) n-block
        wt = jnp.asarray(w, f32).T
        return wt[:, : 2 * h], wt[:, 2 * h:]

    def b_split(b):  # (3H,) -> (2H,), (H,)
        b = jnp.asarray(b, f32)
        return b[: 2 * h], b[2 * h:]

    e_ih_rz, e_ih_n = w_split(p["enc_w_ih"])
    e_hh_rz, e_hh_n = w_split(p["enc_w_hh"])
    d_ih_rz, d_ih_n = w_split(p["dec_w_ih"])
    d_hh_rz, d_hh_n = w_split(p["dec_w_hh"])
    e_bih_rz, e_bih_n = b_split(p["enc_b_ih"])
    e_bhh_rz, e_bhh_n = b_split(p["enc_b_hh"])
    d_bih_rz, d_bih_n = b_split(p["dec_b_ih"])
    d_bhh_rz, d_bhh_n = b_split(p["dec_b_hh"])

    wrz = jnp.zeros((lrz["rows"], 2 * h), f32)
    wrz = wrz.at[lrz["enc_wih"]:lrz["enc_wih"] + din].set(e_ih_rz)
    wrz = wrz.at[lrz["enc_whh"]:lrz["enc_whh"] + h].set(e_hh_rz)
    wrz = wrz.at[lrz["dec_wih"]:lrz["dec_wih"] + dout].set(d_ih_rz)
    wrz = wrz.at[lrz["dec_whh"]:lrz["dec_whh"] + h].set(d_hh_rz)
    wrz = wrz.at[lrz["enc_b"]].set(e_bih_rz + e_bhh_rz)   # r|z biases pre-summed
    wrz = wrz.at[lrz["dec_b"]].set(d_bih_rz + d_bhh_rz)

    w = lwn["width"]
    wn = jnp.zeros((lwn["rows"], w), f32)
    wn = wn.at[lwn["enc_wih"]:lwn["enc_wih"] + din, :h].set(e_ih_n)
    wn = wn.at[lwn["enc_whh"]:lwn["enc_whh"] + h, :h].set(e_hh_n)
    wn = wn.at[lwn["dec_wih"]:lwn["dec_wih"] + dout, :h].set(d_ih_n)
    wn = wn.at[lwn["dec_whh"]:lwn["dec_whh"] + h, :h].set(d_hh_n)
    wn = wn.at[lwn["fc1_w"]:lwn["fc1_w"] + h, :f1].set(jnp.asarray(p["fc1_w"], f32).T)
    m = lwn["misc"]
    wn = wn.at[m + 0, :h].set(e_bih_n)       # encoder b_in
    wn = wn.at[m + 1, :h].set(e_bhh_n)       # encoder b_hn
    wn = wn.at[m + 2, :h].set(d_bih_n)       # decoder b_in
    wn = wn.at[m + 3, :h].set(d_bhh_n)       # decoder b_hn
    wn = wn.at[m + 4, :f1].set(jnp.asarray(p["fc1_b"], f32))
    wn = wn.at[m + 5, :f1].set(jnp.asarray(p["ln_g"], f32))
    wn = wn.at[m + 6, :f1].set(jnp.asarray(p["ln_b"], f32))

    f2 = jnp.zeros((lf2["rows"], dout), f32)
    f2 = f2.at[lf2["w"]:lf2["w"] + f1].set(jnp.asarray(p["fc2_w"], f32).T)
    f2 = f2.at[lf2["b"]].set(jnp.asarray(p["fc2_b"], f32))
    return wrz, wn, f2


# --------------------------------- forward ------------------------------------

def covsf_forward(x_btf, wrz, wn, fc2, *, hidden_dim, output_dim, output_len, fc_dim):
    """x_btf: (B, S, Din) batch-first like the PyTorch module. Returns (B, T, Dout)."""
    B, S, Din = x_btf.shape
    H, Dout, T, F1 = hidden_dim, output_dim, output_len, fc_dim
    lrz, lwn, lf2 = _layout(Din, H, Dout, F1)
    f32 = jnp.float32

    def kernel(x_ref, wrz_ref, wn_ref, fc2_ref, out_ref):
        # ----------------- parameter slices (static, preamble-only) ------------
        wih_e_rz = wrz_ref[lrz["enc_wih"]:lrz["enc_wih"] + Din, :]
        whh_e_rz = wrz_ref[lrz["enc_whh"]:lrz["enc_whh"] + H, :]
        wih_d_rz = wrz_ref[lrz["dec_wih"]:lrz["dec_wih"] + Dout, :]
        whh_d_rz = wrz_ref[lrz["dec_whh"]:lrz["dec_whh"] + H, :]
        b_e_rz = wrz_ref[lrz["enc_b"]:lrz["enc_b"] + 1, :]          # (1, 2H)
        b_d_rz = jnp.broadcast_to(wrz_ref[lrz["dec_b"]:lrz["dec_b"] + 1, :], (B, 2 * H))

        wih_e_n = wn_ref[lwn["enc_wih"]:lwn["enc_wih"] + Din, :H]
        whh_e_n = wn_ref[lwn["enc_whh"]:lwn["enc_whh"] + H, :H]
        wih_d_n = wn_ref[lwn["dec_wih"]:lwn["dec_wih"] + Dout, :H]
        whh_d_n = wn_ref[lwn["dec_whh"]:lwn["dec_whh"] + H, :H]
        w1 = wn_ref[lwn["fc1_w"]:lwn["fc1_w"] + H, :F1]
        m = lwn["misc"]
        b_e_in = wn_ref[m + 0:m + 1, :H]                              # (1, H)
        b_e_hn = jnp.broadcast_to(wn_ref[m + 1:m + 2, :H], (B, H))
        b_d_in = jnp.broadcast_to(wn_ref[m + 2:m + 3, :H], (B, H))
        b_d_hn = jnp.broadcast_to(wn_ref[m + 3:m + 4, :H], (B, H))
        b1 = jnp.broadcast_to(wn_ref[m + 4:m + 5, :F1], (B, F1))
        ln_g = jnp.broadcast_to(wn_ref[m + 5:m + 6, :F1], (B, F1))
        ln_b = jnp.broadcast_to(wn_ref[m + 6:m + 7, :F1], (B, F1))
        w2 = fc2_ref[lf2["w"]:lf2["w"] + F1, :]
        b2 = jnp.broadcast_to(fc2_ref[lf2["b"]:lf2["b"] + 1, :], (B, Dout))

        # one fused-gate GRU cell; rz biases already folded into gi_rz,
        # n-gate hidden bias already folded into gh_n (PyTorch formulation).
        def gru_cell(gi_rz, gi_n, gh_rz, gh_n, h_prev):
            rz = _sigmoid(gi_rz + gh_rz)
            r = rz[:, :H]
            z = rz[:, H:]
            n = jnp.tanh(gi_n + r * gh_n)
            return (1.0 - z) * n + z * h_prev

        # ------------------------------ encoder --------------------------------
        # Input projection hoisted out of the recurrence: ONE 2-D contraction
        # over all S timesteps per gate block (x arrives pre-flattened (S*B, Din)).
        x2 = x_ref[...]                                               # (S*B, Din)
        gi_rz_all = jnp.dot(x2, wih_e_rz, preferred_element_type=f32) + b_e_rz
        gi_n_all = jnp.dot(x2, wih_e_n, preferred_element_type=f32) + b_e_in

        # t = 0: h0 == 0, so the two hidden matmuls are skipped.
        rz0 = _sigmoid(gi_rz_all[0:B, :])
        n0 = jnp.tanh(gi_n_all[0:B, :] + rz0[:, :H] * b_e_hn)
        h = (1.0 - rz0[:, H:]) * n0
        for t in range(1, S):                                         # static unroll
            gh_rz = jnp.dot(h, whh_e_rz, preferred_element_type=f32)
            gh_n = jnp.dot(h, whh_e_n, preferred_element_type=f32) + b_e_hn
            h = gru_cell(gi_rz_all[t * B:(t + 1) * B, :],
                         gi_n_all[t * B:(t + 1) * B, :], gh_rz, gh_n, h)

        # -------------------- decoder (autoregressive) -------------------------
        inv_f1 = 1.0 / F1
        gi_rz = b_d_rz            # t==0 input is zeros -> only the biases remain
        gi_n = b_d_in
        ys = []
        for t in range(T):                                            # static unroll
            gh_rz = jnp.dot(h, whh_d_rz, preferred_element_type=f32)
            gh_n = jnp.dot(h, whh_d_n, preferred_element_type=f32) + b_d_hn
            h = gru_cell(gi_rz, gi_n, gh_rz, gh_n, h)

            # head: Linear -> LayerNorm -> GELU -> Dropout(eval: identity) -> Linear
            z1 = jnp.dot(h, w1, preferred_element_type=f32) + b1
            s1 = jnp.sum(z1, axis=-1, keepdims=True)                  # independent
            s2 = jnp.sum(z1 * z1, axis=-1, keepdims=True)             # reductions
            mu = s1 * inv_f1
            var = s2 * inv_f1 - mu * mu
            zn = (z1 - mu) * lax.rsqrt(var + 1e-5) * ln_g + ln_b
            a = _gelu(zn)
            logits = jnp.dot(a, w2, preferred_element_type=f32) + b2

            # softmax with deferred normalization: e @ W_ih overlaps the
            # cross-lane sum + exact divide (exact so outputs sum to 1).
            mx = jnp.max(logits, axis=-1, keepdims=True)
            e = jnp.exp(logits - mx)
            ssum = jnp.sum(e, axis=-1, keepdims=True)
            inv = 1.0 / ssum
            ys.append(e * inv)                                        # (B, Dout)
            if t + 1 < T:
                ew_rz = jnp.dot(e, wih_d_rz, preferred_element_type=f32)
                ew_n = jnp.dot(e, wih_d_n, preferred_element_type=f32)
                gi_rz = ew_rz * inv + b_d_rz
                gi_n = ew_n * inv + b_d_in

        out_ref[...] = jnp.stack(ys, axis=0)                          # ONE store

    # Time-major flat input: leading rows are (t, b) so per-step access inside
    # the kernel is plain row slicing; transpose/reshape happen in XLA.
    x2 = jnp.transpose(x_btf, (1, 0, 2)).reshape(S * B, Din)
    out_tbd = pl.pallas_call(
        kernel,
        out_shape=jax.ShapeDtypeStruct((T, B, Dout), jnp.float32),
        in_specs=[pl.BlockSpec(memory_space=pltpu.MemorySpace.VMEM)] * 4,
        out_specs=pl.BlockSpec(memory_space=pltpu.MemorySpace.VMEM),
    )(x2, wrz, wn, fc2)
    return jnp.transpose(out_tbd, (1, 0, 2))                          # (B, T, Dout)


# ----------------------------- parameter init ----------------------------------

def init_torch_params(key, input_dim, hidden_dim, output_dim, fc_dim):
    """Synthetic params in PyTorch layouts (GRU: (3H, in), gate order r|z|n)."""
    H = hidden_dim
    kh = H ** -0.5
    kf = fc_dim ** -0.5
    ks = jax.random.split(key, 12)
    u = lambda k, shape, b: jax.random.uniform(k, shape, jnp.float32, -b, b)
    h3 = 3 * H
    return {
        "enc_w_ih": u(ks[0], (h3, input_dim), kh),
        "enc_w_hh": u(ks[1], (h3, H), kh),
        "enc_b_ih": u(ks[2], (h3,), kh),
        "enc_b_hh": u(ks[3], (h3,), kh),
        "dec_w_ih": u(ks[4], (h3, output_dim), kh),
        "dec_w_hh": u(ks[5], (h3, H), kh),
        "dec_b_ih": u(ks[6], (h3,), kh),
        "dec_b_hh": u(ks[7], (h3,), kh),
        "fc1_w": u(ks[8], (fc_dim, H), kh),
        "fc1_b": u(ks[9], (fc_dim,), kh),
        "ln_g": jnp.ones((fc_dim,), jnp.float32),
        "ln_b": jnp.zeros((fc_dim,), jnp.float32),
        "fc2_w": u(ks[10], (output_dim, fc_dim), kf),
        "fc2_b": u(ks[11], (output_dim,), kf),
    }


# ---------------------------------- main ----------------------------------------

if __name__ == "__main__":
    # TODO(synk): dropout layers (fc_dropout / recurrent_dropout) are identity in
    # eval mode and not modeled; norm_method='batch' variant not implemented.
    B, S, Din = 2, 8, 4
    H, Dout, T, F1 = 32, 4, 8, 32

    key = jax.random.PRNGKey(0)
    pkey, xkey = jax.random.split(key)
    torch_params = init_torch_params(pkey, Din, H, Dout, F1)
    wrz, wn, f2 = pack_params(torch_params, input_dim=Din, hidden_dim=H,
                              output_dim=Dout, fc_dim=F1)
    x = jax.random.normal(xkey, (B, S, Din), dtype=jnp.float32)

    fwd = jax.jit(covsf_forward,
                  static_argnames=("hidden_dim", "output_dim", "output_len", "fc_dim"))
    out = jax.block_until_ready(
        fwd(x, wrz, wn, f2, hidden_dim=H, output_dim=Dout, output_len=T, fc_dim=F1))

    assert out.shape == (B, T, Dout), out.shape
    assert bool(jnp.all(jnp.isfinite(out)))
    # every step's output is a softmax distribution over Dout (exact divide now)
    assert bool(jnp.allclose(jnp.sum(out, axis=-1), 1.0, atol=1e-3))
    print("KERNEL_OK")
</pallas_src>

<mosaic_0001>
module attributes {stable_mosaic.version = 11 : i64} {
  func.func @kernel(%arg0: memref<16x4xf32, #tpu.memory_space<vmem>>, %arg1: memref<96x64xf32, #tpu.memory_space<vmem>>, %arg2: memref<120x32xf32, #tpu.memory_space<vmem>>, %arg3: memref<40x4xf32, #tpu.memory_space<vmem>>, %arg4: memref<8x2x4xf32, #tpu.memory_space<vmem>>) attributes {dimension_semantics = [], scalar_prefetch = 0 : i64, scratch_operands = 0 : i64, tpu.core_type = #tpu.core_type<tc>} {
    %c0 = arith.constant 0 : index
    %c0_0 = arith.constant 0 : index
    %0 = vector.load %arg1[%c0, %c0_0] : memref<96x64xf32, #tpu.memory_space<vmem>>, vector<4x64xf32>
    %c8 = arith.constant 8 : index
    %c0_1 = arith.constant 0 : index
    %1 = vector.load %arg1[%c8, %c0_1] : memref<96x64xf32, #tpu.memory_space<vmem>>, vector<32x64xf32>
    %c40 = arith.constant 40 : index
    %c0_2 = arith.constant 0 : index
    %2 = vector.load %arg1[%c40, %c0_2] : memref<96x64xf32, #tpu.memory_space<vmem>>, vector<4x64xf32>
    %c48 = arith.constant 48 : index
    %c0_3 = arith.constant 0 : index
    %3 = vector.load %arg1[%c48, %c0_3] : memref<96x64xf32, #tpu.memory_space<vmem>>, vector<32x64xf32>
    %c80 = arith.constant 80 : index
    %c0_4 = arith.constant 0 : index
    %4 = vector.load %arg1[%c80, %c0_4] : memref<96x64xf32, #tpu.memory_space<vmem>>, vector<1x64xf32>
    %c88 = arith.constant 88 : index
    %c0_5 = arith.constant 0 : index
    %5 = vector.load %arg1[%c88, %c0_5] : memref<96x64xf32, #tpu.memory_space<vmem>>, vector<1x64xf32>
    %6 = vector.shape_cast %5 : vector<1x64xf32> to vector<1x64xf32>
    %7 = vector.broadcast %6 : vector<1x64xf32> to vector<2x64xf32>
    %c0_6 = arith.constant 0 : index
    %c0_7 = arith.constant 0 : index
    %8 = vector.load %arg2[%c0_6, %c0_7] : memref<120x32xf32, #tpu.memory_space<vmem>>, vector<4x32xf32>
    %c8_8 = arith.constant 8 : index
    %c0_9 = arith.constant 0 : index
    %9 = vector.load %arg2[%c8_8, %c0_9] : memref<120x32xf32, #tpu.memory_space<vmem>>, vector<32x32xf32>
    %c40_10 = arith.constant 40 : index
    %c0_11 = arith.constant 0 : index
    %10 = vector.load %arg2[%c40_10, %c0_11] : memref<120x32xf32, #tpu.memory_space<vmem>>, vector<4x32xf32>
    %c48_12 = arith.constant 48 : index
    %c0_13 = arith.constant 0 : index
    %11 = vector.load %arg2[%c48_12, %c0_13] : memref<120x32xf32, #tpu.memory_space<vmem>>, vector<32x32xf32>
    %c80_14 = arith.constant 80 : index
    %c0_15 = arith.constant 0 : index
    %12 = vector.load %arg2[%c80_14, %c0_15] : memref<120x32xf32, #tpu.memory_space<vmem>>, vector<32x32xf32>
    %c112 = arith.constant 112 : index
    %c0_16 = arith.constant 0 : index
    %13 = vector.load %arg2[%c112, %c0_16] : memref<120x32xf32, #tpu.memory_space<vmem>>, vector<1x32xf32>
    %c113 = arith.constant 113 : index
    %c0_17 = arith.constant 0 : index
    %14 = vector.load %arg2[%c113, %c0_17] : memref<120x32xf32, #tpu.memory_space<vmem>>, vector<1x32xf32>
    %15 = vector.shape_cast %14 : vector<1x32xf32> to vector<1x32xf32>
    %16 = vector.broadcast %15 : vector<1x32xf32> to vector<2x32xf32>
    %c114 = arith.constant 114 : index
    %c0_18 = arith.constant 0 : index
    %17 = vector.load %arg2[%c114, %c0_18] : memref<120x32xf32, #tpu.memory_space<vmem>>, vector<1x32xf32>
    %18 = vector.shape_cast %17 : vector<1x32xf32> to vector<1x32xf32>
    %19 = vector.broadcast %18 : vector<1x32xf32> to vector<2x32xf32>
    %c115 = arith.constant 115 : index
    %c0_19 = arith.constant 0 : index
    %20 = vector.load %arg2[%c115, %c0_19] : memref<120x32xf32, #tpu.memory_space<vmem>>, vector<1x32xf32>
    %21 = vector.shape_cast %20 : vector<1x32xf32> to vector<1x32xf32>
    %22 = vector.broadcast %21 : vector<1x32xf32> to vector<2x32xf32>
    %c116 = arith.constant 116 : index
    %c0_20 = arith.constant 0 : index
    %23 = vector.load %arg2[%c116, %c0_20] : memref<120x32xf32, #tpu.memory_space<vmem>>, vector<1x32xf32>
    %24 = vector.shape_cast %23 : vector<1x32xf32> to vector<1x32xf32>
    %25 = vector.broadcast %24 : vector<1x32xf32> to vector<2x32xf32>
    %c117 = arith.constant 117 : index
    %c0_21 = arith.constant 0 : index
    %26 = vector.load %arg2[%c117, %c0_21] : memref<120x32xf32, #tpu.memory_space<vmem>>, vector<1x32xf32>
    %27 = vector.shape_cast %26 : vector<1x32xf32> to vector<1x32xf32>
    %28 = vector.broadcast %27 : vector<1x32xf32> to vector<2x32xf32>
    %c118 = arith.constant 118 : index
    %c0_22 = arith.constant 0 : index
    %29 = vector.load %arg2[%c118, %c0_22] : memref<120x32xf32, #tpu.memory_space<vmem>>, vector<1x32xf32>
    %30 = vector.shape_cast %29 : vector<1x32xf32> to vector<1x32xf32>
    %31 = vector.broadcast %30 : vector<1x32xf32> to vector<2x32xf32>
    %c0_23 = arith.constant 0 : index
    %c0_24 = arith.constant 0 : index
    %32 = vector.load %arg3[%c0_23, %c0_24] : memref<40x4xf32, #tpu.memory_space<vmem>>, vector<32x4xf32>
    %c32 = arith.constant 32 : index
    %c0_25 = arith.constant 0 : index
    %33 = vector.load %arg3[%c32, %c0_25] : memref<40x4xf32, #tpu.memory_space<vmem>>, vector<1x4xf32>
    %34 = vector.shape_cast %33 : vector<1x4xf32> to vector<1x4xf32>
    %35 = vector.broadcast %34 : vector<1x4xf32> to vector<2x4xf32>
    %c0_26 = arith.constant 0 : index
    %c0_27 = arith.constant 0 : index
    %36 = vector.load %arg0[%c0_26, %c0_27] : memref<16x4xf32, #tpu.memory_space<vmem>>, vector<16x4xf32>
    %cst = arith.constant dense<0.000000e+00> : vector<16x64xf32>
    %37 = tpu.matmul %36, %0, %cst {dimension_numbers = #tpu.dot_dimension_numbers<[1], [0], [0], [1], [0, 0, 1, 1], [], []>} : vector<16x4xf32>, vector<4x64xf32>, vector<16x64xf32> -> vector<16x64xf32>
    %38 = vector.broadcast %4 : vector<1x64xf32> to vector<16x64xf32>
    %39 = arith.addf %37, %38 : vector<16x64xf32>
    %cst_28 = arith.constant dense<0.000000e+00> : vector<16x32xf32>
    %40 = tpu.matmul %36, %8, %cst_28 {dimension_numbers = #tpu.dot_dimension_numbers<[1], [0], [0], [1], [0, 0, 1, 1], [], []>} : vector<16x4xf32>, vector<4x32xf32>, vector<16x32xf32> -> vector<16x32xf32>
    %41 = vector.broadcast %13 : vector<1x32xf32> to vector<16x32xf32>
    %42 = arith.addf %40, %41 : vector<16x32xf32>
    %43 = vector.extract_strided_slice %39 {offsets = [0, 0], sizes = [2, 64], strides = [1, 1]} : vector<16x64xf32> to vector<2x64xf32>
    %cst_29 = arith.constant 5.000000e-01 : f32
    %44 = vector.broadcast %cst_29 : f32 to vector<2x64xf32>
    %45 = arith.mulf %44, %43 : vector<2x64xf32>
    %46 = math.tanh %45 : vector<2x64xf32>
    %cst_30 = arith.constant 1.000000e+00 : f32
    %47 = vector.broadcast %cst_30 : f32 to vector<2x64xf32>
    %48 = arith.addf %46, %47 : vector<2x64xf32>
    %cst_31 = arith.constant 5.000000e-01 : f32
    %49 = vector.broadcast %cst_31 : f32 to vector<2x64xf32>
    %50 = arith.mulf %49, %48 : vector<2x64xf32>
    %51 = vector.extract_strided_slice %42 {offsets = [0, 0], sizes = [2, 32], strides = [1, 1]} : vector<16x32xf32> to vector<2x32xf32>
    %52 = vector.extract_strided_slice %50 {offsets = [0, 0], sizes = [2, 32], strides = [1, 1]} : vector<2x64xf32> to vector<2x32xf32>
    %53 = arith.mulf %52, %16 : vector<2x32xf32>
    %54 = arith.addf %51, %53 : vector<2x32xf32>
    %55 = math.tanh %54 : vector<2x32xf32>
    %56 = vector.extract_strided_slice %50 {offsets = [0, 32], sizes = [2, 32], strides = [1, 1]} : vector<2x64xf32> to vector<2x32xf32>
    %cst_32 = arith.constant 1.000000e+00 : f32
    %57 = vector.broadcast %cst_32 : f32 to vector<2x32xf32>
    %58 = arith.subf %57, %56 : vector<2x32xf32>
    %59 = arith.mulf %58, %55 : vector<2x32xf32>
    %cst_33 = arith.constant dense<0.000000e+00> : vector<2x64xf32>
    %60 = tpu.matmul %59, %1, %cst_33 {dimension_numbers = #tpu.dot_dimension_numbers<[1], [0], [0], [1], [0, 0, 1, 1], [], []>} : vector<2x32xf32>, vector<32x64xf32>, vector<2x64xf32> -> vector<2x64xf32>
    %cst_34 = arith.constant dense<0.000000e+00> : vector<2x32xf32>
    %61 = tpu.matmul %59, %9, %cst_34 {dimension_numbers = #tpu.dot_dimension_numbers<[1], [0], [0], [1], [0, 0, 1, 1], [], []>} : vector<2x32xf32>, vector<32x32xf32>, vector<2x32xf32> -> vector<2x32xf32>
    %62 = arith.addf %61, %16 : vector<2x32xf32>
    %63 = vector.extract_strided_slice %39 {offsets = [2, 0], sizes = [2, 64], strides = [1, 1]} : vector<16x64xf32> to vector<2x64xf32>
    %64 = vector.extract_strided_slice %42 {offsets = [2, 0], sizes = [2, 32], strides = [1, 1]} : vector<16x32xf32> to vector<2x32xf32>
    %65 = arith.addf %63, %60 : vector<2x64xf32>
    %cst_35 = arith.constant 5.000000e-01 : f32
    %66 = vector.broadcast %cst_35 : f32 to vector<2x64xf32>
    %67 = arith.mulf %66, %65 : vector<2x64xf32>
    %68 = math.tanh %67 : vector<2x64xf32>
    %cst_36 = arith.constant 1.000000e+00 : f32
    %69 = vector.broadcast %cst_36 : f32 to vector<2x64xf32>
    %70 = arith.addf %68, %69 : vector<2x64xf32>
    %cst_37 = arith.constant 5.000000e-01 : f32
    %71 = vector.broadcast %cst_37 : f32 to vector<2x64xf32>
    %72 = arith.mulf %71, %70 : vector<2x64xf32>
    %73 = vector.extract_strided_slice %72 {offsets = [0, 0], sizes = [2, 32], strides = [1, 1]} : vector<2x64xf32> to vector<2x32xf32>
    %74 = vector.extract_strided_slice %72 {offsets = [0, 32], sizes = [2, 32], strides = [1, 1]} : vector<2x64xf32> to vector<2x32xf32>
    %75 = arith.mulf %73, %62 : vector<2x32xf32>
    %76 = arith.addf %64, %75 : vector<2x32xf32>
    %77 = math.tanh %76 : vector<2x32xf32>
    %cst_38 = arith.constant 1.000000e+00 : f32
    %78 = vector.broadcast %cst_38 : f32 to vector<2x32xf32>
    %79 = arith.subf %78, %74 : vector<2x32xf32>
    %80 = arith.mulf %79, %77 : vector<2x32xf32>
    %81 = arith.mulf %74, %59 : vector<2x32xf32>
    %82 = arith.addf %80, %81 : vector<2x32xf32>
    %cst_39 = arith.constant dense<0.000000e+00> : vector<2x64xf32>
    %83 = tpu.matmul %82, %1, %cst_39 {dimension_numbers = #tpu.dot_dimension_numbers<[1], [0], [0], [1], [0, 0, 1, 1], [], []>} : vector<2x32xf32>, vector<32x64xf32>, vector<2x64xf32> -> vector<2x64xf32>
    %cst_40 = arith.constant dense<0.000000e+00> : vector<2x32xf32>
    %84 = tpu.matmul %82, %9, %cst_40 {dimension_numbers = #tpu.dot_dimension_numbers<[1], [0], [0], [1], [0, 0, 1, 1], [], []>} : vector<2x32xf32>, vector<32x32xf32>, vector<2x32xf32> -> vector<2x32xf32>
    %85 = arith.addf %84, %16 : vector<2x32xf32>
    %86 = vector.extract_strided_slice %39 {offsets = [4, 0], sizes = [2, 64], strides = [1, 1]} : vector<16x64xf32> to vector<2x64xf32>
    %87 = vector.extract_strided_slice %42 {offsets = [4, 0], sizes = [2, 32], strides = [1, 1]} : vector<16x32xf32> to vector<2x32xf32>
    %88 = arith.addf %86, %83 : vector<2x64xf32>
    %cst_41 = arith.constant 5.000000e-01 : f32
    %89 = vector.broadcast %cst_41 : f32 to vector<2x64xf32>
    %90 = arith.mulf %89, %88 : vector<2x64xf32>
    %91 = math.tanh %90 : vector<2x64xf32>
    %cst_42 = arith.constant 1.000000e+00 : f32
    %92 = vector.broadcast %cst_42 : f32 to vector<2x64xf32>
    %93 = arith.addf %91, %92 : vector<2x64xf32>
    %cst_43 = arith.constant 5.000000e-01 : f32
    %94 = vector.broadcast %cst_43 : f32 to vector<2x64xf32>
    %95 = arith.mulf %94, %93 : vector<2x64xf32>
    %96 = vector.extract_strided_slice %95 {offsets = [0, 0], sizes = [2, 32], strides = [1, 1]} : vector<2x64xf32> to vector<2x32xf32>
    %97 = vector.extract_strided_slice %95 {offsets = [0, 32], sizes = [2, 32], strides = [1, 1]} : vector<2x64xf32> to vector<2x32xf32>
    %98 = arith.mulf %96, %85 : vector<2x32xf32>
    %99 = arith.addf %87, %98 : vector<2x32xf32>
    %100 = math.tanh %99 : vector<2x32xf32>
    %cst_44 = arith.constant 1.000000e+00 : f32
    %101 = vector.broadcast %cst_44 : f32 to vector<2x32xf32>
    %102 = arith.subf %101, %97 : vector<2x32xf32>
    %103 = arith.mulf %102, %100 : vector<2x32xf32>
    %104 = arith.mulf %97, %82 : vector<2x32xf32>
    %105 = arith.addf %103, %104 : vector<2x32xf32>
    %cst_45 = arith.constant dense<0.000000e+00> : vector<2x64xf32>
    %106 = tpu.matmul %105, %1, %cst_45 {dimension_numbers = #tpu.dot_dimension_numbers<[1], [0], [0], [1], [0, 0, 1, 1], [], []>} : vector<2x32xf32>, vector<32x64xf32>, vector<2x64xf32> -> vector<2x64xf32>
    %cst_46 = arith.constant dense<0.000000e+00> : vector<2x32xf32>
    %107 = tpu.matmul %105, %9, %cst_46 {dimension_numbers = #tpu.dot_dimension_numbers<[1], [0], [0], [1], [0, 0, 1, 1], [], []>} : vector<2x32xf32>, vector<32x32xf32>, vector<2x32xf32> -> vector<2x32xf32>
    %108 = arith.addf %107, %16 : vector<2x32xf32>
    %109 = vector.extract_strided_slice %39 {offsets = [6, 0], sizes = [2, 64], strides = [1, 1]} : vector<16x64xf32> to vector<2x64xf32>
    %110 = vector.extract_strided_slice %42 {offsets = [6, 0], sizes = [2, 32], strides = [1, 1]} : vector<16x32xf32> to vector<2x32xf32>
    %111 = arith.addf %109, %106 : vector<2x64xf32>
    %cst_47 = arith.constant 5.000000e-01 : f32
    %112 = vector.broadcast %cst_47 : f32 to vector<2x64xf32>
    %113 = arith.mulf %112, %111 : vector<2x64xf32>
    %114 = math.tanh %113 : vector<2x64xf32>
    %cst_48 = arith.constant 1.000000e+00 : f32
    %115 = vector.broadcast %cst_48 : f32 to vector<2x64xf32>
    %116 = arith.addf %114, %115 : vector<2x64xf32>
    %cst_49 = arith.constant 5.000000e-01 : f32
    %117 = vector.broadcast %cst_49 : f32 to vector<2x64xf32>
    %118 = arith.mulf %117, %116 : vector<2x64xf32>
    %119 = vector.extract_strided_slice %118 {offsets = [0, 0], sizes = [2, 32], strides = [1, 1]} : vector<2x64xf32> to vector<2x32xf32>
    %120 = vector.extract_strided_slice %118 {offsets = [0, 32], sizes = [2, 32], strides = [1, 1]} : vector<2x64xf32> to vector<2x32xf32>
    %121 = arith.mulf %119, %108 : vector<2x32xf32>
    %122 = arith.addf %110, %121 : vector<2x32xf32>
    %123 = math.tanh %122 : vector<2x32xf32>
    %cst_50 = arith.constant 1.000000e+00 : f32
    %124 = vector.broadcast %cst_50 : f32 to vector<2x32xf32>
    %125 = arith.subf %124, %120 : vector<2x32xf32>
    %126 = arith.mulf %125, %123 : vector<2x32xf32>
    %127 = arith.mulf %120, %105 : vector<2x32xf32>
    %128 = arith.addf %126, %127 : vector<2x32xf32>
    %cst_51 = arith.constant dense<0.000000e+00> : vector<2x64xf32>
    %129 = tpu.matmul %128, %1, %cst_51 {dimension_numbers = #tpu.dot_dimension_numbers<[1], [0], [0], [1], [0, 0, 1, 1], [], []>} : vector<2x32xf32>, vector<32x64xf32>, vector<2x64xf32> -> vector<2x64xf32>
    %cst_52 = arith.constant dense<0.000000e+00> : vector<2x32xf32>
    %130 = tpu.matmul %128, %9, %cst_52 {dimension_numbers = #tpu.dot_dimension_numbers<[1], [0], [0], [1], [0, 0, 1, 1], [], []>} : vector<2x32xf32>, vector<32x32xf32>, vector<2x32xf32> -> vector<2x32xf32>
    %131 = arith.addf %130, %16 : vector<2x32xf32>
    %132 = vector.extract_strided_slice %39 {offsets = [8, 0], sizes = [2, 64], strides = [1, 1]} : vector<16x64xf32> to vector<2x64xf32>
    %133 = vector.extract_strided_slice %42 {offsets = [8, 0], sizes = [2, 32], strides = [1, 1]} : vector<16x32xf32> to vector<2x32xf32>
    %134 = arith.addf %132, %129 : vector<2x64xf32>
    %cst_53 = arith.constant 5.000000e-01 : f32
    %135 = vector.broadcast %cst_53 : f32 to vector<2x64xf32>
    %136 = arith.mulf %135, %134 : vector<2x64xf32>
    %137 = math.tanh %136 : vector<2x64xf32>
    %cst_54 = arith.constant 1.000000e+00 : f32
    %138 = vector.broadcast %cst_54 : f32 to vector<2x64xf32>
    %139 = arith.addf %137, %138 : vector<2x64xf32>
    %cst_55 = arith.constant 5.000000e-01 : f32
    %140 = vector.broadcast %cst_55 : f32 to vector<2x64xf32>
    %141 = arith.mulf %140, %139 : vector<2x64xf32>
    %142 = vector.extract_strided_slice %141 {offsets = [0, 0], sizes = [2, 32], strides = [1, 1]} : vector<2x64xf32> to vector<2x32xf32>
    %143 = vector.extract_strided_slice %141 {offsets = [0, 32], sizes = [2, 32], strides = [1, 1]} : vector<2x64xf32> to vector<2x32xf32>
    %144 = arith.mulf %142, %131 : vector<2x32xf32>
    %145 = arith.addf %133, %144 : vector<2x32xf32>
    %146 = math.tanh %145 : vector<2x32xf32>
    %cst_56 = arith.constant 1.000000e+00 : f32
    %147 = vector.broadcast %cst_56 : f32 to vector<2x32xf32>
    %148 = arith.subf %147, %143 : vector<2x32xf32>
    %149 = arith.mulf %148, %146 : vector<2x32xf32>
    %150 = arith.mulf %143, %128 : vector<2x32xf32>
    %151 = arith.addf %149, %150 : vector<2x32xf32>
    %cst_57 = arith.constant dense<0.000000e+00> : vector<2x64xf32>
    %152 = tpu.matmul %151, %1, %cst_57 {dimension_numbers = #tpu.dot_dimension_numbers<[1], [0], [0], [1], [0, 0, 1, 1], [], []>} : vector<2x32xf32>, vector<32x64xf32>, vector<2x64xf32> -> vector<2x64xf32>
    %cst_58 = arith.constant dense<0.000000e+00> : vector<2x32xf32>
    %153 = tpu.matmul %151, %9, %cst_58 {dimension_numbers = #tpu.dot_dimension_numbers<[1], [0], [0], [1], [0, 0, 1, 1], [], []>} : vector<2x32xf32>, vector<32x32xf32>, vector<2x32xf32> -> vector<2x32xf32>
    %154 = arith.addf %153, %16 : vector<2x32xf32>
    %155 = vector.extract_strided_slice %39 {offsets = [10, 0], sizes = [2, 64], strides = [1, 1]} : vector<16x64xf32> to vector<2x64xf32>
    %156 = vector.extract_strided_slice %42 {offsets = [10, 0], sizes = [2, 32], strides = [1, 1]} : vector<16x32xf32> to vector<2x32xf32>
    %157 = arith.addf %155, %152 : vector<2x64xf32>
    %cst_59 = arith.constant 5.000000e-01 : f32
    %158 = vector.broadcast %cst_59 : f32 to vector<2x64xf32>
    %159 = arith.mulf %158, %157 : vector<2x64xf32>
    %160 = math.tanh %159 : vector<2x64xf32>
    %cst_60 = arith.constant 1.000000e+00 : f32
    %161 = vector.broadcast %cst_60 : f32 to vector<2x64xf32>
    %162 = arith.addf %160, %161 : vector<2x64xf32>
    %cst_61 = arith.constant 5.000000e-01 : f32
    %163 = vector.broadcast %cst_61 : f32 to vector<2x64xf32>
    %164 = arith.mulf %163, %162 : vector<2x64xf32>
    %165 = vector.extract_strided_slice %164 {offsets = [0, 0], sizes = [2, 32], strides = [1, 1]} : vector<2x64xf32> to vector<2x32xf32>
    %166 = vector.extract_strided_slice %164 {offsets = [0, 32], sizes = [2, 32], strides = [1, 1]} : vector<2x64xf32> to vector<2x32xf32>
    %167 = arith.mulf %165, %154 : vector<2x32xf32>
    %168 = arith.addf %156, %167 : vector<2x32xf32>
    %169 = math.tanh %168 : vector<2x32xf32>
    %cst_62 = arith.constant 1.000000e+00 : f32
    %170 = vector.broadcast %cst_62 : f32 to vector<2x32xf32>
    %171 = arith.subf %170, %166 : vector<2x32xf32>
    %172 = arith.mulf %171, %169 : vector<2x32xf32>
    %173 = arith.mulf %166, %151 : vector<2x32xf32>
    %174 = arith.addf %172, %173 : vector<2x32xf32>
    %cst_63 = arith.constant dense<0.000000e+00> : vector<2x64xf32>
    %175 = tpu.matmul %174, %1, %cst_63 {dimension_numbers = #tpu.dot_dimension_numbers<[1], [0], [0], [1], [0, 0, 1, 1], [], []>} : vector<2x32xf32>, vector<32x64xf32>, vector<2x64xf32> -> vector<2x64xf32>
    %cst_64 = arith.constant dense<0.000000e+00> : vector<2x32xf32>
    %176 = tpu.matmul %174, %9, %cst_64 {dimension_numbers = #tpu.dot_dimension_numbers<[1], [0], [0], [1], [0, 0, 1, 1], [], []>} : vector<2x32xf32>, vector<32x32xf32>, vector<2x32xf32> -> vector<2x32xf32>
    %177 = arith.addf %176, %16 : vector<2x32xf32>
    %178 = vector.extract_strided_slice %39 {offsets = [12, 0], sizes = [2, 64], strides = [1, 1]} : vector<16x64xf32> to vector<2x64xf32>
    %179 = vector.extract_strided_slice %42 {offsets = [12, 0], sizes = [2, 32], strides = [1, 1]} : vector<16x32xf32> to vector<2x32xf32>
    %180 = arith.addf %178, %175 : vector<2x64xf32>
    %cst_65 = arith.constant 5.000000e-01 : f32
    %181 = vector.broadcast %cst_65 : f32 to vector<2x64xf32>
    %182 = arith.mulf %181, %180 : vector<2x64xf32>
    %183 = math.tanh %182 : vector<2x64xf32>
    %cst_66 = arith.constant 1.000000e+00 : f32
    %184 = vector.broadcast %cst_66 : f32 to vector<2x64xf32>
    %185 = arith.addf %183, %184 : vector<2x64xf32>
    %cst_67 = arith.constant 5.000000e-01 : f32
    %186 = vector.broadcast %cst_67 : f32 to vector<2x64xf32>
    %187 = arith.mulf %186, %185 : vector<2x64xf32>
    %188 = vector.extract_strided_slice %187 {offsets = [0, 0], sizes = [2, 32], strides = [1, 1]} : vector<2x64xf32> to vector<2x32xf32>
    %189 = vector.extract_strided_slice %187 {offsets = [0, 32], sizes = [2, 32], strides = [1, 1]} : vector<2x64xf32> to vector<2x32xf32>
    %190 = arith.mulf %188, %177 : vector<2x32xf32>
    %191 = arith.addf %179, %190 : vector<2x32xf32>
    %192 = math.tanh %191 : vector<2x32xf32>
    %cst_68 = arith.constant 1.000000e+00 : f32
    %193 = vector.broadcast %cst_68 : f32 to vector<2x32xf32>
    %194 = arith.subf %193, %189 : vector<2x32xf32>
    %195 = arith.mulf %194, %192 : vector<2x32xf32>
    %196 = arith.mulf %189, %174 : vector<2x32xf32>
    %197 = arith.addf %195, %196 : vector<2x32xf32>
    %cst_69 = arith.constant dense<0.000000e+00> : vector<2x64xf32>
    %198 = tpu.matmul %197, %1, %cst_69 {dimension_numbers = #tpu.dot_dimension_numbers<[1], [0], [0], [1], [0, 0, 1, 1], [], []>} : vector<2x32xf32>, vector<32x64xf32>, vector<2x64xf32> -> vector<2x64xf32>
    %cst_70 = arith.constant dense<0.000000e+00> : vector<2x32xf32>
    %199 = tpu.matmul %197, %9, %cst_70 {dimension_numbers = #tpu.dot_dimension_numbers<[1], [0], [0], [1], [0, 0, 1, 1], [], []>} : vector<2x32xf32>, vector<32x32xf32>, vector<2x32xf32> -> vector<2x32xf32>
    %200 = arith.addf %199, %16 : vector<2x32xf32>
    %201 = vector.extract_strided_slice %39 {offsets = [14, 0], sizes = [2, 64], strides = [1, 1]} : vector<16x64xf32> to vector<2x64xf32>
    %202 = vector.extract_strided_slice %42 {offsets = [14, 0], sizes = [2, 32], strides = [1, 1]} : vector<16x32xf32> to vector<2x32xf32>
    %203 = arith.addf %201, %198 : vector<2x64xf32>
    %cst_71 = arith.constant 5.000000e-01 : f32
    %204 = vector.broadcast %cst_71 : f32 to vector<2x64xf32>
    %205 = arith.mulf %204, %203 : vector<2x64xf32>
    %206 = math.tanh %205 : vector<2x64xf32>
    %cst_72 = arith.constant 1.000000e+00 : f32
    %207 = vector.broadcast %cst_72 : f32 to vector<2x64xf32>
    %208 = arith.addf %206, %207 : vector<2x64xf32>
    %cst_73 = arith.constant 5.000000e-01 : f32
    %209 = vector.broadcast %cst_73 : f32 to vector<2x64xf32>
    %210 = arith.mulf %209, %208 : vector<2x64xf32>
    %211 = vector.extract_strided_slice %210 {offsets = [0, 0], sizes = [2, 32], strides = [1, 1]} : vector<2x64xf32> to vector<2x32xf32>
    %212 = vector.extract_strided_slice %210 {offsets = [0, 32], sizes = [2, 32], strides = [1, 1]} : vector<2x64xf32> to vector<2x32xf32>
    %213 = arith.mulf %211, %200 : vector<2x32xf32>
    %214 = arith.addf %202, %213 : vector<2x32xf32>
    %215 = math.tanh %214 : vector<2x32xf32>
    %cst_74 = arith.constant 1.000000e+00 : f32
    %216 = vector.broadcast %cst_74 : f32 to vector<2x32xf32>
    %217 = arith.subf %216, %212 : vector<2x32xf32>
    %218 = arith.mulf %217, %215 : vector<2x32xf32>
    %219 = arith.mulf %212, %197 : vector<2x32xf32>
    %220 = arith.addf %218, %219 : vector<2x32xf32>
    %cst_75 = arith.constant dense<0.000000e+00> : vector<2x64xf32>
    %221 = tpu.matmul %220, %3, %cst_75 {dimension_numbers = #tpu.dot_dimension_numbers<[1], [0], [0], [1], [0, 0, 1, 1], [], []>} : vector<2x32xf32>, vector<32x64xf32>, vector<2x64xf32> -> vector<2x64xf32>
    %cst_76 = arith.constant dense<0.000000e+00> : vector<2x32xf32>
    %222 = tpu.matmul %220, %11, %cst_76 {dimension_numbers = #tpu.dot_dimension_numbers<[1], [0], [0], [1], [0, 0, 1, 1], [], []>} : vector<2x32xf32>, vector<32x32xf32>, vector<2x32xf32> -> vector<2x32xf32>
    %223 = arith.addf %222, %22 : vector<2x32xf32>
    %224 = arith.addf %7, %221 : vector<2x64xf32>
    %cst_77 = arith.constant 5.000000e-01 : f32
    %225 = vector.broadcast %cst_77 : f32 to vector<2x64xf32>
    %226 = arith.mulf %225, %224 : vector<2x64xf32>
    %227 = math.tanh %226 : vector<2x64xf32>
    %cst_78 = arith.constant 1.000000e+00 : f32
    %228 = vector.broadcast %cst_78 : f32 to vector<2x64xf32>
    %229 = arith.addf %227, %228 : vector<2x64xf32>
    %cst_79 = arith.constant 5.000000e-01 : f32
    %230 = vector.broadcast %cst_79 : f32 to vector<2x64xf32>
    %231 = arith.mulf %230, %229 : vector<2x64xf32>
    %232 = vector.extract_strided_slice %231 {offsets = [0, 0], sizes = [2, 32], strides = [1, 1]} : vector<2x64xf32> to vector<2x32xf32>
    %233 = vector.extract_strided_slice %231 {offsets = [0, 32], sizes = [2, 32], strides = [1, 1]} : vector<2x64xf32> to vector<2x32xf32>
    %234 = arith.mulf %232, %223 : vector<2x32xf32>
    %235 = arith.addf %19, %234 : vector<2x32xf32>
    %236 = math.tanh %235 : vector<2x32xf32>
    %cst_80 = arith.constant 1.000000e+00 : f32
    %237 = vector.broadcast %cst_80 : f32 to vector<2x32xf32>
    %238 = arith.subf %237, %233 : vector<2x32xf32>
    %239 = arith.mulf %238, %236 : vector<2x32xf32>
    %240 = arith.mulf %233, %220 : vector<2x32xf32>
    %241 = arith.addf %239, %240 : vector<2x32xf32>
    %cst_81 = arith.constant dense<0.000000e+00> : vector<2x32xf32>
    %242 = tpu.matmul %241, %12, %cst_81 {dimension_numbers = #tpu.dot_dimension_numbers<[1], [0], [0], [1], [0, 0, 1, 1], [], []>} : vector<2x32xf32>, vector<32x32xf32>, vector<2x32xf32> -> vector<2x32xf32>
    %243 = arith.addf %242, %25 : vector<2x32xf32>
    %cst_82 = arith.constant dense<0.000000e+00> : vector<2xf32>
    %244 = vector.multi_reduction <add>, %243, %cst_82 [1] : vector<2x32xf32> to vector<2xf32>
    %245 = vector.shape_cast %244 : vector<2xf32> to vector<2x1xf32>
    %246 = arith.mulf %243, %243 : vector<2x32xf32>
    %cst_83 = arith.constant dense<0.000000e+00> : vector<2xf32>
    %247 = vector.multi_reduction <add>, %246, %cst_83 [1] : vector<2x32xf32> to vector<2xf32>
    %248 = vector.shape_cast %247 : vector<2xf32> to vector<2x1xf32>
    %cst_84 = arith.constant 3.125000e-02 : f32
    %249 = vector.broadcast %cst_84 : f32 to vector<2x1xf32>
    %250 = arith.mulf %245, %249 : vector<2x1xf32>
    %cst_85 = arith.constant 3.125000e-02 : f32
    %251 = vector.broadcast %cst_85 : f32 to vector<2x1xf32>
    %252 = arith.mulf %248, %251 : vector<2x1xf32>
    %253 = arith.mulf %250, %250 : vector<2x1xf32>
    %254 = arith.subf %252, %253 : vector<2x1xf32>
    %255 = vector.broadcast %250 : vector<2x1xf32> to vector<2x32xf32>
    %256 = arith.subf %243, %255 : vector<2x32xf32>
    %cst_86 = arith.constant 9.99999974E-6 : f32
    %257 = vector.broadcast %cst_86 : f32 to vector<2x1xf32>
    %258 = arith.addf %254, %257 : vector<2x1xf32>
    %259 = math.rsqrt %258 : vector<2x1xf32>
    %260 = vector.broadcast %259 : vector<2x1xf32> to vector<2x32xf32>
    %261 = arith.mulf %256, %260 : vector<2x32xf32>
    %262 = arith.mulf %261, %28 : vector<2x32xf32>
    %263 = arith.addf %262, %31 : vector<2x32xf32>
    %cst_87 = arith.constant 5.000000e-01 : f32
    %264 = vector.broadcast %cst_87 : f32 to vector<2x32xf32>
    %265 = arith.mulf %264, %263 : vector<2x32xf32>
    %cst_88 = arith.constant 4.471500e-02 : f32
    %266 = vector.broadcast %cst_88 : f32 to vector<2x32xf32>
    %267 = arith.mulf %266, %263 : vector<2x32xf32>
    %268 = arith.mulf %267, %263 : vector<2x32xf32>
    %269 = arith.mulf %268, %263 : vector<2x32xf32>
    %270 = arith.addf %263, %269 : vector<2x32xf32>
    %cst_89 = arith.constant 0.797884583 : f32
    %271 = vector.broadcast %cst_89 : f32 to vector<2x32xf32>
    %272 = arith.mulf %271, %270 : vector<2x32xf32>
    %273 = math.tanh %272 : vector<2x32xf32>
    %cst_90 = arith.constant 1.000000e+00 : f32
    %274 = vector.broadcast %cst_90 : f32 to vector<2x32xf32>
    %275 = arith.addf %274, %273 : vector<2x32xf32>
    %276 = arith.mulf %265, %275 : vector<2x32xf32>
    %cst_91 = arith.constant dense<0.000000e+00> : vector<2x4xf32>
    %277 = tpu.matmul %276, %32, %cst_91 {dimension_numbers = #tpu.dot_dimension_numbers<[1], [0], [0], [1], [0, 0, 1, 1], [], []>} : vector<2x32xf32>, vector<32x4xf32>, vector<2x4xf32> -> vector<2x4xf32>
    %278 = arith.addf %277, %35 : vector<2x4xf32>
    %cst_92 = arith.constant dense<0xFF800000> : vector<2xf32>
    %279 = vector.multi_reduction <maximumf>, %278, %cst_92 [1] : vector<2x4xf32> to vector<2xf32>
    %280 = vector.shape_cast %279 : vector<2xf32> to vector<2x1xf32>
    %281 = vector.broadcast %280 : vector<2x1xf32> to vector<2x4xf32>
    %282 = arith.subf %278, %281 : vector<2x4xf32>
    %283 = math.exp %282 : vector<2x4xf32>
    %cst_93 = arith.constant dense<0.000000e+00> : vector<2xf32>
    %284 = vector.multi_reduction <add>, %283, %cst_93 [1] : vector<2x4xf32> to vector<2xf32>
    %285 = vector.shape_cast %284 : vector<2xf32> to vector<2x1xf32>
    %cst_94 = arith.constant 1.000000e+00 : f32
    %286 = vector.broadcast %cst_94 : f32 to vector<2x1xf32>
    %287 = arith.divf %286, %285 : vector<2x1xf32>
    %288 = vector.broadcast %287 : vector<2x1xf32> to vector<2x4xf32>
    %289 = arith.mulf %283, %288 : vector<2x4xf32>
    %cst_95 = arith.constant dense<0.000000e+00> : vector<2x64xf32>
    %290 = tpu.matmul %283, %2, %cst_95 {dimension_numbers = #tpu.dot_dimension_numbers<[1], [0], [0], [1], [0, 0, 1, 1], [], []>} : vector<2x4xf32>, vector<4x64xf32>, vector<2x64xf32> -> vector<2x64xf32>
    %cst_96 = arith.constant dense<0.000000e+00> : vector<2x32xf32>
    %291 = tpu.matmul %283, %10, %cst_96 {dimension_numbers = #tpu.dot_dimension_numbers<[1], [0], [0], [1], [0, 0, 1, 1], [], []>} : vector<2x4xf32>, vector<4x32xf32>, vector<2x32xf32> -> vector<2x32xf32>
    %292 = vector.broadcast %287 : vector<2x1xf32> to vector<2x64xf32>
    %293 = arith.mulf %290, %292 : vector<2x64xf32>
    %294 = arith.addf %293, %7 : vector<2x64xf32>
    %295 = vector.broadcast %287 : vector<2x1xf32> to vector<2x32xf32>
    %296 = arith.mulf %291, %295 : vector<2x32xf32>
    %297 = arith.addf %296, %19 : vector<2x32xf32>
    %cst_97 = arith.constant dense<0.000000e+00> : vector<2x64xf32>
    %298 = tpu.matmul %241, %3, %cst_97 {dimension_numbers = #tpu.dot_dimension_numbers<[1], [0], [0], [1], [0, 0, 1, 1], [], []>} : vector<2x32xf32>, vector<32x64xf32>, vector<2x64xf32> -> vector<2x64xf32>
    %cst_98 = arith.constant dense<0.000000e+00> : vector<2x32xf32>
    %299 = tpu.matmul %241, %11, %cst_98 {dimension_numbers = #tpu.dot_dimension_numbers<[1], [0], [0], [1], [0, 0, 1, 1], [], []>} : vector<2x32xf32>, vector<32x32xf32>, vector<2x32xf32> -> vector<2x32xf32>
    %300 = arith.addf %299, %22 : vector<2x32xf32>
    %301 = arith.addf %294, %298 : vector<2x64xf32>
    %cst_99 = arith.constant 5.000000e-01 : f32
    %302 = vector.broadcast %cst_99 : f32 to vector<2x64xf32>
    %303 = arith.mulf %302, %301 : vector<2x64xf32>
    %304 = math.tanh %303 : vector<2x64xf32>
    %cst_100 = arith.constant 1.000000e+00 : f32
    %305 = vector.broadcast %cst_100 : f32 to vector<2x64xf32>
    %306 = arith.addf %304, %305 : vector<2x64xf32>
    %cst_101 = arith.constant 5.000000e-01 : f32
    %307 = vector.broadcast %cst_101 : f32 to vector<2x64xf32>
    %308 = arith.mulf %307, %306 : vector<2x64xf32>
    %309 = vector.extract_strided_slice %308 {offsets = [0, 0], sizes = [2, 32], strides = [1, 1]} : vector<2x64xf32> to vector<2x32xf32>
    %310 = vector.extract_strided_slice %308 {offsets = [0, 32], sizes = [2, 32], strides = [1, 1]} : vector<2x64xf32> to vector<2x32xf32>
    %311 = arith.mulf %309, %300 : vector<2x32xf32>
    %312 = arith.addf %297, %311 : vector<2x32xf32>
    %313 = math.tanh %312 : vector<2x32xf32>
    %cst_102 = arith.constant 1.000000e+00 : f32
    %314 = vector.broadcast %cst_102 : f32 to vector<2x32xf32>
    %315 = arith.subf %314, %310 : vector<2x32xf32>
    %316 = arith.mulf %315, %313 : vector<2x32xf32>
    %317 = arith.mulf %310, %241 : vector<2x32xf32>
    %318 = arith.addf %316, %317 : vector<2x32xf32>
    %cst_103 = arith.constant dense<0.000000e+00> : vector<2x32xf32>
    %319 = tpu.matmul %318, %12, %cst_103 {dimension_numbers = #tpu.dot_dimension_numbers<[1], [0], [0], [1], [0, 0, 1, 1], [], []>} : vector<2x32xf32>, vector<32x32xf32>, vector<2x32xf32> -> vector<2x32xf32>
    %320 = arith.addf %319, %25 : vector<2x32xf32>
    %cst_104 = arith.constant dense<0.000000e+00> : vector<2xf32>
    %321 = vector.multi_reduction <add>, %320, %cst_104 [1] : vector<2x32xf32> to vector<2xf32>
    %322 = vector.shape_cast %321 : vector<2xf32> to vector<2x1xf32>
    %323 = arith.mulf %320, %320 : vector<2x32xf32>
    %cst_105 = arith.constant dense<0.000000e+00> : vector<2xf32>
    %324 = vector.multi_reduction <add>, %323, %cst_105 [1] : vector<2x32xf32> to vector<2xf32>
    %325 = vector.shape_cast %324 : vector<2xf32> to vector<2x1xf32>
    %cst_106 = arith.constant 3.125000e-02 : f32
    %326 = vector.broadcast %cst_106 : f32 to vector<2x1xf32>
    %327 = arith.mulf %322, %326 : vector<2x1xf32>
    %cst_107 = arith.constant 3.125000e-02 : f32
    %328 = vector.broadcast %cst_107 : f32 to vector<2x1xf32>
    %329 = arith.mulf %325, %328 : vector<2x1xf32>
    %330 = arith.mulf %327, %327 : vector<2x1xf32>
    %331 = arith.subf %329, %330 : vector<2x1xf32>
    %332 = vector.broadcast %327 : vector<2x1xf32> to vector<2x32xf32>
    %333 = arith.subf %320, %332 : vector<2x32xf32>
    %cst_108 = arith.constant 9.99999974E-6 : f32
    %334 = vector.broadcast %cst_108 : f32 to vector<2x1xf32>
    %335 = arith.addf %331, %334 : vector<2x1xf32>
    %336 = math.rsqrt %335 : vector<2x1xf32>
    %337 = vector.broadcast %336 : vector<2x1xf32> to vector<2x32xf32>
    %338 = arith.mulf %333, %337 : vector<2x32xf32>
    %339 = arith.mulf %338, %28 : vector<2x32xf32>
    %340 = arith.addf %339, %31 : vector<2x32xf32>
    %cst_109 = arith.constant 5.000000e-01 : f32
    %341 = vector.broadcast %cst_109 : f32 to vector<2x32xf32>
    %342 = arith.mulf %341, %340 : vector<2x32xf32>
    %cst_110 = arith.constant 4.471500e-02 : f32
    %343 = vector.broadcast %cst_110 : f32 to vector<2x32xf32>
    %344 = arith.mulf %343, %340 : vector<2x32xf32>
    %345 = arith.mulf %344, %340 : vector<2x32xf32>
    %346 = arith.mulf %345, %340 : vector<2x32xf32>
    %347 = arith.addf %340, %346 : vector<2x32xf32>
    %cst_111 = arith.constant 0.797884583 : f32
    %348 = vector.broadcast %cst_111 : f32 to vector<2x32xf32>
    %349 = arith.mulf %348, %347 : vector<2x32xf32>
    %350 = math.tanh %349 : vector<2x32xf32>
    %cst_112 = arith.constant 1.000000e+00 : f32
    %351 = vector.broadcast %cst_112 : f32 to vector<2x32xf32>
    %352 = arith.addf %351, %350 : vector<2x32xf32>
    %353 = arith.mulf %342, %352 : vector<2x32xf32>
    %cst_113 = arith.constant dense<0.000000e+00> : vector<2x4xf32>
    %354 = tpu.matmul %353, %32, %cst_113 {dimension_numbers = #tpu.dot_dimension_numbers<[1], [0], [0], [1], [0, 0, 1, 1], [], []>} : vector<2x32xf32>, vector<32x4xf32>, vector<2x4xf32> -> vector<2x4xf32>
    %355 = arith.addf %354, %35 : vector<2x4xf32>
    %cst_114 = arith.constant dense<0xFF800000> : vector<2xf32>
    %356 = vector.multi_reduction <maximumf>, %355, %cst_114 [1] : vector<2x4xf32> to vector<2xf32>
    %357 = vector.shape_cast %356 : vector<2xf32> to vector<2x1xf32>
    %358 = vector.broadcast %357 : vector<2x1xf32> to vector<2x4xf32>
    %359 = arith.subf %355, %358 : vector<2x4xf32>
    %360 = math.exp %359 : vector<2x4xf32>
    %cst_115 = arith.constant dense<0.000000e+00> : vector<2xf32>
    %361 = vector.multi_reduction <add>, %360, %cst_115 [1] : vector<2x4xf32> to vector<2xf32>
    %362 = vector.shape_cast %361 : vector<2xf32> to vector<2x1xf32>
    %cst_116 = arith.constant 1.000000e+00 : f32
    %363 = vector.broadcast %cst_116 : f32 to vector<2x1xf32>
    %364 = arith.divf %363, %362 : vector<2x1xf32>
    %365 = vector.broadcast %364 : vector<2x1xf32> to vector<2x4xf32>
    %366 = arith.mulf %360, %365 : vector<2x4xf32>
    %cst_117 = arith.constant dense<0.000000e+00> : vector<2x64xf32>
    %367 = tpu.matmul %360, %2, %cst_117 {dimension_numbers = #tpu.dot_dimension_numbers<[1], [0], [0], [1], [0, 0, 1, 1], [], []>} : vector<2x4xf32>, vector<4x64xf32>, vector<2x64xf32> -> vector<2x64xf32>
    %cst_118 = arith.constant dense<0.000000e+00> : vector<2x32xf32>
    %368 = tpu.matmul %360, %10, %cst_118 {dimension_numbers = #tpu.dot_dimension_numbers<[1], [0], [0], [1], [0, 0, 1, 1], [], []>} : vector<2x4xf32>, vector<4x32xf32>, vector<2x32xf32> -> vector<2x32xf32>
    %369 = vector.broadcast %364 : vector<2x1xf32> to vector<2x64xf32>
    %370 = arith.mulf %367, %369 : vector<2x64xf32>
    %371 = arith.addf %370, %7 : vector<2x64xf32>
    %372 = vector.broadcast %364 : vector<2x1xf32> to vector<2x32xf32>
    %373 = arith.mulf %368, %372 : vector<2x32xf32>
    %374 = arith.addf %373, %19 : vector<2x32xf32>
    %cst_119 = arith.constant dense<0.000000e+00> : vector<2x64xf32>
    %375 = tpu.matmul %318, %3, %cst_119 {dimension_numbers = #tpu.dot_dimension_numbers<[1], [0], [0], [1], [0, 0, 1, 1], [], []>} : vector<2x32xf32>, vector<32x64xf32>, vector<2x64xf32> -> vector<2x64xf32>
    %cst_120 = arith.constant dense<0.000000e+00> : vector<2x32xf32>
    %376 = tpu.matmul %318, %11, %cst_120 {dimension_numbers = #tpu.dot_dimension_numbers<[1], [0], [0], [1], [0, 0, 1, 1], [], []>} : vector<2x32xf32>, vector<32x32xf32>, vector<2x32xf32> -> vector<2x32xf32>
    %377 = arith.addf %376, %22 : vector<2x32xf32>
    %378 = arith.addf %371, %375 : vector<2x64xf32>
    %cst_121 = arith.constant 5.000000e-01 : f32
    %379 = vector.broadcast %cst_121 : f32 to vector<2x64xf32>
    %380 = arith.mulf %379, %378 : vector<2x64xf32>
    %381 = math.tanh %380 : vector<2x64xf32>
    %cst_122 = arith.constant 1.000000e+00 : f32
    %382 = vector.broadcast %cst_122 : f32 to vector<2x64xf32>
    %383 = arith.addf %381, %382 : vector<2x64xf32>
    %cst_123 = arith.constant 5.000000e-01 : f32
    %384 = vector.broadcast %cst_123 : f32 to vector<2x64xf32>
    %385 = arith.mulf %384, %383 : vector<2x64xf32>
    %386 = vector.extract_strided_slice %385 {offsets = [0, 0], sizes = [2, 32], strides = [1, 1]} : vector<2x64xf32> to vector<2x32xf32>
    %387 = vector.extract_strided_slice %385 {offsets = [0, 32], sizes = [2, 32], strides = [1, 1]} : vector<2x64xf32> to vector<2x32xf32>
    %388 = arith.mulf %386, %377 : vector<2x32xf32>
    %389 = arith.addf %374, %388 : vector<2x32xf32>
    %390 = math.tanh %389 : vector<2x32xf32>
    %cst_124 = arith.constant 1.000000e+00 : f32
    %391 = vector.broadcast %cst_124 : f32 to vector<2x32xf32>
    %392 = arith.subf %391, %387 : vector<2x32xf32>
    %393 = arith.mulf %392, %390 : vector<2x32xf32>
    %394 = arith.mulf %387, %318 : vector<2x32xf32>
    %395 = arith.addf %393, %394 : vector<2x32xf32>
    %cst_125 = arith.constant dense<0.000000e+00> : vector<2x32xf32>
    %396 = tpu.matmul %395, %12, %cst_125 {dimension_numbers = #tpu.dot_dimension_numbers<[1], [0], [0], [1], [0, 0, 1, 1], [], []>} : vector<2x32xf32>, vector<32x32xf32>, vector<2x32xf32> -> vector<2x32xf32>
    %397 = arith.addf %396, %25 : vector<2x32xf32>
    %cst_126 = arith.constant dense<0.000000e+00> : vector<2xf32>
    %398 = vector.multi_reduction <add>, %397, %cst_126 [1] : vector<2x32xf32> to vector<2xf32>
    %399 = vector.shape_cast %398 : vector<2xf32> to vector<2x1xf32>
    %400 = arith.mulf %397, %397 : vector<2x32xf32>
    %cst_127 = arith.constant dense<0.000000e+00> : vector<2xf32>
    %401 = vector.multi_reduction <add>, %400, %cst_127 [1] : vector<2x32xf32> to vector<2xf32>
    %402 = vector.shape_cast %401 : vector<2xf32> to vector<2x1xf32>
    %cst_128 = arith.constant 3.125000e-02 : f32
    %403 = vector.broadcast %cst_128 : f32 to vector<2x1xf32>
    %404 = arith.mulf %399, %403 : vector<2x1xf32>
    %cst_129 = arith.constant 3.125000e-02 : f32
    %405 = vector.broadcast %cst_129 : f32 to vector<2x1xf32>
    %406 = arith.mulf %402, %405 : vector<2x1xf32>
    %407 = arith.mulf %404, %404 : vector<2x1xf32>
    %408 = arith.subf %406, %407 : vector<2x1xf32>
    %409 = vector.broadcast %404 : vector<2x1xf32> to vector<2x32xf32>
    %410 = arith.subf %397, %409 : vector<2x32xf32>
    %cst_130 = arith.constant 9.99999974E-6 : f32
    %411 = vector.broadcast %cst_130 : f32 to vector<2x1xf32>
    %412 = arith.addf %408, %411 : vector<2x1xf32>
    %413 = math.rsqrt %412 : vector<2x1xf32>
    %414 = vector.broadcast %413 : vector<2x1xf32> to vector<2x32xf32>
    %415 = arith.mulf %410, %414 : vector<2x32xf32>
    %416 = arith.mulf %415, %28 : vector<2x32xf32>
    %417 = arith.addf %416, %31 : vector<2x32xf32>
    %cst_131 = arith.constant 5.000000e-01 : f32
    %418 = vector.broadcast %cst_131 : f32 to vector<2x32xf32>
    %419 = arith.mulf %418, %417 : vector<2x32xf32>
    %cst_132 = arith.constant 4.471500e-02 : f32
    %420 = vector.broadcast %cst_132 : f32 to vector<2x32xf32>
    %421 = arith.mulf %420, %417 : vector<2x32xf32>
    %422 = arith.mulf %421, %417 : vector<2x32xf32>
    %423 = arith.mulf %422, %417 : vector<2x32xf32>
    %424 = arith.addf %417, %423 : vector<2x32xf32>
    %cst_133 = arith.constant 0.797884583 : f32
    %425 = vector.broadcast %cst_133 : f32 to vector<2x32xf32>
    %426 = arith.mulf %425, %424 : vector<2x32xf32>
    %427 = math.tanh %426 : vector<2x32xf32>
    %cst_134 = arith.constant 1.000000e+00 : f32
    %428 = vector.broadcast %cst_134 : f32 to vector<2x32xf32>
    %429 = arith.addf %428, %427 : vector<2x32xf32>
    %430 = arith.mulf %419, %429 : vector<2x32xf32>
    %cst_135 = arith.constant dense<0.000000e+00> : vector<2x4xf32>
    %431 = tpu.matmul %430, %32, %cst_135 {dimension_numbers = #tpu.dot_dimension_numbers<[1], [0], [0], [1], [0, 0, 1, 1], [], []>} : vector<2x32xf32>, vector<32x4xf32>, vector<2x4xf32> -> vector<2x4xf32>
    %432 = arith.addf %431, %35 : vector<2x4xf32>
    %cst_136 = arith.constant dense<0xFF800000> : vector<2xf32>
    %433 = vector.multi_reduction <maximumf>, %432, %cst_136 [1] : vector<2x4xf32> to vector<2xf32>
    %434 = vector.shape_cast %433 : vector<2xf32> to vector<2x1xf32>
    %435 = vector.broadcast %434 : vector<2x1xf32> to vector<2x4xf32>
    %436 = arith.subf %432, %435 : vector<2x4xf32>
    %437 = math.exp %436 : vector<2x4xf32>
    %cst_137 = arith.constant dense<0.000000e+00> : vector<2xf32>
    %438 = vector.multi_reduction <add>, %437, %cst_137 [1] : vector<2x4xf32> to vector<2xf32>
    %439 = vector.shape_cast %438 : vector<2xf32> to vector<2x1xf32>
    %cst_138 = arith.constant 1.000000e+00 : f32
    %440 = vector.broadcast %cst_138 : f32 to vector<2x1xf32>
    %441 = arith.divf %440, %439 : vector<2x1xf32>
    %442 = vector.broadcast %441 : vector<2x1xf32> to vector<2x4xf32>
    %443 = arith.mulf %437, %442 : vector<2x4xf32>
    %cst_139 = arith.constant dense<0.000000e+00> : vector<2x64xf32>
    %444 = tpu.matmul %437, %2, %cst_139 {dimension_numbers = #tpu.dot_dimension_numbers<[1], [0], [0], [1], [0, 0, 1, 1], [], []>} : vector<2x4xf32>, vector<4x64xf32>, vector<2x64xf32> -> vector<2x64xf32>
    %cst_140 = arith.constant dense<0.000000e+00> : vector<2x32xf32>
    %445 = tpu.matmul %437, %10, %cst_140 {dimension_numbers = #tpu.dot_dimension_numbers<[1], [0], [0], [1], [0, 0, 1, 1], [], []>} : vector<2x4xf32>, vector<4x32xf32>, vector<2x32xf32> -> vector<2x32xf32>
    %446 = vector.broadcast %441 : vector<2x1xf32> to vector<2x64xf32>
    %447 = arith.mulf %444, %446 : vector<2x64xf32>
    %448 = arith.addf %447, %7 : vector<2x64xf32>
    %449 = vector.broadcast %441 : vector<2x1xf32> to vector<2x32xf32>
    %450 = arith.mulf %445, %449 : vector<2x32xf32>
    %451 = arith.addf %450, %19 : vector<2x32xf32>
    %cst_141 = arith.constant dense<0.000000e+00> : vector<2x64xf32>
    %452 = tpu.matmul %395, %3, %cst_141 {dimension_numbers = #tpu.dot_dimension_numbers<[1], [0], [0], [1], [0, 0, 1, 1], [], []>} : vector<2x32xf32>, vector<32x64xf32>, vector<2x64xf32> -> vector<2x64xf32>
    %cst_142 = arith.constant dense<0.000000e+00> : vector<2x32xf32>
    %453 = tpu.matmul %395, %11, %cst_142 {dimension_numbers = #tpu.dot_dimension_numbers<[1], [0], [0], [1], [0, 0, 1, 1], [], []>} : vector<2x32xf32>, vector<32x32xf32>, vector<2x32xf32> -> vector<2x32xf32>
    %454 = arith.addf %453, %22 : vector<2x32xf32>
    %455 = arith.addf %448, %452 : vector<2x64xf32>
    %cst_143 = arith.constant 5.000000e-01 : f32
    %456 = vector.broadcast %cst_143 : f32 to vector<2x64xf32>
    %457 = arith.mulf %456, %455 : vector<2x64xf32>
    %458 = math.tanh %457 : vector<2x64xf32>
    %cst_144 = arith.constant 1.000000e+00 : f32
    %459 = vector.broadcast %cst_144 : f32 to vector<2x64xf32>
    %460 = arith.addf %458, %459 : vector<2x64xf32>
    %cst_145 = arith.constant 5.000000e-01 : f32
    %461 = vector.broadcast %cst_145 : f32 to vector<2x64xf32>
    %462 = arith.mulf %461, %460 : vector<2x64xf32>
    %463 = vector.extract_strided_slice %462 {offsets = [0, 0], sizes = [2, 32], strides = [1, 1]} : vector<2x64xf32> to vector<2x32xf32>
    %464 = vector.extract_strided_slice %462 {offsets = [0, 32], sizes = [2, 32], strides = [1, 1]} : vector<2x64xf32> to vector<2x32xf32>
    %465 = arith.mulf %463, %454 : vector<2x32xf32>
    %466 = arith.addf %451, %465 : vector<2x32xf32>
    %467 = math.tanh %466 : vector<2x32xf32>
    %cst_146 = arith.constant 1.000000e+00 : f32
    %468 = vector.broadcast %cst_146 : f32 to vector<2x32xf32>
    %469 = arith.subf %468, %464 : vector<2x32xf32>
    %470 = arith.mulf %469, %467 : vector<2x32xf32>
    %471 = arith.mulf %464, %395 : vector<2x32xf32>
    %472 = arith.addf %470, %471 : vector<2x32xf32>
    %cst_147 = arith.constant dense<0.000000e+00> : vector<2x32xf32>
    %473 = tpu.matmul %472, %12, %cst_147 {dimension_numbers = #tpu.dot_dimension_numbers<[1], [0], [0], [1], [0, 0, 1, 1], [], []>} : vector<2x32xf32>, vector<32x32xf32>, vector<2x32xf32> -> vector<2x32xf32>
    %474 = arith.addf %473, %25 : vector<2x32xf32>
    %cst_148 = arith.constant dense<0.000000e+00> : vector<2xf32>
    %475 = vector.multi_reduction <add>, %474, %cst_148 [1] : vector<2x32xf32> to vector<2xf32>
    %476 = vector.shape_cast %475 : vector<2xf32> to vector<2x1xf32>
    %477 = arith.mulf %474, %474 : vector<2x32xf32>
    %cst_149 = arith.constant dense<0.000000e+00> : vector<2xf32>
    %478 = vector.multi_reduction <add>, %477, %cst_149 [1] : vector<2x32xf32> to vector<2xf32>
    %479 = vector.shape_cast %478 : vector<2xf32> to vector<2x1xf32>
    %cst_150 = arith.constant 3.125000e-02 : f32
    %480 = vector.broadcast %cst_150 : f32 to vector<2x1xf32>
    %481 = arith.mulf %476, %480 : vector<2x1xf32>
    %cst_151 = arith.constant 3.125000e-02 : f32
    %482 = vector.broadcast %cst_151 : f32 to vector<2x1xf32>
    %483 = arith.mulf %479, %482 : vector<2x1xf32>
    %484 = arith.mulf %481, %481 : vector<2x1xf32>
    %485 = arith.subf %483, %484 : vector<2x1xf32>
    %486 = vector.broadcast %481 : vector<2x1xf32> to vector<2x32xf32>
    %487 = arith.subf %474, %486 : vector<2x32xf32>
    %cst_152 = arith.constant 9.99999974E-6 : f32
    %488 = vector.broadcast %cst_152 : f32 to vector<2x1xf32>
    %489 = arith.addf %485, %488 : vector<2x1xf32>
    %490 = math.rsqrt %489 : vector<2x1xf32>
    %491 = vector.broadcast %490 : vector<2x1xf32> to vector<2x32xf32>
    %492 = arith.mulf %487, %491 : vector<2x32xf32>
    %493 = arith.mulf %492, %28 : vector<2x32xf32>
    %494 = arith.addf %493, %31 : vector<2x32xf32>
    %cst_153 = arith.constant 5.000000e-01 : f32
    %495 = vector.broadcast %cst_153 : f32 to vector<2x32xf32>
    %496 = arith.mulf %495, %494 : vector<2x32xf32>
    %cst_154 = arith.constant 4.471500e-02 : f32
    %497 = vector.broadcast %cst_154 : f32 to vector<2x32xf32>
    %498 = arith.mulf %497, %494 : vector<2x32xf32>
    %499 = arith.mulf %498, %494 : vector<2x32xf32>
    %500 = arith.mulf %499, %494 : vector<2x32xf32>
    %501 = arith.addf %494, %500 : vector<2x32xf32>
    %cst_155 = arith.constant 0.797884583 : f32
    %502 = vector.broadcast %cst_155 : f32 to vector<2x32xf32>
    %503 = arith.mulf %502, %501 : vector<2x32xf32>
    %504 = math.tanh %503 : vector<2x32xf32>
    %cst_156 = arith.constant 1.000000e+00 : f32
    %505 = vector.broadcast %cst_156 : f32 to vector<2x32xf32>
    %506 = arith.addf %505, %504 : vector<2x32xf32>
    %507 = arith.mulf %496, %506 : vector<2x32xf32>
    %cst_157 = arith.constant dense<0.000000e+00> : vector<2x4xf32>
    %508 = tpu.matmul %507, %32, %cst_157 {dimension_numbers = #tpu.dot_dimension_numbers<[1], [0], [0], [1], [0, 0, 1, 1], [], []>} : vector<2x32xf32>, vector<32x4xf32>, vector<2x4xf32> -> vector<2x4xf32>
    %509 = arith.addf %508, %35 : vector<2x4xf32>
    %cst_158 = arith.constant dense<0xFF800000> : vector<2xf32>
    %510 = vector.multi_reduction <maximumf>, %509, %cst_158 [1] : vector<2x4xf32> to vector<2xf32>
    %511 = vector.shape_cast %510 : vector<2xf32> to vector<2x1xf32>
    %512 = vector.broadcast %511 : vector<2x1xf32> to vector<2x4xf32>
    %513 = arith.subf %509, %512 : vector<2x4xf32>
    %514 = math.exp %513 : vector<2x4xf32>
    %cst_159 = arith.constant dense<0.000000e+00> : vector<2xf32>
    %515 = vector.multi_reduction <add>, %514, %cst_159 [1] : vector<2x4xf32> to vector<2xf32>
    %516 = vector.shape_cast %515 : vector<2xf32> to vector<2x1xf32>
    %cst_160 = arith.constant 1.000000e+00 : f32
    %517 = vector.broadcast %cst_160 : f32 to vector<2x1xf32>
    %518 = arith.divf %517, %516 : vector<2x1xf32>
    %519 = vector.broadcast %518 : vector<2x1xf32> to vector<2x4xf32>
    %520 = arith.mulf %514, %519 : vector<2x4xf32>
    %cst_161 = arith.constant dense<0.000000e+00> : vector<2x64xf32>
    %521 = tpu.matmul %514, %2, %cst_161 {dimension_numbers = #tpu.dot_dimension_numbers<[1], [0], [0], [1], [0, 0, 1, 1], [], []>} : vector<2x4xf32>, vector<4x64xf32>, vector<2x64xf32> -> vector<2x64xf32>
    %cst_162 = arith.constant dense<0.000000e+00> : vector<2x32xf32>
    %522 = tpu.matmul %514, %10, %cst_162 {dimension_numbers = #tpu.dot_dimension_numbers<[1], [0], [0], [1], [0, 0, 1, 1], [], []>} : vector<2x4xf32>, vector<4x32xf32>, vector<2x32xf32> -> vector<2x32xf32>
    %523 = vector.broadcast %518 : vector<2x1xf32> to vector<2x64xf32>
    %524 = arith.mulf %521, %523 : vector<2x64xf32>
    %525 = arith.addf %524, %7 : vector<2x64xf32>
    %526 = vector.broadcast %518 : vector<2x1xf32> to vector<2x32xf32>
    %527 = arith.mulf %522, %526 : vector<2x32xf32>
    %528 = arith.addf %527, %19 : vector<2x32xf32>
    %cst_163 = arith.constant dense<0.000000e+00> : vector<2x64xf32>
    %529 = tpu.matmul %472, %3, %cst_163 {dimension_numbers = #tpu.dot_dimension_numbers<[1], [0], [0], [1], [0, 0, 1, 1], [], []>} : vector<2x32xf32>, vector<32x64xf32>, vector<2x64xf32> -> vector<2x64xf32>
    %cst_164 = arith.constant dense<0.000000e+00> : vector<2x32xf32>
    %530 = tpu.matmul %472, %11, %cst_164 {dimension_numbers = #tpu.dot_dimension_numbers<[1], [0], [0], [1], [0, 0, 1, 1], [], []>} : vector<2x32xf32>, vector<32x32xf32>, vector<2x32xf32> -> vector<2x32xf32>
    %531 = arith.addf %530, %22 : vector<2x32xf32>
    %532 = arith.addf %525, %529 : vector<2x64xf32>
    %cst_165 = arith.constant 5.000000e-01 : f32
    %533 = vector.broadcast %cst_165 : f32 to vector<2x64xf32>
    %534 = arith.mulf %533, %532 : vector<2x64xf32>
    %535 = math.tanh %534 : vector<2x64xf32>
    %cst_166 = arith.constant 1.000000e+00 : f32
    %536 = vector.broadcast %cst_166 : f32 to vector<2x64xf32>
    %537 = arith.addf %535, %536 : vector<2x64xf32>
    %cst_167 = arith.constant 5.000000e-01 : f32
    %538 = vector.broadcast %cst_167 : f32 to vector<2x64xf32>
    %539 = arith.mulf %538, %537 : vector<2x64xf32>
    %540 = vector.extract_strided_slice %539 {offsets = [0, 0], sizes = [2, 32], strides = [1, 1]} : vector<2x64xf32> to vector<2x32xf32>
    %541 = vector.extract_strided_slice %539 {offsets = [0, 32], sizes = [2, 32], strides = [1, 1]} : vector<2x64xf32> to vector<2x32xf32>
    %542 = arith.mulf %540, %531 : vector<2x32xf32>
    %543 = arith.addf %528, %542 : vector<2x32xf32>
    %544 = math.tanh %543 : vector<2x32xf32>
    %cst_168 = arith.constant 1.000000e+00 : f32
    %545 = vector.broadcast %cst_168 : f32 to vector<2x32xf32>
    %546 = arith.subf %545, %541 : vector<2x32xf32>
    %547 = arith.mulf %546, %544 : vector<2x32xf32>
    %548 = arith.mulf %541, %472 : vector<2x32xf32>
    %549 = arith.addf %547, %548 : vector<2x32xf32>
    %cst_169 = arith.constant dense<0.000000e+00> : vector<2x32xf32>
    %550 = tpu.matmul %549, %12, %cst_169 {dimension_numbers = #tpu.dot_dimension_numbers<[1], [0], [0], [1], [0, 0, 1, 1], [], []>} : vector<2x32xf32>, vector<32x32xf32>, vector<2x32xf32> -> vector<2x32xf32>
    %551 = arith.addf %550, %25 : vector<2x32xf32>
    %cst_170 = arith.constant dense<0.000000e+00> : vector<2xf32>
    %552 = vector.multi_reduction <add>, %551, %cst_170 [1] : vector<2x32xf32> to vector<2xf32>
    %553 = vector.shape_cast %552 : vector<2xf32> to vector<2x1xf32>
    %554 = arith.mulf %551, %551 : vector<2x32xf32>
    %cst_171 = arith.constant dense<0.000000e+00> : vector<2xf32>
    %555 = vector.multi_reduction <add>, %554, %cst_171 [1] : vector<2x32xf32> to vector<2xf32>
    %556 = vector.shape_cast %555 : vector<2xf32> to vector<2x1xf32>
    %cst_172 = arith.constant 3.125000e-02 : f32
    %557 = vector.broadcast %cst_172 : f32 to vector<2x1xf32>
    %558 = arith.mulf %553, %557 : vector<2x1xf32>
    %cst_173 = arith.constant 3.125000e-02 : f32
    %559 = vector.broadcast %cst_173 : f32 to vector<2x1xf32>
    %560 = arith.mulf %556, %559 : vector<2x1xf32>
    %561 = arith.mulf %558, %558 : vector<2x1xf32>
    %562 = arith.subf %560, %561 : vector<2x1xf32>
    %563 = vector.broadcast %558 : vector<2x1xf32> to vector<2x32xf32>
    %564 = arith.subf %551, %563 : vector<2x32xf32>
    %cst_174 = arith.constant 9.99999974E-6 : f32
    %565 = vector.broadcast %cst_174 : f32 to vector<2x1xf32>
    %566 = arith.addf %562, %565 : vector<2x1xf32>
    %567 = math.rsqrt %566 : vector<2x1xf32>
    %568 = vector.broadcast %567 : vector<2x1xf32> to vector<2x32xf32>
    %569 = arith.mulf %564, %568 : vector<2x32xf32>
    %570 = arith.mulf %569, %28 : vector<2x32xf32>
    %571 = arith.addf %570, %31 : vector<2x32xf32>
    %cst_175 = arith.constant 5.000000e-01 : f32
    %572 = vector.broadcast %cst_175 : f32 to vector<2x32xf32>
    %573 = arith.mulf %572, %571 : vector<2x32xf32>
    %cst_176 = arith.constant 4.471500e-02 : f32
    %574 = vector.broadcast %cst_176 : f32 to vector<2x32xf32>
    %575 = arith.mulf %574, %571 : vector<2x32xf32>
    %576 = arith.mulf %575, %571 : vector<2x32xf32>
    %577 = arith.mulf %576, %571 : vector<2x32xf32>
    %578 = arith.addf %571, %577 : vector<2x32xf32>
    %cst_177 = arith.constant 0.797884583 : f32
    %579 = vector.broadcast %cst_177 : f32 to vector<2x32xf32>
    %580 = arith.mulf %579, %578 : vector<2x32xf32>
    %581 = math.tanh %580 : vector<2x32xf32>
    %cst_178 = arith.constant 1.000000e+00 : f32
    %582 = vector.broadcast %cst_178 : f32 to vector<2x32xf32>
    %583 = arith.addf %582, %581 : vector<2x32xf32>
    %584 = arith.mulf %573, %583 : vector<2x32xf32>
    %cst_179 = arith.constant dense<0.000000e+00> : vector<2x4xf32>
    %585 = tpu.matmul %584, %32, %cst_179 {dimension_numbers = #tpu.dot_dimension_numbers<[1], [0], [0], [1], [0, 0, 1, 1], [], []>} : vector<2x32xf32>, vector<32x4xf32>, vector<2x4xf32> -> vector<2x4xf32>
    %586 = arith.addf %585, %35 : vector<2x4xf32>
    %cst_180 = arith.constant dense<0xFF800000> : vector<2xf32>
    %587 = vector.multi_reduction <maximumf>, %586, %cst_180 [1] : vector<2x4xf32> to vector<2xf32>
    %588 = vector.shape_cast %587 : vector<2xf32> to vector<2x1xf32>
    %589 = vector.broadcast %588 : vector<2x1xf32> to vector<2x4xf32>
    %590 = arith.subf %586, %589 : vector<2x4xf32>
    %591 = math.exp %590 : vector<2x4xf32>
    %cst_181 = arith.constant dense<0.000000e+00> : vector<2xf32>
    %592 = vector.multi_reduction <add>, %591, %cst_181 [1] : vector<2x4xf32> to vector<2xf32>
    %593 = vector.shape_cast %592 : vector<2xf32> to vector<2x1xf32>
    %cst_182 = arith.constant 1.000000e+00 : f32
    %594 = vector.broadcast %cst_182 : f32 to vector<2x1xf32>
    %595 = arith.divf %594, %593 : vector<2x1xf32>
    %596 = vector.broadcast %595 : vector<2x1xf32> to vector<2x4xf32>
    %597 = arith.mulf %591, %596 : vector<2x4xf32>
    %cst_183 = arith.constant dense<0.000000e+00> : vector<2x64xf32>
    %598 = tpu.matmul %591, %2, %cst_183 {dimension_numbers = #tpu.dot_dimension_numbers<[1], [0], [0], [1], [0, 0, 1, 1], [], []>} : vector<2x4xf32>, vector<4x64xf32>, vector<2x64xf32> -> vector<2x64xf32>
    %cst_184 = arith.constant dense<0.000000e+00> : vector<2x32xf32>
    %599 = tpu.matmul %591, %10, %cst_184 {dimension_numbers = #tpu.dot_dimension_numbers<[1], [0], [0], [1], [0, 0, 1, 1], [], []>} : vector<2x4xf32>, vector<4x32xf32>, vector<2x32xf32> -> vector<2x32xf32>
    %600 = vector.broadcast %595 : vector<2x1xf32> to vector<2x64xf32>
    %601 = arith.mulf %598, %600 : vector<2x64xf32>
    %602 = arith.addf %601, %7 : vector<2x64xf32>
    %603 = vector.broadcast %595 : vector<2x1xf32> to vector<2x32xf32>
    %604 = arith.mulf %599, %603 : vector<2x32xf32>
    %605 = arith.addf %604, %19 : vector<2x32xf32>
    %cst_185 = arith.constant dense<0.000000e+00> : vector<2x64xf32>
    %606 = tpu.matmul %549, %3, %cst_185 {dimension_numbers = #tpu.dot_dimension_numbers<[1], [0], [0], [1], [0, 0, 1, 1], [], []>} : vector<2x32xf32>, vector<32x64xf32>, vector<2x64xf32> -> vector<2x64xf32>
    %cst_186 = arith.constant dense<0.000000e+00> : vector<2x32xf32>
    %607 = tpu.matmul %549, %11, %cst_186 {dimension_numbers = #tpu.dot_dimension_numbers<[1], [0], [0], [1], [0, 0, 1, 1], [], []>} : vector<2x32xf32>, vector<32x32xf32>, vector<2x32xf32> -> vector<2x32xf32>
    %608 = arith.addf %607, %22 : vector<2x32xf32>
    %609 = arith.addf %602, %606 : vector<2x64xf32>
    %cst_187 = arith.constant 5.000000e-01 : f32
    %610 = vector.broadcast %cst_187 : f32 to vector<2x64xf32>
    %611 = arith.mulf %610, %609 : vector<2x64xf32>
    %612 = math.tanh %611 : vector<2x64xf32>
    %cst_188 = arith.constant 1.000000e+00 : f32
    %613 = vector.broadcast %cst_188 : f32 to vector<2x64xf32>
    %614 = arith.addf %612, %613 : vector<2x64xf32>
    %cst_189 = arith.constant 5.000000e-01 : f32
    %615 = vector.broadcast %cst_189 : f32 to vector<2x64xf32>
    %616 = arith.mulf %615, %614 : vector<2x64xf32>
    %617 = vector.extract_strided_slice %616 {offsets = [0, 0], sizes = [2, 32], strides = [1, 1]} : vector<2x64xf32> to vector<2x32xf32>
    %618 = vector.extract_strided_slice %616 {offsets = [0, 32], sizes = [2, 32], strides = [1, 1]} : vector<2x64xf32> to vector<2x32xf32>
    %619 = arith.mulf %617, %608 : vector<2x32xf32>
    %620 = arith.addf %605, %619 : vector<2x32xf32>
    %621 = math.tanh %620 : vector<2x32xf32>
    %cst_190 = arith.constant 1.000000e+00 : f32
    %622 = vector.broadcast %cst_190 : f32 to vector<2x32xf32>
    %623 = arith.subf %622, %618 : vector<2x32xf32>
    %624 = arith.mulf %623, %621 : vector<2x32xf32>
    %625 = arith.mulf %618, %549 : vector<2x32xf32>
    %626 = arith.addf %624, %625 : vector<2x32xf32>
    %cst_191 = arith.constant dense<0.000000e+00> : vector<2x32xf32>
    %627 = tpu.matmul %626, %12, %cst_191 {dimension_numbers = #tpu.dot_dimension_numbers<[1], [0], [0], [1], [0, 0, 1, 1], [], []>} : vector<2x32xf32>, vector<32x32xf32>, vector<2x32xf32> -> vector<2x32xf32>
    %628 = arith.addf %627, %25 : vector<2x32xf32>
    %cst_192 = arith.constant dense<0.000000e+00> : vector<2xf32>
    %629 = vector.multi_reduction <add>, %628, %cst_192 [1] : vector<2x32xf32> to vector<2xf32>
    %630 = vector.shape_cast %629 : vector<2xf32> to vector<2x1xf32>
    %631 = arith.mulf %628, %628 : vector<2x32xf32>
    %cst_193 = arith.constant dense<0.000000e+00> : vector<2xf32>
    %632 = vector.multi_reduction <add>, %631, %cst_193 [1] : vector<2x32xf32> to vector<2xf32>
    %633 = vector.shape_cast %632 : vector<2xf32> to vector<2x1xf32>
    %cst_194 = arith.constant 3.125000e-02 : f32
    %634 = vector.broadcast %cst_194 : f32 to vector<2x1xf32>
    %635 = arith.mulf %630, %634 : vector<2x1xf32>
    %cst_195 = arith.constant 3.125000e-02 : f32
    %636 = vector.broadcast %cst_195 : f32 to vector<2x1xf32>
    %637 = arith.mulf %633, %636 : vector<2x1xf32>
    %638 = arith.mulf %635, %635 : vector<2x1xf32>
    %639 = arith.subf %637, %638 : vector<2x1xf32>
    %640 = vector.broadcast %635 : vector<2x1xf32> to vector<2x32xf32>
    %641 = arith.subf %628, %640 : vector<2x32xf32>
    %cst_196 = arith.constant 9.99999974E-6 : f32
    %642 = vector.broadcast %cst_196 : f32 to vector<2x1xf32>
    %643 = arith.addf %639, %642 : vector<2x1xf32>
    %644 = math.rsqrt %643 : vector<2x1xf32>
    %645 = vector.broadcast %644 : vector<2x1xf32> to vector<2x32xf32>
    %646 = arith.mulf %641, %645 : vector<2x32xf32>
    %647 = arith.mulf %646, %28 : vector<2x32xf32>
    %648 = arith.addf %647, %31 : vector<2x32xf32>
    %cst_197 = arith.constant 5.000000e-01 : f32
    %649 = vector.broadcast %cst_197 : f32 to vector<2x32xf32>
    %650 = arith.mulf %649, %648 : vector<2x32xf32>
    %cst_198 = arith.constant 4.471500e-02 : f32
    %651 = vector.broadcast %cst_198 : f32 to vector<2x32xf32>
    %652 = arith.mulf %651, %648 : vector<2x32xf32>
    %653 = arith.mulf %652, %648 : vector<2x32xf32>
    %654 = arith.mulf %653, %648 : vector<2x32xf32>
    %655 = arith.addf %648, %654 : vector<2x32xf32>
    %cst_199 = arith.constant 0.797884583 : f32
    %656 = vector.broadcast %cst_199 : f32 to vector<2x32xf32>
    %657 = arith.mulf %656, %655 : vector<2x32xf32>
    %658 = math.tanh %657 : vector<2x32xf32>
    %cst_200 = arith.constant 1.000000e+00 : f32
    %659 = vector.broadcast %cst_200 : f32 to vector<2x32xf32>
    %660 = arith.addf %659, %658 : vector<2x32xf32>
    %661 = arith.mulf %650, %660 : vector<2x32xf32>
    %cst_201 = arith.constant dense<0.000000e+00> : vector<2x4xf32>
    %662 = tpu.matmul %661, %32, %cst_201 {dimension_numbers = #tpu.dot_dimension_numbers<[1], [0], [0], [1], [0, 0, 1, 1], [], []>} : vector<2x32xf32>, vector<32x4xf32>, vector<2x4xf32> -> vector<2x4xf32>
    %663 = arith.addf %662, %35 : vector<2x4xf32>
    %cst_202 = arith.constant dense<0xFF800000> : vector<2xf32>
    %664 = vector.multi_reduction <maximumf>, %663, %cst_202 [1] : vector<2x4xf32> to vector<2xf32>
    %665 = vector.shape_cast %664 : vector<2xf32> to vector<2x1xf32>
    %666 = vector.broadcast %665 : vector<2x1xf32> to vector<2x4xf32>
    %667 = arith.subf %663, %666 : vector<2x4xf32>
    %668 = math.exp %667 : vector<2x4xf32>
    %cst_203 = arith.constant dense<0.000000e+00> : vector<2xf32>
    %669 = vector.multi_reduction <add>, %668, %cst_203 [1] : vector<2x4xf32> to vector<2xf32>
    %670 = vector.shape_cast %669 : vector<2xf32> to vector<2x1xf32>
    %cst_204 = arith.constant 1.000000e+00 : f32
    %671 = vector.broadcast %cst_204 : f32 to vector<2x1xf32>
    %672 = arith.divf %671, %670 : vector<2x1xf32>
    %673 = vector.broadcast %672 : vector<2x1xf32> to vector<2x4xf32>
    %674 = arith.mulf %668, %673 : vector<2x4xf32>
    %cst_205 = arith.constant dense<0.000000e+00> : vector<2x64xf32>
    %675 = tpu.matmul %668, %2, %cst_205 {dimension_numbers = #tpu.dot_dimension_numbers<[1], [0], [0], [1], [0, 0, 1, 1], [], []>} : vector<2x4xf32>, vector<4x64xf32>, vector<2x64xf32> -> vector<2x64xf32>
    %cst_206 = arith.constant dense<0.000000e+00> : vector<2x32xf32>
    %676 = tpu.matmul %668, %10, %cst_206 {dimension_numbers = #tpu.dot_dimension_numbers<[1], [0], [0], [1], [0, 0, 1, 1], [], []>} : vector<2x4xf32>, vector<4x32xf32>, vector<2x32xf32> -> vector<2x32xf32>
    %677 = vector.broadcast %672 : vector<2x1xf32> to vector<2x64xf32>
    %678 = arith.mulf %675, %677 : vector<2x64xf32>
    %679 = arith.addf %678, %7 : vector<2x64xf32>
    %680 = vector.broadcast %672 : vector<2x1xf32> to vector<2x32xf32>
    %681 = arith.mulf %676, %680 : vector<2x32xf32>
    %682 = arith.addf %681, %19 : vector<2x32xf32>
    %cst_207 = arith.constant dense<0.000000e+00> : vector<2x64xf32>
    %683 = tpu.matmul %626, %3, %cst_207 {dimension_numbers = #tpu.dot_dimension_numbers<[1], [0], [0], [1], [0, 0, 1, 1], [], []>} : vector<2x32xf32>, vector<32x64xf32>, vector<2x64xf32> -> vector<2x64xf32>
    %cst_208 = arith.constant dense<0.000000e+00> : vector<2x32xf32>
    %684 = tpu.matmul %626, %11, %cst_208 {dimension_numbers = #tpu.dot_dimension_numbers<[1], [0], [0], [1], [0, 0, 1, 1], [], []>} : vector<2x32xf32>, vector<32x32xf32>, vector<2x32xf32> -> vector<2x32xf32>
    %685 = arith.addf %684, %22 : vector<2x32xf32>
    %686 = arith.addf %679, %683 : vector<2x64xf32>
    %cst_209 = arith.constant 5.000000e-01 : f32
    %687 = vector.broadcast %cst_209 : f32 to vector<2x64xf32>
    %688 = arith.mulf %687, %686 : vector<2x64xf32>
    %689 = math.tanh %688 : vector<2x64xf32>
    %cst_210 = arith.constant 1.000000e+00 : f32
    %690 = vector.broadcast %cst_210 : f32 to vector<2x64xf32>
    %691 = arith.addf %689, %690 : vector<2x64xf32>
    %cst_211 = arith.constant 5.000000e-01 : f32
    %692 = vector.broadcast %cst_211 : f32 to vector<2x64xf32>
    %693 = arith.mulf %692, %691 : vector<2x64xf32>
    %694 = vector.extract_strided_slice %693 {offsets = [0, 0], sizes = [2, 32], strides = [1, 1]} : vector<2x64xf32> to vector<2x32xf32>
    %695 = vector.extract_strided_slice %693 {offsets = [0, 32], sizes = [2, 32], strides = [1, 1]} : vector<2x64xf32> to vector<2x32xf32>
    %696 = arith.mulf %694, %685 : vector<2x32xf32>
    %697 = arith.addf %682, %696 : vector<2x32xf32>
    %698 = math.tanh %697 : vector<2x32xf32>
    %cst_212 = arith.constant 1.000000e+00 : f32
    %699 = vector.broadcast %cst_212 : f32 to vector<2x32xf32>
    %700 = arith.subf %699, %695 : vector<2x32xf32>
    %701 = arith.mulf %700, %698 : vector<2x32xf32>
    %702 = arith.mulf %695, %626 : vector<2x32xf32>
    %703 = arith.addf %701, %702 : vector<2x32xf32>
    %cst_213 = arith.constant dense<0.000000e+00> : vector<2x32xf32>
    %704 = tpu.matmul %703, %12, %cst_213 {dimension_numbers = #tpu.dot_dimension_numbers<[1], [0], [0], [1], [0, 0, 1, 1], [], []>} : vector<2x32xf32>, vector<32x32xf32>, vector<2x32xf32> -> vector<2x32xf32>
    %705 = arith.addf %704, %25 : vector<2x32xf32>
    %cst_214 = arith.constant dense<0.000000e+00> : vector<2xf32>
    %706 = vector.multi_reduction <add>, %705, %cst_214 [1] : vector<2x32xf32> to vector<2xf32>
    %707 = vector.shape_cast %706 : vector<2xf32> to vector<2x1xf32>
    %708 = arith.mulf %705, %705 : vector<2x32xf32>
    %cst_215 = arith.constant dense<0.000000e+00> : vector<2xf32>
    %709 = vector.multi_reduction <add>, %708, %cst_215 [1] : vector<2x32xf32> to vector<2xf32>
    %710 = vector.shape_cast %709 : vector<2xf32> to vector<2x1xf32>
    %cst_216 = arith.constant 3.125000e-02 : f32
    %711 = vector.broadcast %cst_216 : f32 to vector<2x1xf32>
    %712 = arith.mulf %707, %711 : vector<2x1xf32>
    %cst_217 = arith.constant 3.125000e-02 : f32
    %713 = vector.broadcast %cst_217 : f32 to vector<2x1xf32>
    %714 = arith.mulf %710, %713 : vector<2x1xf32>
    %715 = arith.mulf %712, %712 : vector<2x1xf32>
    %716 = arith.subf %714, %715 : vector<2x1xf32>
    %717 = vector.broadcast %712 : vector<2x1xf32> to vector<2x32xf32>
    %718 = arith.subf %705, %717 : vector<2x32xf32>
    %cst_218 = arith.constant 9.99999974E-6 : f32
    %719 = vector.broadcast %cst_218 : f32 to vector<2x1xf32>
    %720 = arith.addf %716, %719 : vector<2x1xf32>
    %721 = math.rsqrt %720 : vector<2x1xf32>
    %722 = vector.broadcast %721 : vector<2x1xf32> to vector<2x32xf32>
    %723 = arith.mulf %718, %722 : vector<2x32xf32>
    %724 = arith.mulf %723, %28 : vector<2x32xf32>
    %725 = arith.addf %724, %31 : vector<2x32xf32>
    %cst_219 = arith.constant 5.000000e-01 : f32
    %726 = vector.broadcast %cst_219 : f32 to vector<2x32xf32>
    %727 = arith.mulf %726, %725 : vector<2x32xf32>
    %cst_220 = arith.constant 4.471500e-02 : f32
    %728 = vector.broadcast %cst_220 : f32 to vector<2x32xf32>
    %729 = arith.mulf %728, %725 : vector<2x32xf32>
    %730 = arith.mulf %729, %725 : vector<2x32xf32>
    %731 = arith.mulf %730, %725 : vector<2x32xf32>
    %732 = arith.addf %725, %731 : vector<2x32xf32>
    %cst_221 = arith.constant 0.797884583 : f32
    %733 = vector.broadcast %cst_221 : f32 to vector<2x32xf32>
    %734 = arith.mulf %733, %732 : vector<2x32xf32>
    %735 = math.tanh %734 : vector<2x32xf32>
    %cst_222 = arith.constant 1.000000e+00 : f32
    %736 = vector.broadcast %cst_222 : f32 to vector<2x32xf32>
    %737 = arith.addf %736, %735 : vector<2x32xf32>
    %738 = arith.mulf %727, %737 : vector<2x32xf32>
    %cst_223 = arith.constant dense<0.000000e+00> : vector<2x4xf32>
    %739 = tpu.matmul %738, %32, %cst_223 {dimension_numbers = #tpu.dot_dimension_numbers<[1], [0], [0], [1], [0, 0, 1, 1], [], []>} : vector<2x32xf32>, vector<32x4xf32>, vector<2x4xf32> -> vector<2x4xf32>
    %740 = arith.addf %739, %35 : vector<2x4xf32>
    %cst_224 = arith.constant dense<0xFF800000> : vector<2xf32>
    %741 = vector.multi_reduction <maximumf>, %740, %cst_224 [1] : vector<2x4xf32> to vector<2xf32>
    %742 = vector.shape_cast %741 : vector<2xf32> to vector<2x1xf32>
    %743 = vector.broadcast %742 : vector<2x1xf32> to vector<2x4xf32>
    %744 = arith.subf %740, %743 : vector<2x4xf32>
    %745 = math.exp %744 : vector<2x4xf32>
    %cst_225 = arith.constant dense<0.000000e+00> : vector<2xf32>
    %746 = vector.multi_reduction <add>, %745, %cst_225 [1] : vector<2x4xf32> to vector<2xf32>
    %747 = vector.shape_cast %746 : vector<2xf32> to vector<2x1xf32>
    %cst_226 = arith.constant 1.000000e+00 : f32
    %748 = vector.broadcast %cst_226 : f32 to vector<2x1xf32>
    %749 = arith.divf %748, %747 : vector<2x1xf32>
    %750 = vector.broadcast %749 : vector<2x1xf32> to vector<2x4xf32>
    %751 = arith.mulf %745, %750 : vector<2x4xf32>
    %cst_227 = arith.constant dense<0.000000e+00> : vector<2x64xf32>
    %752 = tpu.matmul %745, %2, %cst_227 {dimension_numbers = #tpu.dot_dimension_numbers<[1], [0], [0], [1], [0, 0, 1, 1], [], []>} : vector<2x4xf32>, vector<4x64xf32>, vector<2x64xf32> -> vector<2x64xf32>
    %cst_228 = arith.constant dense<0.000000e+00> : vector<2x32xf32>
    %753 = tpu.matmul %745, %10, %cst_228 {dimension_numbers = #tpu.dot_dimension_numbers<[1], [0], [0], [1], [0, 0, 1, 1], [], []>} : vector<2x4xf32>, vector<4x32xf32>, vector<2x32xf32> -> vector<2x32xf32>
    %754 = vector.broadcast %749 : vector<2x1xf32> to vector<2x64xf32>
    %755 = arith.mulf %752, %754 : vector<2x64xf32>
    %756 = arith.addf %755, %7 : vector<2x64xf32>
    %757 = vector.broadcast %749 : vector<2x1xf32> to vector<2x32xf32>
    %758 = arith.mulf %753, %757 : vector<2x32xf32>
    %759 = arith.addf %758, %19 : vector<2x32xf32>
    %cst_229 = arith.constant dense<0.000000e+00> : vector<2x64xf32>
    %760 = tpu.matmul %703, %3, %cst_229 {dimension_numbers = #tpu.dot_dimension_numbers<[1], [0], [0], [1], [0, 0, 1, 1], [], []>} : vector<2x32xf32>, vector<32x64xf32>, vector<2x64xf32> -> vector<2x64xf32>
    %cst_230 = arith.constant dense<0.000000e+00> : vector<2x32xf32>
    %761 = tpu.matmul %703, %11, %cst_230 {dimension_numbers = #tpu.dot_dimension_numbers<[1], [0], [0], [1], [0, 0, 1, 1], [], []>} : vector<2x32xf32>, vector<32x32xf32>, vector<2x32xf32> -> vector<2x32xf32>
    %762 = arith.addf %761, %22 : vector<2x32xf32>
    %763 = arith.addf %756, %760 : vector<2x64xf32>
    %cst_231 = arith.constant 5.000000e-01 : f32
    %764 = vector.broadcast %cst_231 : f32 to vector<2x64xf32>
    %765 = arith.mulf %764, %763 : vector<2x64xf32>
    %766 = math.tanh %765 : vector<2x64xf32>
    %cst_232 = arith.constant 1.000000e+00 : f32
    %767 = vector.broadcast %cst_232 : f32 to vector<2x64xf32>
    %768 = arith.addf %766, %767 : vector<2x64xf32>
    %cst_233 = arith.constant 5.000000e-01 : f32
    %769 = vector.broadcast %cst_233 : f32 to vector<2x64xf32>
    %770 = arith.mulf %769, %768 : vector<2x64xf32>
    %771 = vector.extract_strided_slice %770 {offsets = [0, 0], sizes = [2, 32], strides = [1, 1]} : vector<2x64xf32> to vector<2x32xf32>
    %772 = vector.extract_strided_slice %770 {offsets = [0, 32], sizes = [2, 32], strides = [1, 1]} : vector<2x64xf32> to vector<2x32xf32>
    %773 = arith.mulf %771, %762 : vector<2x32xf32>
    %774 = arith.addf %759, %773 : vector<2x32xf32>
    %775 = math.tanh %774 : vector<2x32xf32>
    %cst_234 = arith.constant 1.000000e+00 : f32
    %776 = vector.broadcast %cst_234 : f32 to vector<2x32xf32>
    %777 = arith.subf %776, %772 : vector<2x32xf32>
    %778 = arith.mulf %777, %775 : vector<2x32xf32>
    %779 = arith.mulf %772, %703 : vector<2x32xf32>
    %780 = arith.addf %778, %779 : vector<2x32xf32>
    %cst_235 = arith.constant dense<0.000000e+00> : vector<2x32xf32>
    %781 = tpu.matmul %780, %12, %cst_235 {dimension_numbers = #tpu.dot_dimension_numbers<[1], [0], [0], [1], [0, 0, 1, 1], [], []>} : vector<2x32xf32>, vector<32x32xf32>, vector<2x32xf32> -> vector<2x32xf32>
    %782 = arith.addf %781, %25 : vector<2x32xf32>
    %cst_236 = arith.constant dense<0.000000e+00> : vector<2xf32>
    %783 = vector.multi_reduction <add>, %782, %cst_236 [1] : vector<2x32xf32> to vector<2xf32>
    %784 = vector.shape_cast %783 : vector<2xf32> to vector<2x1xf32>
    %785 = arith.mulf %782, %782 : vector<2x32xf32>
    %cst_237 = arith.constant dense<0.000000e+00> : vector<2xf32>
    %786 = vector.multi_reduction <add>, %785, %cst_237 [1] : vector<2x32xf32> to vector<2xf32>
    %787 = vector.shape_cast %786 : vector<2xf32> to vector<2x1xf32>
    %cst_238 = arith.constant 3.125000e-02 : f32
    %788 = vector.broadcast %cst_238 : f32 to vector<2x1xf32>
    %789 = arith.mulf %784, %788 : vector<2x1xf32>
    %cst_239 = arith.constant 3.125000e-02 : f32
    %790 = vector.broadcast %cst_239 : f32 to vector<2x1xf32>
    %791 = arith.mulf %787, %790 : vector<2x1xf32>
    %792 = arith.mulf %789, %789 : vector<2x1xf32>
    %793 = arith.subf %791, %792 : vector<2x1xf32>
    %794 = vector.broadcast %789 : vector<2x1xf32> to vector<2x32xf32>
    %795 = arith.subf %782, %794 : vector<2x32xf32>
    %cst_240 = arith.constant 9.99999974E-6 : f32
    %796 = vector.broadcast %cst_240 : f32 to vector<2x1xf32>
    %797 = arith.addf %793, %796 : vector<2x1xf32>
    %798 = math.rsqrt %797 : vector<2x1xf32>
    %799 = vector.broadcast %798 : vector<2x1xf32> to vector<2x32xf32>
    %800 = arith.mulf %795, %799 : vector<2x32xf32>
    %801 = arith.mulf %800, %28 : vector<2x32xf32>
    %802 = arith.addf %801, %31 : vector<2x32xf32>
    %cst_241 = arith.constant 5.000000e-01 : f32
    %803 = vector.broadcast %cst_241 : f32 to vector<2x32xf32>
    %804 = arith.mulf %803, %802 : vector<2x32xf32>
    %cst_242 = arith.constant 4.471500e-02 : f32
    %805 = vector.broadcast %cst_242 : f32 to vector<2x32xf32>
    %806 = arith.mulf %805, %802 : vector<2x32xf32>
    %807 = arith.mulf %806, %802 : vector<2x32xf32>
    %808 = arith.mulf %807, %802 : vector<2x32xf32>
    %809 = arith.addf %802, %808 : vector<2x32xf32>
    %cst_243 = arith.constant 0.797884583 : f32
    %810 = vector.broadcast %cst_243 : f32 to vector<2x32xf32>
    %811 = arith.mulf %810, %809 : vector<2x32xf32>
    %812 = math.tanh %811 : vector<2x32xf32>
    %cst_244 = arith.constant 1.000000e+00 : f32
    %813 = vector.broadcast %cst_244 : f32 to vector<2x32xf32>
    %814 = arith.addf %813, %812 : vector<2x32xf32>
    %815 = arith.mulf %804, %814 : vector<2x32xf32>
    %cst_245 = arith.constant dense<0.000000e+00> : vector<2x4xf32>
    %816 = tpu.matmul %815, %32, %cst_245 {dimension_numbers = #tpu.dot_dimension_numbers<[1], [0], [0], [1], [0, 0, 1, 1], [], []>} : vector<2x32xf32>, vector<32x4xf32>, vector<2x4xf32> -> vector<2x4xf32>
    %817 = arith.addf %816, %35 : vector<2x4xf32>
    %cst_246 = arith.constant dense<0xFF800000> : vector<2xf32>
    %818 = vector.multi_reduction <maximumf>, %817, %cst_246 [1] : vector<2x4xf32> to vector<2xf32>
    %819 = vector.shape_cast %818 : vector<2xf32> to vector<2x1xf32>
    %820 = vector.broadcast %819 : vector<2x1xf32> to vector<2x4xf32>
    %821 = arith.subf %817, %820 : vector<2x4xf32>
    %822 = math.exp %821 : vector<2x4xf32>
    %cst_247 = arith.constant dense<0.000000e+00> : vector<2xf32>
    %823 = vector.multi_reduction <add>, %822, %cst_247 [1] : vector<2x4xf32> to vector<2xf32>
    %824 = vector.shape_cast %823 : vector<2xf32> to vector<2x1xf32>
    %cst_248 = arith.constant 1.000000e+00 : f32
    %825 = vector.broadcast %cst_248 : f32 to vector<2x1xf32>
    %826 = arith.divf %825, %824 : vector<2x1xf32>
    %827 = vector.broadcast %826 : vector<2x1xf32> to vector<2x4xf32>
    %828 = arith.mulf %822, %827 : vector<2x4xf32>
    %829 = vector.shape_cast %289 : vector<2x4xf32> to vector<1x2x4xf32>
    %830 = vector.shape_cast %366 : vector<2x4xf32> to vector<1x2x4xf32>
    %831 = vector.shape_cast %443 : vector<2x4xf32> to vector<1x2x4xf32>
    %832 = vector.shape_cast %520 : vector<2x4xf32> to vector<1x2x4xf32>
    %833 = vector.shape_cast %597 : vector<2x4xf32> to vector<1x2x4xf32>
    %834 = vector.shape_cast %674 : vector<2x4xf32> to vector<1x2x4xf32>
    %835 = vector.shape_cast %751 : vector<2x4xf32> to vector<1x2x4xf32>
    %836 = vector.shape_cast %828 : vector<2x4xf32> to vector<1x2x4xf32>
    %837 = tpu.concatenate %829, %830, %831, %832, %833, %834, %835, %836 in 0 : vector<1x2x4xf32>, vector<1x2x4xf32>, vector<1x2x4xf32>, vector<1x2x4xf32>, vector<1x2x4xf32>, vector<1x2x4xf32>, vector<1x2x4xf32>, vector<1x2x4xf32> -> vector<8x2x4xf32>
    %c0_249 = arith.constant 0 : index
    %c0_250 = arith.constant 0 : index
    %c0_251 = arith.constant 0 : index
    %838 = vector.load %arg4[%c0_249, %c0_250, %c0_251] : memref<8x2x4xf32, #tpu.memory_space<vmem>>, vector<8x2x4xf32>
    tpu.vector_store %arg4[%c0_249, %c0_250, %c0_251], %837 {strides = array<i32>} : memref<8x2x4xf32, #tpu.memory_space<vmem>>, vector<8x2x4xf32>,
    return
  }
}

</mosaic_0001>

<llo_original>
// kernel: covsf_forward.1
$region0: #{covsf_forward.1}
  #allocation0 [shape = 'u32[]', space=smem, size = 0x4, offset = 0x4, fixed_abs, tag = 'smem constant byte address 0x4 - core index']
  #allocation1 [shape = 'u32[144,128]{1,0:T(1,128)}', space=vmem, size = 0x12000, scoped, tag = 'internal scratch']
  %s0 = inlined_call_operand.vmem [shape: f32[16,4], index: 0, kind: input, shape index: {}]
  %s1 = inlined_call_operand.vmem [shape: f32[96,64], index: 1, kind: input, shape index: {}]
  %s2 = inlined_call_operand.vmem [shape: f32[120,32], index: 2, kind: input, shape index: {}]
  %s3 = inlined_call_operand.vmem [shape: f32[40,4], index: 3, kind: input, shape index: {}]
  %s4 = inlined_call_operand.vmem [shape: f32[8,2,4], index: 4, kind: output, shape index: {}]
  %s5 = sld [smem:[#allocation0]]
  $region26: #{covsf_forward.1} parent=0
    _
  %s7 = ssub.s32 1, %s5
  %s8 = scalar_select 0, %s7, %s5
  // Predicated region
  $region2: #{covsf_forward.1} parent=0 // pred_check
    _
  $region3: #{covsf_forward.1} parent=0 // pred_check_branch
    %10 = sbr.rel (0) target = $region5
  $region4: #{covsf_forward.1} parent=0 // pred_region
    _
  $region5: #{covsf_forward.1} parent=0 // pred_fallthru
    _
  // Predicated region
  $region6: #{covsf_forward.1} parent=0 // pred_check
    _
  $region7: #{covsf_forward.1} parent=0 // pred_check_branch
    %12 = sbr.rel (0) target = $region9
  $region8: #{covsf_forward.1} parent=0 // pred_region
    _
  $region9: #{covsf_forward.1} parent=0 // pred_fallthru
    _
  // Predicated region
  $region10: #{covsf_forward.1} parent=0 // pred_check
    _
  $region11: #{covsf_forward.1} parent=0 // pred_check_branch
    %14 = sbr.rel (0) target = $region13
  $region12: #{covsf_forward.1} parent=0 // pred_region
    _
  $region13: #{covsf_forward.1} parent=0 // pred_fallthru
    _
  // Predicated region
  $region14: #{covsf_forward.1} parent=0 // pred_check
    _
  $region15: #{covsf_forward.1} parent=0 // pred_check_branch
    %16 = sbr.rel (0) target = $region17
  $region16: #{covsf_forward.1} parent=0 // pred_region
    _
  $region17: #{covsf_forward.1} parent=0 // pred_fallthru
    _
  %v17 = vld [vmem:[%s1] sm:$0xf]
  %v18 = vld [vmem:[%s1 + $0x8] sm:$0xff]
  %v19 = vld [vmem:[%s1 + $0x10] sm:$0xff]
  %v20 = vld [vmem:[%s1 + $0x18] sm:$0xff]
  %v21 = vld [vmem:[%s1 + $0x20] sm:$0xff]
  %v22 = vld [vmem:[%s1 + $0x28] sm:$0xf]
  %v23 = vld [vmem:[%s1 + $0x30] sm:$0xff]
  %v24 = vld [vmem:[%s1 + $0x38] sm:$0xff]
  %v25 = vld [vmem:[%s1 + $0x40] sm:$0xff]
  %v26 = vld [vmem:[%s1 + $0x48] sm:$0xff]
  %v27 = vld [vmem:[%s1 + $0x50] sm:$0x1]
  %v28 = vld [vmem:[%s1 + $0x58] sm:$0x1]
  %v29 = vlaneseq
  %v30 = vshrl.u32 %v29, 7
  %v31 = vsub.s32 0, %v30
  %v32 = vrot.slane %v28, %v31
  %v33 = vld [vmem:[%s2] sm:$0xf]
  %v34 = vld [vmem:[%s2 + $0x8] sm:$0xff]
  %v35 = vld [vmem:[%s2 + $0x10] sm:$0xff]
  %v36 = vld [vmem:[%s2 + $0x18] sm:$0xff]
  %v37 = vld [vmem:[%s2 + $0x20] sm:$0xff]
  %v38 = vld [vmem:[%s2 + $0x28] sm:$0xf]
  %v39 = vld [vmem:[%s2 + $0x30] sm:$0xff]
  %v40 = vld [vmem:[%s2 + $0x38] sm:$0xff]
  %v41 = vld [vmem:[%s2 + $0x40] sm:$0xff]
  %v42 = vld [vmem:[%s2 + $0x48] sm:$0xff]
  %v43 = vld [vmem:[%s2 + $0x50] sm:$0xff]
  %v44 = vld [vmem:[%s2 + $0x58] sm:$0xff]
  %v45 = vld [vmem:[%s2 + $0x60] sm:$0xff]
  %v46 = vld [vmem:[%s2 + $0x68] sm:$0xff]
  %v47 = vld [vmem:[%s2 + $0x70] sm:$0x1]
  %v48 = vld [vmem:[%s2 + $0x71] sm:$0x1]
  %v49 = vlaneseq
  %v50 = vshrl.u32 %v49, 7
  %v51 = vsub.s32 0, %v50
  %v52 = vrot.slane %v48, %v51
  %v53 = vld [vmem:[%s2 + $0x72] sm:$0x1]
  %v54 = vlaneseq
  %v55 = vshrl.u32 %v54, 7
  %v56 = vsub.s32 0, %v55
  %v57 = vrot.slane %v53, %v56
  %v58 = vld [vmem:[%s2 + $0x73] sm:$0x1]
  %v59 = vlaneseq
  %v60 = vshrl.u32 %v59, 7
  %v61 = vsub.s32 0, %v60
  %v62 = vrot.slane %v58, %v61
  %v63 = vld [vmem:[%s2 + $0x74] sm:$0x1]
  %v64 = vlaneseq
  %v65 = vshrl.u32 %v64, 7
  %v66 = vsub.s32 0, %v65
  %v67 = vrot.slane %v63, %v66
  %v68 = vld [vmem:[%s2 + $0x75] sm:$0x1]
  %v69 = vlaneseq
  %v70 = vshrl.u32 %v69, 7
  %v71 = vsub.s32 0, %v70
  %v72 = vrot.slane %v68, %v71
  %v73 = vld [vmem:[%s2 + $0x76] sm:$0x1]
  %v74 = vlaneseq
  %v75 = vshrl.u32 %v74, 7
  %v76 = vsub.s32 0, %v75
  %v77 = vrot.slane %v73, %v76
  %v78 = vld [vmem:[%s3] sm:$0xff]
  %v79 = vld [vmem:[%s3 + $0x8] sm:$0xff]
  %v80 = vld [vmem:[%s3 + $0x10] sm:$0xff]
  %v81 = vld [vmem:[%s3 + $0x18] sm:$0xff]
  %v82 = vld [vmem:[%s3 + $0x20] sm:$0x1]
  %v83 = vlaneseq
  %v84 = vshrl.u32 %v83, 7
  %v85 = vsub.s32 0, %v84
  %v86 = vrot.slane %v82, %v85
  %v87 = vld [vmem:[%s0] sm:$0xff]
  %v88 = vld [vmem:[%s0 + $0x8] sm:$0xff]
  %v89 = vlaneseq
  %v90 = vshrl.u32 %v89, 7
  %v91 = vsub.s32 0, %v90
  %v92 = vrot.slane %v27, %v91
  %vm93 = vcmask 31744
  %v95 = vsel %vm93, %v87, 0
  %v98 = vsel %vm93, %v88, 0
  %vm100 = vcmask 1043456
  %v102 = vsel %vm100, %v17, 0
  %104 = vmatprep.subr.mxu0 0.0
  %105 = vmatpush1.msra.mxu0 %v102
  %106 = vmatprep.subr.mxu0 0.0
  %107 = vmatpush1.msra.mxu0 0.0
  %108 = vmatprep.subr.mxu0 0.0
  %109 = vmatpush1.msra.mxu0 0.0
  %110 = vmatprep.subr.mxu0 0.0
  %111 = vmatpush1.msra.mxu0 0.0
  %112 = vmatprep.subr.mxu0 0.0
  %113 = vmatpush1.msra.mxu0 0.0
  %114 = vmatprep.subr.mxu0 0.0
  %115 = vmatpush1.msra.mxu0 0.0
  %116 = vmatprep.subr.mxu0 0.0
  %117 = vmatpush1.msra.mxu0 0.0
  %118 = vmatprep.subr.mxu0 0.0
  %119 = vmatpush1.msra.mxu0 0.0
  %120 = vmatprep.subr.mxu0 0.0
  %121 = vmatpush1.msra.mxu0 0.0
  %122 = vmatprep.subr.mxu0 0.0
  %123 = vmatpush1.msra.mxu0 0.0
  %124 = vmatprep.subr.mxu0 0.0
  %125 = vmatpush1.msra.mxu0 0.0
  %126 = vmatprep.subr.mxu0 0.0
  %127 = vmatpush1.msra.mxu0 0.0
  %128 = vmatprep.subr.mxu0 0.0
  %129 = vmatpush1.msra.mxu0 0.0
  %130 = vmatprep.subr.mxu0 0.0
  %131 = vmatpush1.msra.mxu0 0.0
  %132 = vmatprep.subr.mxu0 0.0
  %133 = vmatpush1.msra.mxu0 0.0
  %134 = vmatprep.subr.mxu0 0.0
  %135 = vmatpush1.msra.mxu0 0.0
  %136 = vmatprep.subr.mxu0 0.0
  %137 = vmatpush1.msra.mxu0 0.0
  %138 = vmatprep.subr.mxu0 0.0
  %139 = vmatpush1.msra.mxu0 0.0
  %140 = vmatprep.subr.mxu0 0.0
  %141 = vmatpush1.msra.mxu0 0.0
  %142 = vmatprep.subr.mxu0 0.0
  %143 = vmatpush1.msra.mxu0 0.0
  %144 = vmatprep.subr.mxu0 0.0
  %145 = vmatpush1.msra.mxu0 0.0
  %146 = vmatprep.subr.mxu0 0.0
  %147 = vmatpush1.msra.mxu0 0.0
  %148 = vmatprep.subr.mxu0 0.0
  %149 = vmatpush1.msra.mxu0 0.0
  %150 = vmatprep.subr.mxu0 0.0
  %151 = vmatpush1.msra.mxu0 0.0
  %152 = vmatprep.subr.mxu0 0.0
  %153 = vmatpush1.msra.mxu0 0.0
  %154 = vmatprep.subr.mxu0 0.0
  %155 = vmatpush1.msra.mxu0 0.0
  %156 = vmatprep.subr.mxu0 0.0
  %157 = vmatpush1.msra.mxu0 0.0
  %158 = vmatprep.subr.mxu0 0.0
  %159 = vmatpush1.msra.mxu0 0.0
  %160 = vmatprep.subr.mxu0 0.0
  %161 = vmatpush1.msra.mxu0 0.0
  %162 = vmatprep.subr.mxu0 0.0
  %163 = vmatpush1.msra.mxu0 0.0
  %164 = vmatprep.subr.mxu0 0.0
  %165 = vmatpush1.msra.mxu0 0.0
  %166 = vmatprep.subr.mxu0 0.0
  %167 = vmatpush1.msra.mxu0 0.0
  %168 = vmatprep.mubr.f32.mxu0 0.0
  %169 = vmatmul.mubr.f32.gmra.mrb[0].mxu0 %v95
  %v170 = vpop.f32.mrb[0].mxu0
  %v171 = vadd.f32 %v92, %v170
  %v172 = vpop.f32.mrb[0].mxu0
  %173 = vmatprep.mubr.f32.mxu0 0.0
  %174 = vmatmul.mubr.f32.gmra.mrb[0].mxu0 %v98
  %v175 = vpop.f32.mrb[0].mxu0
  %v176 = vadd.f32 %v92, %v175
  %v177 = vpop.f32.mrb[0].mxu0
  %178 = vdwg.mxu0
  %v179 = vlaneseq
  %v180 = vshrl.u32 %v179, 7
  %v181 = vsub.s32 0, %v180
  %v182 = vrot.slane %v47, %v181
  %v184 = vsel %vm100, %v33, 0
  %186 = vmatprep.subr.mxu0 0.0
  %187 = vmatpush1.msra.mxu0 %v184
  %188 = vmatprep.subr.mxu0 0.0
  %189 = vmatpush1.msra.mxu0 0.0
  %190 = vmatprep.subr.mxu0 0.0
  %191 = vmatpush1.msra.mxu0 0.0
  %192 = vmatprep.subr.mxu0 0.0
  %193 = vmatpush1.msra.mxu0 0.0
  %194 = vmatprep.subr.mxu0 0.0
  %195 = vmatpush1.msra.mxu0 0.0
  %196 = vmatprep.subr.mxu0 0.0
  %197 = vmatpush1.msra.mxu0 0.0
  %198 = vmatprep.subr.mxu0 0.0
  %199 = vmatpush1.msra.mxu0 0.0
  %200 = vmatprep.subr.mxu0 0.0
  %201 = vmatpush1.msra.mxu0 0.0
  %202 = vmatprep.subr.mxu0 0.0
  %203 = vmatpush1.msra.mxu0 0.0
  %204 = vmatprep.subr.mxu0 0.0
  %205 = vmatpush1.msra.mxu0 0.0
  %206 = vmatprep.subr.mxu0 0.0
  %207 = vmatpush1.msra.mxu0 0.0
  %208 = vmatprep.subr.mxu0 0.0
  %209 = vmatpush1.msra.mxu0 0.0
  %210 = vmatprep.subr.mxu0 0.0
  %211 = vmatpush1.msra.mxu0 0.0
  %212 = vmatprep.subr.mxu0 0.0
  %213 = vmatpush1.msra.mxu0 0.0
  %214 = vmatprep.subr.mxu0 0.0
  %215 = vmatpush1.msra.mxu0 0.0
  %216 = vmatprep.subr.mxu0 0.0
  %217 = vmatpush1.msra.mxu0 0.0
  %218 = vmatprep.subr.mxu0 0.0
  %219 = vmatpush1.msra.mxu0 0.0
  %220 = vmatprep.subr.mxu0 0.0
  %221 = vmatpush1.msra.mxu0 0.0
  %222 = vmatprep.subr.mxu0 0.0
  %223 = vmatpush1.msra.mxu0 0.0
  %224 = vmatprep.subr.mxu0 0.0
  %225 = vmatpush1.msra.mxu0 0.0
  %226 = vmatprep.subr.mxu0 0.0
  %227 = vmatpush1.msra.mxu0 0.0
  %228 = vmatprep.subr.mxu0 0.0
  %229 = vmatpush1.msra.mxu0 0.0
  %230 = vmatprep.subr.mxu0 0.0
  %231 = vmatpush1.msra.mxu0 0.0
  %232 = vmatprep.subr.mxu0 0.0
  %233 = vmatpush1.msra.mxu0 0.0
  %234 = vmatprep.subr.mxu0 0.0
  %235 = vmatpush1.msra.mxu0 0.0
  %236 = vmatprep.subr.mxu0 0.0
  %237 = vmatpush1.msra.mxu0 0.0
  %238 = vmatprep.subr.mxu0 0.0
  %239 = vmatpush1.msra.mxu0 0.0
  %240 = vmatprep.subr.mxu0 0.0
  %241 = vmatpush1.msra.mxu0 0.0
  %242 = vmatprep.subr.mxu0 0.0
  %243 = vmatpush1.msra.mxu0 0.0
  %244 = vmatprep.subr.mxu0 0.0
  %245 = vmatpush1.msra.mxu0 0.0
  %246 = vmatprep.subr.mxu0 0.0
  %247 = vmatpush1.msra.mxu0 0.0
  %248 = vmatprep.subr.mxu0 0.0
  %249 = vmatpush1.msra.mxu0 0.0
  %250 = vmatprep.mubr.f32.mxu0 0.0
  %251 = vmatmul.mubr.f32.gmra.mrb[0].mxu0 %v95
  %v252 = vpop.f32.mrb[0].mxu0
  %v253 = vadd.f32 %v182, %v252
  %v254 = vpop.f32.mrb[0].mxu0
  %255 = vmatprep.mubr.f32.mxu0 0.0
  %256 = vmatmul.mubr.f32.gmra.mrb[0].mxu0 %v98
  %v257 = vpop.f32.mrb[0].mxu0
  %v258 = vadd.f32 %v182, %v257
  %v259 = vpop.f32.mrb[0].mxu0
  %260 = vdwg.mxu0
  %v261 = vmul.f32 %v171, 0.5
  %v262 = vtanh.pop %v261
  %v263 = vadd.f32 %v262, 1.0
  %v264 = vmul.f32 %v263, 0.5
  %v265 = vmul.f32 %v264, %v52
  %v266 = vadd.f32 %v253, %v265
  %v267 = vtanh.pop %v266
  %v268 = vsub.f32 1.0, %v264
  %270 = vrot.lane.b32.xlu0 %v267, 32
  %v271 = vpop.permute.xlu0 %270
  %v273 = vmul.f32 %v268, %v271
  %275 = vrot.lane.b32.xlu0 %v273, 96
  %v276 = vpop.permute.xlu0 %275
  %vm277 = vcmask 261120
  %v278 = vsel %vm277, %v276, 0
  %280 = vmatprep.subr.mxu0 0.0
  %281 = vmatpush1.msra.mxu0 %v18
  %282 = vmatprep.subr.mxu0 0.0
  %283 = vmatpush1.msra.mxu0 %v19
  %284 = vmatprep.subr.mxu0 0.0
  %285 = vmatpush1.msra.mxu0 %v20
  %286 = vmatprep.subr.mxu0 0.0
  %287 = vmatpush1.msra.mxu0 %v21
  %288 = vmatprep.subr.mxu0 0.0
  %289 = vmatpush1.msra.mxu0 0.0
  %290 = vmatprep.subr.mxu0 0.0
  %291 = vmatpush1.msra.mxu0 0.0
  %292 = vmatprep.subr.mxu0 0.0
  %293 = vmatpush1.msra.mxu0 0.0
  %294 = vmatprep.subr.mxu0 0.0
  %295 = vmatpush1.msra.mxu0 0.0
  %296 = vmatprep.subr.mxu0 0.0
  %297 = vmatpush1.msra.mxu0 0.0
  %298 = vmatprep.subr.mxu0 0.0
  %299 = vmatpush1.msra.mxu0 0.0
  %300 = vmatprep.subr.mxu0 0.0
  %301 = vmatpush1.msra.mxu0 0.0
  %302 = vmatprep.subr.mxu0 0.0
  %303 = vmatpush1.msra.mxu0 0.0
  %304 = vmatprep.subr.mxu0 0.0
  %305 = vmatpush1.msra.mxu0 0.0
  %306 = vmatprep.subr.mxu0 0.0
  %307 = vmatpush1.msra.mxu0 0.0
  %308 = vmatprep.subr.mxu0 0.0
  %309 = vmatpush1.msra.mxu0 0.0
  %310 = vmatprep.subr.mxu0 0.0
  %311 = vmatpush1.msra.mxu0 0.0
  %312 = vmatprep.subr.mxu0 0.0
  %313 = vmatpush1.msra.mxu0 0.0
  %314 = vmatprep.subr.mxu0 0.0
  %315 = vmatpush1.msra.mxu0 0.0
  %316 = vmatprep.subr.mxu0 0.0
  %317 = vmatpush1.msra.mxu0 0.0
  %318 = vmatprep.subr.mxu0 0.0
  %319 = vmatpush1.msra.mxu0 0.0
  %320 = vmatprep.subr.mxu0 0.0
  %321 = vmatpush1.msra.mxu0 0.0
  %322 = vmatprep.subr.mxu0 0.0
  %323 = vmatpush1.msra.mxu0 0.0
  %324 = vmatprep.subr.mxu0 0.0
  %325 = vmatpush1.msra.mxu0 0.0
  %326 = vmatprep.subr.mxu0 0.0
  %327 = vmatpush1.msra.mxu0 0.0
  %328 = vmatprep.subr.mxu0 0.0
  %329 = vmatpush1.msra.mxu0 0.0
  %330 = vmatprep.subr.mxu0 0.0
  %331 = vmatpush1.msra.mxu0 0.0
  %332 = vmatprep.subr.mxu0 0.0
  %333 = vmatpush1.msra.mxu0 0.0
  %334 = vmatprep.subr.mxu0 0.0
  %335 = vmatpush1.msra.mxu0 0.0
  %336 = vmatprep.subr.mxu0 0.0
  %337 = vmatpush1.msra.mxu0 0.0
  %338 = vmatprep.subr.mxu0 0.0
  %339 = vmatpush1.msra.mxu0 0.0
  %340 = vmatprep.subr.mxu0 0.0
  %341 = vmatpush1.msra.mxu0 0.0
  %342 = vmatprep.subr.mxu0 0.0
  %343 = vmatpush1.msra.mxu0 0.0
  %344 = vmatprep.mubr.f32.mxu0 0.0
  %345 = vmatmul.mubr.f32.gmra.mrb[0].mxu0 %v278
  %v346 = vpop.f32.mrb[0].mxu0
  %v347 = vadd.f32 0.0, %v346
  %v348 = vpop.f32.mrb[0].mxu0
  %349 = vdwg.mxu0
  %350 = vmatprep.subr.mxu0 0.0
  %351 = vmatpush1.msra.mxu0 %v34
  %352 = vmatprep.subr.mxu0 0.0
  %353 = vmatpush1.msra.mxu0 %v35
  %354 = vmatprep.subr.mxu0 0.0
  %355 = vmatpush1.msra.mxu0 %v36
  %356 = vmatprep.subr.mxu0 0.0
  %357 = vmatpush1.msra.mxu0 %v37
  %358 = vmatprep.subr.mxu0 0.0
  %359 = vmatpush1.msra.mxu0 0.0
  %360 = vmatprep.subr.mxu0 0.0
  %361 = vmatpush1.msra.mxu0 0.0
  %362 = vmatprep.subr.mxu0 0.0
  %363 = vmatpush1.msra.mxu0 0.0
  %364 = vmatprep.subr.mxu0 0.0
  %365 = vmatpush1.msra.mxu0 0.0
  %366 = vmatprep.subr.mxu0 0.0
  %367 = vmatpush1.msra.mxu0 0.0
  %368 = vmatprep.subr.mxu0 0.0
  %369 = vmatpush1.msra.mxu0 0.0
  %370 = vmatprep.subr.mxu0 0.0
  %371 = vmatpush1.msra.mxu0 0.0
  %372 = vmatprep.subr.mxu0 0.0
  %373 = vmatpush1.msra.mxu0 0.0
  %374 = vmatprep.subr.mxu0 0.0
  %375 = vmatpush1.msra.mxu0 0.0
  %376 = vmatprep.subr.mxu0 0.0
  %377 = vmatpush1.msra.mxu0 0.0
  %378 = vmatprep.subr.mxu0 0.0
  %379 = vmatpush1.msra.mxu0 0.0
  %380 = vmatprep.subr.mxu0 0.0
  %381 = vmatpush1.msra.mxu0 0.0
  %382 = vmatprep.subr.mxu0 0.0
  %383 = vmatpush1.msra.mxu0 0.0
  %384 = vmatprep.subr.mxu0 0.0
  %385 = vmatpush1.msra.mxu0 0.0
  %386 = vmatprep.subr.mxu0 0.0
  %387 = vmatpush1.msra.mxu0 0.0
  %388 = vmatprep.subr.mxu0 0.0
  %389 = vmatpush1.msra.mxu0 0.0
  %390 = vmatprep.subr.mxu0 0.0
  %391 = vmatpush1.msra.mxu0 0.0
  %392 = vmatprep.subr.mxu0 0.0
  %393 = vmatpush1.msra.mxu0 0.0
  %394 = vmatprep.subr.mxu0 0.0
  %395 = vmatpush1.msra.mxu0 0.0
  %396 = vmatprep.subr.mxu0 0.0
  %397 = vmatpush1.msra.mxu0 0.0
  %398 = vmatprep.subr.mxu0 0.0
  %399 = vmatpush1.msra.mxu0 0.0
  %400 = vmatprep.subr.mxu0 0.0
  %401 = vmatpush1.msra.mxu0 0.0
  %402 = vmatprep.subr.mxu0 0.0
  %403 = vmatpush1.msra.mxu0 0.0
  %404 = vmatprep.subr.mxu0 0.0
  %405 = vmatpush1.msra.mxu0 0.0
  %406 = vmatprep.subr.mxu0 0.0
  %407 = vmatpush1.msra.mxu0 0.0
  %408 = vmatprep.subr.mxu0 0.0
  %409 = vmatpush1.msra.mxu0 0.0
  %410 = vmatprep.subr.mxu0 0.0
  %411 = vmatpush1.msra.mxu0 0.0
  %412 = vmatprep.subr.mxu0 0.0
  %413 = vmatpush1.msra.mxu0 0.0
  %414 = vmatprep.mubr.f32.mxu0 0.0
  %415 = vmatmul.mubr.f32.gmra.mrb[0].mxu0 %v278
  %v416 = vpop.f32.mrb[0].mxu0
  %v417 = vadd.f32 %v52, %v416
  %v418 = vpop.f32.mrb[0].mxu0
  %419 = vdwg.mxu0
  %v421 = vrot.slane %v347, 6
  %v423 = vadd.f32 %v171, %v421
  %v424 = vmul.f32 %v423, 0.5
  %v425 = vtanh.pop %v424
  %v426 = vadd.f32 %v425, 1.0
  %v427 = vmul.f32 %v426, 0.5
  %v429 = vrot.slane %v417, 6
  %v431 = vmul.f32 %v427, %v429
  %v432 = vadd.f32 %v253, %v431
  %v433 = vtanh.pop %v432
  %v434 = vsub.f32 1.0, %v427
  %436 = vrot.lane.b32.xlu0 %v433, 32
  %v437 = vpop.permute.xlu0 %436
  %v439 = vmul.f32 %v434, %v437
  %v440 = vrot.slane %v273, 6
  %v442 = vmul.f32 %v427, %v440
  %v443 = vadd.f32 %v439, %v442
  %v445 = vrot.slane %v443, 2
  %446 = vrot.lane.b32.xlu0 %v445, 96
  %v447 = vpop.permute.xlu0 %446
  %v448 = vsel %vm277, %v447, 0
  %450 = vmatprep.subr.mxu0 0.0
  %451 = vmatpush1.msra.mxu0 %v18
  %452 = vmatprep.subr.mxu0 0.0
  %453 = vmatpush1.msra.mxu0 %v19
  %454 = vmatprep.subr.mxu0 0.0
  %455 = vmatpush1.msra.mxu0 %v20
  %456 = vmatprep.subr.mxu0 0.0
  %457 = vmatpush1.msra.mxu0 %v21
  %458 = vmatprep.subr.mxu0 0.0
  %459 = vmatpush1.msra.mxu0 0.0
  %460 = vmatprep.subr.mxu0 0.0
  %461 = vmatpush1.msra.mxu0 0.0
  %462 = vmatprep.subr.mxu0 0.0
  %463 = vmatpush1.msra.mxu0 0.0
  %464 = vmatprep.subr.mxu0 0.0
  %465 = vmatpush1.msra.mxu0 0.0
  %466 = vmatprep.subr.mxu0 0.0
  %467 = vmatpush1.msra.mxu0 0.0
  %468 = vmatprep.subr.mxu0 0.0
  %469 = vmatpush1.msra.mxu0 0.0
  %470 = vmatprep.subr.mxu0 0.0
  %471 = vmatpush1.msra.mxu0 0.0
  %472 = vmatprep.subr.mxu0 0.0
  %473 = vmatpush1.msra.mxu0 0.0
  %474 = vmatprep.subr.mxu0 0.0
  %475 = vmatpush1.msra.mxu0 0.0
  %476 = vmatprep.subr.mxu0 0.0
  %477 = vmatpush1.msra.mxu0 0.0
  %478 = vmatprep.subr.mxu0 0.0
  %479 = vmatpush1.msra.mxu0 0.0
  %480 = vmatprep.subr.mxu0 0.0
  %481 = vmatpush1.msra.mxu0 0.0
  %482 = vmatprep.subr.mxu0 0.0
  %483 = vmatpush1.msra.mxu0 0.0
  %484 = vmatprep.subr.mxu0 0.0
  %485 = vmatpush1.msra.mxu0 0.0
  %486 = vmatprep.subr.mxu0 0.0
  %487 = vmatpush1.msra.mxu0 0.0
  %488 = vmatprep.subr.mxu0 0.0
  %489 = vmatpush1.msra.mxu0 0.0
  %490 = vmatprep.subr.mxu0 0.0
  %491 = vmatpush1.msra.mxu0 0.0
  %492 = vmatprep.subr.mxu0 0.0
  %493 = vmatpush1.msra.mxu0 0.0
  %494 = vmatprep.subr.mxu0 0.0
  %495 = vmatpush1.msra.mxu0 0.0
  %496 = vmatprep.subr.mxu0 0.0
  %497 = vmatpush1.msra.mxu0 0.0
  %498 = vmatprep.subr.mxu0 0.0
  %499 = vmatpush1.msra.mxu0 0.0
  %500 = vmatprep.subr.mxu0 0.0
  %501 = vmatpush1.msra.mxu0 0.0
  %502 = vmatprep.subr.mxu0 0.0
  %503 = vmatpush1.msra.mxu0 0.0
  %504 = vmatprep.subr.mxu0 0.0
  %505 = vmatpush1.msra.mxu0 0.0
  %506 = vmatprep.subr.mxu0 0.0
  %507 = vmatpush1.msra.mxu0 0.0
  %508 = vmatprep.subr.mxu0 0.0
  %509 = vmatpush1.msra.mxu0 0.0
  %510 = vmatprep.subr.mxu0 0.0
  %511 = vmatpush1.msra.mxu0 0.0
  %512 = vmatprep.subr.mxu0 0.0
  %513 = vmatpush1.msra.mxu0 0.0
  %514 = vmatprep.mubr.f32.mxu0 0.0
  %515 = vmatmul.mubr.f32.gmra.mrb[0].mxu0 %v448
  %v516 = vpop.f32.mrb[0].mxu0
  %v517 = vadd.f32 0.0, %v516
  %v518 = vpop.f32.mrb[0].mxu0
  %519 = vdwg.mxu0
  %520 = vmatprep.subr.mxu0 0.0
  %521 = vmatpush1.msra.mxu0 %v34
  %522 = vmatprep.subr.mxu0 0.0
  %523 = vmatpush1.msra.mxu0 %v35
  %524 = vmatprep.subr.mxu0 0.0
  %525 = vmatpush1.msra.mxu0 %v36
  %526 = vmatprep.subr.mxu0 0.0
  %527 = vmatpush1.msra.mxu0 %v37
  %528 = vmatprep.subr.mxu0 0.0
  %529 = vmatpush1.msra.mxu0 0.0
  %530 = vmatprep.subr.mxu0 0.0
  %531 = vmatpush1.msra.mxu0 0.0
  %532 = vmatprep.subr.mxu0 0.0
  %533 = vmatpush1.msra.mxu0 0.0
  %534 = vmatprep.subr.mxu0 0.0
  %535 = vmatpush1.msra.mxu0 0.0
  %536 = vmatprep.subr.mxu0 0.0
  %537 = vmatpush1.msra.mxu0 0.0
  %538 = vmatprep.subr.mxu0 0.0
  %539 = vmatpush1.msra.mxu0 0.0
  %540 = vmatprep.subr.mxu0 0.0
  %541 = vmatpush1.msra.mxu0 0.0
  %542 = vmatprep.subr.mxu0 0.0
  %543 = vmatpush1.msra.mxu0 0.0
  %544 = vmatprep.subr.mxu0 0.0
  %545 = vmatpush1.msra.mxu0 0.0
  %546 = vmatprep.subr.mxu0 0.0
  %547 = vmatpush1.msra.mxu0 0.0
  %548 = vmatprep.subr.mxu0 0.0
  %549 = vmatpush1.msra.mxu0 0.0
  %550 = vmatprep.subr.mxu0 0.0
  %551 = vmatpush1.msra.mxu0 0.0
  %552 = vmatprep.subr.mxu0 0.0
  %553 = vmatpush1.msra.mxu0 0.0
  %554 = vmatprep.subr.mxu0 0.0
  %555 = vmatpush1.msra.mxu0 0.0
  %556 = vmatprep.subr.mxu0 0.0
  %557 = vmatpush1.msra.mxu0 0.0
  %558 = vmatprep.subr.mxu0 0.0
  %559 = vmatpush1.msra.mxu0 0.0
  %560 = vmatprep.subr.mxu0 0.0
  %561 = vmatpush1.msra.mxu0 0.0
  %562 = vmatprep.subr.mxu0 0.0
  %563 = vmatpush1.msra.mxu0 0.0
  %564 = vmatprep.subr.mxu0 0.0
  %565 = vmatpush1.msra.mxu0 0.0
  %566 = vmatprep.subr.mxu0 0.0
  %567 = vmatpush1.msra.mxu0 0.0
  %568 = vmatprep.subr.mxu0 0.0
  %569 = vmatpush1.msra.mxu0 0.0
  %570 = vmatprep.subr.mxu0 0.0
  %571 = vmatpush1.msra.mxu0 0.0
  %572 = vmatprep.subr.mxu0 0.0
  %573 = vmatpush1.msra.mxu0 0.0
  %574 = vmatprep.subr.mxu0 0.0
  %575 = vmatpush1.msra.mxu0 0.0
  %576 = vmatprep.subr.mxu0 0.0
  %577 = vmatpush1.msra.mxu0 0.0
  %578 = vmatprep.subr.mxu0 0.0
  %579 = vmatpush1.msra.mxu0 0.0
  %580 = vmatprep.subr.mxu0 0.0
  %581 = vmatpush1.msra.mxu0 0.0
  %582 = vmatprep.subr.mxu0 0.0
  %583 = vmatpush1.msra.mxu0 0.0
  %584 = vmatprep.mubr.f32.mxu0 0.0
  %585 = vmatmul.mubr.f32.gmra.mrb[0].mxu0 %v448
  %v586 = vpop.f32.mrb[0].mxu0
  %v587 = vadd.f32 %v52, %v586
  %v588 = vpop.f32.mrb[0].mxu0
  %589 = vdwg.mxu0
  %v591 = vrot.slane %v517, 4
  %v593 = vadd.f32 %v171, %v591
  %v594 = vmul.f32 %v593, 0.5
  %v595 = vtanh.pop %v594
  %v596 = vadd.f32 %v595, 1.0
  %v597 = vmul.f32 %v596, 0.5
  %v599 = vrot.slane %v587, 4
  %v601 = vmul.f32 %v597, %v599
  %v602 = vadd.f32 %v253, %v601
  %v603 = vtanh.pop %v602
  %v604 = vsub.f32 1.0, %v597
  %606 = vrot.lane.b32.xlu0 %v603, 32
  %v607 = vpop.permute.xlu0 %606
  %v609 = vmul.f32 %v604, %v607
  %v610 = vrot.slane %v443, 6
  %v612 = vmul.f32 %v597, %v610
  %v613 = vadd.f32 %v609, %v612
  %v615 = vrot.slane %v613, 4
  %616 = vrot.lane.b32.xlu0 %v615, 96
  %v617 = vpop.permute.xlu0 %616
  %v618 = vsel %vm277, %v617, 0
  %620 = vmatprep.subr.mxu0 0.0
  %621 = vmatpush1.msra.mxu0 %v18
  %622 = vmatprep.subr.mxu0 0.0
  %623 = vmatpush1.msra.mxu0 %v19
  %624 = vmatprep.subr.mxu0 0.0
  %625 = vmatpush1.msra.mxu0 %v20
  %626 = vmatprep.subr.mxu0 0.0
  %627 = vmatpush1.msra.mxu0 %v21
  %628 = vmatprep.subr.mxu0 0.0
  %629 = vmatpush1.msra.mxu0 0.0
  %630 = vmatprep.subr.mxu0 0.0
  %631 = vmatpush1.msra.mxu0 0.0
  %632 = vmatprep.subr.mxu0 0.0
  %633 = vmatpush1.msra.mxu0 0.0
  %634 = vmatprep.subr.mxu0 0.0
  %635 = vmatpush1.msra.mxu0 0.0
  %636 = vmatprep.subr.mxu0 0.0
  %637 = vmatpush1.msra.mxu0 0.0
  %638 = vmatprep.subr.mxu0 0.0
  %639 = vmatpush1.msra.mxu0 0.0
  %640 = vmatprep.subr.mxu0 0.0
  %641 = vmatpush1.msra.mxu0 0.0
  %642 = vmatprep.subr.mxu0 0.0
  %643 = vmatpush1.msra.mxu0 0.0
  %644 = vmatprep.subr.mxu0 0.0
  %645 = vmatpush1.msra.mxu0 0.0
  %646 = vmatprep.subr.mxu0 0.0
  %647 = vmatpush1.msra.mxu0 0.0
  %648 = vmatprep.subr.mxu0 0.0
  %649 = vmatpush1.msra.mxu0 0.0
  %650 = vmatprep.subr.mxu0 0.0
  %651 = vmatpush1.msra.mxu0 0.0
  %652 = vmatprep.subr.mxu0 0.0
  %653 = vmatpush1.msra.mxu0 0.0
  %654 = vmatprep.subr.mxu0 0.0
  %655 = vmatpush1.msra.mxu0 0.0
  %656 = vmatprep.subr.mxu0 0.0
  %657 = vmatpush1.msra.mxu0 0.0
  %658 = vmatprep.subr.mxu0 0.0
  %659 = vmatpush1.msra.mxu0 0.0
  %660 = vmatprep.subr.mxu0 0.0
  %661 = vmatpush1.msra.mxu0 0.0
  %662 = vmatprep.subr.mxu0 0.0
  %663 = vmatpush1.msra.mxu0 0.0
  %664 = vmatprep.subr.mxu0 0.0
  %665 = vmatpush1.msra.mxu0 0.0
  %666 = vmatprep.subr.mxu0 0.0
  %667 = vmatpush1.msra.mxu0 0.0
  %668 = vmatprep.subr.mxu0 0.0
  %669 = vmatpush1.msra.mxu0 0.0
  %670 = vmatprep.subr.mxu0 0.0
  %671 = vmatpush1.msra.mxu0 0.0
  %672 = vmatprep.subr.mxu0 0.0
  %673 = vmatpush1.msra.mxu0 0.0
  %674 = vmatprep.subr.mxu0 0.0
  %675 = vmatpush1.msra.mxu0 0.0
  %676 = vmatprep.subr.mxu0 0.0
  %677 = vmatpush1.msra.mxu0 0.0
  %678 = vmatprep.subr.mxu0 0.0
  %679 = vmatpush1.msra.mxu0 0.0
  %680 = vmatprep.subr.mxu0 0.0
  %681 = vmatpush1.msra.mxu0 0.0
  %682 = vmatprep.subr.mxu0 0.0
  %683 = vmatpush1.msra.mxu0 0.0
  %684 = vmatprep.mubr.f32.mxu0 0.0
  %685 = vmatmul.mubr.f32.gmra.mrb[0].mxu0 %v618
  %v686 = vpop.f32.mrb[0].mxu0
  %v687 = vadd.f32 0.0, %v686
  %v688 = vpop.f32.mrb[0].mxu0
  %689 = vdwg.mxu0
  %690 = vmatprep.subr.mxu0 0.0
  %691 = vmatpush1.msra.mxu0 %v34
  %692 = vmatprep.subr.mxu0 0.0
  %693 = vmatpush1.msra.mxu0 %v35
  %694 = vmatprep.subr.mxu0 0.0
  %695 = vmatpush1.msra.mxu0 %v36
  %696 = vmatprep.subr.mxu0 0.0
  %697 = vmatpush1.msra.mxu0 %v37
  %698 = vmatprep.subr.mxu0 0.0
  %699 = vmatpush1.msra.mxu0 0.0
  %700 = vmatprep.subr.mxu0 0.0
  %701 = vmatpush1.msra.mxu0 0.0
  %702 = vmatprep.subr.mxu0 0.0
  %703 = vmatpush1.msra.mxu0 0.0
  %704 = vmatprep.subr.mxu0 0.0
  %705 = vmatpush1.msra.mxu0 0.0
  %706 = vmatprep.subr.mxu0 0.0
  %707 = vmatpush1.msra.mxu0 0.0
  %708 = vmatprep.subr.mxu0 0.0
  %709 = vmatpush1.msra.mxu0 0.0
  %710 = vmatprep.subr.mxu0 0.0
  %711 = vmatpush1.msra.mxu0 0.0
  %712 = vmatprep.subr.mxu0 0.0
  %713 = vmatpush1.msra.mxu0 0.0
  %714 = vmatprep.subr.mxu0 0.0
  %715 = vmatpush1.msra.mxu0 0.0
  %716 = vmatprep.subr.mxu0 0.0
  %717 = vmatpush1.msra.mxu0 0.0
  %718 = vmatprep.subr.mxu0 0.0
  %719 = vmatpush1.msra.mxu0 0.0
  %720 = vmatprep.subr.mxu0 0.0
  %721 = vmatpush1.msra.mxu0 0.0
  %722 = vmatprep.subr.mxu0 0.0
  %723 = vmatpush1.msra.mxu0 0.0
  %724 = vmatprep.subr.mxu0 0.0
  %725 = vmatpush1.msra.mxu0 0.0
  %726 = vmatprep.subr.mxu0 0.0
  %727 = vmatpush1.msra.mxu0 0.0
  %728 = vmatprep.subr.mxu0 0.0
  %729 = vmatpush1.msra.mxu0 0.0
  %730 = vmatprep.subr.mxu0 0.0
  %731 = vmatpush1.msra.mxu0 0.0
  %732 = vmatprep.subr.mxu0 0.0
  %733 = vmatpush1.msra.mxu0 0.0
  %734 = vmatprep.subr.mxu0 0.0
  %735 = vmatpush1.msra.mxu0 0.0
  %736 = vmatprep.subr.mxu0 0.0
  %737 = vmatpush1.msra.mxu0 0.0
  %738 = vmatprep.subr.mxu0 0.0
  %739 = vmatpush1.msra.mxu0 0.0
  %740 = vmatprep.subr.mxu0 0.0
  %741 = vmatpush1.msra.mxu0 0.0
  %742 = vmatprep.subr.mxu0 0.0
  %743 = vmatpush1.msra.mxu0 0.0
  %744 = vmatprep.subr.mxu0 0.0
  %745 = vmatpush1.msra.mxu0 0.0
  %746 = vmatprep.subr.mxu0 0.0
  %747 = vmatpush1.msra.mxu0 0.0
  %748 = vmatprep.subr.mxu0 0.0
  %749 = vmatpush1.msra.mxu0 0.0
  %750 = vmatprep.subr.mxu0 0.0
  %751 = vmatpush1.msra.mxu0 0.0
  %752 = vmatprep.subr.mxu0 0.0
  %753 = vmatpush1.msra.mxu0 0.0
  %754 = vmatprep.mubr.f32.mxu0 0.0
  %755 = vmatmul.mubr.f32.gmra.mrb[0].mxu0 %v618
  %v756 = vpop.f32.mrb[0].mxu0
  %v757 = vadd.f32 %v52, %v756
  %v758 = vpop.f32.mrb[0].mxu0
  %759 = vdwg.mxu0
  %v761 = vrot.slane %v687, 2
  %v763 = vadd.f32 %v171, %v761
  %v764 = vmul.f32 %v763, 0.5
  %v765 = vtanh.pop %v764
  %v766 = vadd.f32 %v765, 1.0
  %v767 = vmul.f32 %v766, 0.5
  %v769 = vrot.slane %v757, 2
  %v771 = vmul.f32 %v767, %v769
  %v772 = vadd.f32 %v253, %v771
  %v773 = vtanh.pop %v772
  %v774 = vsub.f32 1.0, %v767
  %776 = vrot.lane.b32.xlu0 %v773, 32
  %v777 = vpop.permute.xlu0 %776
  %v779 = vmul.f32 %v774, %v777
  %v780 = vrot.slane %v613, 6
  %v782 = vmul.f32 %v767, %v780
  %v783 = vadd.f32 %v779, %v782
  %v785 = vrot.slane %v783, 6
  %786 = vrot.lane.b32.xlu0 %v785, 96
  %v787 = vpop.permute.xlu0 %786
  %v788 = vsel %vm277, %v787, 0
  %790 = vmatprep.subr.mxu0 0.0
  %791 = vmatpush1.msra.mxu0 %v18
  %792 = vmatprep.subr.mxu0 0.0
  %793 = vmatpush1.msra.mxu0 %v19
  %794 = vmatprep.subr.mxu0 0.0
  %795 = vmatpush1.msra.mxu0 %v20
  %796 = vmatprep.subr.mxu0 0.0
  %797 = vmatpush1.msra.mxu0 %v21
  %798 = vmatprep.subr.mxu0 0.0
  %799 = vmatpush1.msra.mxu0 0.0
  %800 = vmatprep.subr.mxu0 0.0
  %801 = vmatpush1.msra.mxu0 0.0
  %802 = vmatprep.subr.mxu0 0.0
  %803 = vmatpush1.msra.mxu0 0.0
  %804 = vmatprep.subr.mxu0 0.0
  %805 = vmatpush1.msra.mxu0 0.0
  %806 = vmatprep.subr.mxu0 0.0
  %807 = vmatpush1.msra.mxu0 0.0
  %808 = vmatprep.subr.mxu0 0.0
  %809 = vmatpush1.msra.mxu0 0.0
  %810 = vmatprep.subr.mxu0 0.0
  %811 = vmatpush1.msra.mxu0 0.0
  %812 = vmatprep.subr.mxu0 0.0
  %813 = vmatpush1.msra.mxu0 0.0
  %814 = vmatprep.subr.mxu0 0.0
  %815 = vmatpush1.msra.mxu0 0.0
  %816 = vmatprep.subr.mxu0 0.0
  %817 = vmatpush1.msra.mxu0 0.0
  %818 = vmatprep.subr.mxu0 0.0
  %819 = vmatpush1.msra.mxu0 0.0
  %820 = vmatprep.subr.mxu0 0.0
  %821 = vmatpush1.msra.mxu0 0.0
  %822 = vmatprep.subr.mxu0 0.0
  %823 = vmatpush1.msra.mxu0 0.0
  %824 = vmatprep.subr.mxu0 0.0
  %825 = vmatpush1.msra.mxu0 0.0
  %826 = vmatprep.subr.mxu0 0.0
  %827 = vmatpush1.msra.mxu0 0.0
  %828 = vmatprep.subr.mxu0 0.0
  %829 = vmatpush1.msra.mxu0 0.0
  %830 = vmatprep.subr.mxu0 0.0
  %831 = vmatpush1.msra.mxu0 0.0
  %832 = vmatprep.subr.mxu0 0.0
  %833 = vmatpush1.msra.mxu0 0.0
  %834 = vmatprep.subr.mxu0 0.0
  %835 = vmatpush1.msra.mxu0 0.0
  %836 = vmatprep.subr.mxu0 0.0
  %837 = vmatpush1.msra.mxu0 0.0
  %838 = vmatprep.subr.mxu0 0.0
  %839 = vmatpush1.msra.mxu0 0.0
  %840 = vmatprep.subr.mxu0 0.0
  %841 = vmatpush1.msra.mxu0 0.0
  %842 = vmatprep.subr.mxu0 0.0
  %843 = vmatpush1.msra.mxu0 0.0
  %844 = vmatprep.subr.mxu0 0.0
  %845 = vmatpush1.msra.mxu0 0.0
  %846 = vmatprep.subr.mxu0 0.0
  %847 = vmatpush1.msra.mxu0 0.0
  %848 = vmatprep.subr.mxu0 0.0
  %849 = vmatpush1.msra.mxu0 0.0
  %850 = vmatprep.subr.mxu0 0.0
  %851 = vmatpush1.msra.mxu0 0.0
  %852 = vmatprep.subr.mxu0 0.0
  %853 = vmatpush1.msra.mxu0 0.0
  %854 = vmatprep.mubr.f32.mxu0 0.0
  %855 = vmatmul.mubr.f32.gmra.mrb[0].mxu0 %v788
  %v856 = vpop.f32.mrb[0].mxu0
  %v857 = vadd.f32 0.0, %v856
  %v858 = vpop.f32.mrb[0].mxu0
  %859 = vdwg.mxu0
  %860 = vmatprep.subr.mxu0 0.0
  %861 = vmatpush1.msra.mxu0 %v34
  %862 = vmatprep.subr.mxu0 0.0
  %863 = vmatpush1.msra.mxu0 %v35
  %864 = vmatprep.subr.mxu0 0.0
  %865 = vmatpush1.msra.mxu0 %v36
  %866 = vmatprep.subr.mxu0 0.0
  %867 = vmatpush1.msra.mxu0 %v37
  %868 = vmatprep.subr.mxu0 0.0
  %869 = vmatpush1.msra.mxu0 0.0
  %870 = vmatprep.subr.mxu0 0.0
  %871 = vmatpush1.msra.mxu0 0.0
  %872 = vmatprep.subr.mxu0 0.0
  %873 = vmatpush1.msra.mxu0 0.0
  %874 = vmatprep.subr.mxu0 0.0
  %875 = vmatpush1.msra.mxu0 0.0
  %876 = vmatprep.subr.mxu0 0.0
  %877 = vmatpush1.msra.mxu0 0.0
  %878 = vmatprep.subr.mxu0 0.0
  %879 = vmatpush1.msra.mxu0 0.0
  %880 = vmatprep.subr.mxu0 0.0
  %881 = vmatpush1.msra.mxu0 0.0
  %882 = vmatprep.subr.mxu0 0.0
  %883 = vmatpush1.msra.mxu0 0.0
  %884 = vmatprep.subr.mxu0 0.0
  %885 = vmatpush1.msra.mxu0 0.0
  %886 = vmatprep.subr.mxu0 0.0
  %887 = vmatpush1.msra.mxu0 0.0
  %888 = vmatprep.subr.mxu0 0.0
  %889 = vmatpush1.msra.mxu0 0.0
  %890 = vmatprep.subr.mxu0 0.0
  %891 = vmatpush1.msra.mxu0 0.0
  %892 = vmatprep.subr.mxu0 0.0
  %893 = vmatpush1.msra.mxu0 0.0
  %894 = vmatprep.subr.mxu0 0.0
  %895 = vmatpush1.msra.mxu0 0.0
  %896 = vmatprep.subr.mxu0 0.0
  %897 = vmatpush1.msra.mxu0 0.0
  %898 = vmatprep.subr.mxu0 0.0
  %899 = vmatpush1.msra.mxu0 0.0
  %900 = vmatprep.subr.mxu0 0.0
  %901 = vmatpush1.msra.mxu0 0.0
  %902 = vmatprep.subr.mxu0 0.0
  %903 = vmatpush1.msra.mxu0 0.0
  %904 = vmatprep.subr.mxu0 0.0
  %905 = vmatpush1.msra.mxu0 0.0
  %906 = vmatprep.subr.mxu0 0.0
  %907 = vmatpush1.msra.mxu0 0.0
  %908 = vmatprep.subr.mxu0 0.0
  %909 = vmatpush1.msra.mxu0 0.0
  %910 = vmatprep.subr.mxu0 0.0
  %911 = vmatpush1.msra.mxu0 0.0
  %912 = vmatprep.subr.mxu0 0.0
  %913 = vmatpush1.msra.mxu0 0.0
  %914 = vmatprep.subr.mxu0 0.0
  %915 = vmatpush1.msra.mxu0 0.0
  %916 = vmatprep.subr.mxu0 0.0
  %917 = vmatpush1.msra.mxu0 0.0
  %918 = vmatprep.subr.mxu0 0.0
  %919 = vmatpush1.msra.mxu0 0.0
  %920 = vmatprep.subr.mxu0 0.0
  %921 = vmatpush1.msra.mxu0 0.0
  %922 = vmatprep.subr.mxu0 0.0
  %923 = vmatpush1.msra.mxu0 0.0
  %924 = vmatprep.mubr.f32.mxu0 0.0
  %925 = vmatmul.mubr.f32.gmra.mrb[0].mxu0 %v788
  %v926 = vpop.f32.mrb[0].mxu0
  %v927 = vadd.f32 %v52, %v926
  %v928 = vpop.f32.mrb[0].mxu0
  %929 = vdwg.mxu0
  %v930 = vadd.f32 %v176, %v857
  %v931 = vmul.f32 %v930, 0.5
  %v932 = vtanh.pop %v931
  %v933 = vadd.f32 %v932, 1.0
  %v934 = vmul.f32 %v933, 0.5
  %v935 = vmul.f32 %v934, %v927
  %v936 = vadd.f32 %v258, %v935
  %v937 = vtanh.pop %v936
  %v938 = vsub.f32 1.0, %v934
  %940 = vrot.lane.b32.xlu0 %v937, 32
  %v941 = vpop.permute.xlu0 %940
  %v943 = vmul.f32 %v938, %v941
  %v945 = vmul.f32 %v934, %v785
  %v946 = vadd.f32 %v943, %v945
  %948 = vrot.lane.b32.xlu0 %v946, 96
  %v949 = vpop.permute.xlu0 %948
  %v950 = vsel %vm277, %v949, 0
  %952 = vmatprep.subr.mxu0 0.0
  %953 = vmatpush1.msra.mxu0 %v18
  %954 = vmatprep.subr.mxu0 0.0
  %955 = vmatpush1.msra.mxu0 %v19
  %956 = vmatprep.subr.mxu0 0.0
  %957 = vmatpush1.msra.mxu0 %v20
  %958 = vmatprep.subr.mxu0 0.0
  %959 = vmatpush1.msra.mxu0 %v21
  %960 = vmatprep.subr.mxu0 0.0
  %961 = vmatpush1.msra.mxu0 0.0
  %962 = vmatprep.subr.mxu0 0.0
  %963 = vmatpush1.msra.mxu0 0.0
  %964 = vmatprep.subr.mxu0 0.0
  %965 = vmatpush1.msra.mxu0 0.0
  %966 = vmatprep.subr.mxu0 0.0
  %967 = vmatpush1.msra.mxu0 0.0
  %968 = vmatprep.subr.mxu0 0.0
  %969 = vmatpush1.msra.mxu0 0.0
  %970 = vmatprep.subr.mxu0 0.0
  %971 = vmatpush1.msra.mxu0 0.0
  %972 = vmatprep.subr.mxu0 0.0
  %973 = vmatpush1.msra.mxu0 0.0
  %974 = vmatprep.subr.mxu0 0.0
  %975 = vmatpush1.msra.mxu0 0.0
  %976 = vmatprep.subr.mxu0 0.0
  %977 = vmatpush1.msra.mxu0 0.0
  %978 = vmatprep.subr.mxu0 0.0
  %979 = vmatpush1.msra.mxu0 0.0
  %980 = vmatprep.subr.mxu0 0.0
  %981 = vmatpush1.msra.mxu0 0.0
  %982 = vmatprep.subr.mxu0 0.0
  %983 = vmatpush1.msra.mxu0 0.0
  %984 = vmatprep.subr.mxu0 0.0
  %985 = vmatpush1.msra.mxu0 0.0
  %986 = vmatprep.subr.mxu0 0.0
  %987 = vmatpush1.msra.mxu0 0.0
  %988 = vmatprep.subr.mxu0 0.0
  %989 = vmatpush1.msra.mxu0 0.0
  %990 = vmatprep.subr.mxu0 0.0
  %991 = vmatpush1.msra.mxu0 0.0
  %992 = vmatprep.subr.mxu0 0.0
  %993 = vmatpush1.msra.mxu0 0.0
  %994 = vmatprep.subr.mxu0 0.0
  %995 = vmatpush1.msra.mxu0 0.0
  %996 = vmatprep.subr.mxu0 0.0
  %997 = vmatpush1.msra.mxu0 0.0
  %998 = vmatprep.subr.mxu0 0.0
  %999 = vmatpush1.msra.mxu0 0.0
  %1000 = vmatprep.subr.mxu0 0.0
  %1001 = vmatpush1.msra.mxu0 0.0
  %1002 = vmatprep.subr.mxu0 0.0
  %1003 = vmatpush1.msra.mxu0 0.0
  %1004 = vmatprep.subr.mxu0 0.0
  %1005 = vmatpush1.msra.mxu0 0.0
  %1006 = vmatprep.subr.mxu0 0.0
  %1007 = vmatpush1.msra.mxu0 0.0
  %1008 = vmatprep.subr.mxu0 0.0
  %1009 = vmatpush1.msra.mxu0 0.0
  %1010 = vmatprep.subr.mxu0 0.0
  %1011 = vmatpush1.msra.mxu0 0.0
  %1012 = vmatprep.subr.mxu0 0.0
  %1013 = vmatpush1.msra.mxu0 0.0
  %1014 = vmatprep.subr.mxu0 0.0
  %1015 = vmatpush1.msra.mxu0 0.0
  %1016 = vmatprep.mubr.f32.mxu0 0.0
  %1017 = vmatmul.mubr.f32.gmra.mrb[0].mxu0 %v950
  %v1018 = vpop.f32.mrb[0].mxu0
  %v1019 = vadd.f32 0.0, %v1018
  %v1020 = vpop.f32.mrb[0].mxu0
  %1021 = vdwg.mxu0
  %1022 = vmatprep.subr.mxu0 0.0
  %1023 = vmatpush1.msra.mxu0 %v34
  %1024 = vmatprep.subr.mxu0 0.0
  %1025 = vmatpush1.msra.mxu0 %v35
  %1026 = vmatprep.subr.mxu0 0.0
  %1027 = vmatpush1.msra.mxu0 %v36
  %1028 = vmatprep.subr.mxu0 0.0
  %1029 = vmatpush1.msra.mxu0 %v37
  %1030 = vmatprep.subr.mxu0 0.0
  %1031 = vmatpush1.msra.mxu0 0.0
  %1032 = vmatprep.subr.mxu0 0.0
  %1033 = vmatpush1.msra.mxu0 0.0
  %1034 = vmatprep.subr.mxu0 0.0
  %1035 = vmatpush1.msra.mxu0 0.0
  %1036 = vmatprep.subr.mxu0 0.0
  %1037 = vmatpush1.msra.mxu0 0.0
  %1038 = vmatprep.subr.mxu0 0.0
  %1039 = vmatpush1.msra.mxu0 0.0
  %1040 = vmatprep.subr.mxu0 0.0
  %1041 = vmatpush1.msra.mxu0 0.0
  %1042 = vmatprep.subr.mxu0 0.0
  %1043 = vmatpush1.msra.mxu0 0.0
  %1044 = vmatprep.subr.mxu0 0.0
  %1045 = vmatpush1.msra.mxu0 0.0
  %1046 = vmatprep.subr.mxu0 0.0
  %1047 = vmatpush1.msra.mxu0 0.0
  %1048 = vmatprep.subr.mxu0 0.0
  %1049 = vmatpush1.msra.mxu0 0.0
  %1050 = vmatprep.subr.mxu0 0.0
  %1051 = vmatpush1.msra.mxu0 0.0
  %1052 = vmatprep.subr.mxu0 0.0
  %1053 = vmatpush1.msra.mxu0 0.0
  %1054 = vmatprep.subr.mxu0 0.0
  %1055 = vmatpush1.msra.mxu0 0.0
  %1056 = vmatprep.subr.mxu0 0.0
  %1057 = vmatpush1.msra.mxu0 0.0
  %1058 = vmatprep.subr.mxu0 0.0
  %1059 = vmatpush1.msra.mxu0 0.0
  %1060 = vmatprep.subr.mxu0 0.0
  %1061 = vmatpush1.msra.mxu0 0.0
  %1062 = vmatprep.subr.mxu0 0.0
  %1063 = vmatpush1.msra.mxu0 0.0
  %1064 = vmatprep.subr.mxu0 0.0
  %1065 = vmatpush1.msra.mxu0 0.0
  %1066 = vmatprep.subr.mxu0 0.0
  %1067 = vmatpush1.msra.mxu0 0.0
  %1068 = vmatprep.subr.mxu0 0.0
  %1069 = vmatpush1.msra.mxu0 0.0
  %1070 = vmatprep.subr.mxu0 0.0
  %1071 = vmatpush1.msra.mxu0 0.0
  %1072 = vmatprep.subr.mxu0 0.0
  %1073 = vmatpush1.msra.mxu0 0.0
  %1074 = vmatprep.subr.mxu0 0.0
  %1075 = vmatpush1.msra.mxu0 0.0
  %1076 = vmatprep.subr.mxu0 0.0
  %1077 = vmatpush1.msra.mxu0 0.0
  %1078 = vmatprep.subr.mxu0 0.0
  %1079 = vmatpush1.msra.mxu0 0.0
  %1080 = vmatprep.subr.mxu0 0.0
  %1081 = vmatpush1.msra.mxu0 0.0
  %1082 = vmatprep.subr.mxu0 0.0
  %1083 = vmatpush1.msra.mxu0 0.0
  %1084 = vmatprep.subr.mxu0 0.0
  %1085 = vmatpush1.msra.mxu0 0.0
  %1086 = vmatprep.mubr.f32.mxu0 0.0
  %1087 = vmatmul.mubr.f32.gmra.mrb[0].mxu0 %v950
  %v1088 = vpop.f32.mrb[0].mxu0
  %v1089 = vadd.f32 %v52, %v1088
  %v1090 = vpop.f32.mrb[0].mxu0
  %1091 = vdwg.mxu0
  %v1093 = vrot.slane %v1019, 6
  %v1095 = vadd.f32 %v176, %v1093
  %v1096 = vmul.f32 %v1095, 0.5
  %v1097 = vtanh.pop %v1096
  %v1098 = vadd.f32 %v1097, 1.0
  %v1099 = vmul.f32 %v1098, 0.5
  %v1101 = vrot.slane %v1089, 6
  %v1103 = vmul.f32 %v1099, %v1101
  %v1104 = vadd.f32 %v258, %v1103
  %v1105 = vtanh.pop %v1104
  %v1106 = vsub.f32 1.0, %v1099
  %1108 = vrot.lane.b32.xlu0 %v1105, 32
  %v1109 = vpop.permute.xlu0 %1108
  %v1111 = vmul.f32 %v1106, %v1109
  %v1112 = vrot.slane %v946, 6
  %v1114 = vmul.f32 %v1099, %v1112
  %v1115 = vadd.f32 %v1111, %v1114
  %v1117 = vrot.slane %v1115, 2
  %1118 = vrot.lane.b32.xlu0 %v1117, 96
  %v1119 = vpop.permute.xlu0 %1118
  %v1120 = vsel %vm277, %v1119, 0
  %1122 = vmatprep.subr.mxu0 0.0
  %1123 = vmatpush1.msra.mxu0 %v18
  %1124 = vmatprep.subr.mxu0 0.0
  %1125 = vmatpush1.msra.mxu0 %v19
  %1126 = vmatprep.subr.mxu0 0.0
  %1127 = vmatpush1.msra.mxu0 %v20
  %1128 = vmatprep.subr.mxu0 0.0
  %1129 = vmatpush1.msra.mxu0 %v21
  %1130 = vmatprep.subr.mxu0 0.0
  %1131 = vmatpush1.msra.mxu0 0.0
  %1132 = vmatprep.subr.mxu0 0.0
  %1133 = vmatpush1.msra.mxu0 0.0
  %1134 = vmatprep.subr.mxu0 0.0
  %1135 = vmatpush1.msra.mxu0 0.0
  %1136 = vmatprep.subr.mxu0 0.0
  %1137 = vmatpush1.msra.mxu0 0.0
  %1138 = vmatprep.subr.mxu0 0.0
  %1139 = vmatpush1.msra.mxu0 0.0
  %1140 = vmatprep.subr.mxu0 0.0
  %1141 = vmatpush1.msra.mxu0 0.0
  %1142 = vmatprep.subr.mxu0 0.0
  %1143 = vmatpush1.msra.mxu0 0.0
  %1144 = vmatprep.subr.mxu0 0.0
  %1145 = vmatpush1.msra.mxu0 0.0
  %1146 = vmatprep.subr.mxu0 0.0
  %1147 = vmatpush1.msra.mxu0 0.0
  %1148 = vmatprep.subr.mxu0 0.0
  %1149 = vmatpush1.msra.mxu0 0.0
  %1150 = vmatprep.subr.mxu0 0.0
  %1151 = vmatpush1.msra.mxu0 0.0
  %1152 = vmatprep.subr.mxu0 0.0
  %1153 = vmatpush1.msra.mxu0 0.0
  %1154 = vmatprep.subr.mxu0 0.0
  %1155 = vmatpush1.msra.mxu0 0.0
  %1156 = vmatprep.subr.mxu0 0.0
  %1157 = vmatpush1.msra.mxu0 0.0
  %1158 = vmatprep.subr.mxu0 0.0
  %1159 = vmatpush1.msra.mxu0 0.0
  %1160 = vmatprep.subr.mxu0 0.0
  %1161 = vmatpush1.msra.mxu0 0.0
  %1162 = vmatprep.subr.mxu0 0.0
  %1163 = vmatpush1.msra.mxu0 0.0
  %1164 = vmatprep.subr.mxu0 0.0
  %1165 = vmatpush1.msra.mxu0 0.0
  %1166 = vmatprep.subr.mxu0 0.0
  %1167 = vmatpush1.msra.mxu0 0.0
  %1168 = vmatprep.subr.mxu0 0.0
  %1169 = vmatpush1.msra.mxu0 0.0
  %1170 = vmatprep.subr.mxu0 0.0
  %1171 = vmatpush1.msra.mxu0 0.0
  %1172 = vmatprep.subr.mxu0 0.0
  %1173 = vmatpush1.msra.mxu0 0.0
  %1174 = vmatprep.subr.mxu0 0.0
  %1175 = vmatpush1.msra.mxu0 0.0
  %1176 = vmatprep.subr.mxu0 0.0
  %1177 = vmatpush1.msra.mxu0 0.0
  %1178 = vmatprep.subr.mxu0 0.0
  %1179 = vmatpush1.msra.mxu0 0.0
  %1180 = vmatprep.subr.mxu0 0.0
  %1181 = vmatpush1.msra.mxu0 0.0
  %1182 = vmatprep.subr.mxu0 0.0
  %1183 = vmatpush1.msra.mxu0 0.0
  %1184 = vmatprep.subr.mxu0 0.0
  %1185 = vmatpush1.msra.mxu0 0.0
  %1186 = vmatprep.mubr.f32.mxu0 0.0
  %1187 = vmatmul.mubr.f32.gmra.mrb[0].mxu0 %v1120
  %v1188 = vpop.f32.mrb[0].mxu0
  %v1189 = vadd.f32 0.0, %v1188
  %v1190 = vpop.f32.mrb[0].mxu0
  %1191 = vdwg.mxu0
  %1192 = vmatprep.subr.mxu0 0.0
  %1193 = vmatpush1.msra.mxu0 %v34
  %1194 = vmatprep.subr.mxu0 0.0
  %1195 = vmatpush1.msra.mxu0 %v35
  %1196 = vmatprep.subr.mxu0 0.0
  %1197 = vmatpush1.msra.mxu0 %v36
  %1198 = vmatprep.subr.mxu0 0.0
  %1199 = vmatpush1.msra.mxu0 %v37
  %1200 = vmatprep.subr.mxu0 0.0
  %1201 = vmatpush1.msra.mxu0 0.0
  %1202 = vmatprep.subr.mxu0 0.0
  %1203 = vmatpush1.msra.mxu0 0.0
  %1204 = vmatprep.subr.mxu0 0.0
  %1205 = vmatpush1.msra.mxu0 0.0
  %1206 = vmatprep.subr.mxu0 0.0
  %1207 = vmatpush1.msra.mxu0 0.0
  %1208 = vmatprep.subr.mxu0 0.0
  %1209 = vmatpush1.msra.mxu0 0.0
  %1210 = vmatprep.subr.mxu0 0.0
  %1211 = vmatpush1.msra.mxu0 0.0
  %1212 = vmatprep.subr.mxu0 0.0
  %1213 = vmatpush1.msra.mxu0 0.0
  %1214 = vmatprep.subr.mxu0 0.0
  %1215 = vmatpush1.msra.mxu0 0.0
  %1216 = vmatprep.subr.mxu0 0.0
  %1217 = vmatpush1.msra.mxu0 0.0
  %1218 = vmatprep.subr.mxu0 0.0
  %1219 = vmatpush1.msra.mxu0 0.0
  %1220 = vmatprep.subr.mxu0 0.0
  %1221 = vmatpush1.msra.mxu0 0.0
  %1222 = vmatprep.subr.mxu0 0.0
  %1223 = vmatpush1.msra.mxu0 0.0
  %1224 = vmatprep.subr.mxu0 0.0
  %1225 = vmatpush1.msra.mxu0 0.0
  %1226 = vmatprep.subr.mxu0 0.0
  %1227 = vmatpush1.msra.mxu0 0.0
  %1228 = vmatprep.subr.mxu0 0.0
  %1229 = vmatpush1.msra.mxu0 0.0
  %1230 = vmatprep.subr.mxu0 0.0
  %1231 = vmatpush1.msra.mxu0 0.0
  %1232 = vmatprep.subr.mxu0 0.0
  %1233 = vmatpush1.msra.mxu0 0.0
  %1234 = vmatprep.subr.mxu0 0.0
  %1235 = vmatpush1.msra.mxu0 0.0
  %1236 = vmatprep.subr.mxu0 0.0
  %1237 = vmatpush1.msra.mxu0 0.0
  %1238 = vmatprep.subr.mxu0 0.0
  %1239 = vmatpush1.msra.mxu0 0.0
  %1240 = vmatprep.subr.mxu0 0.0
  %1241 = vmatpush1.msra.mxu0 0.0
  %1242 = vmatprep.subr.mxu0 0.0
  %1243 = vmatpush1.msra.mxu0 0.0
  %1244 = vmatprep.subr.mxu0 0.0
  %1245 = vmatpush1.msra.mxu0 0.0
  %1246 = vmatprep.subr.mxu0 0.0
  %1247 = vmatpush1.msra.mxu0 0.0
  %1248 = vmatprep.subr.mxu0 0.0
  %1249 = vmatpush1.msra.mxu0 0.0
  %1250 = vmatprep.subr.mxu0 0.0
  %1251 = vmatpush1.msra.mxu0 0.0
  %1252 = vmatprep.subr.mxu0 0.0
  %1253 = vmatpush1.msra.mxu0 0.0
  %1254 = vmatprep.subr.mxu0 0.0
  %1255 = vmatpush1.msra.mxu0 0.0
  %1256 = vmatprep.mubr.f32.mxu0 0.0
  %1257 = vmatmul.mubr.f32.gmra.mrb[0].mxu0 %v1120
  %v1258 = vpop.f32.mrb[0].mxu0
  %v1259 = vadd.f32 %v52, %v1258
  %v1260 = vpop.f32.mrb[0].mxu0
  %1261 = vdwg.mxu0
  %v1263 = vrot.slane %v1189, 4
  %v1265 = vadd.f32 %v176, %v1263
  %v1266 = vmul.f32 %v1265, 0.5
  %v1267 = vtanh.pop %v1266
  %v1268 = vadd.f32 %v1267, 1.0
  %v1269 = vmul.f32 %v1268, 0.5
  %v1271 = vrot.slane %v1259, 4
  %v1273 = vmul.f32 %v1269, %v1271
  %v1274 = vadd.f32 %v258, %v1273
  %v1275 = vtanh.pop %v1274
  %v1276 = vsub.f32 1.0, %v1269
  %1278 = vrot.lane.b32.xlu0 %v1275, 32
  %v1279 = vpop.permute.xlu0 %1278
  %v1281 = vmul.f32 %v1276, %v1279
  %v1282 = vrot.slane %v1115, 6
  %v1284 = vmul.f32 %v1269, %v1282
  %v1285 = vadd.f32 %v1281, %v1284
  %v1287 = vrot.slane %v1285, 4
  %1288 = vrot.lane.b32.xlu0 %v1287, 96
  %v1289 = vpop.permute.xlu0 %1288
  %v1290 = vsel %vm277, %v1289, 0
  %1292 = vmatprep.subr.mxu0 0.0
  %1293 = vmatpush1.msra.mxu0 %v18
  %1294 = vmatprep.subr.mxu0 0.0
  %1295 = vmatpush1.msra.mxu0 %v19
  %1296 = vmatprep.subr.mxu0 0.0
  %1297 = vmatpush1.msra.mxu0 %v20
  %1298 = vmatprep.subr.mxu0 0.0
  %1299 = vmatpush1.msra.mxu0 %v21
  %1300 = vmatprep.subr.mxu0 0.0
  %1301 = vmatpush1.msra.mxu0 0.0
  %1302 = vmatprep.subr.mxu0 0.0
  %1303 = vmatpush1.msra.mxu0 0.0
  %1304 = vmatprep.subr.mxu0 0.0
  %1305 = vmatpush1.msra.mxu0 0.0
  %1306 = vmatprep.subr.mxu0 0.0
  %1307 = vmatpush1.msra.mxu0 0.0
  %1308 = vmatprep.subr.mxu0 0.0
  %1309 = vmatpush1.msra.mxu0 0.0
  %1310 = vmatprep.subr.mxu0 0.0
  %1311 = vmatpush1.msra.mxu0 0.0
  %1312 = vmatprep.subr.mxu0 0.0
  %1313 = vmatpush1.msra.mxu0 0.0
  %1314 = vmatprep.subr.mxu0 0.0
  %1315 = vmatpush1.msra.mxu0 0.0
  %1316 = vmatprep.subr.mxu0 0.0
  %1317 = vmatpush1.msra.mxu0 0.0
  %1318 = vmatprep.subr.mxu0 0.0
  %1319 = vmatpush1.msra.mxu0 0.0
  %1320 = vmatprep.subr.mxu0 0.0
  %1321 = vmatpush1.msra.mxu0 0.0
  %1322 = vmatprep.subr.mxu0 0.0
  %1323 = vmatpush1.msra.mxu0 0.0
  %1324 = vmatprep.subr.mxu0 0.0
  %1325 = vmatpush1.msra.mxu0 0.0
  %1326 = vmatprep.subr.mxu0 0.0
  %1327 = vmatpush1.msra.mxu0 0.0
  %1328 = vmatprep.subr.mxu0 0.0
  %1329 = vmatpush1.msra.mxu0 0.0
  %1330 = vmatprep.subr.mxu0 0.0
  %1331 = vmatpush1.msra.mxu0 0.0
  %1332 = vmatprep.subr.mxu0 0.0
  %1333 = vmatpush1.msra.mxu0 0.0
  %1334 = vmatprep.subr.mxu0 0.0
  %1335 = vmatpush1.msra.mxu0 0.0
  %1336 = vmatprep.subr.mxu0 0.0
  %1337 = vmatpush1.msra.mxu0 0.0
  %1338 = vmatprep.subr.mxu0 0.0
  %1339 = vmatpush1.msra.mxu0 0.0
  %1340 = vmatprep.subr.mxu0 0.0
  %1341 = vmatpush1.msra.mxu0 0.0
  %1342 = vmatprep.subr.mxu0 0.0
  %1343 = vmatpush1.msra.mxu0 0.0
  %1344 = vmatprep.subr.mxu0 0.0
  %1345 = vmatpush1.msra.mxu0 0.0
  %1346 = vmatprep.subr.mxu0 0.0
  %1347 = vmatpush1.msra.mxu0 0.0
  %1348 = vmatprep.subr.mxu0 0.0
  %1349 = vmatpush1.msra.mxu0 0.0
  %1350 = vmatprep.subr.mxu0 0.0
  %1351 = vmatpush1.msra.mxu0 0.0
  %1352 = vmatprep.subr.mxu0 0.0
  %1353 = vmatpush1.msra.mxu0 0.0
  %1354 = vmatprep.subr.mxu0 0.0
  %1355 = vmatpush1.msra.mxu0 0.0
  %1356 = vmatprep.mubr.f32.mxu0 0.0
  %1357 = vmatmul.mubr.f32.gmra.mrb[0].mxu0 %v1290
  %v1358 = vpop.f32.mrb[0].mxu0
  %v1359 = vadd.f32 0.0, %v1358
  %v1360 = vpop.f32.mrb[0].mxu0
  %1361 = vdwg.mxu0
  %1362 = vmatprep.subr.mxu0 0.0
  %1363 = vmatpush1.msra.mxu0 %v34
  %1364 = vmatprep.subr.mxu0 0.0
  %1365 = vmatpush1.msra.mxu0 %v35
  %1366 = vmatprep.subr.mxu0 0.0
  %1367 = vmatpush1.msra.mxu0 %v36
  %1368 = vmatprep.subr.mxu0 0.0
  %1369 = vmatpush1.msra.mxu0 %v37
  %1370 = vmatprep.subr.mxu0 0.0
  %1371 = vmatpush1.msra.mxu0 0.0
  %1372 = vmatprep.subr.mxu0 0.0
  %1373 = vmatpush1.msra.mxu0 0.0
  %1374 = vmatprep.subr.mxu0 0.0
  %1375 = vmatpush1.msra.mxu0 0.0
  %1376 = vmatprep.subr.mxu0 0.0
  %1377 = vmatpush1.msra.mxu0 0.0
  %1378 = vmatprep.subr.mxu0 0.0
  %1379 = vmatpush1.msra.mxu0 0.0
  %1380 = vmatprep.subr.mxu0 0.0
  %1381 = vmatpush1.msra.mxu0 0.0
  %1382 = vmatprep.subr.mxu0 0.0
  %1383 = vmatpush1.msra.mxu0 0.0
  %1384 = vmatprep.subr.mxu0 0.0
  %1385 = vmatpush1.msra.mxu0 0.0
  %1386 = vmatprep.subr.mxu0 0.0
  %1387 = vmatpush1.msra.mxu0 0.0
  %1388 = vmatprep.subr.mxu0 0.0
  %1389 = vmatpush1.msra.mxu0 0.0
  %1390 = vmatprep.subr.mxu0 0.0
  %1391 = vmatpush1.msra.mxu0 0.0
  %1392 = vmatprep.subr.mxu0 0.0
  %1393 = vmatpush1.msra.mxu0 0.0
  %1394 = vmatprep.subr.mxu0 0.0
  %1395 = vmatpush1.msra.mxu0 0.0
  %1396 = vmatprep.subr.mxu0 0.0
  %1397 = vmatpush1.msra.mxu0 0.0
  %1398 = vmatprep.subr.mxu0 0.0
  %1399 = vmatpush1.msra.mxu0 0.0
  %1400 = vmatprep.subr.mxu0 0.0
  %1401 = vmatpush1.msra.mxu0 0.0
  %1402 = vmatprep.subr.mxu0 0.0
  %1403 = vmatpush1.msra.mxu0 0.0
  %1404 = vmatprep.subr.mxu0 0.0
  %1405 = vmatpush1.msra.mxu0 0.0
  %1406 = vmatprep.subr.mxu0 0.0
  %1407 = vmatpush1.msra.mxu0 0.0
  %1408 = vmatprep.subr.mxu0 0.0
  %1409 = vmatpush1.msra.mxu0 0.0
  %1410 = vmatprep.subr.mxu0 0.0
  %1411 = vmatpush1.msra.mxu0 0.0
  %1412 = vmatprep.subr.mxu0 0.0
  %1413 = vmatpush1.msra.mxu0 0.0
  %1414 = vmatprep.subr.mxu0 0.0
  %1415 = vmatpush1.msra.mxu0 0.0
  %1416 = vmatprep.subr.mxu0 0.0
  %1417 = vmatpush1.msra.mxu0 0.0
  %1418 = vmatprep.subr.mxu0 0.0
  %1419 = vmatpush1.msra.mxu0 0.0
  %1420 = vmatprep.subr.mxu0 0.0
  %1421 = vmatpush1.msra.mxu0 0.0
  %1422 = vmatprep.subr.mxu0 0.0
  %1423 = vmatpush1.msra.mxu0 0.0
  %1424 = vmatprep.subr.mxu0 0.0
  %1425 = vmatpush1.msra.mxu0 0.0
  %1426 = vmatprep.mubr.f32.mxu0 0.0
  %1427 = vmatmul.mubr.f32.gmra.mrb[0].mxu0 %v1290
  %v1428 = vpop.f32.mrb[0].mxu0
  %v1429 = vadd.f32 %v52, %v1428
  %v1430 = vpop.f32.mrb[0].mxu0
  %1431 = vdwg.mxu0
  %v1433 = vrot.slane %v1359, 2
  %v1435 = vadd.f32 %v176, %v1433
  %v1436 = vmul.f32 %v1435, 0.5
  %v1437 = vtanh.pop %v1436
  %v1438 = vadd.f32 %v1437, 1.0
  %v1439 = vmul.f32 %v1438, 0.5
  %v1441 = vrot.slane %v1429, 2
  %v1443 = vmul.f32 %v1439, %v1441
  %v1444 = vadd.f32 %v258, %v1443
  %v1445 = vtanh.pop %v1444
  %v1446 = vsub.f32 1.0, %v1439
  %1448 = vrot.lane.b32.xlu0 %v1445, 32
  %v1449 = vpop.permute.xlu0 %1448
  %v1451 = vmul.f32 %v1446, %v1449
  %v1452 = vrot.slane %v1285, 6
  %v1454 = vmul.f32 %v1439, %v1452
  %v1455 = vadd.f32 %v1451, %v1454
  %v1457 = vrot.slane %v1455, 6
  %1458 = vrot.lane.b32.xlu0 %v1457, 96
  %v1459 = vpop.permute.xlu0 %1458
  %v1460 = vsel %vm277, %v1459, 0
  %1462 = vmatprep.subr.mxu0 0.0
  %1463 = vmatpush1.msra.mxu0 %v23
  %1464 = vmatprep.subr.mxu0 0.0
  %1465 = vmatpush1.msra.mxu0 %v24
  %1466 = vmatprep.subr.mxu0 0.0
  %1467 = vmatpush1.msra.mxu0 %v25
  %1468 = vmatprep.subr.mxu0 0.0
  %1469 = vmatpush1.msra.mxu0 %v26
  %1470 = vmatprep.subr.mxu0 0.0
  %1471 = vmatpush1.msra.mxu0 0.0
  %1472 = vmatprep.subr.mxu0 0.0
  %1473 = vmatpush1.msra.mxu0 0.0
  %1474 = vmatprep.subr.mxu0 0.0
  %1475 = vmatpush1.msra.mxu0 0.0
  %1476 = vmatprep.subr.mxu0 0.0
  %1477 = vmatpush1.msra.mxu0 0.0
  %1478 = vmatprep.subr.mxu0 0.0
  %1479 = vmatpush1.msra.mxu0 0.0
  %1480 = vmatprep.subr.mxu0 0.0
  %1481 = vmatpush1.msra.mxu0 0.0
  %1482 = vmatprep.subr.mxu0 0.0
  %1483 = vmatpush1.msra.mxu0 0.0
  %1484 = vmatprep.subr.mxu0 0.0
  %1485 = vmatpush1.msra.mxu0 0.0
  %1486 = vmatprep.subr.mxu0 0.0
  %1487 = vmatpush1.msra.mxu0 0.0
  %1488 = vmatprep.subr.mxu0 0.0
  %1489 = vmatpush1.msra.mxu0 0.0
  %1490 = vmatprep.subr.mxu0 0.0
  %1491 = vmatpush1.msra.mxu0 0.0
  %1492 = vmatprep.subr.mxu0 0.0
  %1493 = vmatpush1.msra.mxu0 0.0
  %1494 = vmatprep.subr.mxu0 0.0
  %1495 = vmatpush1.msra.mxu0 0.0
  %1496 = vmatprep.subr.mxu0 0.0
  %1497 = vmatpush1.msra.mxu0 0.0
  %1498 = vmatprep.subr.mxu0 0.0
  %1499 = vmatpush1.msra.mxu0 0.0
  %1500 = vmatprep.subr.mxu0 0.0
  %1501 = vmatpush1.msra.mxu0 0.0
  %1502 = vmatprep.subr.mxu0 0.0
  %1503 = vmatpush1.msra.mxu0 0.0
  %1504 = vmatprep.subr.mxu0 0.0
  %1505 = vmatpush1.msra.mxu0 0.0
  %1506 = vmatprep.subr.mxu0 0.0
  %1507 = vmatpush1.msra.mxu0 0.0
  %1508 = vmatprep.subr.mxu0 0.0
  %1509 = vmatpush1.msra.mxu0 0.0
  %1510 = vmatprep.subr.mxu0 0.0
  %1511 = vmatpush1.msra.mxu0 0.0
  %1512 = vmatprep.subr.mxu0 0.0
  %1513 = vmatpush1.msra.mxu0 0.0
  %1514 = vmatprep.subr.mxu0 0.0
  %1515 = vmatpush1.msra.mxu0 0.0
  %1516 = vmatprep.subr.mxu0 0.0
  %1517 = vmatpush1.msra.mxu0 0.0
  %1518 = vmatprep.subr.mxu0 0.0
  %1519 = vmatpush1.msra.mxu0 0.0
  %1520 = vmatprep.subr.mxu0 0.0
  %1521 = vmatpush1.msra.mxu0 0.0
  %1522 = vmatprep.subr.mxu0 0.0
  %1523 = vmatpush1.msra.mxu0 0.0
  %1524 = vmatprep.subr.mxu0 0.0
  %1525 = vmatpush1.msra.mxu0 0.0
  %1526 = vmatprep.mubr.f32.mxu0 0.0
  %1527 = vmatmul.mubr.f32.gmra.mrb[0].mxu0 %v1460
  %v1528 = vpop.f32.mrb[0].mxu0
  %v1529 = vadd.f32 0.0, %v1528
  %v1530 = vpop.f32.mrb[0].mxu0
  %1531 = vdwg.mxu0
  %1532 = vmatprep.subr.mxu0 0.0
  %1533 = vmatpush1.msra.mxu0 %v39
  %1534 = vmatprep.subr.mxu0 0.0
  %1535 = vmatpush1.msra.mxu0 %v40
  %1536 = vmatprep.subr.mxu0 0.0
  %1537 = vmatpush1.msra.mxu0 %v41
  %1538 = vmatprep.subr.mxu0 0.0
  %1539 = vmatpush1.msra.mxu0 %v42
  %1540 = vmatprep.subr.mxu0 0.0
  %1541 = vmatpush1.msra.mxu0 0.0
  %1542 = vmatprep.subr.mxu0 0.0
  %1543 = vmatpush1.msra.mxu0 0.0
  %1544 = vmatprep.subr.mxu0 0.0
  %1545 = vmatpush1.msra.mxu0 0.0
  %1546 = vmatprep.subr.mxu0 0.0
  %1547 = vmatpush1.msra.mxu0 0.0
  %1548 = vmatprep.subr.mxu0 0.0
  %1549 = vmatpush1.msra.mxu0 0.0
  %1550 = vmatprep.subr.mxu0 0.0
  %1551 = vmatpush1.msra.mxu0 0.0
  %1552 = vmatprep.subr.mxu0 0.0
  %1553 = vmatpush1.msra.mxu0 0.0
  %1554 = vmatprep.subr.mxu0 0.0
  %1555 = vmatpush1.msra.mxu0 0.0
  %1556 = vmatprep.subr.mxu0 0.0
  %1557 = vmatpush1.msra.mxu0 0.0
  %1558 = vmatprep.subr.mxu0 0.0
  %1559 = vmatpush1.msra.mxu0 0.0
  %1560 = vmatprep.subr.mxu0 0.0
  %1561 = vmatpush1.msra.mxu0 0.0
  %1562 = vmatprep.subr.mxu0 0.0
  %1563 = vmatpush1.msra.mxu0 0.0
  %1564 = vmatprep.subr.mxu0 0.0
  %1565 = vmatpush1.msra.mxu0 0.0
  %1566 = vmatprep.subr.mxu0 0.0
  %1567 = vmatpush1.msra.mxu0 0.0
  %1568 = vmatprep.subr.mxu0 0.0
  %1569 = vmatpush1.msra.mxu0 0.0
  %1570 = vmatprep.subr.mxu0 0.0
  %1571 = vmatpush1.msra.mxu0 0.0
  %1572 = vmatprep.subr.mxu0 0.0
  %1573 = vmatpush1.msra.mxu0 0.0
  %1574 = vmatprep.subr.mxu0 0.0
  %1575 = vmatpush1.msra.mxu0 0.0
  %1576 = vmatprep.subr.mxu0 0.0
  %1577 = vmatpush1.msra.mxu0 0.0
  %1578 = vmatprep.subr.mxu0 0.0
  %1579 = vmatpush1.msra.mxu0 0.0
  %1580 = vmatprep.subr.mxu0 0.0
  %1581 = vmatpush1.msra.mxu0 0.0
  %1582 = vmatprep.subr.mxu0 0.0
  %1583 = vmatpush1.msra.mxu0 0.0
  %1584 = vmatprep.subr.mxu0 0.0
  %1585 = vmatpush1.msra.mxu0 0.0
  %1586 = vmatprep.subr.mxu0 0.0
  %1587 = vmatpush1.msra.mxu0 0.0
  %1588 = vmatprep.subr.mxu0 0.0
  %1589 = vmatpush1.msra.mxu0 0.0
  %1590 = vmatprep.subr.mxu0 0.0
  %1591 = vmatpush1.msra.mxu0 0.0
  %1592 = vmatprep.subr.mxu0 0.0
  %1593 = vmatpush1.msra.mxu0 0.0
  %1594 = vmatprep.subr.mxu0 0.0
  %1595 = vmatpush1.msra.mxu0 0.0
  %1596 = vmatprep.mubr.f32.mxu0 0.0
  %1597 = vmatmul.mubr.f32.gmra.mrb[0].mxu0 %v1460
  %v1598 = vpop.f32.mrb[0].mxu0
  %v1599 = vadd.f32 %v62, %v1598
  %v1600 = vpop.f32.mrb[0].mxu0
  %1601 = vdwg.mxu0
  %v1602 = vadd.f32 %v32, %v1529
  %v1603 = vmul.f32 %v1602, 0.5
  %v1604 = vtanh.pop %v1603
  %v1605 = vadd.f32 %v1604, 1.0
  %v1606 = vmul.f32 %v1605, 0.5
  %v1607 = vmul.f32 %v1606, %v1599
  %v1608 = vadd.f32 %v57, %v1607
  %v1609 = vtanh.pop %v1608
  %v1610 = vsub.f32 1.0, %v1606
  %1612 = vrot.lane.b32.xlu0 %v1609, 32
  %v1613 = vpop.permute.xlu0 %1612
  %v1615 = vmul.f32 %v1610, %v1613
  %v1617 = vmul.f32 %v1606, %v1457
  %v1618 = vadd.f32 %v1615, %v1617
  %1620 = vrot.lane.b32.xlu0 %v1618, 96
  %v1621 = vpop.permute.xlu0 %1620
  %v1622 = vsel %vm277, %v1621, 0
  %1624 = vmatprep.subr.mxu0 0.0
  %1625 = vmatpush1.msra.mxu0 %v43
  %1626 = vmatprep.subr.mxu0 0.0
  %1627 = vmatpush1.msra.mxu0 %v44
  %1628 = vmatprep.subr.mxu0 0.0
  %1629 = vmatpush1.msra.mxu0 %v45
  %1630 = vmatprep.subr.mxu0 0.0
  %1631 = vmatpush1.msra.mxu0 %v46
  %1632 = vmatprep.subr.mxu0 0.0
  %1633 = vmatpush1.msra.mxu0 0.0
  %1634 = vmatprep.subr.mxu0 0.0
  %1635 = vmatpush1.msra.mxu0 0.0
  %1636 = vmatprep.subr.mxu0 0.0
  %1637 = vmatpush1.msra.mxu0 0.0
  %1638 = vmatprep.subr.mxu0 0.0
  %1639 = vmatpush1.msra.mxu0 0.0
  %1640 = vmatprep.subr.mxu0 0.0
  %1641 = vmatpush1.msra.mxu0 0.0
  %1642 = vmatprep.subr.mxu0 0.0
  %1643 = vmatpush1.msra.mxu0 0.0
  %1644 = vmatprep.subr.mxu0 0.0
  %1645 = vmatpush1.msra.mxu0 0.0
  %1646 = vmatprep.subr.mxu0 0.0
  %1647 = vmatpush1.msra.mxu0 0.0
  %1648 = vmatprep.subr.mxu0 0.0
  %1649 = vmatpush1.msra.mxu0 0.0
  %1650 = vmatprep.subr.mxu0 0.0
  %1651 = vmatpush1.msra.mxu0 0.0
  %1652 = vmatprep.subr.mxu0 0.0
  %1653 = vmatpush1.msra.mxu0 0.0
  %1654 = vmatprep.subr.mxu0 0.0
  %1655 = vmatpush1.msra.mxu0 0.0
  %1656 = vmatprep.subr.mxu0 0.0
  %1657 = vmatpush1.msra.mxu0 0.0
  %1658 = vmatprep.subr.mxu0 0.0
  %1659 = vmatpush1.msra.mxu0 0.0
  %1660 = vmatprep.subr.mxu0 0.0
  %1661 = vmatpush1.msra.mxu0 0.0
  %1662 = vmatprep.subr.mxu0 0.0
  %1663 = vmatpush1.msra.mxu0 0.0
  %1664 = vmatprep.subr.mxu0 0.0
  %1665 = vmatpush1.msra.mxu0 0.0
  %1666 = vmatprep.subr.mxu0 0.0
  %1667 = vmatpush1.msra.mxu0 0.0
  %1668 = vmatprep.subr.mxu0 0.0
  %1669 = vmatpush1.msra.mxu0 0.0
  %1670 = vmatprep.subr.mxu0 0.0
  %1671 = vmatpush1.msra.mxu0 0.0
  %1672 = vmatprep.subr.mxu0 0.0
  %1673 = vmatpush1.msra.mxu0 0.0
  %1674 = vmatprep.subr.mxu0 0.0
  %1675 = vmatpush1.msra.mxu0 0.0
  %1676 = vmatprep.subr.mxu0 0.0
  %1677 = vmatpush1.msra.mxu0 0.0
  %1678 = vmatprep.subr.mxu0 0.0
  %1679 = vmatpush1.msra.mxu0 0.0
  %1680 = vmatprep.subr.mxu0 0.0
  %1681 = vmatpush1.msra.mxu0 0.0
  %1682 = vmatprep.subr.mxu0 0.0
  %1683 = vmatpush1.msra.mxu0 0.0
  %1684 = vmatprep.subr.mxu0 0.0
  %1685 = vmatpush1.msra.mxu0 0.0
  %1686 = vmatprep.subr.mxu0 0.0
  %1687 = vmatpush1.msra.mxu0 0.0
  %1688 = vmatprep.mubr.f32.mxu0 0.0
  %1689 = vmatmul.mubr.f32.gmra.mrb[0].mxu0 %v1622
  %v1690 = vpop.f32.mrb[0].mxu0
  %v1691 = vadd.f32 %v67, %v1690
  %v1692 = vpop.f32.mrb[0].mxu0
  %1693 = vdwg.mxu0
  %vm1694 = vcmask 254976
  %v1695 = vsel %vm1694, %v1691, 0.0
  %1696 = vadd.xlane.f32.xlu0 %v1695
  %v1697 = vpop.xlane.xlu0 %1696
  %v1698 = vmul.f32 %v1691, %v1691
  %v1699 = vsel %vm1694, %v1698, 0.0
  %1700 = vadd.xlane.f32.xlu0 %v1699
  %v1701 = vpop.xlane.xlu0 %1700
  %v1702 = vmul.f32 %v1697, 0.03125
  %v1703 = vmul.f32 %v1701, 0.03125
  %v1704 = vmul.f32 %v1702, %v1702
  %v1705 = vsub.f32 %v1703, %v1704
  %v1706 = vsub.f32 %v1691, %v1702
  %v1707 = vadd.f32 %v1705, 1e-05
  %v1708 = vrsqrt.pop %v1707
  %v1709 = vmul.f32 %v1706, %v1708
  %v1710 = vmul.f32 %v1709, %v72
  %v1711 = vadd.f32 %v1710, %v77
  %v1712 = vmul.f32 %v1711, 0.5
  %v1713 = vmul.f32 %v1711, 0.044715
  %v1714 = vmul.f32 %v1713, %v1711
  %v1715 = vmul.f32 %v1714, %v1711
  %v1716 = vadd.f32 %v1711, %v1715
  %v1717 = vmul.f32 %v1716, 0.7978846
  %v1718 = vtanh.pop %v1717
  %v1719 = vadd.f32 %v1718, 1.0
  %v1720 = vmul.f32 %v1712, %v1719
  %v1722 = vsel %vm277, %v1720, 0
  %1724 = vmatprep.subr.mxu0 0.0
  %1725 = vmatpush1.msra.mxu0 %v78
  %1726 = vmatprep.subr.mxu0 0.0
  %1727 = vmatpush1.msra.mxu0 %v79
  %1728 = vmatprep.subr.mxu0 0.0
  %1729 = vmatpush1.msra.mxu0 %v80
  %1730 = vmatprep.subr.mxu0 0.0
  %1731 = vmatpush1.msra.mxu0 %v81
  %1732 = vmatprep.subr.mxu0 0.0
  %1733 = vmatpush1.msra.mxu0 0.0
  %1734 = vmatprep.subr.mxu0 0.0
  %1735 = vmatpush1.msra.mxu0 0.0
  %1736 = vmatprep.subr.mxu0 0.0
  %1737 = vmatpush1.msra.mxu0 0.0
  %1738 = vmatprep.subr.mxu0 0.0
  %1739 = vmatpush1.msra.mxu0 0.0
  %1740 = vmatprep.subr.mxu0 0.0
  %1741 = vmatpush1.msra.mxu0 0.0
  %1742 = vmatprep.subr.mxu0 0.0
  %1743 = vmatpush1.msra.mxu0 0.0
  %1744 = vmatprep.subr.mxu0 0.0
  %1745 = vmatpush1.msra.mxu0 0.0
  %1746 = vmatprep.subr.mxu0 0.0
  %1747 = vmatpush1.msra.mxu0 0.0
  %1748 = vmatprep.subr.mxu0 0.0
  %1749 = vmatpush1.msra.mxu0 0.0
  %1750 = vmatprep.subr.mxu0 0.0
  %1751 = vmatpush1.msra.mxu0 0.0
  %1752 = vmatprep.subr.mxu0 0.0
  %1753 = vmatpush1.msra.mxu0 0.0
  %1754 = vmatprep.subr.mxu0 0.0
  %1755 = vmatpush1.msra.mxu0 0.0
  %1756 = vmatprep.subr.mxu0 0.0
  %1757 = vmatpush1.msra.mxu0 0.0
  %1758 = vmatprep.subr.mxu0 0.0
  %1759 = vmatpush1.msra.mxu0 0.0
  %1760 = vmatprep.subr.mxu0 0.0
  %1761 = vmatpush1.msra.mxu0 0.0
  %1762 = vmatprep.subr.mxu0 0.0
  %1763 = vmatpush1.msra.mxu0 0.0
  %1764 = vmatprep.subr.mxu0 0.0
  %1765 = vmatpush1.msra.mxu0 0.0
  %1766 = vmatprep.subr.mxu0 0.0
  %1767 = vmatpush1.msra.mxu0 0.0
  %1768 = vmatprep.subr.mxu0 0.0
  %1769 = vmatpush1.msra.mxu0 0.0
  %1770 = vmatprep.subr.mxu0 0.0
  %1771 = vmatpush1.msra.mxu0 0.0
  %1772 = vmatprep.subr.mxu0 0.0
  %1773 = vmatpush1.msra.mxu0 0.0
  %1774 = vmatprep.subr.mxu0 0.0
  %1775 = vmatpush1.msra.mxu0 0.0
  %1776 = vmatprep.subr.mxu0 0.0
  %1777 = vmatpush1.msra.mxu0 0.0
  %1778 = vmatprep.subr.mxu0 0.0
  %1779 = vmatpush1.msra.mxu0 0.0
  %1780 = vmatprep.subr.mxu0 0.0
  %1781 = vmatpush1.msra.mxu0 0.0
  %1782 = vmatprep.subr.mxu0 0.0
  %1783 = vmatpush1.msra.mxu0 0.0
  %1784 = vmatprep.subr.mxu0 0.0
  %1785 = vmatpush1.msra.mxu0 0.0
  %1786 = vmatprep.subr.mxu0 0.0
  %1787 = vmatpush1.msra.mxu0 0.0
  %1788 = vmatprep.mubr.f32.mxu0 0.0
  %1789 = vmatmul.mubr.f32.gmra.mrb[0].mxu0 %v1722
  %v1790 = vpop.f32.mrb[0].mxu0
  %v1791 = vadd.f32 %v86, %v1790
  %v1792 = vpop.f32.mrb[0].mxu0
  %1793 = vdwg.mxu0
  %vm1794 = vcmask 25600
  %v1795 = vsel %vm1794, %v1791, -inf
  %1796 = vmax.xlane.f32.xlu0 %v1795
  %v1797 = vpop.xlane.xlu0 %1796
  %v1798 = vsub.f32 %v1791, %v1797
  %v1799 = vmul.f32 %v1798, 1.442695
  %v1800 = vpow.pop %v1799
  %v1801 = vsel %vm1794, %v1800, 0.0
  %1802 = vadd.xlane.f32.xlu0 %v1801
  %v1803 = vpop.xlane.xlu0 %1802
  %v1804 = vrcp.pop %v1803
  %v1805 = vmul.f32 1.0, %v1804
  %v1806 = vmul.f32 %v1800, %v1805
  %v1808 = vsel %vm93, %v1800, 0
  %v1811 = vsel %vm100, %v22, 0
  %1813 = vmatprep.subr.mxu0 0.0
  %1814 = vmatpush1.msra.mxu0 %v1811
  %1815 = vmatprep.subr.mxu0 0.0
  %1816 = vmatpush1.msra.mxu0 0.0
  %1817 = vmatprep.subr.mxu0 0.0
  %1818 = vmatpush1.msra.mxu0 0.0
  %1819 = vmatprep.subr.mxu0 0.0
  %1820 = vmatpush1.msra.mxu0 0.0
  %1821 = vmatprep.subr.mxu0 0.0
  %1822 = vmatpush1.msra.mxu0 0.0
  %1823 = vmatprep.subr.mxu0 0.0
  %1824 = vmatpush1.msra.mxu0 0.0
  %1825 = vmatprep.subr.mxu0 0.0
  %1826 = vmatpush1.msra.mxu0 0.0
  %1827 = vmatprep.subr.mxu0 0.0
  %1828 = vmatpush1.msra.mxu0 0.0
  %1829 = vmatprep.subr.mxu0 0.0
  %1830 = vmatpush1.msra.mxu0 0.0
  %1831 = vmatprep.subr.mxu0 0.0
  %1832 = vmatpush1.msra.mxu0 0.0
  %1833 = vmatprep.subr.mxu0 0.0
  %1834 = vmatpush1.msra.mxu0 0.0
  %1835 = vmatprep.subr.mxu0 0.0
  %1836 = vmatpush1.msra.mxu0 0.0
  %1837 = vmatprep.subr.mxu0 0.0
  %1838 = vmatpush1.msra.mxu0 0.0
  %1839 = vmatprep.subr.mxu0 0.0
  %1840 = vmatpush1.msra.mxu0 0.0
  %1841 = vmatprep.subr.mxu0 0.0
  %1842 = vmatpush1.msra.mxu0 0.0
  %1843 = vmatprep.subr.mxu0 0.0
  %1844 = vmatpush1.msra.mxu0 0.0
  %1845 = vmatprep.subr.mxu0 0.0
  %1846 = vmatpush1.msra.mxu0 0.0
  %1847 = vmatprep.subr.mxu0 0.0
  %1848 = vmatpush1.msra.mxu0 0.0
  %1849 = vmatprep.subr.mxu0 0.0
  %1850 = vmatpush1.msra.mxu0 0.0
  %1851 = vmatprep.subr.mxu0 0.0
  %1852 = vmatpush1.msra.mxu0 0.0
  %1853 = vmatprep.subr.mxu0 0.0
  %1854 = vmatpush1.msra.mxu0 0.0
  %1855 = vmatprep.subr.mxu0 0.0
  %1856 = vmatpush1.msra.mxu0 0.0
  %1857 = vmatprep.subr.mxu0 0.0
  %1858 = vmatpush1.msra.mxu0 0.0
  %1859 = vmatprep.subr.mxu0 0.0
  %1860 = vmatpush1.msra.mxu0 0.0
  %1861 = vmatprep.subr.mxu0 0.0
  %1862 = vmatpush1.msra.mxu0 0.0
  %1863 = vmatprep.subr.mxu0 0.0
  %1864 = vmatpush1.msra.mxu0 0.0
  %1865 = vmatprep.subr.mxu0 0.0
  %1866 = vmatpush1.msra.mxu0 0.0
  %1867 = vmatprep.subr.mxu0 0.0
  %1868 = vmatpush1.msra.mxu0 0.0
  %1869 = vmatprep.subr.mxu0 0.0
  %1870 = vmatpush1.msra.mxu0 0.0
  %1871 = vmatprep.subr.mxu0 0.0
  %1872 = vmatpush1.msra.mxu0 0.0
  %1873 = vmatprep.subr.mxu0 0.0
  %1874 = vmatpush1.msra.mxu0 0.0
  %1875 = vmatprep.subr.mxu0 0.0
  %1876 = vmatpush1.msra.mxu0 0.0
  %1877 = vmatprep.mubr.f32.mxu0 0.0
  %1878 = vmatmul.mubr.f32.gmra.mrb[0].mxu0 %v1808
  %v1879 = vpop.f32.mrb[0].mxu0
  %v1880 = vadd.f32 0.0, %v1879
  %v1881 = vpop.f32.mrb[0].mxu0
  %1882 = vdwg.mxu0
  %v1884 = vsel %vm100, %v38, 0
  %1886 = vmatprep.subr.mxu0 0.0
  %1887 = vmatpush1.msra.mxu0 %v1884
  %1888 = vmatprep.subr.mxu0 0.0
  %1889 = vmatpush1.msra.mxu0 0.0
  %1890 = vmatprep.subr.mxu0 0.0
  %1891 = vmatpush1.msra.mxu0 0.0
  %1892 = vmatprep.subr.mxu0 0.0
  %1893 = vmatpush1.msra.mxu0 0.0
  %1894 = vmatprep.subr.mxu0 0.0
  %1895 = vmatpush1.msra.mxu0 0.0
  %1896 = vmatprep.subr.mxu0 0.0
  %1897 = vmatpush1.msra.mxu0 0.0
  %1898 = vmatprep.subr.mxu0 0.0
  %1899 = vmatpush1.msra.mxu0 0.0
  %1900 = vmatprep.subr.mxu0 0.0
  %1901 = vmatpush1.msra.mxu0 0.0
  %1902 = vmatprep.subr.mxu0 0.0
  %1903 = vmatpush1.msra.mxu0 0.0
  %1904 = vmatprep.subr.mxu0 0.0
  %1905 = vmatpush1.msra.mxu0 0.0
  %1906 = vmatprep.subr.mxu0 0.0
  %1907 = vmatpush1.msra.mxu0 0.0
  %1908 = vmatprep.subr.mxu0 0.0
  %1909 = vmatpush1.msra.mxu0 0.0
  %1910 = vmatprep.subr.mxu0 0.0
  %1911 = vmatpush1.msra.mxu0 0.0
  %1912 = vmatprep.subr.mxu0 0.0
  %1913 = vmatpush1.msra.mxu0 0.0
  %1914 = vmatprep.subr.mxu0 0.0
  %1915 = vmatpush1.msra.mxu0 0.0
  %1916 = vmatprep.subr.mxu0 0.0
  %1917 = vmatpush1.msra.mxu0 0.0
  %1918 = vmatprep.subr.mxu0 0.0
  %1919 = vmatpush1.msra.mxu0 0.0
  %1920 = vmatprep.subr.mxu0 0.0
  %1921 = vmatpush1.msra.mxu0 0.0
  %1922 = vmatprep.subr.mxu0 0.0
  %1923 = vmatpush1.msra.mxu0 0.0
  %1924 = vmatprep.subr.mxu0 0.0
  %1925 = vmatpush1.msra.mxu0 0.0
  %1926 = vmatprep.subr.mxu0 0.0
  %1927 = vmatpush1.msra.mxu0 0.0
  %1928 = vmatprep.subr.mxu0 0.0
  %1929 = vmatpush1.msra.mxu0 0.0
  %1930 = vmatprep.subr.mxu0 0.0
  %1931 = vmatpush1.msra.mxu0 0.0
  %1932 = vmatprep.subr.mxu0 0.0
  %1933 = vmatpush1.msra.mxu0 0.0
  %1934 = vmatprep.subr.mxu0 0.0
  %1935 = vmatpush1.msra.mxu0 0.0
  %1936 = vmatprep.subr.mxu0 0.0
  %1937 = vmatpush1.msra.mxu0 0.0
  %1938 = vmatprep.subr.mxu0 0.0
  %1939 = vmatpush1.msra.mxu0 0.0
  %1940 = vmatprep.subr.mxu0 0.0
  %1941 = vmatpush1.msra.mxu0 0.0
  %1942 = vmatprep.subr.mxu0 0.0
  %1943 = vmatpush1.msra.mxu0 0.0
  %1944 = vmatprep.subr.mxu0 0.0
  %1945 = vmatpush1.msra.mxu0 0.0
  %1946 = vmatprep.subr.mxu0 0.0
  %1947 = vmatpush1.msra.mxu0 0.0
  %1948 = vmatprep.subr.mxu0 0.0
  %1949 = vmatpush1.msra.mxu0 0.0
  %1950 = vmatprep.mubr.f32.mxu0 0.0
  %1951 = vmatmul.mubr.f32.gmra.mrb[0].mxu0 %v1808
  %v1952 = vpop.f32.mrb[0].mxu0
  %v1953 = vadd.f32 0.0, %v1952
  %v1954 = vpop.f32.mrb[0].mxu0
  %1955 = vdwg.mxu0
  %v1956 = vmul.f32 %v1880, %v1805
  %v1957 = vadd.f32 %v1956, %v32
  %v1958 = vmul.f32 %v1953, %v1805
  %v1959 = vadd.f32 %v1958, %v57
  %1960 = vmatprep.subr.mxu0 0.0
  %1961 = vmatpush1.msra.mxu0 %v23
  %1962 = vmatprep.subr.mxu0 0.0
  %1963 = vmatpush1.msra.mxu0 %v24
  %1964 = vmatprep.subr.mxu0 0.0
  %1965 = vmatpush1.msra.mxu0 %v25
  %1966 = vmatprep.subr.mxu0 0.0
  %1967 = vmatpush1.msra.mxu0 %v26
  %1968 = vmatprep.subr.mxu0 0.0
  %1969 = vmatpush1.msra.mxu0 0.0
  %1970 = vmatprep.subr.mxu0 0.0
  %1971 = vmatpush1.msra.mxu0 0.0
  %1972 = vmatprep.subr.mxu0 0.0
  %1973 = vmatpush1.msra.mxu0 0.0
  %1974 = vmatprep.subr.mxu0 0.0
  %1975 = vmatpush1.msra.mxu0 0.0
  %1976 = vmatprep.subr.mxu0 0.0
  %1977 = vmatpush1.msra.mxu0 0.0
  %1978 = vmatprep.subr.mxu0 0.0
  %1979 = vmatpush1.msra.mxu0 0.0
  %1980 = vmatprep.subr.mxu0 0.0
  %1981 = vmatpush1.msra.mxu0 0.0
  %1982 = vmatprep.subr.mxu0 0.0
  %1983 = vmatpush1.msra.mxu0 0.0
  %1984 = vmatprep.subr.mxu0 0.0
  %1985 = vmatpush1.msra.mxu0 0.0
  %1986 = vmatprep.subr.mxu0 0.0
  %1987 = vmatpush1.msra.mxu0 0.0
  %1988 = vmatprep.subr.mxu0 0.0
  %1989 = vmatpush1.msra.mxu0 0.0
  %1990 = vmatprep.subr.mxu0 0.0
  %1991 = vmatpush1.msra.mxu0 0.0
  %1992 = vmatprep.subr.mxu0 0.0
  %1993 = vmatpush1.msra.mxu0 0.0
  %1994 = vmatprep.subr.mxu0 0.0
  %1995 = vmatpush1.msra.mxu0 0.0
  %1996 = vmatprep.subr.mxu0 0.0
  %1997 = vmatpush1.msra.mxu0 0.0
  %1998 = vmatprep.subr.mxu0 0.0
  %1999 = vmatpush1.msra.mxu0 0.0
  %2000 = vmatprep.subr.mxu0 0.0
  %2001 = vmatpush1.msra.mxu0 0.0
  %2002 = vmatprep.subr.mxu0 0.0
  %2003 = vmatpush1.msra.mxu0 0.0
  %2004 = vmatprep.subr.mxu0 0.0
  %2005 = vmatpush1.msra.mxu0 0.0
  %2006 = vmatprep.subr.mxu0 0.0
  %2007 = vmatpush1.msra.mxu0 0.0
  %2008 = vmatprep.subr.mxu0 0.0
  %2009 = vmatpush1.msra.mxu0 0.0
  %2010 = vmatprep.subr.mxu0 0.0
  %2011 = vmatpush1.msra.mxu0 0.0
  %2012 = vmatprep.subr.mxu0 0.0
  %2013 = vmatpush1.msra.mxu0 0.0
  %2014 = vmatprep.subr.mxu0 0.0
  %2015 = vmatpush1.msra.mxu0 0.0
  %2016 = vmatprep.subr.mxu0 0.0
  %2017 = vmatpush1.msra.mxu0 0.0
  %2018 = vmatprep.subr.mxu0 0.0
  %2019 = vmatpush1.msra.mxu0 0.0
  %2020 = vmatprep.subr.mxu0 0.0
  %2021 = vmatpush1.msra.mxu0 0.0
  %2022 = vmatprep.subr.mxu0 0.0
  %2023 = vmatpush1.msra.mxu0 0.0
  %2024 = vmatprep.mubr.f32.mxu0 0.0
  %2025 = vmatmul.mubr.f32.gmra.mrb[0].mxu0 %v1622
  %v2026 = vpop.f32.mrb[0].mxu0
  %v2027 = vadd.f32 0.0, %v2026
  %v2028 = vpop.f32.mrb[0].mxu0
  %2029 = vdwg.mxu0
  %2030 = vmatprep.subr.mxu0 0.0
  %2031 = vmatpush1.msra.mxu0 %v39
  %2032 = vmatprep.subr.mxu0 0.0
  %2033 = vmatpush1.msra.mxu0 %v40
  %2034 = vmatprep.subr.mxu0 0.0
  %2035 = vmatpush1.msra.mxu0 %v41
  %2036 = vmatprep.subr.mxu0 0.0
  %2037 = vmatpush1.msra.mxu0 %v42
  %2038 = vmatprep.subr.mxu0 0.0
  %2039 = vmatpush1.msra.mxu0 0.0
  %2040 = vmatprep.subr.mxu0 0.0
  %2041 = vmatpush1.msra.mxu0 0.0
  %2042 = vmatprep.subr.mxu0 0.0
  %2043 = vmatpush1.msra.mxu0 0.0
  %2044 = vmatprep.subr.mxu0 0.0
  %2045 = vmatpush1.msra.mxu0 0.0
  %2046 = vmatprep.subr.mxu0 0.0
  %2047 = vmatpush1.msra.mxu0 0.0
  %2048 = vmatprep.subr.mxu0 0.0
  %2049 = vmatpush1.msra.mxu0 0.0
  %2050 = vmatprep.subr.mxu0 0.0
  %2051 = vmatpush1.msra.mxu0 0.0
  %2052 = vmatprep.subr.mxu0 0.0
  %2053 = vmatpush1.msra.mxu0 0.0
  %2054 = vmatprep.subr.mxu0 0.0
  %2055 = vmatpush1.msra.mxu0 0.0
  %2056 = vmatprep.subr.mxu0 0.0
  %2057 = vmatpush1.msra.mxu0 0.0
  %2058 = vmatprep.subr.mxu0 0.0
  %2059 = vmatpush1.msra.mxu0 0.0
  %2060 = vmatprep.subr.mxu0 0.0
  %2061 = vmatpush1.msra.mxu0 0.0
  %2062 = vmatprep.subr.mxu0 0.0
  %2063 = vmatpush1.msra.mxu0 0.0
  %2064 = vmatprep.subr.mxu0 0.0
  %2065 = vmatpush1.msra.mxu0 0.0
  %2066 = vmatprep.subr.mxu0 0.0
  %2067 = vmatpush1.msra.mxu0 0.0
  %2068 = vmatprep.subr.mxu0 0.0
  %2069 = vmatpush1.msra.mxu0 0.0
  %2070 = vmatprep.subr.mxu0 0.0
  %2071 = vmatpush1.msra.mxu0 0.0
  %2072 = vmatprep.subr.mxu0 0.0
  %2073 = vmatpush1.msra.mxu0 0.0
  %2074 = vmatprep.subr.mxu0 0.0
  %2075 = vmatpush1.msra.mxu0 0.0
  %2076 = vmatprep.subr.mxu0 0.0
  %2077 = vmatpush1.msra.mxu0 0.0
  %2078 = vmatprep.subr.mxu0 0.0
  %2079 = vmatpush1.msra.mxu0 0.0
  %2080 = vmatprep.subr.mxu0 0.0
  %2081 = vmatpush1.msra.mxu0 0.0
  %2082 = vmatprep.subr.mxu0 0.0
  %2083 = vmatpush1.msra.mxu0 0.0
  %2084 = vmatprep.subr.mxu0 0.0
  %2085 = vmatpush1.msra.mxu0 0.0
  %2086 = vmatprep.subr.mxu0 0.0
  %2087 = vmatpush1.msra.mxu0 0.0
  %2088 = vmatprep.subr.mxu0 0.0
  %2089 = vmatpush1.msra.mxu0 0.0
  %2090 = vmatprep.subr.mxu0 0.0
  %2091 = vmatpush1.msra.mxu0 0.0
  %2092 = vmatprep.subr.mxu0 0.0
  %2093 = vmatpush1.msra.mxu0 0.0
  %2094 = vmatprep.mubr.f32.mxu0 0.0
  %2095 = vmatmul.mubr.f32.gmra.mrb[0].mxu0 %v1622
  %v2096 = vpop.f32.mrb[0].mxu0
  %v2097 = vadd.f32 %v62, %v2096
  %v2098 = vpop.f32.mrb[0].mxu0
  %2099 = vdwg.mxu0
  %v2100 = vadd.f32 %v1957, %v2027
  %v2101 = vmul.f32 %v2100, 0.5
  %v2102 = vtanh.pop %v2101
  %v2103 = vadd.f32 %v2102, 1.0
  %v2104 = vmul.f32 %v2103, 0.5
  %v2105 = vmul.f32 %v2104, %v2097
  %v2106 = vadd.f32 %v1959, %v2105
  %v2107 = vtanh.pop %v2106
  %v2108 = vsub.f32 1.0, %v2104
  %2110 = vrot.lane.b32.xlu0 %v2107, 32
  %v2111 = vpop.permute.xlu0 %2110
  %v2113 = vmul.f32 %v2108, %v2111
  %v2114 = vmul.f32 %v2104, %v1618
  %v2115 = vadd.f32 %v2113, %v2114
  %2117 = vrot.lane.b32.xlu0 %v2115, 96
  %v2118 = vpop.permute.xlu0 %2117
  %v2119 = vsel %vm277, %v2118, 0
  %2121 = vmatprep.subr.mxu0 0.0
  %2122 = vmatpush1.msra.mxu0 %v43
  %2123 = vmatprep.subr.mxu0 0.0
  %2124 = vmatpush1.msra.mxu0 %v44
  %2125 = vmatprep.subr.mxu0 0.0
  %2126 = vmatpush1.msra.mxu0 %v45
  %2127 = vmatprep.subr.mxu0 0.0
  %2128 = vmatpush1.msra.mxu0 %v46
  %2129 = vmatprep.subr.mxu0 0.0
  %2130 = vmatpush1.msra.mxu0 0.0
  %2131 = vmatprep.subr.mxu0 0.0
  %2132 = vmatpush1.msra.mxu0 0.0
  %2133 = vmatprep.subr.mxu0 0.0
  %2134 = vmatpush1.msra.mxu0 0.0
  %2135 = vmatprep.subr.mxu0 0.0
  %2136 = vmatpush1.msra.mxu0 0.0
  %2137 = vmatprep.subr.mxu0 0.0
  %2138 = vmatpush1.msra.mxu0 0.0
  %2139 = vmatprep.subr.mxu0 0.0
  %2140 = vmatpush1.msra.mxu0 0.0
  %2141 = vmatprep.subr.mxu0 0.0
  %2142 = vmatpush1.msra.mxu0 0.0
  %2143 = vmatprep.subr.mxu0 0.0
  %2144 = vmatpush1.msra.mxu0 0.0
  %2145 = vmatprep.subr.mxu0 0.0
  %2146 = vmatpush1.msra.mxu0 0.0
  %2147 = vmatprep.subr.mxu0 0.0
  %2148 = vmatpush1.msra.mxu0 0.0
  %2149 = vmatprep.subr.mxu0 0.0
  %2150 = vmatpush1.msra.mxu0 0.0
  %2151 = vmatprep.subr.mxu0 0.0
  %2152 = vmatpush1.msra.mxu0 0.0
  %2153 = vmatprep.subr.mxu0 0.0
  %2154 = vmatpush1.msra.mxu0 0.0
  %2155 = vmatprep.subr.mxu0 0.0
  %2156 = vmatpush1.msra.mxu0 0.0
  %2157 = vmatprep.subr.mxu0 0.0
  %2158 = vmatpush1.msra.mxu0 0.0
  %2159 = vmatprep.subr.mxu0 0.0
  %2160 = vmatpush1.msra.mxu0 0.0
  %2161 = vmatprep.subr.mxu0 0.0
  %2162 = vmatpush1.msra.mxu0 0.0
  %2163 = vmatprep.subr.mxu0 0.0
  %2164 = vmatpush1.msra.mxu0 0.0
  %2165 = vmatprep.subr.mxu0 0.0
  %2166 = vmatpush1.msra.mxu0 0.0
  %2167 = vmatprep.subr.mxu0 0.0
  %2168 = vmatpush1.msra.mxu0 0.0
  %2169 = vmatprep.subr.mxu0 0.0
  %2170 = vmatpush1.msra.mxu0 0.0
  %2171 = vmatprep.subr.mxu0 0.0
  %2172 = vmatpush1.msra.mxu0 0.0
  %2173 = vmatprep.subr.mxu0 0.0
  %2174 = vmatpush1.msra.mxu0 0.0
  %2175 = vmatprep.subr.mxu0 0.0
  %2176 = vmatpush1.msra.mxu0 0.0
  %2177 = vmatprep.subr.mxu0 0.0
  %2178 = vmatpush1.msra.mxu0 0.0
  %2179 = vmatprep.subr.mxu0 0.0
  %2180 = vmatpush1.msra.mxu0 0.0
  %2181 = vmatprep.subr.mxu0 0.0
  %2182 = vmatpush1.msra.mxu0 0.0
  %2183 = vmatprep.subr.mxu0 0.0
  %2184 = vmatpush1.msra.mxu0 0.0
  %2185 = vmatprep.mubr.f32.mxu0 0.0
  %2186 = vmatmul.mubr.f32.gmra.mrb[0].mxu0 %v2119
  %v2187 = vpop.f32.mrb[0].mxu0
  %v2188 = vadd.f32 %v67, %v2187
  %v2189 = vpop.f32.mrb[0].mxu0
  %2190 = vdwg.mxu0
  %v2191 = vsel %vm1694, %v2188, 0.0
  %2192 = vadd.xlane.f32.xlu0 %v2191
  %v2193 = vpop.xlane.xlu0 %2192
  %v2194 = vmul.f32 %v2188, %v2188
  %v2195 = vsel %vm1694, %v2194, 0.0
  %2196 = vadd.xlane.f32.xlu0 %v2195
  %v2197 = vpop.xlane.xlu0 %2196
  %v2198 = vmul.f32 %v2193, 0.03125
  %v2199 = vmul.f32 %v2197, 0.03125
  %v2200 = vmul.f32 %v2198, %v2198
  %v2201 = vsub.f32 %v2199, %v2200
  %v2202 = vsub.f32 %v2188, %v2198
  %v2203 = vadd.f32 %v2201, 1e-05
  %v2204 = vrsqrt.pop %v2203
  %v2205 = vmul.f32 %v2202, %v2204
  %v2206 = vmul.f32 %v2205, %v72
  %v2207 = vadd.f32 %v2206, %v77
  %v2208 = vmul.f32 %v2207, 0.5
  %v2209 = vmul.f32 %v2207, 0.044715
  %v2210 = vmul.f32 %v2209, %v2207
  %v2211 = vmul.f32 %v2210, %v2207
  %v2212 = vadd.f32 %v2207, %v2211
  %v2213 = vmul.f32 %v2212, 0.7978846
  %v2214 = vtanh.pop %v2213
  %v2215 = vadd.f32 %v2214, 1.0
  %v2216 = vmul.f32 %v2208, %v2215
  %v2218 = vsel %vm277, %v2216, 0
  %2220 = vmatprep.subr.mxu0 0.0
  %2221 = vmatpush1.msra.mxu0 %v78
  %2222 = vmatprep.subr.mxu0 0.0
  %2223 = vmatpush1.msra.mxu0 %v79
  %2224 = vmatprep.subr.mxu0 0.0
  %2225 = vmatpush1.msra.mxu0 %v80
  %2226 = vmatprep.subr.mxu0 0.0
  %2227 = vmatpush1.msra.mxu0 %v81
  %2228 = vmatprep.subr.mxu0 0.0
  %2229 = vmatpush1.msra.mxu0 0.0
  %2230 = vmatprep.subr.mxu0 0.0
  %2231 = vmatpush1.msra.mxu0 0.0
  %2232 = vmatprep.subr.mxu0 0.0
  %2233 = vmatpush1.msra.mxu0 0.0
  %2234 = vmatprep.subr.mxu0 0.0
  %2235 = vmatpush1.msra.mxu0 0.0
  %2236 = vmatprep.subr.mxu0 0.0
  %2237 = vmatpush1.msra.mxu0 0.0
  %2238 = vmatprep.subr.mxu0 0.0
  %2239 = vmatpush1.msra.mxu0 0.0
  %2240 = vmatprep.subr.mxu0 0.0
  %2241 = vmatpush1.msra.mxu0 0.0
  %2242 = vmatprep.subr.mxu0 0.0
  %2243 = vmatpush1.msra.mxu0 0.0
  %2244 = vmatprep.subr.mxu0 0.0
  %2245 = vmatpush1.msra.mxu0 0.0
  %2246 = vmatprep.subr.mxu0 0.0
  %2247 = vmatpush1.msra.mxu0 0.0
  %2248 = vmatprep.subr.mxu0 0.0
  %2249 = vmatpush1.msra.mxu0 0.0
  %2250 = vmatprep.subr.mxu0 0.0
  %2251 = vmatpush1.msra.mxu0 0.0
  %2252 = vmatprep.subr.mxu0 0.0
  %2253 = vmatpush1.msra.mxu0 0.0
  %2254 = vmatprep.subr.mxu0 0.0
  %2255 = vmatpush1.msra.mxu0 0.0
  %2256 = vmatprep.subr.mxu0 0.0
  %2257 = vmatpush1.msra.mxu0 0.0
  %2258 = vmatprep.subr.mxu0 0.0
  %2259 = vmatpush1.msra.mxu0 0.0
  %2260 = vmatprep.subr.mxu0 0.0
  %2261 = vmatpush1.msra.mxu0 0.0
  %2262 = vmatprep.subr.mxu0 0.0
  %2263 = vmatpush1.msra.mxu0 0.0
  %2264 = vmatprep.subr.mxu0 0.0
  %2265 = vmatpush1.msra.mxu0 0.0
  %2266 = vmatprep.subr.mxu0 0.0
  %2267 = vmatpush1.msra.mxu0 0.0
  %2268 = vmatprep.subr.mxu0 0.0
  %2269 = vmatpush1.msra.mxu0 0.0
  %2270 = vmatprep.subr.mxu0 0.0
  %2271 = vmatpush1.msra.mxu0 0.0
  %2272 = vmatprep.subr.mxu0 0.0
  %2273 = vmatpush1.msra.mxu0 0.0
  %2274 = vmatprep.subr.mxu0 0.0
  %2275 = vmatpush1.msra.mxu0 0.0
  %2276 = vmatprep.subr.mxu0 0.0
  %2277 = vmatpush1.msra.mxu0 0.0
  %2278 = vmatprep.subr.mxu0 0.0
  %2279 = vmatpush1.msra.mxu0 0.0
  %2280 = vmatprep.subr.mxu0 0.0
  %2281 = vmatpush1.msra.mxu0 0.0
  %2282 = vmatprep.subr.mxu0 0.0
  %2283 = vmatpush1.msra.mxu0 0.0
  %2284 = vmatprep.mubr.f32.mxu0 0.0
  %2285 = vmatmul.mubr.f32.gmra.mrb[0].mxu0 %v2218
  %v2286 = vpop.f32.mrb[0].mxu0
  %v2287 = vadd.f32 %v86, %v2286
  %v2288 = vpop.f32.mrb[0].mxu0
  %2289 = vdwg.mxu0
  %v2290 = vsel %vm1794, %v2287, -inf
  %2291 = vmax.xlane.f32.xlu0 %v2290
  %v2292 = vpop.xlane.xlu0 %2291
  %v2293 = vsub.f32 %v2287, %v2292
  %v2294 = vmul.f32 %v2293, 1.442695
  %v2295 = vpow.pop %v2294
  %v2296 = vsel %vm1794, %v2295, 0.0
  %2297 = vadd.xlane.f32.xlu0 %v2296
  %v2298 = vpop.xlane.xlu0 %2297
  %v2299 = vrcp.pop %v2298
  %v2300 = vmul.f32 1.0, %v2299
  %v2301 = vmul.f32 %v2295, %v2300
  %v2303 = vsel %vm93, %v2295, 0
  %2305 = vmatprep.subr.mxu0 0.0
  %2306 = vmatpush1.msra.mxu0 %v1811
  %2307 = vmatprep.subr.mxu0 0.0
  %2308 = vmatpush1.msra.mxu0 0.0
  %2309 = vmatprep.subr.mxu0 0.0
  %2310 = vmatpush1.msra.mxu0 0.0
  %2311 = vmatprep.subr.mxu0 0.0
  %2312 = vmatpush1.msra.mxu0 0.0
  %2313 = vmatprep.subr.mxu0 0.0
  %2314 = vmatpush1.msra.mxu0 0.0
  %2315 = vmatprep.subr.mxu0 0.0
  %2316 = vmatpush1.msra.mxu0 0.0
  %2317 = vmatprep.subr.mxu0 0.0
  %2318 = vmatpush1.msra.mxu0 0.0
  %2319 = vmatprep.subr.mxu0 0.0
  %2320 = vmatpush1.msra.mxu0 0.0
  %2321 = vmatprep.subr.mxu0 0.0
  %2322 = vmatpush1.msra.mxu0 0.0
  %2323 = vmatprep.subr.mxu0 0.0
  %2324 = vmatpush1.msra.mxu0 0.0
  %2325 = vmatprep.subr.mxu0 0.0
  %2326 = vmatpush1.msra.mxu0 0.0
  %2327 = vmatprep.subr.mxu0 0.0
  %2328 = vmatpush1.msra.mxu0 0.0
  %2329 = vmatprep.subr.mxu0 0.0
  %2330 = vmatpush1.msra.mxu0 0.0
  %2331 = vmatprep.subr.mxu0 0.0
  %2332 = vmatpush1.msra.mxu0 0.0
  %2333 = vmatprep.subr.mxu0 0.0
  %2334 = vmatpush1.msra.mxu0 0.0
  %2335 = vmatprep.subr.mxu0 0.0
  %2336 = vmatpush1.msra.mxu0 0.0
  %2337 = vmatprep.subr.mxu0 0.0
  %2338 = vmatpush1.msra.mxu0 0.0
  %2339 = vmatprep.subr.mxu0 0.0
  %2340 = vmatpush1.msra.mxu0 0.0
  %2341 = vmatprep.subr.mxu0 0.0
  %2342 = vmatpush1.msra.mxu0 0.0
  %2343 = vmatprep.subr.mxu0 0.0
  %2344 = vmatpush1.msra.mxu0 0.0
  %2345 = vmatprep.subr.mxu0 0.0
  %2346 = vmatpush1.msra.mxu0 0.0
  %2347 = vmatprep.subr.mxu0 0.0
  %2348 = vmatpush1.msra.mxu0 0.0
  %2349 = vmatprep.subr.mxu0 0.0
  %2350 = vmatpush1.msra.mxu0 0.0
  %2351 = vmatprep.subr.mxu0 0.0
  %2352 = vmatpush1.msra.mxu0 0.0
  %2353 = vmatprep.subr.mxu0 0.0
  %2354 = vmatpush1.msra.mxu0 0.0
  %2355 = vmatprep.subr.mxu0 0.0
  %2356 = vmatpush1.msra.mxu0 0.0
  %2357 = vmatprep.subr.mxu0 0.0
  %2358 = vmatpush1.msra.mxu0 0.0
  %2359 = vmatprep.subr.mxu0 0.0
  %2360 = vmatpush1.msra.mxu0 0.0
  %2361 = vmatprep.subr.mxu0 0.0
  %2362 = vmatpush1.msra.mxu0 0.0
  %2363 = vmatprep.subr.mxu0 0.0
  %2364 = vmatpush1.msra.mxu0 0.0
  %2365 = vmatprep.subr.mxu0 0.0
  %2366 = vmatpush1.msra.mxu0 0.0
  %2367 = vmatprep.subr.mxu0 0.0
  %2368 = vmatpush1.msra.mxu0 0.0
  %2369 = vmatprep.mubr.f32.mxu0 0.0
  %2370 = vmatmul.mubr.f32.gmra.mrb[0].mxu0 %v2303
  %v2371 = vpop.f32.mrb[0].mxu0
  %v2372 = vadd.f32 0.0, %v2371
  %v2373 = vpop.f32.mrb[0].mxu0
  %2374 = vdwg.mxu0
  %2375 = vmatprep.subr.mxu0 0.0
  %2376 = vmatpush1.msra.mxu0 %v1884
  %2377 = vmatprep.subr.mxu0 0.0
  %2378 = vmatpush1.msra.mxu0 0.0
  %2379 = vmatprep.subr.mxu0 0.0
  %2380 = vmatpush1.msra.mxu0 0.0
  %2381 = vmatprep.subr.mxu0 0.0
  %2382 = vmatpush1.msra.mxu0 0.0
  %2383 = vmatprep.subr.mxu0 0.0
  %2384 = vmatpush1.msra.mxu0 0.0
  %2385 = vmatprep.subr.mxu0 0.0
  %2386 = vmatpush1.msra.mxu0 0.0
  %2387 = vmatprep.subr.mxu0 0.0
  %2388 = vmatpush1.msra.mxu0 0.0
  %2389 = vmatprep.subr.mxu0 0.0
  %2390 = vmatpush1.msra.mxu0 0.0
  %2391 = vmatprep.subr.mxu0 0.0
  %2392 = vmatpush1.msra.mxu0 0.0
  %2393 = vmatprep.subr.mxu0 0.0
  %2394 = vmatpush1.msra.mxu0 0.0
  %2395 = vmatprep.subr.mxu0 0.0
  %2396 = vmatpush1.msra.mxu0 0.0
  %2397 = vmatprep.subr.mxu0 0.0
  %2398 = vmatpush1.msra.mxu0 0.0
  %2399 = vmatprep.subr.mxu0 0.0
  %2400 = vmatpush1.msra.mxu0 0.0
  %2401 = vmatprep.subr.mxu0 0.0
  %2402 = vmatpush1.msra.mxu0 0.0
  %2403 = vmatprep.subr.mxu0 0.0
  %2404 = vmatpush1.msra.mxu0 0.0
  %2405 = vmatprep.subr.mxu0 0.0
  %2406 = vmatpush1.msra.mxu0 0.0
  %2407 = vmatprep.subr.mxu0 0.0
  %2408 = vmatpush1.msra.mxu0 0.0
  %2409 = vmatprep.subr.mxu0 0.0
  %2410 = vmatpush1.msra.mxu0 0.0
  %2411 = vmatprep.subr.mxu0 0.0
  %2412 = vmatpush1.msra.mxu0 0.0
  %2413 = vmatprep.subr.mxu0 0.0
  %2414 = vmatpush1.msra.mxu0 0.0
  %2415 = vmatprep.subr.mxu0 0.0
  %2416 = vmatpush1.msra.mxu0 0.0
  %2417 = vmatprep.subr.mxu0 0.0
  %2418 = vmatpush1.msra.mxu0 0.0
  %2419 = vmatprep.subr.mxu0 0.0
  %2420 = vmatpush1.msra.mxu0 0.0
  %2421 = vmatprep.subr.mxu0 0.0
  %2422 = vmatpush1.msra.mxu0 0.0
  %2423 = vmatprep.subr.mxu0 0.0
  %2424 = vmatpush1.msra.mxu0 0.0
  %2425 = vmatprep.subr.mxu0 0.0
  %2426 = vmatpush1.msra.mxu0 0.0
  %2427 = vmatprep.subr.mxu0 0.0
  %2428 = vmatpush1.msra.mxu0 0.0
  %2429 = vmatprep.subr.mxu0 0.0
  %2430 = vmatpush1.msra.mxu0 0.0
  %2431 = vmatprep.subr.mxu0 0.0
  %2432 = vmatpush1.msra.mxu0 0.0
  %2433 = vmatprep.subr.mxu0 0.0
  %2434 = vmatpush1.msra.mxu0 0.0
  %2435 = vmatprep.subr.mxu0 0.0
  %2436 = vmatpush1.msra.mxu0 0.0
  %2437 = vmatprep.subr.mxu0 0.0
  %2438 = vmatpush1.msra.mxu0 0.0
  %2439 = vmatprep.mubr.f32.mxu0 0.0
  %2440 = vmatmul.mubr.f32.gmra.mrb[0].mxu0 %v2303
  %v2441 = vpop.f32.mrb[0].mxu0
  %v2442 = vadd.f32 0.0, %v2441
  %v2443 = vpop.f32.mrb[0].mxu0
  %2444 = vdwg.mxu0
  %v2445 = vmul.f32 %v2372, %v2300
  %v2446 = vadd.f32 %v2445, %v32
  %v2447 = vmul.f32 %v2442, %v2300
  %v2448 = vadd.f32 %v2447, %v57
  %2449 = vmatprep.subr.mxu0 0.0
  %2450 = vmatpush1.msra.mxu0 %v23
  %2451 = vmatprep.subr.mxu0 0.0
  %2452 = vmatpush1.msra.mxu0 %v24
  %2453 = vmatprep.subr.mxu0 0.0
  %2454 = vmatpush1.msra.mxu0 %v25
  %2455 = vmatprep.subr.mxu0 0.0
  %2456 = vmatpush1.msra.mxu0 %v26
  %2457 = vmatprep.subr.mxu0 0.0
  %2458 = vmatpush1.msra.mxu0 0.0
  %2459 = vmatprep.subr.mxu0 0.0
  %2460 = vmatpush1.msra.mxu0 0.0
  %2461 = vmatprep.subr.mxu0 0.0
  %2462 = vmatpush1.msra.mxu0 0.0
  %2463 = vmatprep.subr.mxu0 0.0
  %2464 = vmatpush1.msra.mxu0 0.0
  %2465 = vmatprep.subr.mxu0 0.0
  %2466 = vmatpush1.msra.mxu0 0.0
  %2467 = vmatprep.subr.mxu0 0.0
  %2468 = vmatpush1.msra.mxu0 0.0
  %2469 = vmatprep.subr.mxu0 0.0
  %2470 = vmatpush1.msra.mxu0 0.0
  %2471 = vmatprep.subr.mxu0 0.0
  %2472 = vmatpush1.msra.mxu0 0.0
  %2473 = vmatprep.subr.mxu0 0.0
  %2474 = vmatpush1.msra.mxu0 0.0
  %2475 = vmatprep.subr.mxu0 0.0
  %2476 = vmatpush1.msra.mxu0 0.0
  %2477 = vmatprep.subr.mxu0 0.0
  %2478 = vmatpush1.msra.mxu0 0.0
  %2479 = vmatprep.subr.mxu0 0.0
  %2480 = vmatpush1.msra.mxu0 0.0
  %2481 = vmatprep.subr.mxu0 0.0
  %2482 = vmatpush1.msra.mxu0 0.0
  %2483 = vmatprep.subr.mxu0 0.0
  %2484 = vmatpush1.msra.mxu0 0.0
  %2485 = vmatprep.subr.mxu0 0.0
  %2486 = vmatpush1.msra.mxu0 0.0
  %2487 = vmatprep.subr.mxu0 0.0
  %2488 = vmatpush1.msra.mxu0 0.0
  %2489 = vmatprep.subr.mxu0 0.0
  %2490 = vmatpush1.msra.mxu0 0.0
  %2491 = vmatprep.subr.mxu0 0.0
  %2492 = vmatpush1.msra.mxu0 0.0
  %2493 = vmatprep.subr.mxu0 0.0
  %2494 = vmatpush1.msra.mxu0 0.0
  %2495 = vmatprep.subr.mxu0 0.0
  %2496 = vmatpush1.msra.mxu0 0.0
  %2497 = vmatprep.subr.mxu0 0.0
  %2498 = vmatpush1.msra.mxu0 0.0
  %2499 = vmatprep.subr.mxu0 0.0
  %2500 = vmatpush1.msra.mxu0 0.0
  %2501 = vmatprep.subr.mxu0 0.0
  %2502 = vmatpush1.msra.mxu0 0.0
  %2503 = vmatprep.subr.mxu0 0.0
  %2504 = vmatpush1.msra.mxu0 0.0
  %2505 = vmatprep.subr.mxu0 0.0
  %2506 = vmatpush1.msra.mxu0 0.0
  %2507 = vmatprep.subr.mxu0 0.0
  %2508 = vmatpush1.msra.mxu0 0.0
  %2509 = vmatprep.subr.mxu0 0.0
  %2510 = vmatpush1.msra.mxu0 0.0
  %2511 = vmatprep.subr.mxu0 0.0
  %2512 = vmatpush1.msra.mxu0 0.0
  %2513 = vmatprep.mubr.f32.mxu0 0.0
  %2514 = vmatmul.mubr.f32.gmra.mrb[0].mxu0 %v2119
  %v2515 = vpop.f32.mrb[0].mxu0
  %v2516 = vadd.f32 0.0, %v2515
  %v2517 = vpop.f32.mrb[0].mxu0
  %2518 = vdwg.mxu0
  %2519 = vmatprep.subr.mxu0 0.0
  %2520 = vmatpush1.msra.mxu0 %v39
  %2521 = vmatprep.subr.mxu0 0.0
  %2522 = vmatpush1.msra.mxu0 %v40
  %2523 = vmatprep.subr.mxu0 0.0
  %2524 = vmatpush1.msra.mxu0 %v41
  %2525 = vmatprep.subr.mxu0 0.0
  %2526 = vmatpush1.msra.mxu0 %v42
  %2527 = vmatprep.subr.mxu0 0.0
  %2528 = vmatpush1.msra.mxu0 0.0
  %2529 = vmatprep.subr.mxu0 0.0
  %2530 = vmatpush1.msra.mxu0 0.0
  %2531 = vmatprep.subr.mxu0 0.0
  %2532 = vmatpush1.msra.mxu0 0.0
  %2533 = vmatprep.subr.mxu0 0.0
  %2534 = vmatpush1.msra.mxu0 0.0
  %2535 = vmatprep.subr.mxu0 0.0
  %2536 = vmatpush1.msra.mxu0 0.0
  %2537 = vmatprep.subr.mxu0 0.0
  %2538 = vmatpush1.msra.mxu0 0.0
  %2539 = vmatprep.subr.mxu0 0.0
  %2540 = vmatpush1.msra.mxu0 0.0
  %2541 = vmatprep.subr.mxu0 0.0
  %2542 = vmatpush1.msra.mxu0 0.0
  %2543 = vmatprep.subr.mxu0 0.0
  %2544 = vmatpush1.msra.mxu0 0.0
  %2545 = vmatprep.subr.mxu0 0.0
  %2546 = vmatpush1.msra.mxu0 0.0
  %2547 = vmatprep.subr.mxu0 0.0
  %2548 = vmatpush1.msra.mxu0 0.0
  %2549 = vmatprep.subr.mxu0 0.0
  %2550 = vmatpush1.msra.mxu0 0.0
  %2551 = vmatprep.subr.mxu0 0.0
  %2552 = vmatpush1.msra.mxu0 0.0
  %2553 = vmatprep.subr.mxu0 0.0
  %2554 = vmatpush1.msra.mxu0 0.0
  %2555 = vmatprep.subr.mxu0 0.0
  %2556 = vmatpush1.msra.mxu0 0.0
  %2557 = vmatprep.subr.mxu0 0.0
  %2558 = vmatpush1.msra.mxu0 0.0
  %2559 = vmatprep.subr.mxu0 0.0
  %2560 = vmatpush1.msra.mxu0 0.0
  %2561 = vmatprep.subr.mxu0 0.0
  %2562 = vmatpush1.msra.mxu0 0.0
  %2563 = vmatprep.subr.mxu0 0.0
  %2564 = vmatpush1.msra.mxu0 0.0
  %2565 = vmatprep.subr.mxu0 0.0
  %2566 = vmatpush1.msra.mxu0 0.0
  %2567 = vmatprep.subr.mxu0 0.0
  %2568 = vmatpush1.msra.mxu0 0.0
  %2569 = vmatprep.subr.mxu0 0.0
  %2570 = vmatpush1.msra.mxu0 0.0
  %2571 = vmatprep.subr.mxu0 0.0
  %2572 = vmatpush1.msra.mxu0 0.0
  %2573 = vmatprep.subr.mxu0 0.0
  %2574 = vmatpush1.msra.mxu0 0.0
  %2575 = vmatprep.subr.mxu0 0.0
  %2576 = vmatpush1.msra.mxu0 0.0
  %2577 = vmatprep.subr.mxu0 0.0
  %2578 = vmatpush1.msra.mxu0 0.0
  %2579 = vmatprep.subr.mxu0 0.0
  %2580 = vmatpush1.msra.mxu0 0.0
  %2581 = vmatprep.subr.mxu0 0.0
  %2582 = vmatpush1.msra.mxu0 0.0
  %2583 = vmatprep.mubr.f32.mxu0 0.0
  %2584 = vmatmul.mubr.f32.gmra.mrb[0].mxu0 %v2119
  %v2585 = vpop.f32.mrb[0].mxu0
  %v2586 = vadd.f32 %v62, %v2585
  %v2587 = vpop.f32.mrb[0].mxu0
  %2588 = vdwg.mxu0
  %v2589 = vadd.f32 %v2446, %v2516
  %v2590 = vmul.f32 %v2589, 0.5
  %v2591 = vtanh.pop %v2590
  %v2592 = vadd.f32 %v2591, 1.0
  %v2593 = vmul.f32 %v2592, 0.5
  %v2594 = vmul.f32 %v2593, %v2586
  %v2595 = vadd.f32 %v2448, %v2594
  %v2596 = vtanh.pop %v2595
  %v2597 = vsub.f32 1.0, %v2593
  %2599 = vrot.lane.b32.xlu0 %v2596, 32
  %v2600 = vpop.permute.xlu0 %2599
  %v2602 = vmul.f32 %v2597, %v2600
  %v2603 = vmul.f32 %v2593, %v2115
  %v2604 = vadd.f32 %v2602, %v2603
  %2606 = vrot.lane.b32.xlu0 %v2604, 96
  %v2607 = vpop.permute.xlu0 %2606
  %v2608 = vsel %vm277, %v2607, 0
  %2610 = vmatprep.subr.mxu0 0.0
  %2611 = vmatpush1.msra.mxu0 %v43
  %2612 = vmatprep.subr.mxu0 0.0
  %2613 = vmatpush1.msra.mxu0 %v44
  %2614 = vmatprep.subr.mxu0 0.0
  %2615 = vmatpush1.msra.mxu0 %v45
  %2616 = vmatprep.subr.mxu0 0.0
  %2617 = vmatpush1.msra.mxu0 %v46
  %2618 = vmatprep.subr.mxu0 0.0
  %2619 = vmatpush1.msra.mxu0 0.0
  %2620 = vmatprep.subr.mxu0 0.0
  %2621 = vmatpush1.msra.mxu0 0.0
  %2622 = vmatprep.subr.mxu0 0.0
  %2623 = vmatpush1.msra.mxu0 0.0
  %2624 = vmatprep.subr.mxu0 0.0
  %2625 = vmatpush1.msra.mxu0 0.0
  %2626 = vmatprep.subr.mxu0 0.0
  %2627 = vmatpush1.msra.mxu0 0.0
  %2628 = vmatprep.subr.mxu0 0.0
  %2629 = vmatpush1.msra.mxu0 0.0
  %2630 = vmatprep.subr.mxu0 0.0
  %2631 = vmatpush1.msra.mxu0 0.0
  %2632 = vmatprep.subr.mxu0 0.0
  %2633 = vmatpush1.msra.mxu0 0.0
  %2634 = vmatprep.subr.mxu0 0.0
  %2635 = vmatpush1.msra.mxu0 0.0
  %2636 = vmatprep.subr.mxu0 0.0
  %2637 = vmatpush1.msra.mxu0 0.0
  %2638 = vmatprep.subr.mxu0 0.0
  %2639 = vmatpush1.msra.mxu0 0.0
  %2640 = vmatprep.subr.mxu0 0.0
  %2641 = vmatpush1.msra.mxu0 0.0
  %2642 = vmatprep.subr.mxu0 0.0
  %2643 = vmatpush1.msra.mxu0 0.0
  %2644 = vmatprep.subr.mxu0 0.0
  %2645 = vmatpush1.msra.mxu0 0.0
  %2646 = vmatprep.subr.mxu0 0.0
  %2647 = vmatpush1.msra.mxu0 0.0
  %2648 = vmatprep.subr.mxu0 0.0
  %2649 = vmatpush1.msra.mxu0 0.0
  %2650 = vmatprep.subr.mxu0 0.0
  %2651 = vmatpush1.msra.mxu0 0.0
  %2652 = vmatprep.subr.mxu0 0.0
  %2653 = vmatpush1.msra.mxu0 0.0
  %2654 = vmatprep.subr.mxu0 0.0
  %2655 = vmatpush1.msra.mxu0 0.0
  %2656 = vmatprep.subr.mxu0 0.0
  %2657 = vmatpush1.msra.mxu0 0.0
  %2658 = vmatprep.subr.mxu0 0.0
  %2659 = vmatpush1.msra.mxu0 0.0
  %2660 = vmatprep.subr.mxu0 0.0
  %2661 = vmatpush1.msra.mxu0 0.0
  %2662 = vmatprep.subr.mxu0 0.0
  %2663 = vmatpush1.msra.mxu0 0.0
  %2664 = vmatprep.subr.mxu0 0.0
  %2665 = vmatpush1.msra.mxu0 0.0
  %2666 = vmatprep.subr.mxu0 0.0
  %2667 = vmatpush1.msra.mxu0 0.0
  %2668 = vmatprep.subr.mxu0 0.0
  %2669 = vmatpush1.msra.mxu0 0.0
  %2670 = vmatprep.subr.mxu0 0.0
  %2671 = vmatpush1.msra.mxu0 0.0
  %2672 = vmatprep.subr.mxu0 0.0
  %2673 = vmatpush1.msra.mxu0 0.0
  %2674 = vmatprep.mubr.f32.mxu0 0.0
  %2675 = vmatmul.mubr.f32.gmra.mrb[0].mxu0 %v2608
  %v2676 = vpop.f32.mrb[0].mxu0
  %v2677 = vadd.f32 %v67, %v2676
  %v2678 = vpop.f32.mrb[0].mxu0
  %2679 = vdwg.mxu0
  %v2680 = vsel %vm1694, %v2677, 0.0
  %2681 = vadd.xlane.f32.xlu0 %v2680
  %v2682 = vpop.xlane.xlu0 %2681
  %v2683 = vmul.f32 %v2677, %v2677
  %v2684 = vsel %vm1694, %v2683, 0.0
  %2685 = vadd.xlane.f32.xlu0 %v2684
  %v2686 = vpop.xlane.xlu0 %2685
  %v2687 = vmul.f32 %v2682, 0.03125
  %v2688 = vmul.f32 %v2686, 0.03125
  %v2689 = vmul.f32 %v2687, %v2687
  %v2690 = vsub.f32 %v2688, %v2689
  %v2691 = vsub.f32 %v2677, %v2687
  %v2692 = vadd.f32 %v2690, 1e-05
  %v2693 = vrsqrt.pop %v2692
  %v2694 = vmul.f32 %v2691, %v2693
  %v2695 = vmul.f32 %v2694, %v72
  %v2696 = vadd.f32 %v2695, %v77
  %v2697 = vmul.f32 %v2696, 0.5
  %v2698 = vmul.f32 %v2696, 0.044715
  %v2699 = vmul.f32 %v2698, %v2696
  %v2700 = vmul.f32 %v2699, %v2696
  %v2701 = vadd.f32 %v2696, %v2700
  %v2702 = vmul.f32 %v2701, 0.7978846
  %v2703 = vtanh.pop %v2702
  %v2704 = vadd.f32 %v2703, 1.0
  %v2705 = vmul.f32 %v2697, %v2704
  %v2707 = vsel %vm277, %v2705, 0
  %2709 = vmatprep.subr.mxu0 0.0
  %2710 = vmatpush1.msra.mxu0 %v78
  %2711 = vmatprep.subr.mxu0 0.0
  %2712 = vmatpush1.msra.mxu0 %v79
  %2713 = vmatprep.subr.mxu0 0.0
  %2714 = vmatpush1.msra.mxu0 %v80
  %2715 = vmatprep.subr.mxu0 0.0
  %2716 = vmatpush1.msra.mxu0 %v81
  %2717 = vmatprep.subr.mxu0 0.0
  %2718 = vmatpush1.msra.mxu0 0.0
  %2719 = vmatprep.subr.mxu0 0.0
  %2720 = vmatpush1.msra.mxu0 0.0
  %2721 = vmatprep.subr.mxu0 0.0
  %2722 = vmatpush1.msra.mxu0 0.0
  %2723 = vmatprep.subr.mxu0 0.0
  %2724 = vmatpush1.msra.mxu0 0.0
  %2725 = vmatprep.subr.mxu0 0.0
  %2726 = vmatpush1.msra.mxu0 0.0
  %2727 = vmatprep.subr.mxu0 0.0
  %2728 = vmatpush1.msra.mxu0 0.0
  %2729 = vmatprep.subr.mxu0 0.0
  %2730 = vmatpush1.msra.mxu0 0.0
  %2731 = vmatprep.subr.mxu0 0.0
  %2732 = vmatpush1.msra.mxu0 0.0
  %2733 = vmatprep.subr.mxu0 0.0
  %2734 = vmatpush1.msra.mxu0 0.0
  %2735 = vmatprep.subr.mxu0 0.0
  %2736 = vmatpush1.msra.mxu0 0.0
  %2737 = vmatprep.subr.mxu0 0.0
  %2738 = vmatpush1.msra.mxu0 0.0
  %2739 = vmatprep.subr.mxu0 0.0
  %2740 = vmatpush1.msra.mxu0 0.0
  %2741 = vmatprep.subr.mxu0 0.0
  %2742 = vmatpush1.msra.mxu0 0.0
  %2743 = vmatprep.subr.mxu0 0.0
  %2744 = vmatpush1.msra.mxu0 0.0
  %2745 = vmatprep.subr.mxu0 0.0
  %2746 = vmatpush1.msra.mxu0 0.0
  %2747 = vmatprep.subr.mxu0 0.0
  %2748 = vmatpush1.msra.mxu0 0.0
  %2749 = vmatprep.subr.mxu0 0.0
  %2750 = vmatpush1.msra.mxu0 0.0
  %2751 = vmatprep.subr.mxu0 0.0
  %2752 = vmatpush1.msra.mxu0 0.0
  %2753 = vmatprep.subr.mxu0 0.0
  %2754 = vmatpush1.msra.mxu0 0.0
  %2755 = vmatprep.subr.mxu0 0.0
  %2756 = vmatpush1.msra.mxu0 0.0
  %2757 = vmatprep.subr.mxu0 0.0
  %2758 = vmatpush1.msra.mxu0 0.0
  %2759 = vmatprep.subr.mxu0 0.0
  %2760 = vmatpush1.msra.mxu0 0.0
  %2761 = vmatprep.subr.mxu0 0.0
  %2762 = vmatpush1.msra.mxu0 0.0
  %2763 = vmatprep.subr.mxu0 0.0
  %2764 = vmatpush1.msra.mxu0 0.0
  %2765 = vmatprep.subr.mxu0 0.0
  %2766 = vmatpush1.msra.mxu0 0.0
  %2767 = vmatprep.subr.mxu0 0.0
  %2768 = vmatpush1.msra.mxu0 0.0
  %2769 = vmatprep.subr.mxu0 0.0
  %2770 = vmatpush1.msra.mxu0 0.0
  %2771 = vmatprep.subr.mxu0 0.0
  %2772 = vmatpush1.msra.mxu0 0.0
  %2773 = vmatprep.mubr.f32.mxu0 0.0
  %2774 = vmatmul.mubr.f32.gmra.mrb[0].mxu0 %v2707
  %v2775 = vpop.f32.mrb[0].mxu0
  %v2776 = vadd.f32 %v86, %v2775
  %v2777 = vpop.f32.mrb[0].mxu0
  %2778 = vdwg.mxu0
  %v2779 = vsel %vm1794, %v2776, -inf
  %2780 = vmax.xlane.f32.xlu0 %v2779
  %v2781 = vpop.xlane.xlu0 %2780
  %v2782 = vsub.f32 %v2776, %v2781
  %v2783 = vmul.f32 %v2782, 1.442695
  %v2784 = vpow.pop %v2783
  %v2785 = vsel %vm1794, %v2784, 0.0
  %2786 = vadd.xlane.f32.xlu0 %v2785
  %v2787 = vpop.xlane.xlu0 %2786
  %v2788 = vrcp.pop %v2787
  %v2789 = vmul.f32 1.0, %v2788
  %v2790 = vmul.f32 %v2784, %v2789
  %v2792 = vsel %vm93, %v2784, 0
  %2794 = vmatprep.subr.mxu0 0.0
  %2795 = vmatpush1.msra.mxu0 %v1811
  %2796 = vmatprep.subr.mxu0 0.0
  %2797 = vmatpush1.msra.mxu0 0.0
  %2798 = vmatprep.subr.mxu0 0.0
  %2799 = vmatpush1.msra.mxu0 0.0
  %2800 = vmatprep.subr.mxu0 0.0
  %2801 = vmatpush1.msra.mxu0 0.0
  %2802 = vmatprep.subr.mxu0 0.0
  %2803 = vmatpush1.msra.mxu0 0.0
  %2804 = vmatprep.subr.mxu0 0.0
  %2805 = vmatpush1.msra.mxu0 0.0
  %2806 = vmatprep.subr.mxu0 0.0
  %2807 = vmatpush1.msra.mxu0 0.0
  %2808 = vmatprep.subr.mxu0 0.0
  %2809 = vmatpush1.msra.mxu0 0.0
  %2810 = vmatprep.subr.mxu0 0.0
  %2811 = vmatpush1.msra.mxu0 0.0
  %2812 = vmatprep.subr.mxu0 0.0
  %2813 = vmatpush1.msra.mxu0 0.0
  %2814 = vmatprep.subr.mxu0 0.0
  %2815 = vmatpush1.msra.mxu0 0.0
  %2816 = vmatprep.subr.mxu0 0.0
  %2817 = vmatpush1.msra.mxu0 0.0
  %2818 = vmatprep.subr.mxu0 0.0
  %2819 = vmatpush1.msra.mxu0 0.0
  %2820 = vmatprep.subr.mxu0 0.0
  %2821 = vmatpush1.msra.mxu0 0.0
  %2822 = vmatprep.subr.mxu0 0.0
  %2823 = vmatpush1.msra.mxu0 0.0
  %2824 = vmatprep.subr.mxu0 0.0
  %2825 = vmatpush1.msra.mxu0 0.0
  %2826 = vmatprep.subr.mxu0 0.0
  %2827 = vmatpush1.msra.mxu0 0.0
  %2828 = vmatprep.subr.mxu0 0.0
  %2829 = vmatpush1.msra.mxu0 0.0
  %2830 = vmatprep.subr.mxu0 0.0
  %2831 = vmatpush1.msra.mxu0 0.0
  %2832 = vmatprep.subr.mxu0 0.0
  %2833 = vmatpush1.msra.mxu0 0.0
  %2834 = vmatprep.subr.mxu0 0.0
  %2835 = vmatpush1.msra.mxu0 0.0
  %2836 = vmatprep.subr.mxu0 0.0
  %2837 = vmatpush1.msra.mxu0 0.0
  %2838 = vmatprep.subr.mxu0 0.0
  %2839 = vmatpush1.msra.mxu0 0.0
  %2840 = vmatprep.subr.mxu0 0.0
  %2841 = vmatpush1.msra.mxu0 0.0
  %2842 = vmatprep.subr.mxu0 0.0
  %2843 = vmatpush1.msra.mxu0 0.0
  %2844 = vmatprep.subr.mxu0 0.0
  %2845 = vmatpush1.msra.mxu0 0.0
  %2846 = vmatprep.subr.mxu0 0.0
  %2847 = vmatpush1.msra.mxu0 0.0
  %2848 = vmatprep.subr.mxu0 0.0
  %2849 = vmatpush1.msra.mxu0 0.0
  %2850 = vmatprep.subr.mxu0 0.0
  %2851 = vmatpush1.msra.mxu0 0.0
  %2852 = vmatprep.subr.mxu0 0.0
  %2853 = vmatpush1.msra.mxu0 0.0
  %2854 = vmatprep.subr.mxu0 0.0
  %2855 = vmatpush1.msra.mxu0 0.0
  %2856 = vmatprep.subr.mxu0 0.0
  %2857 = vmatpush1.msra.mxu0 0.0
  %2858 = vmatprep.mubr.f32.mxu0 0.0
  %2859 = vmatmul.mubr.f32.gmra.mrb[0].mxu0 %v2792
  %v2860 = vpop.f32.mrb[0].mxu0
  %v2861 = vadd.f32 0.0, %v2860
  %v2862 = vpop.f32.mrb[0].mxu0
  %2863 = vdwg.mxu0
  %2864 = vmatprep.subr.mxu0 0.0
  %2865 = vmatpush1.msra.mxu0 %v1884
  %2866 = vmatprep.subr.mxu0 0.0
  %2867 = vmatpush1.msra.mxu0 0.0
  %2868 = vmatprep.subr.mxu0 0.0
  %2869 = vmatpush1.msra.mxu0 0.0
  %2870 = vmatprep.subr.mxu0 0.0
  %2871 = vmatpush1.msra.mxu0 0.0
  %2872 = vmatprep.subr.mxu0 0.0
  %2873 = vmatpush1.msra.mxu0 0.0
  %2874 = vmatprep.subr.mxu0 0.0
  %2875 = vmatpush1.msra.mxu0 0.0
  %2876 = vmatprep.subr.mxu0 0.0
  %2877 = vmatpush1.msra.mxu0 0.0
  %2878 = vmatprep.subr.mxu0 0.0
  %2879 = vmatpush1.msra.mxu0 0.0
  %2880 = vmatprep.subr.mxu0 0.0
  %2881 = vmatpush1.msra.mxu0 0.0
  %2882 = vmatprep.subr.mxu0 0.0
  %2883 = vmatpush1.msra.mxu0 0.0
  %2884 = vmatprep.subr.mxu0 0.0
  %2885 = vmatpush1.msra.mxu0 0.0
  %2886 = vmatprep.subr.mxu0 0.0
  %2887 = vmatpush1.msra.mxu0 0.0
  %2888 = vmatprep.subr.mxu0 0.0
  %2889 = vmatpush1.msra.mxu0 0.0
  %2890 = vmatprep.subr.mxu0 0.0
  %2891 = vmatpush1.msra.mxu0 0.0
  %2892 = vmatprep.subr.mxu0 0.0
  %2893 = vmatpush1.msra.mxu0 0.0
  %2894 = vmatprep.subr.mxu0 0.0
  %2895 = vmatpush1.msra.mxu0 0.0
  %2896 = vmatprep.subr.mxu0 0.0
  %2897 = vmatpush1.msra.mxu0 0.0
  %2898 = vmatprep.subr.mxu0 0.0
  %2899 = vmatpush1.msra.mxu0 0.0
  %2900 = vmatprep.subr.mxu0 0.0
  %2901 = vmatpush1.msra.mxu0 0.0
  %2902 = vmatprep.subr.mxu0 0.0
  %2903 = vmatpush1.msra.mxu0 0.0
  %2904 = vmatprep.subr.mxu0 0.0
  %2905 = vmatpush1.msra.mxu0 0.0
  %2906 = vmatprep.subr.mxu0 0.0
  %2907 = vmatpush1.msra.mxu0 0.0
  %2908 = vmatprep.subr.mxu0 0.0
  %2909 = vmatpush1.msra.mxu0 0.0
  %2910 = vmatprep.subr.mxu0 0.0
  %2911 = vmatpush1.msra.mxu0 0.0
  %2912 = vmatprep.subr.mxu0 0.0
  %2913 = vmatpush1.msra.mxu0 0.0
  %2914 = vmatprep.subr.mxu0 0.0
  %2915 = vmatpush1.msra.mxu0 0.0
  %2916 = vmatprep.subr.mxu0 0.0
  %2917 = vmatpush1.msra.mxu0 0.0
  %2918 = vmatprep.subr.mxu0 0.0
  %2919 = vmatpush1.msra.mxu0 0.0
  %2920 = vmatprep.subr.mxu0 0.0
  %2921 = vmatpush1.msra.mxu0 0.0
  %2922 = vmatprep.subr.mxu0 0.0
  %2923 = vmatpush1.msra.mxu0 0.0
  %2924 = vmatprep.subr.mxu0 0.0
  %2925 = vmatpush1.msra.mxu0 0.0
  %2926 = vmatprep.subr.mxu0 0.0
  %2927 = vmatpush1.msra.mxu0 0.0
  %2928 = vmatprep.mubr.f32.mxu0 0.0
  %2929 = vmatmul.mubr.f32.gmra.mrb[0].mxu0 %v2792
  %v2930 = vpop.f32.mrb[0].mxu0
  %v2931 = vadd.f32 0.0, %v2930
  %v2932 = vpop.f32.mrb[0].mxu0
  %2933 = vdwg.mxu0
  %v2934 = vmul.f32 %v2861, %v2789
  %v2935 = vadd.f32 %v2934, %v32
  %v2936 = vmul.f32 %v2931, %v2789
  %v2937 = vadd.f32 %v2936, %v57
  %2938 = vmatprep.subr.mxu0 0.0
  %2939 = vmatpush1.msra.mxu0 %v23
  %2940 = vmatprep.subr.mxu0 0.0
  %2941 = vmatpush1.msra.mxu0 %v24
  %2942 = vmatprep.subr.mxu0 0.0
  %2943 = vmatpush1.msra.mxu0 %v25
  %2944 = vmatprep.subr.mxu0 0.0
  %2945 = vmatpush1.msra.mxu0 %v26
  %2946 = vmatprep.subr.mxu0 0.0
  %2947 = vmatpush1.msra.mxu0 0.0
  %2948 = vmatprep.subr.mxu0 0.0
  %2949 = vmatpush1.msra.mxu0 0.0
  %2950 = vmatprep.subr.mxu0 0.0
  %2951 = vmatpush1.msra.mxu0 0.0
  %2952 = vmatprep.subr.mxu0 0.0
  %2953 = vmatpush1.msra.mxu0 0.0
  %2954 = vmatprep.subr.mxu0 0.0
  %2955 = vmatpush1.msra.mxu0 0.0
  %2956 = vmatprep.subr.mxu0 0.0
  %2957 = vmatpush1.msra.mxu0 0.0
  %2958 = vmatprep.subr.mxu0 0.0
  %2959 = vmatpush1.msra.mxu0 0.0
  %2960 = vmatprep.subr.mxu0 0.0
  %2961 = vmatpush1.msra.mxu0 0.0
  %2962 = vmatprep.subr.mxu0 0.0
  %2963 = vmatpush1.msra.mxu0 0.0
  %2964 = vmatprep.subr.mxu0 0.0
  %2965 = vmatpush1.msra.mxu0 0.0
  %2966 = vmatprep.subr.mxu0 0.0
  %2967 = vmatpush1.msra.mxu0 0.0
  %2968 = vmatprep.subr.mxu0 0.0
  %2969 = vmatpush1.msra.mxu0 0.0
  %2970 = vmatprep.subr.mxu0 0.0
  %2971 = vmatpush1.msra.mxu0 0.0
  %2972 = vmatprep.subr.mxu0 0.0
  %2973 = vmatpush1.msra.mxu0 0.0
  %2974 = vmatprep.subr.mxu0 0.0
  %2975 = vmatpush1.msra.mxu0 0.0
  %2976 = vmatprep.subr.mxu0 0.0
  %2977 = vmatpush1.msra.mxu0 0.0
  %2978 = vmatprep.subr.mxu0 0.0
  %2979 = vmatpush1.msra.mxu0 0.0
  %2980 = vmatprep.subr.mxu0 0.0
  %2981 = vmatpush1.msra.mxu0 0.0
  %2982 = vmatprep.subr.mxu0 0.0
  %2983 = vmatpush1.msra.mxu0 0.0
  %2984 = vmatprep.subr.mxu0 0.0
  %2985 = vmatpush1.msra.mxu0 0.0
  %2986 = vmatprep.subr.mxu0 0.0
  %2987 = vmatpush1.msra.mxu0 0.0
  %2988 = vmatprep.subr.mxu0 0.0
  %2989 = vmatpush1.msra.mxu0 0.0
  %2990 = vmatprep.subr.mxu0 0.0
  %2991 = vmatpush1.msra.mxu0 0.0
  %2992 = vmatprep.subr.mxu0 0.0
  %2993 = vmatpush1.msra.mxu0 0.0
  %2994 = vmatprep.subr.mxu0 0.0
  %2995 = vmatpush1.msra.mxu0 0.0
  %2996 = vmatprep.subr.mxu0 0.0
  %2997 = vmatpush1.msra.mxu0 0.0
  %2998 = vmatprep.subr.mxu0 0.0
  %2999 = vmatpush1.msra.mxu0 0.0
  %3000 = vmatprep.subr.mxu0 0.0
  %3001 = vmatpush1.msra.mxu0 0.0
  %3002 = vmatprep.mubr.f32.mxu0 0.0
  %3003 = vmatmul.mubr.f32.gmra.mrb[0].mxu0 %v2608
  %v3004 = vpop.f32.mrb[0].mxu0
  %v3005 = vadd.f32 0.0, %v3004
  %v3006 = vpop.f32.mrb[0].mxu0
  %3007 = vdwg.mxu0
  %3008 = vmatprep.subr.mxu0 0.0
  %3009 = vmatpush1.msra.mxu0 %v39
  %3010 = vmatprep.subr.mxu0 0.0
  %3011 = vmatpush1.msra.mxu0 %v40
  %3012 = vmatprep.subr.mxu0 0.0
  %3013 = vmatpush1.msra.mxu0 %v41
  %3014 = vmatprep.subr.mxu0 0.0
  %3015 = vmatpush1.msra.mxu0 %v42
  %3016 = vmatprep.subr.mxu0 0.0
  %3017 = vmatpush1.msra.mxu0 0.0
  %3018 = vmatprep.subr.mxu0 0.0
  %3019 = vmatpush1.msra.mxu0 0.0
  %3020 = vmatprep.subr.mxu0 0.0
  %3021 = vmatpush1.msra.mxu0 0.0
  %3022 = vmatprep.subr.mxu0 0.0
  %3023 = vmatpush1.msra.mxu0 0.0
  %3024 = vmatprep.subr.mxu0 0.0
  %3025 = vmatpush1.msra.mxu0 0.0
  %3026 = vmatprep.subr.mxu0 0.0
  %3027 = vmatpush1.msra.mxu0 0.0
  %3028 = vmatprep.subr.mxu0 0.0
  %3029 = vmatpush1.msra.mxu0 0.0
  %3030 = vmatprep.subr.mxu0 0.0
  %3031 = vmatpush1.msra.mxu0 0.0
  %3032 = vmatprep.subr.mxu0 0.0
  %3033 = vmatpush1.msra.mxu0 0.0
  %3034 = vmatprep.subr.mxu0 0.0
  %3035 = vmatpush1.msra.mxu0 0.0
  %3036 = vmatprep.subr.mxu0 0.0
  %3037 = vmatpush1.msra.mxu0 0.0
  %3038 = vmatprep.subr.mxu0 0.0
  %3039 = vmatpush1.msra.mxu0 0.0
  %3040 = vmatprep.subr.mxu0 0.0
  %3041 = vmatpush1.msra.mxu0 0.0
  %3042 = vmatprep.subr.mxu0 0.0
  %3043 = vmatpush1.msra.mxu0 0.0
  %3044 = vmatprep.subr.mxu0 0.0
  %3045 = vmatpush1.msra.mxu0 0.0
  %3046 = vmatprep.subr.mxu0 0.0
  %3047 = vmatpush1.msra.mxu0 0.0
  %3048 = vmatprep.subr.mxu0 0.0
  %3049 = vmatpush1.msra.mxu0 0.0
  %3050 = vmatprep.subr.mxu0 0.0
  %3051 = vmatpush1.msra.mxu0 0.0
  %3052 = vmatprep.subr.mxu0 0.0
  %3053 = vmatpush1.msra.mxu0 0.0
  %3054 = vmatprep.subr.mxu0 0.0
  %3055 = vmatpush1.msra.mxu0 0.0
  %3056 = vmatprep.subr.mxu0 0.0
  %3057 = vmatpush1.msra.mxu0 0.0
  %3058 = vmatprep.subr.mxu0 0.0
  %3059 = vmatpush1.msra.mxu0 0.0
  %3060 = vmatprep.subr.mxu0 0.0
  %3061 = vmatpush1.msra.mxu0 0.0
  %3062 = vmatprep.subr.mxu0 0.0
  %3063 = vmatpush1.msra.mxu0 0.0
  %3064 = vmatprep.subr.mxu0 0.0
  %3065 = vmatpush1.msra.mxu0 0.0
  %3066 = vmatprep.subr.mxu0 0.0
  %3067 = vmatpush1.msra.mxu0 0.0
  %3068 = vmatprep.subr.mxu0 0.0
  %3069 = vmatpush1.msra.mxu0 0.0
  %3070 = vmatprep.subr.mxu0 0.0
  %3071 = vmatpush1.msra.mxu0 0.0
  %3072 = vmatprep.mubr.f32.mxu0 0.0
  %3073 = vmatmul.mubr.f32.gmra.mrb[0].mxu0 %v2608
  %v3074 = vpop.f32.mrb[0].mxu0
  %v3075 = vadd.f32 %v62, %v3074
  %v3076 = vpop.f32.mrb[0].mxu0
  %3077 = vdwg.mxu0
  %v3078 = vadd.f32 %v2935, %v3005
  %v3079 = vmul.f32 %v3078, 0.5
  %v3080 = vtanh.pop %v3079
  %v3081 = vadd.f32 %v3080, 1.0
  %v3082 = vmul.f32 %v3081, 0.5
  %v3083 = vmul.f32 %v3082, %v3075
  %v3084 = vadd.f32 %v2937, %v3083
  %v3085 = vtanh.pop %v3084
  %v3086 = vsub.f32 1.0, %v3082
  %3088 = vrot.lane.b32.xlu0 %v3085, 32
  %v3089 = vpop.permute.xlu0 %3088
  %v3091 = vmul.f32 %v3086, %v3089
  %v3092 = vmul.f32 %v3082, %v2604
  %v3093 = vadd.f32 %v3091, %v3092
  %3095 = vrot.lane.b32.xlu0 %v3093, 96
  %v3096 = vpop.permute.xlu0 %3095
  %v3097 = vsel %vm277, %v3096, 0
  %3099 = vmatprep.subr.mxu0 0.0
  %3100 = vmatpush1.msra.mxu0 %v43
  %3101 = vmatprep.subr.mxu0 0.0
  %3102 = vmatpush1.msra.mxu0 %v44
  %3103 = vmatprep.subr.mxu0 0.0
  %3104 = vmatpush1.msra.mxu0 %v45
  %3105 = vmatprep.subr.mxu0 0.0
  %3106 = vmatpush1.msra.mxu0 %v46
  %3107 = vmatprep.subr.mxu0 0.0
  %3108 = vmatpush1.msra.mxu0 0.0
  %3109 = vmatprep.subr.mxu0 0.0
  %3110 = vmatpush1.msra.mxu0 0.0
  %3111 = vmatprep.subr.mxu0 0.0
  %3112 = vmatpush1.msra.mxu0 0.0
  %3113 = vmatprep.subr.mxu0 0.0
  %3114 = vmatpush1.msra.mxu0 0.0
  %3115 = vmatprep.subr.mxu0 0.0
  %3116 = vmatpush1.msra.mxu0 0.0
  %3117 = vmatprep.subr.mxu0 0.0
  %3118 = vmatpush1.msra.mxu0 0.0
  %3119 = vmatprep.subr.mxu0 0.0
  %3120 = vmatpush1.msra.mxu0 0.0
  %3121 = vmatprep.subr.mxu0 0.0
  %3122 = vmatpush1.msra.mxu0 0.0
  %3123 = vmatprep.subr.mxu0 0.0
  %3124 = vmatpush1.msra.mxu0 0.0
  %3125 = vmatprep.subr.mxu0 0.0
  %3126 = vmatpush1.msra.mxu0 0.0
  %3127 = vmatprep.subr.mxu0 0.0
  %3128 = vmatpush1.msra.mxu0 0.0
  %3129 = vmatprep.subr.mxu0 0.0
  %3130 = vmatpush1.msra.mxu0 0.0
  %3131 = vmatprep.subr.mxu0 0.0
  %3132 = vmatpush1.msra.mxu0 0.0
  %3133 = vmatprep.subr.mxu0 0.0
  %3134 = vmatpush1.msra.mxu0 0.0
  %3135 = vmatprep.subr.mxu0 0.0
  %3136 = vmatpush1.msra.mxu0 0.0
  %3137 = vmatprep.subr.mxu0 0.0
  %3138 = vmatpush1.msra.mxu0 0.0
  %3139 = vmatprep.subr.mxu0 0.0
  %3140 = vmatpush1.msra.mxu0 0.0
  %3141 = vmatprep.subr.mxu0 0.0
  %3142 = vmatpush1.msra.mxu0 0.0
  %3143 = vmatprep.subr.mxu0 0.0
  %3144 = vmatpush1.msra.mxu0 0.0
  %3145 = vmatprep.subr.mxu0 0.0
  %3146 = vmatpush1.msra.mxu0 0.0
  %3147 = vmatprep.subr.mxu0 0.0
  %3148 = vmatpush1.msra.mxu0 0.0
  %3149 = vmatprep.subr.mxu0 0.0
  %3150 = vmatpush1.msra.mxu0 0.0
  %3151 = vmatprep.subr.mxu0 0.0
  %3152 = vmatpush1.msra.mxu0 0.0
  %3153 = vmatprep.subr.mxu0 0.0
  %3154 = vmatpush1.msra.mxu0 0.0
  %3155 = vmatprep.subr.mxu0 0.0
  %3156 = vmatpush1.msra.mxu0 0.0
  %3157 = vmatprep.subr.mxu0 0.0
  %3158 = vmatpush1.msra.mxu0 0.0
  %3159 = vmatprep.subr.mxu0 0.0
  %3160 = vmatpush1.msra.mxu0 0.0
  %3161 = vmatprep.subr.mxu0 0.0
  %3162 = vmatpush1.msra.mxu0 0.0
  %3163 = vmatprep.mubr.f32.mxu0 0.0
  %3164 = vmatmul.mubr.f32.gmra.mrb[0].mxu0 %v3097
  %v3165 = vpop.f32.mrb[0].mxu0
  %v3166 = vadd.f32 %v67, %v3165
  %v3167 = vpop.f32.mrb[0].mxu0
  %3168 = vdwg.mxu0
  %v3169 = vsel %vm1694, %v3166, 0.0
  %3170 = vadd.xlane.f32.xlu0 %v3169
  %v3171 = vpop.xlane.xlu0 %3170
  %v3172 = vmul.f32 %v3166, %v3166
  %v3173 = vsel %vm1694, %v3172, 0.0
  %3174 = vadd.xlane.f32.xlu0 %v3173
  %v3175 = vpop.xlane.xlu0 %3174
  %v3176 = vmul.f32 %v3171, 0.03125
  %v3177 = vmul.f32 %v3175, 0.03125
  %v3178 = vmul.f32 %v3176, %v3176
  %v3179 = vsub.f32 %v3177, %v3178
  %v3180 = vsub.f32 %v3166, %v3176
  %v3181 = vadd.f32 %v3179, 1e-05
  %v3182 = vrsqrt.pop %v3181
  %v3183 = vmul.f32 %v3180, %v3182
  %v3184 = vmul.f32 %v3183, %v72
  %v3185 = vadd.f32 %v3184, %v77
  %v3186 = vmul.f32 %v3185, 0.5
  %v3187 = vmul.f32 %v3185, 0.044715
  %v3188 = vmul.f32 %v3187, %v3185
  %v3189 = vmul.f32 %v3188, %v3185
  %v3190 = vadd.f32 %v3185, %v3189
  %v3191 = vmul.f32 %v3190, 0.7978846
  %v3192 = vtanh.pop %v3191
  %v3193 = vadd.f32 %v3192, 1.0
  %v3194 = vmul.f32 %v3186, %v3193
  %v3196 = vsel %vm277, %v3194, 0
  %3198 = vmatprep.subr.mxu0 0.0
  %3199 = vmatpush1.msra.mxu0 %v78
  %3200 = vmatprep.subr.mxu0 0.0
  %3201 = vmatpush1.msra.mxu0 %v79
  %3202 = vmatprep.subr.mxu0 0.0
  %3203 = vmatpush1.msra.mxu0 %v80
  %3204 = vmatprep.subr.mxu0 0.0
  %3205 = vmatpush1.msra.mxu0 %v81
  %3206 = vmatprep.subr.mxu0 0.0
  %3207 = vmatpush1.msra.mxu0 0.0
  %3208 = vmatprep.subr.mxu0 0.0
  %3209 = vmatpush1.msra.mxu0 0.0
  %3210 = vmatprep.subr.mxu0 0.0
  %3211 = vmatpush1.msra.mxu0 0.0
  %3212 = vmatprep.subr.mxu0 0.0
  %3213 = vmatpush1.msra.mxu0 0.0
  %3214 = vmatprep.subr.mxu0 0.0
  %3215 = vmatpush1.msra.mxu0 0.0
  %3216 = vmatprep.subr.mxu0 0.0
  %3217 = vmatpush1.msra.mxu0 0.0
  %3218 = vmatprep.subr.mxu0 0.0
  %3219 = vmatpush1.msra.mxu0 0.0
  %3220 = vmatprep.subr.mxu0 0.0
  %3221 = vmatpush1.msra.mxu0 0.0
  %3222 = vmatprep.subr.mxu0 0.0
  %3223 = vmatpush1.msra.mxu0 0.0
  %3224 = vmatprep.subr.mxu0 0.0
  %3225 = vmatpush1.msra.mxu0 0.0
  %3226 = vmatprep.subr.mxu0 0.0
  %3227 = vmatpush1.msra.mxu0 0.0
  %3228 = vmatprep.subr.mxu0 0.0
  %3229 = vmatpush1.msra.mxu0 0.0
  %3230 = vmatprep.subr.mxu0 0.0
  %3231 = vmatpush1.msra.mxu0 0.0
  %3232 = vmatprep.subr.mxu0 0.0
  %3233 = vmatpush1.msra.mxu0 0.0
  %3234 = vmatprep.subr.mxu0 0.0
  %3235 = vmatpush1.msra.mxu0 0.0
  %3236 = vmatprep.subr.mxu0 0.0
  %3237 = vmatpush1.msra.mxu0 0.0
  %3238 = vmatprep.subr.mxu0 0.0
  %3239 = vmatpush1.msra.mxu0 0.0
  %3240 = vmatprep.subr.mxu0 0.0
  %3241 = vmatpush1.msra.mxu0 0.0
  %3242 = vmatprep.subr.mxu0 0.0
  %3243 = vmatpush1.msra.mxu0 0.0
  %3244 = vmatprep.subr.mxu0 0.0
  %3245 = vmatpush1.msra.mxu0 0.0
  %3246 = vmatprep.subr.mxu0 0.0
  %3247 = vmatpush1.msra.mxu0 0.0
  %3248 = vmatprep.subr.mxu0 0.0
  %3249 = vmatpush1.msra.mxu0 0.0
  %3250 = vmatprep.subr.mxu0 0.0
  %3251 = vmatpush1.msra.mxu0 0.0
  %3252 = vmatprep.subr.mxu0 0.0
  %3253 = vmatpush1.msra.mxu0 0.0
  %3254 = vmatprep.subr.mxu0 0.0
  %3255 = vmatpush1.msra.mxu0 0.0
  %3256 = vmatprep.subr.mxu0 0.0
  %3257 = vmatpush1.msra.mxu0 0.0
  %3258 = vmatprep.subr.mxu0 0.0
  %3259 = vmatpush1.msra.mxu0 0.0
  %3260 = vmatprep.subr.mxu0 0.0
  %3261 = vmatpush1.msra.mxu0 0.0
  %3262 = vmatprep.mubr.f32.mxu0 0.0
  %3263 = vmatmul.mubr.f32.gmra.mrb[0].mxu0 %v3196
  %v3264 = vpop.f32.mrb[0].mxu0
  %v3265 = vadd.f32 %v86, %v3264
  %v3266 = vpop.f32.mrb[0].mxu0
  %3267 = vdwg.mxu0
  %v3268 = vsel %vm1794, %v3265, -inf
  %3269 = vmax.xlane.f32.xlu0 %v3268
  %v3270 = vpop.xlane.xlu0 %3269
  %v3271 = vsub.f32 %v3265, %v3270
  %v3272 = vmul.f32 %v3271, 1.442695
  %v3273 = vpow.pop %v3272
  %v3274 = vsel %vm1794, %v3273, 0.0
  %3275 = vadd.xlane.f32.xlu0 %v3274
  %v3276 = vpop.xlane.xlu0 %3275
  %v3277 = vrcp.pop %v3276
  %v3278 = vmul.f32 1.0, %v3277
  %v3279 = vmul.f32 %v3273, %v3278
  %v3281 = vsel %vm93, %v3273, 0
  %3283 = vmatprep.subr.mxu0 0.0
  %3284 = vmatpush1.msra.mxu0 %v1811
  %3285 = vmatprep.subr.mxu0 0.0
  %3286 = vmatpush1.msra.mxu0 0.0
  %3287 = vmatprep.subr.mxu0 0.0
  %3288 = vmatpush1.msra.mxu0 0.0
  %3289 = vmatprep.subr.mxu0 0.0
  %3290 = vmatpush1.msra.mxu0 0.0
  %3291 = vmatprep.subr.mxu0 0.0
  %3292 = vmatpush1.msra.mxu0 0.0
  %3293 = vmatprep.subr.mxu0 0.0
  %3294 = vmatpush1.msra.mxu0 0.0
  %3295 = vmatprep.subr.mxu0 0.0
  %3296 = vmatpush1.msra.mxu0 0.0
  %3297 = vmatprep.subr.mxu0 0.0
  %3298 = vmatpush1.msra.mxu0 0.0
  %3299 = vmatprep.subr.mxu0 0.0
  %3300 = vmatpush1.msra.mxu0 0.0
  %3301 = vmatprep.subr.mxu0 0.0
  %3302 = vmatpush1.msra.mxu0 0.0
  %3303 = vmatprep.subr.mxu0 0.0
  %3304 = vmatpush1.msra.mxu0 0.0
  %3305 = vmatprep.subr.mxu0 0.0
  %3306 = vmatpush1.msra.mxu0 0.0
  %3307 = vmatprep.subr.mxu0 0.0
  %3308 = vmatpush1.msra.mxu0 0.0
  %3309 = vmatprep.subr.mxu0 0.0
  %3310 = vmatpush1.msra.mxu0 0.0
  %3311 = vmatprep.subr.mxu0 0.0
  %3312 = vmatpush1.msra.mxu0 0.0
  %3313 = vmatprep.subr.mxu0 0.0
  %3314 = vmatpush1.msra.mxu0 0.0
  %3315 = vmatprep.subr.mxu0 0.0
  %3316 = vmatpush1.msra.mxu0 0.0
  %3317 = vmatprep.subr.mxu0 0.0
  %3318 = vmatpush1.msra.mxu0 0.0
  %3319 = vmatprep.subr.mxu0 0.0
  %3320 = vmatpush1.msra.mxu0 0.0
  %3321 = vmatprep.subr.mxu0 0.0
  %3322 = vmatpush1.msra.mxu0 0.0
  %3323 = vmatprep.subr.mxu0 0.0
  %3324 = vmatpush1.msra.mxu0 0.0
  %3325 = vmatprep.subr.mxu0 0.0
  %3326 = vmatpush1.msra.mxu0 0.0
  %3327 = vmatprep.subr.mxu0 0.0
  %3328 = vmatpush1.msra.mxu0 0.0
  %3329 = vmatprep.subr.mxu0 0.0
  %3330 = vmatpush1.msra.mxu0 0.0
  %3331 = vmatprep.subr.mxu0 0.0
  %3332 = vmatpush1.msra.mxu0 0.0
  %3333 = vmatprep.subr.mxu0 0.0
  %3334 = vmatpush1.msra.mxu0 0.0
  %3335 = vmatprep.subr.mxu0 0.0
  %3336 = vmatpush1.msra.mxu0 0.0
  %3337 = vmatprep.subr.mxu0 0.0
  %3338 = vmatpush1.msra.mxu0 0.0
  %3339 = vmatprep.subr.mxu0 0.0
  %3340 = vmatpush1.msra.mxu0 0.0
  %3341 = vmatprep.subr.mxu0 0.0
  %3342 = vmatpush1.msra.mxu0 0.0
  %3343 = vmatprep.subr.mxu0 0.0
  %3344 = vmatpush1.msra.mxu0 0.0
  %3345 = vmatprep.subr.mxu0 0.0
  %3346 = vmatpush1.msra.mxu0 0.0
  %3347 = vmatprep.mubr.f32.mxu0 0.0
  %3348 = vmatmul.mubr.f32.gmra.mrb[0].mxu0 %v3281
  %v3349 = vpop.f32.mrb[0].mxu0
  %v3350 = vadd.f32 0.0, %v3349
  %v3351 = vpop.f32.mrb[0].mxu0
  %3352 = vdwg.mxu0
  %3353 = vmatprep.subr.mxu0 0.0
  %3354 = vmatpush1.msra.mxu0 %v1884
  %3355 = vmatprep.subr.mxu0 0.0
  %3356 = vmatpush1.msra.mxu0 0.0
  %3357 = vmatprep.subr.mxu0 0.0
  %3358 = vmatpush1.msra.mxu0 0.0
  %3359 = vmatprep.subr.mxu0 0.0
  %3360 = vmatpush1.msra.mxu0 0.0
  %3361 = vmatprep.subr.mxu0 0.0
  %3362 = vmatpush1.msra.mxu0 0.0
  %3363 = vmatprep.subr.mxu0 0.0
  %3364 = vmatpush1.msra.mxu0 0.0
  %3365 = vmatprep.subr.mxu0 0.0
  %3366 = vmatpush1.msra.mxu0 0.0
  %3367 = vmatprep.subr.mxu0 0.0
  %3368 = vmatpush1.msra.mxu0 0.0
  %3369 = vmatprep.subr.mxu0 0.0
  %3370 = vmatpush1.msra.mxu0 0.0
  %3371 = vmatprep.subr.mxu0 0.0
  %3372 = vmatpush1.msra.mxu0 0.0
  %3373 = vmatprep.subr.mxu0 0.0
  %3374 = vmatpush1.msra.mxu0 0.0
  %3375 = vmatprep.subr.mxu0 0.0
  %3376 = vmatpush1.msra.mxu0 0.0
  %3377 = vmatprep.subr.mxu0 0.0
  %3378 = vmatpush1.msra.mxu0 0.0
  %3379 = vmatprep.subr.mxu0 0.0
  %3380 = vmatpush1.msra.mxu0 0.0
  %3381 = vmatprep.subr.mxu0 0.0
  %3382 = vmatpush1.msra.mxu0 0.0
  %3383 = vmatprep.subr.mxu0 0.0
  %3384 = vmatpush1.msra.mxu0 0.0
  %3385 = vmatprep.subr.mxu0 0.0
  %3386 = vmatpush1.msra.mxu0 0.0
  %3387 = vmatprep.subr.mxu0 0.0
  %3388 = vmatpush1.msra.mxu0 0.0
  %3389 = vmatprep.subr.mxu0 0.0
  %3390 = vmatpush1.msra.mxu0 0.0
  %3391 = vmatprep.subr.mxu0 0.0
  %3392 = vmatpush1.msra.mxu0 0.0
  %3393 = vmatprep.subr.mxu0 0.0
  %3394 = vmatpush1.msra.mxu0 0.0
  %3395 = vmatprep.subr.mxu0 0.0
  %3396 = vmatpush1.msra.mxu0 0.0
  %3397 = vmatprep.subr.mxu0 0.0
  %3398 = vmatpush1.msra.mxu0 0.0
  %3399 = vmatprep.subr.mxu0 0.0
  %3400 = vmatpush1.msra.mxu0 0.0
  %3401 = vmatprep.subr.mxu0 0.0
  %3402 = vmatpush1.msra.mxu0 0.0
  %3403 = vmatprep.subr.mxu0 0.0
  %3404 = vmatpush1.msra.mxu0 0.0
  %3405 = vmatprep.subr.mxu0 0.0
  %3406 = vmatpush1.msra.mxu0 0.0
  %3407 = vmatprep.subr.mxu0 0.0
  %3408 = vmatpush1.msra.mxu0 0.0
  %3409 = vmatprep.subr.mxu0 0.0
  %3410 = vmatpush1.msra.mxu0 0.0
  %3411 = vmatprep.subr.mxu0 0.0
  %3412 = vmatpush1.msra.mxu0 0.0
  %3413 = vmatprep.subr.mxu0 0.0
  %3414 = vmatpush1.msra.mxu0 0.0
  %3415 = vmatprep.subr.mxu0 0.0
  %3416 = vmatpush1.msra.mxu0 0.0
  %3417 = vmatprep.mubr.f32.mxu0 0.0
  %3418 = vmatmul.mubr.f32.gmra.mrb[0].mxu0 %v3281
  %v3419 = vpop.f32.mrb[0].mxu0
  %v3420 = vadd.f32 0.0, %v3419
  %v3421 = vpop.f32.mrb[0].mxu0
  %3422 = vdwg.mxu0
  %v3423 = vmul.f32 %v3350, %v3278
  %v3424 = vadd.f32 %v3423, %v32
  %v3425 = vmul.f32 %v3420, %v3278
  %v3426 = vadd.f32 %v3425, %v57
  %3427 = vmatprep.subr.mxu0 0.0
  %3428 = vmatpush1.msra.mxu0 %v23
  %3429 = vmatprep.subr.mxu0 0.0
  %3430 = vmatpush1.msra.mxu0 %v24
  %3431 = vmatprep.subr.mxu0 0.0
  %3432 = vmatpush1.msra.mxu0 %v25
  %3433 = vmatprep.subr.mxu0 0.0
  %3434 = vmatpush1.msra.mxu0 %v26
  %3435 = vmatprep.subr.mxu0 0.0
  %3436 = vmatpush1.msra.mxu0 0.0
  %3437 = vmatprep.subr.mxu0 0.0
  %3438 = vmatpush1.msra.mxu0 0.0
  %3439 = vmatprep.subr.mxu0 0.0
  %3440 = vmatpush1.msra.mxu0 0.0
  %3441 = vmatprep.subr.mxu0 0.0
  %3442 = vmatpush1.msra.mxu0 0.0
  %3443 = vmatprep.subr.mxu0 0.0
  %3444 = vmatpush1.msra.mxu0 0.0
  %3445 = vmatprep.subr.mxu0 0.0
  %3446 = vmatpush1.msra.mxu0 0.0
  %3447 = vmatprep.subr.mxu0 0.0
  %3448 = vmatpush1.msra.mxu0 0.0
  %3449 = vmatprep.subr.mxu0 0.0
  %3450 = vmatpush1.msra.mxu0 0.0
  %3451 = vmatprep.subr.mxu0 0.0
  %3452 = vmatpush1.msra.mxu0 0.0
  %3453 = vmatprep.subr.mxu0 0.0
  %3454 = vmatpush1.msra.mxu0 0.0
  %3455 = vmatprep.subr.mxu0 0.0
  %3456 = vmatpush1.msra.mxu0 0.0
  %3457 = vmatprep.subr.mxu0 0.0
  %3458 = vmatpush1.msra.mxu0 0.0
  %3459 = vmatprep.subr.mxu0 0.0
  %3460 = vmatpush1.msra.mxu0 0.0
  %3461 = vmatprep.subr.mxu0 0.0
  %3462 = vmatpush1.msra.mxu0 0.0
  %3463 = vmatprep.subr.mxu0 0.0
  %3464 = vmatpush1.msra.mxu0 0.0
  %3465 = vmatprep.subr.mxu0 0.0
  %3466 = vmatpush1.msra.mxu0 0.0
  %3467 = vmatprep.subr.mxu0 0.0
  %3468 = vmatpush1.msra.mxu0 0.0
  %3469 = vmatprep.subr.mxu0 0.0
  %3470 = vmatpush1.msra.mxu0 0.0
  %3471 = vmatprep.subr.mxu0 0.0
  %3472 = vmatpush1.msra.mxu0 0.0
  %3473 = vmatprep.subr.mxu0 0.0
  %3474 = vmatpush1.msra.mxu0 0.0
  %3475 = vmatprep.subr.mxu0 0.0
  %3476 = vmatpush1.msra.mxu0 0.0
  %3477 = vmatprep.subr.mxu0 0.0
  %3478 = vmatpush1.msra.mxu0 0.0
  %3479 = vmatprep.subr.mxu0 0.0
  %3480 = vmatpush1.msra.mxu0 0.0
  %3481 = vmatprep.subr.mxu0 0.0
  %3482 = vmatpush1.msra.mxu0 0.0
  %3483 = vmatprep.subr.mxu0 0.0
  %3484 = vmatpush1.msra.mxu0 0.0
  %3485 = vmatprep.subr.mxu0 0.0
  %3486 = vmatpush1.msra.mxu0 0.0
  %3487 = vmatprep.subr.mxu0 0.0
  %3488 = vmatpush1.msra.mxu0 0.0
  %3489 = vmatprep.subr.mxu0 0.0
  %3490 = vmatpush1.msra.mxu0 0.0
  %3491 = vmatprep.mubr.f32.mxu0 0.0
  %3492 = vmatmul.mubr.f32.gmra.mrb[0].mxu0 %v3097
  %v3493 = vpop.f32.mrb[0].mxu0
  %v3494 = vadd.f32 0.0, %v3493
  %v3495 = vpop.f32.mrb[0].mxu0
  %3496 = vdwg.mxu0
  %3497 = vmatprep.subr.mxu0 0.0
  %3498 = vmatpush1.msra.mxu0 %v39
  %3499 = vmatprep.subr.mxu0 0.0
  %3500 = vmatpush1.msra.mxu0 %v40
  %3501 = vmatprep.subr.mxu0 0.0
  %3502 = vmatpush1.msra.mxu0 %v41
  %3503 = vmatprep.subr.mxu0 0.0
  %3504 = vmatpush1.msra.mxu0 %v42
  %3505 = vmatprep.subr.mxu0 0.0
  %3506 = vmatpush1.msra.mxu0 0.0
  %3507 = vmatprep.subr.mxu0 0.0
  %3508 = vmatpush1.msra.mxu0 0.0
  %3509 = vmatprep.subr.mxu0 0.0
  %3510 = vmatpush1.msra.mxu0 0.0
  %3511 = vmatprep.subr.mxu0 0.0
  %3512 = vmatpush1.msra.mxu0 0.0
  %3513 = vmatprep.subr.mxu0 0.0
  %3514 = vmatpush1.msra.mxu0 0.0
  %3515 = vmatprep.subr.mxu0 0.0
  %3516 = vmatpush1.msra.mxu0 0.0
  %3517 = vmatprep.subr.mxu0 0.0
  %3518 = vmatpush1.msra.mxu0 0.0
  %3519 = vmatprep.subr.mxu0 0.0
  %3520 = vmatpush1.msra.mxu0 0.0
  %3521 = vmatprep.subr.mxu0 0.0
  %3522 = vmatpush1.msra.mxu0 0.0
  %3523 = vmatprep.subr.mxu0 0.0
  %3524 = vmatpush1.msra.mxu0 0.0
  %3525 = vmatprep.subr.mxu0 0.0
  %3526 = vmatpush1.msra.mxu0 0.0
  %3527 = vmatprep.subr.mxu0 0.0
  %3528 = vmatpush1.msra.mxu0 0.0
  %3529 = vmatprep.subr.mxu0 0.0
  %3530 = vmatpush1.msra.mxu0 0.0
  %3531 = vmatprep.subr.mxu0 0.0
  %3532 = vmatpush1.msra.mxu0 0.0
  %3533 = vmatprep.subr.mxu0 0.0
  %3534 = vmatpush1.msra.mxu0 0.0
  %3535 = vmatprep.subr.mxu0 0.0
  %3536 = vmatpush1.msra.mxu0 0.0
  %3537 = vmatprep.subr.mxu0 0.0
  %3538 = vmatpush1.msra.mxu0 0.0
  %3539 = vmatprep.subr.mxu0 0.0
  %3540 = vmatpush1.msra.mxu0 0.0
  %3541 = vmatprep.subr.mxu0 0.0
  %3542 = vmatpush1.msra.mxu0 0.0
  %3543 = vmatprep.subr.mxu0 0.0
  %3544 = vmatpush1.msra.mxu0 0.0
  %3545 = vmatprep.subr.mxu0 0.0
  %3546 = vmatpush1.msra.mxu0 0.0
  %3547 = vmatprep.subr.mxu0 0.0
  %3548 = vmatpush1.msra.mxu0 0.0
  %3549 = vmatprep.subr.mxu0 0.0
  %3550 = vmatpush1.msra.mxu0 0.0
  %3551 = vmatprep.subr.mxu0 0.0
  %3552 = vmatpush1.msra.mxu0 0.0
  %3553 = vmatprep.subr.mxu0 0.0
  %3554 = vmatpush1.msra.mxu0 0.0
  %3555 = vmatprep.subr.mxu0 0.0
  %3556 = vmatpush1.msra.mxu0 0.0
  %3557 = vmatprep.subr.mxu0 0.0
  %3558 = vmatpush1.msra.mxu0 0.0
  %3559 = vmatprep.subr.mxu0 0.0
  %3560 = vmatpush1.msra.mxu0 0.0
  %3561 = vmatprep.mubr.f32.mxu0 0.0
  %3562 = vmatmul.mubr.f32.gmra.mrb[0].mxu0 %v3097
  %v3563 = vpop.f32.mrb[0].mxu0
  %v3564 = vadd.f32 %v62, %v3563
  %v3565 = vpop.f32.mrb[0].mxu0
  %3566 = vdwg.mxu0
  %v3567 = vadd.f32 %v3424, %v3494
  %v3568 = vmul.f32 %v3567, 0.5
  %v3569 = vtanh.pop %v3568
  %v3570 = vadd.f32 %v3569, 1.0
  %v3571 = vmul.f32 %v3570, 0.5
  %v3572 = vmul.f32 %v3571, %v3564
  %v3573 = vadd.f32 %v3426, %v3572
  %v3574 = vtanh.pop %v3573
  %v3575 = vsub.f32 1.0, %v3571
  %3577 = vrot.lane.b32.xlu0 %v3574, 32
  %v3578 = vpop.permute.xlu0 %3577
  %v3580 = vmul.f32 %v3575, %v3578
  %v3581 = vmul.f32 %v3571, %v3093
  %v3582 = vadd.f32 %v3580, %v3581
  %3584 = vrot.lane.b32.xlu0 %v3582, 96
  %v3585 = vpop.permute.xlu0 %3584
  %v3586 = vsel %vm277, %v3585, 0
  %3588 = vmatprep.subr.mxu0 0.0
  %3589 = vmatpush1.msra.mxu0 %v43
  %3590 = vmatprep.subr.mxu0 0.0
  %3591 = vmatpush1.msra.mxu0 %v44
  %3592 = vmatprep.subr.mxu0 0.0
  %3593 = vmatpush1.msra.mxu0 %v45
  %3594 = vmatprep.subr.mxu0 0.0
  %3595 = vmatpush1.msra.mxu0 %v46
  %3596 = vmatprep.subr.mxu0 0.0
  %3597 = vmatpush1.msra.mxu0 0.0
  %3598 = vmatprep.subr.mxu0 0.0
  %3599 = vmatpush1.msra.mxu0 0.0
  %3600 = vmatprep.subr.mxu0 0.0
  %3601 = vmatpush1.msra.mxu0 0.0
  %3602 = vmatprep.subr.mxu0 0.0
  %3603 = vmatpush1.msra.mxu0 0.0
  %3604 = vmatprep.subr.mxu0 0.0
  %3605 = vmatpush1.msra.mxu0 0.0
  %3606 = vmatprep.subr.mxu0 0.0
  %3607 = vmatpush1.msra.mxu0 0.0
  %3608 = vmatprep.subr.mxu0 0.0
  %3609 = vmatpush1.msra.mxu0 0.0
  %3610 = vmatprep.subr.mxu0 0.0
  %3611 = vmatpush1.msra.mxu0 0.0
  %3612 = vmatprep.subr.mxu0 0.0
  %3613 = vmatpush1.msra.mxu0 0.0
  %3614 = vmatprep.subr.mxu0 0.0
  %3615 = vmatpush1.msra.mxu0 0.0
  %3616 = vmatprep.subr.mxu0 0.0
  %3617 = vmatpush1.msra.mxu0 0.0
  %3618 = vmatprep.subr.mxu0 0.0
  %3619 = vmatpush1.msra.mxu0 0.0
  %3620 = vmatprep.subr.mxu0 0.0
  %3621 = vmatpush1.msra.mxu0 0.0
  %3622 = vmatprep.subr.mxu0 0.0
  %3623 = vmatpush1.msra.mxu0 0.0
  %3624 = vmatprep.subr.mxu0 0.0
  %3625 = vmatpush1.msra.mxu0 0.0
  %3626 = vmatprep.subr.mxu0 0.0
  %3627 = vmatpush1.msra.mxu0 0.0
  %3628 = vmatprep.subr.mxu0 0.0
  %3629 = vmatpush1.msra.mxu0 0.0
  %3630 = vmatprep.subr.mxu0 0.0
  %3631 = vmatpush1.msra.mxu0 0.0
  %3632 = vmatprep.subr.mxu0 0.0
  %3633 = vmatpush1.msra.mxu0 0.0
  %3634 = vmatprep.subr.mxu0 0.0
  %3635 = vmatpush1.msra.mxu0 0.0
  %3636 = vmatprep.subr.mxu0 0.0
  %3637 = vmatpush1.msra.mxu0 0.0
  %3638 = vmatprep.subr.mxu0 0.0
  %3639 = vmatpush1.msra.mxu0 0.0
  %3640 = vmatprep.subr.mxu0 0.0
  %3641 = vmatpush1.msra.mxu0 0.0
  %3642 = vmatprep.subr.mxu0 0.0
  %3643 = vmatpush1.msra.mxu0 0.0
  %3644 = vmatprep.subr.mxu0 0.0
  %3645 = vmatpush1.msra.mxu0 0.0
  %3646 = vmatprep.subr.mxu0 0.0
  %3647 = vmatpush1.msra.mxu0 0.0
  %3648 = vmatprep.subr.mxu0 0.0
  %3649 = vmatpush1.msra.mxu0 0.0
  %3650 = vmatprep.subr.mxu0 0.0
  %3651 = vmatpush1.msra.mxu0 0.0
  %3652 = vmatprep.mubr.f32.mxu0 0.0
  %3653 = vmatmul.mubr.f32.gmra.mrb[0].mxu0 %v3586
  %v3654 = vpop.f32.mrb[0].mxu0
  %v3655 = vadd.f32 %v67, %v3654
  %v3656 = vpop.f32.mrb[0].mxu0
  %3657 = vdwg.mxu0
  %v3658 = vsel %vm1694, %v3655, 0.0
  %3659 = vadd.xlane.f32.xlu0 %v3658
  %v3660 = vpop.xlane.xlu0 %3659
  %v3661 = vmul.f32 %v3655, %v3655
  %v3662 = vsel %vm1694, %v3661, 0.0
  %3663 = vadd.xlane.f32.xlu0 %v3662
  %v3664 = vpop.xlane.xlu0 %3663
  %v3665 = vmul.f32 %v3660, 0.03125
  %v3666 = vmul.f32 %v3664, 0.03125
  %v3667 = vmul.f32 %v3665, %v3665
  %v3668 = vsub.f32 %v3666, %v3667
  %v3669 = vsub.f32 %v3655, %v3665
  %v3670 = vadd.f32 %v3668, 1e-05
  %v3671 = vrsqrt.pop %v3670
  %v3672 = vmul.f32 %v3669, %v3671
  %v3673 = vmul.f32 %v3672, %v72
  %v3674 = vadd.f32 %v3673, %v77
  %v3675 = vmul.f32 %v3674, 0.5
  %v3676 = vmul.f32 %v3674, 0.044715
  %v3677 = vmul.f32 %v3676, %v3674
  %v3678 = vmul.f32 %v3677, %v3674
  %v3679 = vadd.f32 %v3674, %v3678
  %v3680 = vmul.f32 %v3679, 0.7978846
  %v3681 = vtanh.pop %v3680
  %v3682 = vadd.f32 %v3681, 1.0
  %v3683 = vmul.f32 %v3675, %v3682
  %v3685 = vsel %vm277, %v3683, 0
  %3687 = vmatprep.subr.mxu0 0.0
  %3688 = vmatpush1.msra.mxu0 %v78
  %3689 = vmatprep.subr.mxu0 0.0
  %3690 = vmatpush1.msra.mxu0 %v79
  %3691 = vmatprep.subr.mxu0 0.0
  %3692 = vmatpush1.msra.mxu0 %v80
  %3693 = vmatprep.subr.mxu0 0.0
  %3694 = vmatpush1.msra.mxu0 %v81
  %3695 = vmatprep.subr.mxu0 0.0
  %3696 = vmatpush1.msra.mxu0 0.0
  %3697 = vmatprep.subr.mxu0 0.0
  %3698 = vmatpush1.msra.mxu0 0.0
  %3699 = vmatprep.subr.mxu0 0.0
  %3700 = vmatpush1.msra.mxu0 0.0
  %3701 = vmatprep.subr.mxu0 0.0
  %3702 = vmatpush1.msra.mxu0 0.0
  %3703 = vmatprep.subr.mxu0 0.0
  %3704 = vmatpush1.msra.mxu0 0.0
  %3705 = vmatprep.subr.mxu0 0.0
  %3706 = vmatpush1.msra.mxu0 0.0
  %3707 = vmatprep.subr.mxu0 0.0
  %3708 = vmatpush1.msra.mxu0 0.0
  %3709 = vmatprep.subr.mxu0 0.0
  %3710 = vmatpush1.msra.mxu0 0.0
  %3711 = vmatprep.subr.mxu0 0.0
  %3712 = vmatpush1.msra.mxu0 0.0
  %3713 = vmatprep.subr.mxu0 0.0
  %3714 = vmatpush1.msra.mxu0 0.0
  %3715 = vmatprep.subr.mxu0 0.0
  %3716 = vmatpush1.msra.mxu0 0.0
  %3717 = vmatprep.subr.mxu0 0.0
  %3718 = vmatpush1.msra.mxu0 0.0
  %3719 = vmatprep.subr.mxu0 0.0
  %3720 = vmatpush1.msra.mxu0 0.0
  %3721 = vmatprep.subr.mxu0 0.0
  %3722 = vmatpush1.msra.mxu0 0.0
  %3723 = vmatprep.subr.mxu0 0.0
  %3724 = vmatpush1.msra.mxu0 0.0
  %3725 = vmatprep.subr.mxu0 0.0
  %3726 = vmatpush1.msra.mxu0 0.0
  %3727 = vmatprep.subr.mxu0 0.0
  %3728 = vmatpush1.msra.mxu0 0.0
  %3729 = vmatprep.subr.mxu0 0.0
  %3730 = vmatpush1.msra.mxu0 0.0
  %3731 = vmatprep.subr.mxu0 0.0
  %3732 = vmatpush1.msra.mxu0 0.0
  %3733 = vmatprep.subr.mxu0 0.0
  %3734 = vmatpush1.msra.mxu0 0.0
  %3735 = vmatprep.subr.mxu0 0.0
  %3736 = vmatpush1.msra.mxu0 0.0
  %3737 = vmatprep.subr.mxu0 0.0
  %3738 = vmatpush1.msra.mxu0 0.0
  %3739 = vmatprep.subr.mxu0 0.0
  %3740 = vmatpush1.msra.mxu0 0.0
  %3741 = vmatprep.subr.mxu0 0.0
  %3742 = vmatpush1.msra.mxu0 0.0
  %3743 = vmatprep.subr.mxu0 0.0
  %3744 = vmatpush1.msra.mxu0 0.0
  %3745 = vmatprep.subr.mxu0 0.0
  %3746 = vmatpush1.msra.mxu0 0.0
  %3747 = vmatprep.subr.mxu0 0.0
  %3748 = vmatpush1.msra.mxu0 0.0
  %3749 = vmatprep.subr.mxu0 0.0
  %3750 = vmatpush1.msra.mxu0 0.0
  %3751 = vmatprep.mubr.f32.mxu0 0.0
  %3752 = vmatmul.mubr.f32.gmra.mrb[0].mxu0 %v3685
  %v3753 = vpop.f32.mrb[0].mxu0
  %v3754 = vadd.f32 %v86, %v3753
  %v3755 = vpop.f32.mrb[0].mxu0
  %3756 = vdwg.mxu0
  %v3757 = vsel %vm1794, %v3754, -inf
  %3758 = vmax.xlane.f32.xlu0 %v3757
  %v3759 = vpop.xlane.xlu0 %3758
  %v3760 = vsub.f32 %v3754, %v3759
  %v3761 = vmul.f32 %v3760, 1.442695
  %v3762 = vpow.pop %v3761
  %v3763 = vsel %vm1794, %v3762, 0.0
  %3764 = vadd.xlane.f32.xlu0 %v3763
  %v3765 = vpop.xlane.xlu0 %3764
  %v3766 = vrcp.pop %v3765
  %v3767 = vmul.f32 1.0, %v3766
  %v3768 = vmul.f32 %v3762, %v3767
  %v3770 = vsel %vm93, %v3762, 0
  %3772 = vmatprep.subr.mxu0 0.0
  %3773 = vmatpush1.msra.mxu0 %v1811
  %3774 = vmatprep.subr.mxu0 0.0
  %3775 = vmatpush1.msra.mxu0 0.0
  %3776 = vmatprep.subr.mxu0 0.0
  %3777 = vmatpush1.msra.mxu0 0.0
  %3778 = vmatprep.subr.mxu0 0.0
  %3779 = vmatpush1.msra.mxu0 0.0
  %3780 = vmatprep.subr.mxu0 0.0
  %3781 = vmatpush1.msra.mxu0 0.0
  %3782 = vmatprep.subr.mxu0 0.0
  %3783 = vmatpush1.msra.mxu0 0.0
  %3784 = vmatprep.subr.mxu0 0.0
  %3785 = vmatpush1.msra.mxu0 0.0
  %3786 = vmatprep.subr.mxu0 0.0
  %3787 = vmatpush1.msra.mxu0 0.0
  %3788 = vmatprep.subr.mxu0 0.0
  %3789 = vmatpush1.msra.mxu0 0.0
  %3790 = vmatprep.subr.mxu0 0.0
  %3791 = vmatpush1.msra.mxu0 0.0
  %3792 = vmatprep.subr.mxu0 0.0
  %3793 = vmatpush1.msra.mxu0 0.0
  %3794 = vmatprep.subr.mxu0 0.0
  %3795 = vmatpush1.msra.mxu0 0.0
  %3796 = vmatprep.subr.mxu0 0.0
  %3797 = vmatpush1.msra.mxu0 0.0
  %3798 = vmatprep.subr.mxu0 0.0
  %3799 = vmatpush1.msra.mxu0 0.0
  %3800 = vmatprep.subr.mxu0 0.0
  %3801 = vmatpush1.msra.mxu0 0.0
  %3802 = vmatprep.subr.mxu0 0.0
  %3803 = vmatpush1.msra.mxu0 0.0
  %3804 = vmatprep.subr.mxu0 0.0
  %3805 = vmatpush1.msra.mxu0 0.0
  %3806 = vmatprep.subr.mxu0 0.0
  %3807 = vmatpush1.msra.mxu0 0.0
  %3808 = vmatprep.subr.mxu0 0.0
  %3809 = vmatpush1.msra.mxu0 0.0
  %3810 = vmatprep.subr.mxu0 0.0
  %3811 = vmatpush1.msra.mxu0 0.0
  %3812 = vmatprep.subr.mxu0 0.0
  %3813 = vmatpush1.msra.mxu0 0.0
  %3814 = vmatprep.subr.mxu0 0.0
  %3815 = vmatpush1.msra.mxu0 0.0
  %3816 = vmatprep.subr.mxu0 0.0
  %3817 = vmatpush1.msra.mxu0 0.0
  %3818 = vmatprep.subr.mxu0 0.0
  %3819 = vmatpush1.msra.mxu0 0.0
  %3820 = vmatprep.subr.mxu0 0.0
  %3821 = vmatpush1.msra.mxu0 0.0
  %3822 = vmatprep.subr.mxu0 0.0
  %3823 = vmatpush1.msra.mxu0 0.0
  %3824 = vmatprep.subr.mxu0 0.0
  %3825 = vmatpush1.msra.mxu0 0.0
  %3826 = vmatprep.subr.mxu0 0.0
  %3827 = vmatpush1.msra.mxu0 0.0
  %3828 = vmatprep.subr.mxu0 0.0
  %3829 = vmatpush1.msra.mxu0 0.0
  %3830 = vmatprep.subr.mxu0 0.0
  %3831 = vmatpush1.msra.mxu0 0.0
  %3832 = vmatprep.subr.mxu0 0.0
  %3833 = vmatpush1.msra.mxu0 0.0
  %3834 = vmatprep.subr.mxu0 0.0
  %3835 = vmatpush1.msra.mxu0 0.0
  %3836 = vmatprep.mubr.f32.mxu0 0.0
  %3837 = vmatmul.mubr.f32.gmra.mrb[0].mxu0 %v3770
  %v3838 = vpop.f32.mrb[0].mxu0
  %v3839 = vadd.f32 0.0, %v3838
  %v3840 = vpop.f32.mrb[0].mxu0
  %3841 = vdwg.mxu0
  %3842 = vmatprep.subr.mxu0 0.0
  %3843 = vmatpush1.msra.mxu0 %v1884
  %3844 = vmatprep.subr.mxu0 0.0
  %3845 = vmatpush1.msra.mxu0 0.0
  %3846 = vmatprep.subr.mxu0 0.0
  %3847 = vmatpush1.msra.mxu0 0.0
  %3848 = vmatprep.subr.mxu0 0.0
  %3849 = vmatpush1.msra.mxu0 0.0
  %3850 = vmatprep.subr.mxu0 0.0
  %3851 = vmatpush1.msra.mxu0 0.0
  %3852 = vmatprep.subr.mxu0 0.0
  %3853 = vmatpush1.msra.mxu0 0.0
  %3854 = vmatprep.subr.mxu0 0.0
  %3855 = vmatpush1.msra.mxu0 0.0
  %3856 = vmatprep.subr.mxu0 0.0
  %3857 = vmatpush1.msra.mxu0 0.0
  %3858 = vmatprep.subr.mxu0 0.0
  %3859 = vmatpush1.msra.mxu0 0.0
  %3860 = vmatprep.subr.mxu0 0.0
  %3861 = vmatpush1.msra.mxu0 0.0
  %3862 = vmatprep.subr.mxu0 0.0
  %3863 = vmatpush1.msra.mxu0 0.0
  %3864 = vmatprep.subr.mxu0 0.0
  %3865 = vmatpush1.msra.mxu0 0.0
  %3866 = vmatprep.subr.mxu0 0.0
  %3867 = vmatpush1.msra.mxu0 0.0
  %3868 = vmatprep.subr.mxu0 0.0
  %3869 = vmatpush1.msra.mxu0 0.0
  %3870 = vmatprep.subr.mxu0 0.0
  %3871 = vmatpush1.msra.mxu0 0.0
  %3872 = vmatprep.subr.mxu0 0.0
  %3873 = vmatpush1.msra.mxu0 0.0
  %3874 = vmatprep.subr.mxu0 0.0
  %3875 = vmatpush1.msra.mxu0 0.0
  %3876 = vmatprep.subr.mxu0 0.0
  %3877 = vmatpush1.msra.mxu0 0.0
  %3878 = vmatprep.subr.mxu0 0.0
  %3879 = vmatpush1.msra.mxu0 0.0
  %3880 = vmatprep.subr.mxu0 0.0
  %3881 = vmatpush1.msra.mxu0 0.0
  %3882 = vmatprep.subr.mxu0 0.0
  %3883 = vmatpush1.msra.mxu0 0.0
  %3884 = vmatprep.subr.mxu0 0.0
  %3885 = vmatpush1.msra.mxu0 0.0
  %3886 = vmatprep.subr.mxu0 0.0
  %3887 = vmatpush1.msra.mxu0 0.0
  %3888 = vmatprep.subr.mxu0 0.0
  %3889 = vmatpush1.msra.mxu0 0.0
  %3890 = vmatprep.subr.mxu0 0.0
  %3891 = vmatpush1.msra.mxu0 0.0
  %3892 = vmatprep.subr.mxu0 0.0
  %3893 = vmatpush1.msra.mxu0 0.0
  %3894 = vmatprep.subr.mxu0 0.0
  %3895 = vmatpush1.msra.mxu0 0.0
  %3896 = vmatprep.subr.mxu0 0.0
  %3897 = vmatpush1.msra.mxu0 0.0
  %3898 = vmatprep.subr.mxu0 0.0
  %3899 = vmatpush1.msra.mxu0 0.0
  %3900 = vmatprep.subr.mxu0 0.0
  %3901 = vmatpush1.msra.mxu0 0.0
  %3902 = vmatprep.subr.mxu0 0.0
  %3903 = vmatpush1.msra.mxu0 0.0
  %3904 = vmatprep.subr.mxu0 0.0
  %3905 = vmatpush1.msra.mxu0 0.0
  %3906 = vmatprep.mubr.f32.mxu0 0.0
  %3907 = vmatmul.mubr.f32.gmra.mrb[0].mxu0 %v3770
  %v3908 = vpop.f32.mrb[0].mxu0
  %v3909 = vadd.f32 0.0, %v3908
  %v3910 = vpop.f32.mrb[0].mxu0
  %3911 = vdwg.mxu0
  %v3912 = vmul.f32 %v3839, %v3767
  %v3913 = vadd.f32 %v3912, %v32
  %v3914 = vmul.f32 %v3909, %v3767
  %v3915 = vadd.f32 %v3914, %v57
  %3916 = vmatprep.subr.mxu0 0.0
  %3917 = vmatpush1.msra.mxu0 %v23
  %3918 = vmatprep.subr.mxu0 0.0
  %3919 = vmatpush1.msra.mxu0 %v24
  %3920 = vmatprep.subr.mxu0 0.0
  %3921 = vmatpush1.msra.mxu0 %v25
  %3922 = vmatprep.subr.mxu0 0.0
  %3923 = vmatpush1.msra.mxu0 %v26
  %3924 = vmatprep.subr.mxu0 0.0
  %3925 = vmatpush1.msra.mxu0 0.0
  %3926 = vmatprep.subr.mxu0 0.0
  %3927 = vmatpush1.msra.mxu0 0.0
  %3928 = vmatprep.subr.mxu0 0.0
  %3929 = vmatpush1.msra.mxu0 0.0
  %3930 = vmatprep.subr.mxu0 0.0
  %3931 = vmatpush1.msra.mxu0 0.0
  %3932 = vmatprep.subr.mxu0 0.0
  %3933 = vmatpush1.msra.mxu0 0.0
  %3934 = vmatprep.subr.mxu0 0.0
  %3935 = vmatpush1.msra.mxu0 0.0
  %3936 = vmatprep.subr.mxu0 0.0
  %3937 = vmatpush1.msra.mxu0 0.0
  %3938 = vmatprep.subr.mxu0 0.0
  %3939 = vmatpush1.msra.mxu0 0.0
  %3940 = vmatprep.subr.mxu0 0.0
  %3941 = vmatpush1.msra.mxu0 0.0
  %3942 = vmatprep.subr.mxu0 0.0
  %3943 = vmatpush1.msra.mxu0 0.0
  %3944 = vmatprep.subr.mxu0 0.0
  %3945 = vmatpush1.msra.mxu0 0.0
  %3946 = vmatprep.subr.mxu0 0.0
  %3947 = vmatpush1.msra.mxu0 0.0
  %3948 = vmatprep.subr.mxu0 0.0
  %3949 = vmatpush1.msra.mxu0 0.0
  %3950 = vmatprep.subr.mxu0 0.0
  %3951 = vmatpush1.msra.mxu0 0.0
  %3952 = vmatprep.subr.mxu0 0.0
  %3953 = vmatpush1.msra.mxu0 0.0
  %3954 = vmatprep.subr.mxu0 0.0
  %3955 = vmatpush1.msra.mxu0 0.0
  %3956 = vmatprep.subr.mxu0 0.0
  %3957 = vmatpush1.msra.mxu0 0.0
  %3958 = vmatprep.subr.mxu0 0.0
  %3959 = vmatpush1.msra.mxu0 0.0
  %3960 = vmatprep.subr.mxu0 0.0
  %3961 = vmatpush1.msra.mxu0 0.0
  %3962 = vmatprep.subr.mxu0 0.0
  %3963 = vmatpush1.msra.mxu0 0.0
  %3964 = vmatprep.subr.mxu0 0.0
  %3965 = vmatpush1.msra.mxu0 0.0
  %3966 = vmatprep.subr.mxu0 0.0
  %3967 = vmatpush1.msra.mxu0 0.0
  %3968 = vmatprep.subr.mxu0 0.0
  %3969 = vmatpush1.msra.mxu0 0.0
  %3970 = vmatprep.subr.mxu0 0.0
  %3971 = vmatpush1.msra.mxu0 0.0
  %3972 = vmatprep.subr.mxu0 0.0
  %3973 = vmatpush1.msra.mxu0 0.0
  %3974 = vmatprep.subr.mxu0 0.0
  %3975 = vmatpush1.msra.mxu0 0.0
  %3976 = vmatprep.subr.mxu0 0.0
  %3977 = vmatpush1.msra.mxu0 0.0
  %3978 = vmatprep.subr.mxu0 0.0
  %3979 = vmatpush1.msra.mxu0 0.0
  %3980 = vmatprep.mubr.f32.mxu0 0.0
  %3981 = vmatmul.mubr.f32.gmra.mrb[0].mxu0 %v3586
  %v3982 = vpop.f32.mrb[0].mxu0
  %v3983 = vadd.f32 0.0, %v3982
  %v3984 = vpop.f32.mrb[0].mxu0
  %3985 = vdwg.mxu0
  %3986 = vmatprep.subr.mxu0 0.0
  %3987 = vmatpush1.msra.mxu0 %v39
  %3988 = vmatprep.subr.mxu0 0.0
  %3989 = vmatpush1.msra.mxu0 %v40
  %3990 = vmatprep.subr.mxu0 0.0
  %3991 = vmatpush1.msra.mxu0 %v41
  %3992 = vmatprep.subr.mxu0 0.0
  %3993 = vmatpush1.msra.mxu0 %v42
  %3994 = vmatprep.subr.mxu0 0.0
  %3995 = vmatpush1.msra.mxu0 0.0
  %3996 = vmatprep.subr.mxu0 0.0
  %3997 = vmatpush1.msra.mxu0 0.0
  %3998 = vmatprep.subr.mxu0 0.0
  %3999 = vmatpush1.msra.mxu0 0.0
  %4000 = vmatprep.subr.mxu0 0.0
  %4001 = vmatpush1.msra.mxu0 0.0
  %4002 = vmatprep.subr.mxu0 0.0
  %4003 = vmatpush1.msra.mxu0 0.0
  %4004 = vmatprep.subr.mxu0 0.0
  %4005 = vmatpush1.msra.mxu0 0.0
  %4006 = vmatprep.subr.mxu0 0.0
  %4007 = vmatpush1.msra.mxu0 0.0
  %4008 = vmatprep.subr.mxu0 0.0
  %4009 = vmatpush1.msra.mxu0 0.0
  %4010 = vmatprep.subr.mxu0 0.0
  %4011 = vmatpush1.msra.mxu0 0.0
  %4012 = vmatprep.subr.mxu0 0.0
  %4013 = vmatpush1.msra.mxu0 0.0
  %4014 = vmatprep.subr.mxu0 0.0
  %4015 = vmatpush1.msra.mxu0 0.0
  %4016 = vmatprep.subr.mxu0 0.0
  %4017 = vmatpush1.msra.mxu0 0.0
  %4018 = vmatprep.subr.mxu0 0.0
  %4019 = vmatpush1.msra.mxu0 0.0
  %4020 = vmatprep.subr.mxu0 0.0
  %4021 = vmatpush1.msra.mxu0 0.0
  %4022 = vmatprep.subr.mxu0 0.0
  %4023 = vmatpush1.msra.mxu0 0.0
  %4024 = vmatprep.subr.mxu0 0.0
  %4025 = vmatpush1.msra.mxu0 0.0
  %4026 = vmatprep.subr.mxu0 0.0
  %4027 = vmatpush1.msra.mxu0 0.0
  %4028 = vmatprep.subr.mxu0 0.0
  %4029 = vmatpush1.msra.mxu0 0.0
  %4030 = vmatprep.subr.mxu0 0.0
  %4031 = vmatpush1.msra.mxu0 0.0
  %4032 = vmatprep.subr.mxu0 0.0
  %4033 = vmatpush1.msra.mxu0 0.0
  %4034 = vmatprep.subr.mxu0 0.0
  %4035 = vmatpush1.msra.mxu0 0.0
  %4036 = vmatprep.subr.mxu0 0.0
  %4037 = vmatpush1.msra.mxu0 0.0
  %4038 = vmatprep.subr.mxu0 0.0
  %4039 = vmatpush1.msra.mxu0 0.0
  %4040 = vmatprep.subr.mxu0 0.0
  %4041 = vmatpush1.msra.mxu0 0.0
  %4042 = vmatprep.subr.mxu0 0.0
  %4043 = vmatpush1.msra.mxu0 0.0
  %4044 = vmatprep.subr.mxu0 0.0
  %4045 = vmatpush1.msra.mxu0 0.0
  %4046 = vmatprep.subr.mxu0 0.0
  %4047 = vmatpush1.msra.mxu0 0.0
  %4048 = vmatprep.subr.mxu0 0.0
  %4049 = vmatpush1.msra.mxu0 0.0
  %4050 = vmatprep.mubr.f32.mxu0 0.0
  %4051 = vmatmul.mubr.f32.gmra.mrb[0].mxu0 %v3586
  %v4052 = vpop.f32.mrb[0].mxu0
  %v4053 = vadd.f32 %v62, %v4052
  %v4054 = vpop.f32.mrb[0].mxu0
  %4055 = vdwg.mxu0
  %v4056 = vadd.f32 %v3913, %v3983
  %v4057 = vmul.f32 %v4056, 0.5
  %v4058 = vtanh.pop %v4057
  %v4059 = vadd.f32 %v4058, 1.0
  %v4060 = vmul.f32 %v4059, 0.5
  %v4061 = vmul.f32 %v4060, %v4053
  %v4062 = vadd.f32 %v3915, %v4061
  %v4063 = vtanh.pop %v4062
  %v4064 = vsub.f32 1.0, %v4060
  %4066 = vrot.lane.b32.xlu0 %v4063, 32
  %v4067 = vpop.permute.xlu0 %4066
  %v4069 = vmul.f32 %v4064, %v4067
  %v4070 = vmul.f32 %v4060, %v3582
  %v4071 = vadd.f32 %v4069, %v4070
  %4073 = vrot.lane.b32.xlu0 %v4071, 96
  %v4074 = vpop.permute.xlu0 %4073
  %v4075 = vsel %vm277, %v4074, 0
  %4077 = vmatprep.subr.mxu0 0.0
  %4078 = vmatpush1.msra.mxu0 %v43
  %4079 = vmatprep.subr.mxu0 0.0
  %4080 = vmatpush1.msra.mxu0 %v44
  %4081 = vmatprep.subr.mxu0 0.0
  %4082 = vmatpush1.msra.mxu0 %v45
  %4083 = vmatprep.subr.mxu0 0.0
  %4084 = vmatpush1.msra.mxu0 %v46
  %4085 = vmatprep.subr.mxu0 0.0
  %4086 = vmatpush1.msra.mxu0 0.0
  %4087 = vmatprep.subr.mxu0 0.0
  %4088 = vmatpush1.msra.mxu0 0.0
  %4089 = vmatprep.subr.mxu0 0.0
  %4090 = vmatpush1.msra.mxu0 0.0
  %4091 = vmatprep.subr.mxu0 0.0
  %4092 = vmatpush1.msra.mxu0 0.0
  %4093 = vmatprep.subr.mxu0 0.0
  %4094 = vmatpush1.msra.mxu0 0.0
  %4095 = vmatprep.subr.mxu0 0.0
  %4096 = vmatpush1.msra.mxu0 0.0
  %4097 = vmatprep.subr.mxu0 0.0
  %4098 = vmatpush1.msra.mxu0 0.0
  %4099 = vmatprep.subr.mxu0 0.0
  %4100 = vmatpush1.msra.mxu0 0.0
  %4101 = vmatprep.subr.mxu0 0.0
  %4102 = vmatpush1.msra.mxu0 0.0
  %4103 = vmatprep.subr.mxu0 0.0
  %4104 = vmatpush1.msra.mxu0 0.0
  %4105 = vmatprep.subr.mxu0 0.0
  %4106 = vmatpush1.msra.mxu0 0.0
  %4107 = vmatprep.subr.mxu0 0.0
  %4108 = vmatpush1.msra.mxu0 0.0
  %4109 = vmatprep.subr.mxu0 0.0
  %4110 = vmatpush1.msra.mxu0 0.0
  %4111 = vmatprep.subr.mxu0 0.0
  %4112 = vmatpush1.msra.mxu0 0.0
  %4113 = vmatprep.subr.mxu0 0.0
  %4114 = vmatpush1.msra.mxu0 0.0
  %4115 = vmatprep.subr.mxu0 0.0
  %4116 = vmatpush1.msra.mxu0 0.0
  %4117 = vmatprep.subr.mxu0 0.0
  %4118 = vmatpush1.msra.mxu0 0.0
  %4119 = vmatprep.subr.mxu0 0.0
  %4120 = vmatpush1.msra.mxu0 0.0
  %4121 = vmatprep.subr.mxu0 0.0
  %4122 = vmatpush1.msra.mxu0 0.0
  %4123 = vmatprep.subr.mxu0 0.0
  %4124 = vmatpush1.msra.mxu0 0.0
  %4125 = vmatprep.subr.mxu0 0.0
  %4126 = vmatpush1.msra.mxu0 0.0
  %4127 = vmatprep.subr.mxu0 0.0
  %4128 = vmatpush1.msra.mxu0 0.0
  %4129 = vmatprep.subr.mxu0 0.0
  %4130 = vmatpush1.msra.mxu0 0.0
  %4131 = vmatprep.subr.mxu0 0.0
  %4132 = vmatpush1.msra.mxu0 0.0
  %4133 = vmatprep.subr.mxu0 0.0
  %4134 = vmatpush1.msra.mxu0 0.0
  %4135 = vmatprep.subr.mxu0 0.0
  %4136 = vmatpush1.msra.mxu0 0.0
  %4137 = vmatprep.subr.mxu0 0.0
  %4138 = vmatpush1.msra.mxu0 0.0
  %4139 = vmatprep.subr.mxu0 0.0
  %4140 = vmatpush1.msra.mxu0 0.0
  %4141 = vmatprep.mubr.f32.mxu0 0.0
  %4142 = vmatmul.mubr.f32.gmra.mrb[0].mxu0 %v4075
  %v4143 = vpop.f32.mrb[0].mxu0
  %v4144 = vadd.f32 %v67, %v4143
  %v4145 = vpop.f32.mrb[0].mxu0
  %4146 = vdwg.mxu0
  %v4147 = vsel %vm1694, %v4144, 0.0
  %4148 = vadd.xlane.f32.xlu0 %v4147
  %v4149 = vpop.xlane.xlu0 %4148
  %v4150 = vmul.f32 %v4144, %v4144
  %v4151 = vsel %vm1694, %v4150, 0.0
  %4152 = vadd.xlane.f32.xlu0 %v4151
  %v4153 = vpop.xlane.xlu0 %4152
  %v4154 = vmul.f32 %v4149, 0.03125
  %v4155 = vmul.f32 %v4153, 0.03125
  %v4156 = vmul.f32 %v4154, %v4154
  %v4157 = vsub.f32 %v4155, %v4156
  %v4158 = vsub.f32 %v4144, %v4154
  %v4159 = vadd.f32 %v4157, 1e-05
  %v4160 = vrsqrt.pop %v4159
  %v4161 = vmul.f32 %v4158, %v4160
  %v4162 = vmul.f32 %v4161, %v72
  %v4163 = vadd.f32 %v4162, %v77
  %v4164 = vmul.f32 %v4163, 0.5
  %v4165 = vmul.f32 %v4163, 0.044715
  %v4166 = vmul.f32 %v4165, %v4163
  %v4167 = vmul.f32 %v4166, %v4163
  %v4168 = vadd.f32 %v4163, %v4167
  %v4169 = vmul.f32 %v4168, 0.7978846
  %v4170 = vtanh.pop %v4169
  %v4171 = vadd.f32 %v4170, 1.0
  %v4172 = vmul.f32 %v4164, %v4171
  %v4174 = vsel %vm277, %v4172, 0
  %4176 = vmatprep.subr.mxu0 0.0
  %4177 = vmatpush1.msra.mxu0 %v78
  %4178 = vmatprep.subr.mxu0 0.0
  %4179 = vmatpush1.msra.mxu0 %v79
  %4180 = vmatprep.subr.mxu0 0.0
  %4181 = vmatpush1.msra.mxu0 %v80
  %4182 = vmatprep.subr.mxu0 0.0
  %4183 = vmatpush1.msra.mxu0 %v81
  %4184 = vmatprep.subr.mxu0 0.0
  %4185 = vmatpush1.msra.mxu0 0.0
  %4186 = vmatprep.subr.mxu0 0.0
  %4187 = vmatpush1.msra.mxu0 0.0
  %4188 = vmatprep.subr.mxu0 0.0
  %4189 = vmatpush1.msra.mxu0 0.0
  %4190 = vmatprep.subr.mxu0 0.0
  %4191 = vmatpush1.msra.mxu0 0.0
  %4192 = vmatprep.subr.mxu0 0.0
  %4193 = vmatpush1.msra.mxu0 0.0
  %4194 = vmatprep.subr.mxu0 0.0
  %4195 = vmatpush1.msra.mxu0 0.0
  %4196 = vmatprep.subr.mxu0 0.0
  %4197 = vmatpush1.msra.mxu0 0.0
  %4198 = vmatprep.subr.mxu0 0.0
  %4199 = vmatpush1.msra.mxu0 0.0
  %4200 = vmatprep.subr.mxu0 0.0
  %4201 = vmatpush1.msra.mxu0 0.0
  %4202 = vmatprep.subr.mxu0 0.0
  %4203 = vmatpush1.msra.mxu0 0.0
  %4204 = vmatprep.subr.mxu0 0.0
  %4205 = vmatpush1.msra.mxu0 0.0
  %4206 = vmatprep.subr.mxu0 0.0
  %4207 = vmatpush1.msra.mxu0 0.0
  %4208 = vmatprep.subr.mxu0 0.0
  %4209 = vmatpush1.msra.mxu0 0.0
  %4210 = vmatprep.subr.mxu0 0.0
  %4211 = vmatpush1.msra.mxu0 0.0
  %4212 = vmatprep.subr.mxu0 0.0
  %4213 = vmatpush1.msra.mxu0 0.0
  %4214 = vmatprep.subr.mxu0 0.0
  %4215 = vmatpush1.msra.mxu0 0.0
  %4216 = vmatprep.subr.mxu0 0.0
  %4217 = vmatpush1.msra.mxu0 0.0
  %4218 = vmatprep.subr.mxu0 0.0
  %4219 = vmatpush1.msra.mxu0 0.0
  %4220 = vmatprep.subr.mxu0 0.0
  %4221 = vmatpush1.msra.mxu0 0.0
  %4222 = vmatprep.subr.mxu0 0.0
  %4223 = vmatpush1.msra.mxu0 0.0
  %4224 = vmatprep.subr.mxu0 0.0
  %4225 = vmatpush1.msra.mxu0 0.0
  %4226 = vmatprep.subr.mxu0 0.0
  %4227 = vmatpush1.msra.mxu0 0.0
  %4228 = vmatprep.subr.mxu0 0.0
  %4229 = vmatpush1.msra.mxu0 0.0
  %4230 = vmatprep.subr.mxu0 0.0
  %4231 = vmatpush1.msra.mxu0 0.0
  %4232 = vmatprep.subr.mxu0 0.0
  %4233 = vmatpush1.msra.mxu0 0.0
  %4234 = vmatprep.subr.mxu0 0.0
  %4235 = vmatpush1.msra.mxu0 0.0
  %4236 = vmatprep.subr.mxu0 0.0
  %4237 = vmatpush1.msra.mxu0 0.0
  %4238 = vmatprep.subr.mxu0 0.0
  %4239 = vmatpush1.msra.mxu0 0.0
  %4240 = vmatprep.mubr.f32.mxu0 0.0
  %4241 = vmatmul.mubr.f32.gmra.mrb[0].mxu0 %v4174
  %v4242 = vpop.f32.mrb[0].mxu0
  %v4243 = vadd.f32 %v86, %v4242
  %v4244 = vpop.f32.mrb[0].mxu0
  %4245 = vdwg.mxu0
  %v4246 = vsel %vm1794, %v4243, -inf
  %4247 = vmax.xlane.f32.xlu0 %v4246
  %v4248 = vpop.xlane.xlu0 %4247
  %v4249 = vsub.f32 %v4243, %v4248
  %v4250 = vmul.f32 %v4249, 1.442695
  %v4251 = vpow.pop %v4250
  %v4252 = vsel %vm1794, %v4251, 0.0
  %4253 = vadd.xlane.f32.xlu0 %v4252
  %v4254 = vpop.xlane.xlu0 %4253
  %v4255 = vrcp.pop %v4254
  %v4256 = vmul.f32 1.0, %v4255
  %v4257 = vmul.f32 %v4251, %v4256
  %v4259 = vsel %vm93, %v4251, 0
  %4261 = vmatprep.subr.mxu0 0.0
  %4262 = vmatpush1.msra.mxu0 %v1811
  %4263 = vmatprep.subr.mxu0 0.0
  %4264 = vmatpush1.msra.mxu0 0.0
  %4265 = vmatprep.subr.mxu0 0.0
  %4266 = vmatpush1.msra.mxu0 0.0
  %4267 = vmatprep.subr.mxu0 0.0
  %4268 = vmatpush1.msra.mxu0 0.0
  %4269 = vmatprep.subr.mxu0 0.0
  %4270 = vmatpush1.msra.mxu0 0.0
  %4271 = vmatprep.subr.mxu0 0.0
  %4272 = vmatpush1.msra.mxu0 0.0
  %4273 = vmatprep.subr.mxu0 0.0
  %4274 = vmatpush1.msra.mxu0 0.0
  %4275 = vmatprep.subr.mxu0 0.0
  %4276 = vmatpush1.msra.mxu0 0.0
  %4277 = vmatprep.subr.mxu0 0.0
  %4278 = vmatpush1.msra.mxu0 0.0
  %4279 = vmatprep.subr.mxu0 0.0
  %4280 = vmatpush1.msra.mxu0 0.0
  %4281 = vmatprep.subr.mxu0 0.0
  %4282 = vmatpush1.msra.mxu0 0.0
  %4283 = vmatprep.subr.mxu0 0.0
  %4284 = vmatpush1.msra.mxu0 0.0
  %4285 = vmatprep.subr.mxu0 0.0
  %4286 = vmatpush1.msra.mxu0 0.0
  %4287 = vmatprep.subr.mxu0 0.0
  %4288 = vmatpush1.msra.mxu0 0.0
  %4289 = vmatprep.subr.mxu0 0.0
  %4290 = vmatpush1.msra.mxu0 0.0
  %4291 = vmatprep.subr.mxu0 0.0
  %4292 = vmatpush1.msra.mxu0 0.0
  %4293 = vmatprep.subr.mxu0 0.0
  %4294 = vmatpush1.msra.mxu0 0.0
  %4295 = vmatprep.subr.mxu0 0.0
  %4296 = vmatpush1.msra.mxu0 0.0
  %4297 = vmatprep.subr.mxu0 0.0
  %4298 = vmatpush1.msra.mxu0 0.0
  %4299 = vmatprep.subr.mxu0 0.0
  %4300 = vmatpush1.msra.mxu0 0.0
  %4301 = vmatprep.subr.mxu0 0.0
  %4302 = vmatpush1.msra.mxu0 0.0
  %4303 = vmatprep.subr.mxu0 0.0
  %4304 = vmatpush1.msra.mxu0 0.0
  %4305 = vmatprep.subr.mxu0 0.0
  %4306 = vmatpush1.msra.mxu0 0.0
  %4307 = vmatprep.subr.mxu0 0.0
  %4308 = vmatpush1.msra.mxu0 0.0
  %4309 = vmatprep.subr.mxu0 0.0
  %4310 = vmatpush1.msra.mxu0 0.0
  %4311 = vmatprep.subr.mxu0 0.0
  %4312 = vmatpush1.msra.mxu0 0.0
  %4313 = vmatprep.subr.mxu0 0.0
  %4314 = vmatpush1.msra.mxu0 0.0
  %4315 = vmatprep.subr.mxu0 0.0
  %4316 = vmatpush1.msra.mxu0 0.0
  %4317 = vmatprep.subr.mxu0 0.0
  %4318 = vmatpush1.msra.mxu0 0.0
  %4319 = vmatprep.subr.mxu0 0.0
  %4320 = vmatpush1.msra.mxu0 0.0
  %4321 = vmatprep.subr.mxu0 0.0
  %4322 = vmatpush1.msra.mxu0 0.0
  %4323 = vmatprep.subr.mxu0 0.0
  %4324 = vmatpush1.msra.mxu0 0.0
  %4325 = vmatprep.mubr.f32.mxu0 0.0
  %4326 = vmatmul.mubr.f32.gmra.mrb[0].mxu0 %v4259
  %v4327 = vpop.f32.mrb[0].mxu0
  %v4328 = vadd.f32 0.0, %v4327
  %v4329 = vpop.f32.mrb[0].mxu0
  %4330 = vdwg.mxu0
  %4331 = vmatprep.subr.mxu0 0.0
  %4332 = vmatpush1.msra.mxu0 %v1884
  %4333 = vmatprep.subr.mxu0 0.0
  %4334 = vmatpush1.msra.mxu0 0.0
  %4335 = vmatprep.subr.mxu0 0.0
  %4336 = vmatpush1.msra.mxu0 0.0
  %4337 = vmatprep.subr.mxu0 0.0
  %4338 = vmatpush1.msra.mxu0 0.0
  %4339 = vmatprep.subr.mxu0 0.0
  %4340 = vmatpush1.msra.mxu0 0.0
  %4341 = vmatprep.subr.mxu0 0.0
  %4342 = vmatpush1.msra.mxu0 0.0
  %4343 = vmatprep.subr.mxu0 0.0
  %4344 = vmatpush1.msra.mxu0 0.0
  %4345 = vmatprep.subr.mxu0 0.0
  %4346 = vmatpush1.msra.mxu0 0.0
  %4347 = vmatprep.subr.mxu0 0.0
  %4348 = vmatpush1.msra.mxu0 0.0
  %4349 = vmatprep.subr.mxu0 0.0
  %4350 = vmatpush1.msra.mxu0 0.0
  %4351 = vmatprep.subr.mxu0 0.0
  %4352 = vmatpush1.msra.mxu0 0.0
  %4353 = vmatprep.subr.mxu0 0.0
  %4354 = vmatpush1.msra.mxu0 0.0
  %4355 = vmatprep.subr.mxu0 0.0
  %4356 = vmatpush1.msra.mxu0 0.0
  %4357 = vmatprep.subr.mxu0 0.0
  %4358 = vmatpush1.msra.mxu0 0.0
  %4359 = vmatprep.subr.mxu0 0.0
  %4360 = vmatpush1.msra.mxu0 0.0
  %4361 = vmatprep.subr.mxu0 0.0
  %4362 = vmatpush1.msra.mxu0 0.0
  %4363 = vmatprep.subr.mxu0 0.0
  %4364 = vmatpush1.msra.mxu0 0.0
  %4365 = vmatprep.subr.mxu0 0.0
  %4366 = vmatpush1.msra.mxu0 0.0
  %4367 = vmatprep.subr.mxu0 0.0
  %4368 = vmatpush1.msra.mxu0 0.0
  %4369 = vmatprep.subr.mxu0 0.0
  %4370 = vmatpush1.msra.mxu0 0.0
  %4371 = vmatprep.subr.mxu0 0.0
  %4372 = vmatpush1.msra.mxu0 0.0
  %4373 = vmatprep.subr.mxu0 0.0
  %4374 = vmatpush1.msra.mxu0 0.0
  %4375 = vmatprep.subr.mxu0 0.0
  %4376 = vmatpush1.msra.mxu0 0.0
  %4377 = vmatprep.subr.mxu0 0.0
  %4378 = vmatpush1.msra.mxu0 0.0
  %4379 = vmatprep.subr.mxu0 0.0
  %4380 = vmatpush1.msra.mxu0 0.0
  %4381 = vmatprep.subr.mxu0 0.0
  %4382 = vmatpush1.msra.mxu0 0.0
  %4383 = vmatprep.subr.mxu0 0.0
  %4384 = vmatpush1.msra.mxu0 0.0
  %4385 = vmatprep.subr.mxu0 0.0
  %4386 = vmatpush1.msra.mxu0 0.0
  %4387 = vmatprep.subr.mxu0 0.0
  %4388 = vmatpush1.msra.mxu0 0.0
  %4389 = vmatprep.subr.mxu0 0.0
  %4390 = vmatpush1.msra.mxu0 0.0
  %4391 = vmatprep.subr.mxu0 0.0
  %4392 = vmatpush1.msra.mxu0 0.0
  %4393 = vmatprep.subr.mxu0 0.0
  %4394 = vmatpush1.msra.mxu0 0.0
  %4395 = vmatprep.mubr.f32.mxu0 0.0
  %4396 = vmatmul.mubr.f32.gmra.mrb[0].mxu0 %v4259
  %v4397 = vpop.f32.mrb[0].mxu0
  %v4398 = vadd.f32 0.0, %v4397
  %v4399 = vpop.f32.mrb[0].mxu0
  %4400 = vdwg.mxu0
  %v4401 = vmul.f32 %v4328, %v4256
  %v4402 = vadd.f32 %v4401, %v32
  %v4403 = vmul.f32 %v4398, %v4256
  %v4404 = vadd.f32 %v4403, %v57
  %4405 = vmatprep.subr.mxu0 0.0
  %4406 = vmatpush1.msra.mxu0 %v23
  %4407 = vmatprep.subr.mxu0 0.0
  %4408 = vmatpush1.msra.mxu0 %v24
  %4409 = vmatprep.subr.mxu0 0.0
  %4410 = vmatpush1.msra.mxu0 %v25
  %4411 = vmatprep.subr.mxu0 0.0
  %4412 = vmatpush1.msra.mxu0 %v26
  %4413 = vmatprep.subr.mxu0 0.0
  %4414 = vmatpush1.msra.mxu0 0.0
  %4415 = vmatprep.subr.mxu0 0.0
  %4416 = vmatpush1.msra.mxu0 0.0
  %4417 = vmatprep.subr.mxu0 0.0
  %4418 = vmatpush1.msra.mxu0 0.0
  %4419 = vmatprep.subr.mxu0 0.0
  %4420 = vmatpush1.msra.mxu0 0.0
  %4421 = vmatprep.subr.mxu0 0.0
  %4422 = vmatpush1.msra.mxu0 0.0
  %4423 = vmatprep.subr.mxu0 0.0
  %4424 = vmatpush1.msra.mxu0 0.0
  %4425 = vmatprep.subr.mxu0 0.0
  %4426 = vmatpush1.msra.mxu0 0.0
  %4427 = vmatprep.subr.mxu0 0.0
  %4428 = vmatpush1.msra.mxu0 0.0
  %4429 = vmatprep.subr.mxu0 0.0
  %4430 = vmatpush1.msra.mxu0 0.0
  %4431 = vmatprep.subr.mxu0 0.0
  %4432 = vmatpush1.msra.mxu0 0.0
  %4433 = vmatprep.subr.mxu0 0.0
  %4434 = vmatpush1.msra.mxu0 0.0
  %4435 = vmatprep.subr.mxu0 0.0
  %4436 = vmatpush1.msra.mxu0 0.0
  %4437 = vmatprep.subr.mxu0 0.0
  %4438 = vmatpush1.msra.mxu0 0.0
  %4439 = vmatprep.subr.mxu0 0.0
  %4440 = vmatpush1.msra.mxu0 0.0
  %4441 = vmatprep.subr.mxu0 0.0
  %4442 = vmatpush1.msra.mxu0 0.0
  %4443 = vmatprep.subr.mxu0 0.0
  %4444 = vmatpush1.msra.mxu0 0.0
  %4445 = vmatprep.subr.mxu0 0.0
  %4446 = vmatpush1.msra.mxu0 0.0
  %4447 = vmatprep.subr.mxu0 0.0
  %4448 = vmatpush1.msra.mxu0 0.0
  %4449 = vmatprep.subr.mxu0 0.0
  %4450 = vmatpush1.msra.mxu0 0.0
  %4451 = vmatprep.subr.mxu0 0.0
  %4452 = vmatpush1.msra.mxu0 0.0
  %4453 = vmatprep.subr.mxu0 0.0
  %4454 = vmatpush1.msra.mxu0 0.0
  %4455 = vmatprep.subr.mxu0 0.0
  %4456 = vmatpush1.msra.mxu0 0.0
  %4457 = vmatprep.subr.mxu0 0.0
  %4458 = vmatpush1.msra.mxu0 0.0
  %4459 = vmatprep.subr.mxu0 0.0
  %4460 = vmatpush1.msra.mxu0 0.0
  %4461 = vmatprep.subr.mxu0 0.0
  %4462 = vmatpush1.msra.mxu0 0.0
  %4463 = vmatprep.subr.mxu0 0.0
  %4464 = vmatpush1.msra.mxu0 0.0
  %4465 = vmatprep.subr.mxu0 0.0
  %4466 = vmatpush1.msra.mxu0 0.0
  %4467 = vmatprep.subr.mxu0 0.0
  %4468 = vmatpush1.msra.mxu0 0.0
  %4469 = vmatprep.mubr.f32.mxu0 0.0
  %4470 = vmatmul.mubr.f32.gmra.mrb[0].mxu0 %v4075
  %v4471 = vpop.f32.mrb[0].mxu0
  %v4472 = vadd.f32 0.0, %v4471
  %v4473 = vpop.f32.mrb[0].mxu0
  %4474 = vdwg.mxu0
  %4475 = vmatprep.subr.mxu0 0.0
  %4476 = vmatpush1.msra.mxu0 %v39
  %4477 = vmatprep.subr.mxu0 0.0
  %4478 = vmatpush1.msra.mxu0 %v40
  %4479 = vmatprep.subr.mxu0 0.0
  %4480 = vmatpush1.msra.mxu0 %v41
  %4481 = vmatprep.subr.mxu0 0.0
  %4482 = vmatpush1.msra.mxu0 %v42
  %4483 = vmatprep.subr.mxu0 0.0
  %4484 = vmatpush1.msra.mxu0 0.0
  %4485 = vmatprep.subr.mxu0 0.0
  %4486 = vmatpush1.msra.mxu0 0.0
  %4487 = vmatprep.subr.mxu0 0.0
  %4488 = vmatpush1.msra.mxu0 0.0
  %4489 = vmatprep.subr.mxu0 0.0
  %4490 = vmatpush1.msra.mxu0 0.0
  %4491 = vmatprep.subr.mxu0 0.0
  %4492 = vmatpush1.msra.mxu0 0.0
  %4493 = vmatprep.subr.mxu0 0.0
  %4494 = vmatpush1.msra.mxu0 0.0
  %4495 = vmatprep.subr.mxu0 0.0
  %4496 = vmatpush1.msra.mxu0 0.0
  %4497 = vmatprep.subr.mxu0 0.0
  %4498 = vmatpush1.msra.mxu0 0.0
  %4499 = vmatprep.subr.mxu0 0.0
  %4500 = vmatpush1.msra.mxu0 0.0
  %4501 = vmatprep.subr.mxu0 0.0
  %4502 = vmatpush1.msra.mxu0 0.0
  %4503 = vmatprep.subr.mxu0 0.0
  %4504 = vmatpush1.msra.mxu0 0.0
  %4505 = vmatprep.subr.mxu0 0.0
  %4506 = vmatpush1.msra.mxu0 0.0
  %4507 = vmatprep.subr.mxu0 0.0
  %4508 = vmatpush1.msra.mxu0 0.0
  %4509 = vmatprep.subr.mxu0 0.0
  %4510 = vmatpush1.msra.mxu0 0.0
  %4511 = vmatprep.subr.mxu0 0.0
  %4512 = vmatpush1.msra.mxu0 0.0
  %4513 = vmatprep.subr.mxu0 0.0
  %4514 = vmatpush1.msra.mxu0 0.0
  %4515 = vmatprep.subr.mxu0 0.0
  %4516 = vmatpush1.msra.mxu0 0.0
  %4517 = vmatprep.subr.mxu0 0.0
  %4518 = vmatpush1.msra.mxu0 0.0
  %4519 = vmatprep.subr.mxu0 0.0
  %4520 = vmatpush1.msra.mxu0 0.0
  %4521 = vmatprep.subr.mxu0 0.0
  %4522 = vmatpush1.msra.mxu0 0.0
  %4523 = vmatprep.subr.mxu0 0.0
  %4524 = vmatpush1.msra.mxu0 0.0
  %4525 = vmatprep.subr.mxu0 0.0
  %4526 = vmatpush1.msra.mxu0 0.0
  %4527 = vmatprep.subr.mxu0 0.0
  %4528 = vmatpush1.msra.mxu0 0.0
  %4529 = vmatprep.subr.mxu0 0.0
  %4530 = vmatpush1.msra.mxu0 0.0
  %4531 = vmatprep.subr.mxu0 0.0
  %4532 = vmatpush1.msra.mxu0 0.0
  %4533 = vmatprep.subr.mxu0 0.0
  %4534 = vmatpush1.msra.mxu0 0.0
  %4535 = vmatprep.subr.mxu0 0.0
  %4536 = vmatpush1.msra.mxu0 0.0
  %4537 = vmatprep.subr.mxu0 0.0
  %4538 = vmatpush1.msra.mxu0 0.0
  %4539 = vmatprep.mubr.f32.mxu0 0.0
  %4540 = vmatmul.mubr.f32.gmra.mrb[0].mxu0 %v4075
  %v4541 = vpop.f32.mrb[0].mxu0
  %v4542 = vadd.f32 %v62, %v4541
  %v4543 = vpop.f32.mrb[0].mxu0
  %4544 = vdwg.mxu0
  %v4545 = vadd.f32 %v4402, %v4472
  %v4546 = vmul.f32 %v4545, 0.5
  %v4547 = vtanh.pop %v4546
  %v4548 = vadd.f32 %v4547, 1.0
  %v4549 = vmul.f32 %v4548, 0.5
  %v4550 = vmul.f32 %v4549, %v4542
  %v4551 = vadd.f32 %v4404, %v4550
  %v4552 = vtanh.pop %v4551
  %v4553 = vsub.f32 1.0, %v4549
  %4555 = vrot.lane.b32.xlu0 %v4552, 32
  %v4556 = vpop.permute.xlu0 %4555
  %v4558 = vmul.f32 %v4553, %v4556
  %v4559 = vmul.f32 %v4549, %v4071
  %v4560 = vadd.f32 %v4558, %v4559
  %4562 = vrot.lane.b32.xlu0 %v4560, 96
  %v4563 = vpop.permute.xlu0 %4562
  %v4564 = vsel %vm277, %v4563, 0
  %4566 = vmatprep.subr.mxu0 0.0
  %4567 = vmatpush1.msra.mxu0 %v43
  %4568 = vmatprep.subr.mxu0 0.0
  %4569 = vmatpush1.msra.mxu0 %v44
  %4570 = vmatprep.subr.mxu0 0.0
  %4571 = vmatpush1.msra.mxu0 %v45
  %4572 = vmatprep.subr.mxu0 0.0
  %4573 = vmatpush1.msra.mxu0 %v46
  %4574 = vmatprep.subr.mxu0 0.0
  %4575 = vmatpush1.msra.mxu0 0.0
  %4576 = vmatprep.subr.mxu0 0.0
  %4577 = vmatpush1.msra.mxu0 0.0
  %4578 = vmatprep.subr.mxu0 0.0
  %4579 = vmatpush1.msra.mxu0 0.0
  %4580 = vmatprep.subr.mxu0 0.0
  %4581 = vmatpush1.msra.mxu0 0.0
  %4582 = vmatprep.subr.mxu0 0.0
  %4583 = vmatpush1.msra.mxu0 0.0
  %4584 = vmatprep.subr.mxu0 0.0
  %4585 = vmatpush1.msra.mxu0 0.0
  %4586 = vmatprep.subr.mxu0 0.0
  %4587 = vmatpush1.msra.mxu0 0.0
  %4588 = vmatprep.subr.mxu0 0.0
  %4589 = vmatpush1.msra.mxu0 0.0
  %4590 = vmatprep.subr.mxu0 0.0
  %4591 = vmatpush1.msra.mxu0 0.0
  %4592 = vmatprep.subr.mxu0 0.0
  %4593 = vmatpush1.msra.mxu0 0.0
  %4594 = vmatprep.subr.mxu0 0.0
  %4595 = vmatpush1.msra.mxu0 0.0
  %4596 = vmatprep.subr.mxu0 0.0
  %4597 = vmatpush1.msra.mxu0 0.0
  %4598 = vmatprep.subr.mxu0 0.0
  %4599 = vmatpush1.msra.mxu0 0.0
  %4600 = vmatprep.subr.mxu0 0.0
  %4601 = vmatpush1.msra.mxu0 0.0
  %4602 = vmatprep.subr.mxu0 0.0
  %4603 = vmatpush1.msra.mxu0 0.0
  %4604 = vmatprep.subr.mxu0 0.0
  %4605 = vmatpush1.msra.mxu0 0.0
  %4606 = vmatprep.subr.mxu0 0.0
  %4607 = vmatpush1.msra.mxu0 0.0
  %4608 = vmatprep.subr.mxu0 0.0
  %4609 = vmatpush1.msra.mxu0 0.0
  %4610 = vmatprep.subr.mxu0 0.0
  %4611 = vmatpush1.msra.mxu0 0.0
  %4612 = vmatprep.subr.mxu0 0.0
  %4613 = vmatpush1.msra.mxu0 0.0
  %4614 = vmatprep.subr.mxu0 0.0
  %4615 = vmatpush1.msra.mxu0 0.0
  %4616 = vmatprep.subr.mxu0 0.0
  %4617 = vmatpush1.msra.mxu0 0.0
  %4618 = vmatprep.subr.mxu0 0.0
  %4619 = vmatpush1.msra.mxu0 0.0
  %4620 = vmatprep.subr.mxu0 0.0
  %4621 = vmatpush1.msra.mxu0 0.0
  %4622 = vmatprep.subr.mxu0 0.0
  %4623 = vmatpush1.msra.mxu0 0.0
  %4624 = vmatprep.subr.mxu0 0.0
  %4625 = vmatpush1.msra.mxu0 0.0
  %4626 = vmatprep.subr.mxu0 0.0
  %4627 = vmatpush1.msra.mxu0 0.0
  %4628 = vmatprep.subr.mxu0 0.0
  %4629 = vmatpush1.msra.mxu0 0.0
  %4630 = vmatprep.mubr.f32.mxu0 0.0
  %4631 = vmatmul.mubr.f32.gmra.mrb[0].mxu0 %v4564
  %v4632 = vpop.f32.mrb[0].mxu0
  %v4633 = vadd.f32 %v67, %v4632
  %v4634 = vpop.f32.mrb[0].mxu0
  %4635 = vdwg.mxu0
  %v4636 = vsel %vm1694, %v4633, 0.0
  %4637 = vadd.xlane.f32.xlu0 %v4636
  %v4638 = vpop.xlane.xlu0 %4637
  %v4639 = vmul.f32 %v4633, %v4633
  %v4640 = vsel %vm1694, %v4639, 0.0
  %4641 = vadd.xlane.f32.xlu0 %v4640
  %v4642 = vpop.xlane.xlu0 %4641
  %v4643 = vmul.f32 %v4638, 0.03125
  %v4644 = vmul.f32 %v4642, 0.03125
  %v4645 = vmul.f32 %v4643, %v4643
  %v4646 = vsub.f32 %v4644, %v4645
  %v4647 = vsub.f32 %v4633, %v4643
  %v4648 = vadd.f32 %v4646, 1e-05
  %v4649 = vrsqrt.pop %v4648
  %v4650 = vmul.f32 %v4647, %v4649
  %v4651 = vmul.f32 %v4650, %v72
  %v4652 = vadd.f32 %v4651, %v77
  %v4653 = vmul.f32 %v4652, 0.5
  %v4654 = vmul.f32 %v4652, 0.044715
  %v4655 = vmul.f32 %v4654, %v4652
  %v4656 = vmul.f32 %v4655, %v4652
  %v4657 = vadd.f32 %v4652, %v4656
  %v4658 = vmul.f32 %v4657, 0.7978846
  %v4659 = vtanh.pop %v4658
  %v4660 = vadd.f32 %v4659, 1.0
  %v4661 = vmul.f32 %v4653, %v4660
  %v4663 = vsel %vm277, %v4661, 0
  %4665 = vmatprep.subr.mxu0 0.0
  %4666 = vmatpush1.msra.mxu0 %v78
  %4667 = vmatprep.subr.mxu0 0.0
  %4668 = vmatpush1.msra.mxu0 %v79
  %4669 = vmatprep.subr.mxu0 0.0
  %4670 = vmatpush1.msra.mxu0 %v80
  %4671 = vmatprep.subr.mxu0 0.0
  %4672 = vmatpush1.msra.mxu0 %v81
  %4673 = vmatprep.subr.mxu0 0.0
  %4674 = vmatpush1.msra.mxu0 0.0
  %4675 = vmatprep.subr.mxu0 0.0
  %4676 = vmatpush1.msra.mxu0 0.0
  %4677 = vmatprep.subr.mxu0 0.0
  %4678 = vmatpush1.msra.mxu0 0.0
  %4679 = vmatprep.subr.mxu0 0.0
  %4680 = vmatpush1.msra.mxu0 0.0
  %4681 = vmatprep.subr.mxu0 0.0
  %4682 = vmatpush1.msra.mxu0 0.0
  %4683 = vmatprep.subr.mxu0 0.0
  %4684 = vmatpush1.msra.mxu0 0.0
  %4685 = vmatprep.subr.mxu0 0.0
  %4686 = vmatpush1.msra.mxu0 0.0
  %4687 = vmatprep.subr.mxu0 0.0
  %4688 = vmatpush1.msra.mxu0 0.0
  %4689 = vmatprep.subr.mxu0 0.0
  %4690 = vmatpush1.msra.mxu0 0.0
  %4691 = vmatprep.subr.mxu0 0.0
  %4692 = vmatpush1.msra.mxu0 0.0
  %4693 = vmatprep.subr.mxu0 0.0
  %4694 = vmatpush1.msra.mxu0 0.0
  %4695 = vmatprep.subr.mxu0 0.0
  %4696 = vmatpush1.msra.mxu0 0.0
  %4697 = vmatprep.subr.mxu0 0.0
  %4698 = vmatpush1.msra.mxu0 0.0
  %4699 = vmatprep.subr.mxu0 0.0
  %4700 = vmatpush1.msra.mxu0 0.0
  %4701 = vmatprep.subr.mxu0 0.0
  %4702 = vmatpush1.msra.mxu0 0.0
  %4703 = vmatprep.subr.mxu0 0.0
  %4704 = vmatpush1.msra.mxu0 0.0
  %4705 = vmatprep.subr.mxu0 0.0
  %4706 = vmatpush1.msra.mxu0 0.0
  %4707 = vmatprep.subr.mxu0 0.0
  %4708 = vmatpush1.msra.mxu0 0.0
  %4709 = vmatprep.subr.mxu0 0.0
  %4710 = vmatpush1.msra.mxu0 0.0
  %4711 = vmatprep.subr.mxu0 0.0
  %4712 = vmatpush1.msra.mxu0 0.0
  %4713 = vmatprep.subr.mxu0 0.0
  %4714 = vmatpush1.msra.mxu0 0.0
  %4715 = vmatprep.subr.mxu0 0.0
  %4716 = vmatpush1.msra.mxu0 0.0
  %4717 = vmatprep.subr.mxu0 0.0
  %4718 = vmatpush1.msra.mxu0 0.0
  %4719 = vmatprep.subr.mxu0 0.0
  %4720 = vmatpush1.msra.mxu0 0.0
  %4721 = vmatprep.subr.mxu0 0.0
  %4722 = vmatpush1.msra.mxu0 0.0
  %4723 = vmatprep.subr.mxu0 0.0
  %4724 = vmatpush1.msra.mxu0 0.0
  %4725 = vmatprep.subr.mxu0 0.0
  %4726 = vmatpush1.msra.mxu0 0.0
  %4727 = vmatprep.subr.mxu0 0.0
  %4728 = vmatpush1.msra.mxu0 0.0
  %4729 = vmatprep.mubr.f32.mxu0 0.0
  %4730 = vmatmul.mubr.f32.gmra.mrb[0].mxu0 %v4663
  %v4731 = vpop.f32.mrb[0].mxu0
  %v4732 = vadd.f32 %v86, %v4731
  %v4733 = vpop.f32.mrb[0].mxu0
  %4734 = vdwg.mxu0
  %v4735 = vsel %vm1794, %v4732, -inf
  %4736 = vmax.xlane.f32.xlu0 %v4735
  %v4737 = vpop.xlane.xlu0 %4736
  %v4738 = vsub.f32 %v4732, %v4737
  %v4739 = vmul.f32 %v4738, 1.442695
  %v4740 = vpow.pop %v4739
  %v4741 = vsel %vm1794, %v4740, 0.0
  %4742 = vadd.xlane.f32.xlu0 %v4741
  %v4743 = vpop.xlane.xlu0 %4742
  %v4744 = vrcp.pop %v4743
  %v4745 = vmul.f32 1.0, %v4744
  %v4746 = vmul.f32 %v4740, %v4745
  %v4748 = vsel %vm93, %v4740, 0
  %4750 = vmatprep.subr.mxu0 0.0
  %4751 = vmatpush1.msra.mxu0 %v1811
  %4752 = vmatprep.subr.mxu0 0.0
  %4753 = vmatpush1.msra.mxu0 0.0
  %4754 = vmatprep.subr.mxu0 0.0
  %4755 = vmatpush1.msra.mxu0 0.0
  %4756 = vmatprep.subr.mxu0 0.0
  %4757 = vmatpush1.msra.mxu0 0.0
  %4758 = vmatprep.subr.mxu0 0.0
  %4759 = vmatpush1.msra.mxu0 0.0
  %4760 = vmatprep.subr.mxu0 0.0
  %4761 = vmatpush1.msra.mxu0 0.0
  %4762 = vmatprep.subr.mxu0 0.0
  %4763 = vmatpush1.msra.mxu0 0.0
  %4764 = vmatprep.subr.mxu0 0.0
  %4765 = vmatpush1.msra.mxu0 0.0
  %4766 = vmatprep.subr.mxu0 0.0
  %4767 = vmatpush1.msra.mxu0 0.0
  %4768 = vmatprep.subr.mxu0 0.0
  %4769 = vmatpush1.msra.mxu0 0.0
  %4770 = vmatprep.subr.mxu0 0.0
  %4771 = vmatpush1.msra.mxu0 0.0
  %4772 = vmatprep.subr.mxu0 0.0
  %4773 = vmatpush1.msra.mxu0 0.0
  %4774 = vmatprep.subr.mxu0 0.0
  %4775 = vmatpush1.msra.mxu0 0.0
  %4776 = vmatprep.subr.mxu0 0.0
  %4777 = vmatpush1.msra.mxu0 0.0
  %4778 = vmatprep.subr.mxu0 0.0
  %4779 = vmatpush1.msra.mxu0 0.0
  %4780 = vmatprep.subr.mxu0 0.0
  %4781 = vmatpush1.msra.mxu0 0.0
  %4782 = vmatprep.subr.mxu0 0.0
  %4783 = vmatpush1.msra.mxu0 0.0
  %4784 = vmatprep.subr.mxu0 0.0
  %4785 = vmatpush1.msra.mxu0 0.0
  %4786 = vmatprep.subr.mxu0 0.0
  %4787 = vmatpush1.msra.mxu0 0.0
  %4788 = vmatprep.subr.mxu0 0.0
  %4789 = vmatpush1.msra.mxu0 0.0
  %4790 = vmatprep.subr.mxu0 0.0
  %4791 = vmatpush1.msra.mxu0 0.0
  %4792 = vmatprep.subr.mxu0 0.0
  %4793 = vmatpush1.msra.mxu0 0.0
  %4794 = vmatprep.subr.mxu0 0.0
  %4795 = vmatpush1.msra.mxu0 0.0
  %4796 = vmatprep.subr.mxu0 0.0
  %4797 = vmatpush1.msra.mxu0 0.0
  %4798 = vmatprep.subr.mxu0 0.0
  %4799 = vmatpush1.msra.mxu0 0.0
  %4800 = vmatprep.subr.mxu0 0.0
  %4801 = vmatpush1.msra.mxu0 0.0
  %4802 = vmatprep.subr.mxu0 0.0
  %4803 = vmatpush1.msra.mxu0 0.0
  %4804 = vmatprep.subr.mxu0 0.0
  %4805 = vmatpush1.msra.mxu0 0.0
  %4806 = vmatprep.subr.mxu0 0.0
  %4807 = vmatpush1.msra.mxu0 0.0
  %4808 = vmatprep.subr.mxu0 0.0
  %4809 = vmatpush1.msra.mxu0 0.0
  %4810 = vmatprep.subr.mxu0 0.0
  %4811 = vmatpush1.msra.mxu0 0.0
  %4812 = vmatprep.subr.mxu0 0.0
  %4813 = vmatpush1.msra.mxu0 0.0
  %4814 = vmatprep.mubr.f32.mxu0 0.0
  %4815 = vmatmul.mubr.f32.gmra.mrb[0].mxu0 %v4748
  %v4816 = vpop.f32.mrb[0].mxu0
  %v4817 = vadd.f32 0.0, %v4816
  %v4818 = vpop.f32.mrb[0].mxu0
  %4819 = vdwg.mxu0
  %4820 = vmatprep.subr.mxu0 0.0
  %4821 = vmatpush1.msra.mxu0 %v1884
  %4822 = vmatprep.subr.mxu0 0.0
  %4823 = vmatpush1.msra.mxu0 0.0
  %4824 = vmatprep.subr.mxu0 0.0
  %4825 = vmatpush1.msra.mxu0 0.0
  %4826 = vmatprep.subr.mxu0 0.0
  %4827 = vmatpush1.msra.mxu0 0.0
  %4828 = vmatprep.subr.mxu0 0.0
  %4829 = vmatpush1.msra.mxu0 0.0
  %4830 = vmatprep.subr.mxu0 0.0
  %4831 = vmatpush1.msra.mxu0 0.0
  %4832 = vmatprep.subr.mxu0 0.0
  %4833 = vmatpush1.msra.mxu0 0.0
  %4834 = vmatprep.subr.mxu0 0.0
  %4835 = vmatpush1.msra.mxu0 0.0
  %4836 = vmatprep.subr.mxu0 0.0
  %4837 = vmatpush1.msra.mxu0 0.0
  %4838 = vmatprep.subr.mxu0 0.0
  %4839 = vmatpush1.msra.mxu0 0.0
  %4840 = vmatprep.subr.mxu0 0.0
  %4841 = vmatpush1.msra.mxu0 0.0
  %4842 = vmatprep.subr.mxu0 0.0
  %4843 = vmatpush1.msra.mxu0 0.0
  %4844 = vmatprep.subr.mxu0 0.0
  %4845 = vmatpush1.msra.mxu0 0.0
  %4846 = vmatprep.subr.mxu0 0.0
  %4847 = vmatpush1.msra.mxu0 0.0
  %4848 = vmatprep.subr.mxu0 0.0
  %4849 = vmatpush1.msra.mxu0 0.0
  %4850 = vmatprep.subr.mxu0 0.0
  %4851 = vmatpush1.msra.mxu0 0.0
  %4852 = vmatprep.subr.mxu0 0.0
  %4853 = vmatpush1.msra.mxu0 0.0
  %4854 = vmatprep.subr.mxu0 0.0
  %4855 = vmatpush1.msra.mxu0 0.0
  %4856 = vmatprep.subr.mxu0 0.0
  %4857 = vmatpush1.msra.mxu0 0.0
  %4858 = vmatprep.subr.mxu0 0.0
  %4859 = vmatpush1.msra.mxu0 0.0
  %4860 = vmatprep.subr.mxu0 0.0
  %4861 = vmatpush1.msra.mxu0 0.0
  %4862 = vmatprep.subr.mxu0 0.0
  %4863 = vmatpush1.msra.mxu0 0.0
  %4864 = vmatprep.subr.mxu0 0.0
  %4865 = vmatpush1.msra.mxu0 0.0
  %4866 = vmatprep.subr.mxu0 0.0
  %4867 = vmatpush1.msra.mxu0 0.0
  %4868 = vmatprep.subr.mxu0 0.0
  %4869 = vmatpush1.msra.mxu0 0.0
  %4870 = vmatprep.subr.mxu0 0.0
  %4871 = vmatpush1.msra.mxu0 0.0
  %4872 = vmatprep.subr.mxu0 0.0
  %4873 = vmatpush1.msra.mxu0 0.0
  %4874 = vmatprep.subr.mxu0 0.0
  %4875 = vmatpush1.msra.mxu0 0.0
  %4876 = vmatprep.subr.mxu0 0.0
  %4877 = vmatpush1.msra.mxu0 0.0
  %4878 = vmatprep.subr.mxu0 0.0
  %4879 = vmatpush1.msra.mxu0 0.0
  %4880 = vmatprep.subr.mxu0 0.0
  %4881 = vmatpush1.msra.mxu0 0.0
  %4882 = vmatprep.subr.mxu0 0.0
  %4883 = vmatpush1.msra.mxu0 0.0
  %4884 = vmatprep.mubr.f32.mxu0 0.0
  %4885 = vmatmul.mubr.f32.gmra.mrb[0].mxu0 %v4748
  %v4886 = vpop.f32.mrb[0].mxu0
  %v4887 = vadd.f32 0.0, %v4886
  %v4888 = vpop.f32.mrb[0].mxu0
  %4889 = vdwg.mxu0
  %v4890 = vmul.f32 %v4817, %v4745
  %v4891 = vadd.f32 %v4890, %v32
  %v4892 = vmul.f32 %v4887, %v4745
  %v4893 = vadd.f32 %v4892, %v57
  %4894 = vmatprep.subr.mxu0 0.0
  %4895 = vmatpush1.msra.mxu0 %v23
  %4896 = vmatprep.subr.mxu0 0.0
  %4897 = vmatpush1.msra.mxu0 %v24
  %4898 = vmatprep.subr.mxu0 0.0
  %4899 = vmatpush1.msra.mxu0 %v25
  %4900 = vmatprep.subr.mxu0 0.0
  %4901 = vmatpush1.msra.mxu0 %v26
  %4902 = vmatprep.subr.mxu0 0.0
  %4903 = vmatpush1.msra.mxu0 0.0
  %4904 = vmatprep.subr.mxu0 0.0
  %4905 = vmatpush1.msra.mxu0 0.0
  %4906 = vmatprep.subr.mxu0 0.0
  %4907 = vmatpush1.msra.mxu0 0.0
  %4908 = vmatprep.subr.mxu0 0.0
  %4909 = vmatpush1.msra.mxu0 0.0
  %4910 = vmatprep.subr.mxu0 0.0
  %4911 = vmatpush1.msra.mxu0 0.0
  %4912 = vmatprep.subr.mxu0 0.0
  %4913 = vmatpush1.msra.mxu0 0.0
  %4914 = vmatprep.subr.mxu0 0.0
  %4915 = vmatpush1.msra.mxu0 0.0
  %4916 = vmatprep.subr.mxu0 0.0
  %4917 = vmatpush1.msra.mxu0 0.0
  %4918 = vmatprep.subr.mxu0 0.0
  %4919 = vmatpush1.msra.mxu0 0.0
  %4920 = vmatprep.subr.mxu0 0.0
  %4921 = vmatpush1.msra.mxu0 0.0
  %4922 = vmatprep.subr.mxu0 0.0
  %4923 = vmatpush1.msra.mxu0 0.0
  %4924 = vmatprep.subr.mxu0 0.0
  %4925 = vmatpush1.msra.mxu0 0.0
  %4926 = vmatprep.subr.mxu0 0.0
  %4927 = vmatpush1.msra.mxu0 0.0
  %4928 = vmatprep.subr.mxu0 0.0
  %4929 = vmatpush1.msra.mxu0 0.0
  %4930 = vmatprep.subr.mxu0 0.0
  %4931 = vmatpush1.msra.mxu0 0.0
  %4932 = vmatprep.subr.mxu0 0.0
  %4933 = vmatpush1.msra.mxu0 0.0
  %4934 = vmatprep.subr.mxu0 0.0
  %4935 = vmatpush1.msra.mxu0 0.0
  %4936 = vmatprep.subr.mxu0 0.0
  %4937 = vmatpush1.msra.mxu0 0.0
  %4938 = vmatprep.subr.mxu0 0.0
  %4939 = vmatpush1.msra.mxu0 0.0
  %4940 = vmatprep.subr.mxu0 0.0
  %4941 = vmatpush1.msra.mxu0 0.0
  %4942 = vmatprep.subr.mxu0 0.0
  %4943 = vmatpush1.msra.mxu0 0.0
  %4944 = vmatprep.subr.mxu0 0.0
  %4945 = vmatpush1.msra.mxu0 0.0
  %4946 = vmatprep.subr.mxu0 0.0
  %4947 = vmatpush1.msra.mxu0 0.0
  %4948 = vmatprep.subr.mxu0 0.0
  %4949 = vmatpush1.msra.mxu0 0.0
  %4950 = vmatprep.subr.mxu0 0.0
  %4951 = vmatpush1.msra.mxu0 0.0
  %4952 = vmatprep.subr.mxu0 0.0
  %4953 = vmatpush1.msra.mxu0 0.0
  %4954 = vmatprep.subr.mxu0 0.0
  %4955 = vmatpush1.msra.mxu0 0.0
  %4956 = vmatprep.subr.mxu0 0.0
  %4957 = vmatpush1.msra.mxu0 0.0
  %4958 = vmatprep.mubr.f32.mxu0 0.0
  %4959 = vmatmul.mubr.f32.gmra.mrb[0].mxu0 %v4564
  %v4960 = vpop.f32.mrb[0].mxu0
  %v4961 = vadd.f32 0.0, %v4960
  %v4962 = vpop.f32.mrb[0].mxu0
  %4963 = vdwg.mxu0
  %4964 = vmatprep.subr.mxu0 0.0
  %4965 = vmatpush1.msra.mxu0 %v39
  %4966 = vmatprep.subr.mxu0 0.0
  %4967 = vmatpush1.msra.mxu0 %v40
  %4968 = vmatprep.subr.mxu0 0.0
  %4969 = vmatpush1.msra.mxu0 %v41
  %4970 = vmatprep.subr.mxu0 0.0
  %4971 = vmatpush1.msra.mxu0 %v42
  %4972 = vmatprep.subr.mxu0 0.0
  %4973 = vmatpush1.msra.mxu0 0.0
  %4974 = vmatprep.subr.mxu0 0.0
  %4975 = vmatpush1.msra.mxu0 0.0
  %4976 = vmatprep.subr.mxu0 0.0
  %4977 = vmatpush1.msra.mxu0 0.0
  %4978 = vmatprep.subr.mxu0 0.0
  %4979 = vmatpush1.msra.mxu0 0.0
  %4980 = vmatprep.subr.mxu0 0.0
  %4981 = vmatpush1.msra.mxu0 0.0
  %4982 = vmatprep.subr.mxu0 0.0
  %4983 = vmatpush1.msra.mxu0 0.0
  %4984 = vmatprep.subr.mxu0 0.0
  %4985 = vmatpush1.msra.mxu0 0.0
  %4986 = vmatprep.subr.mxu0 0.0
  %4987 = vmatpush1.msra.mxu0 0.0
  %4988 = vmatprep.subr.mxu0 0.0
  %4989 = vmatpush1.msra.mxu0 0.0
  %4990 = vmatprep.subr.mxu0 0.0
  %4991 = vmatpush1.msra.mxu0 0.0
  %4992 = vmatprep.subr.mxu0 0.0
  %4993 = vmatpush1.msra.mxu0 0.0
  %4994 = vmatprep.subr.mxu0 0.0
  %4995 = vmatpush1.msra.mxu0 0.0
  %4996 = vmatprep.subr.mxu0 0.0
  %4997 = vmatpush1.msra.mxu0 0.0
  %4998 = vmatprep.subr.mxu0 0.0
  %4999 = vmatpush1.msra.mxu0 0.0
  %5000 = vmatprep.subr.mxu0 0.0
  %5001 = vmatpush1.msra.mxu0 0.0
  %5002 = vmatprep.subr.mxu0 0.0
  %5003 = vmatpush1.msra.mxu0 0.0
  %5004 = vmatprep.subr.mxu0 0.0
  %5005 = vmatpush1.msra.mxu0 0.0
  %5006 = vmatprep.subr.mxu0 0.0
  %5007 = vmatpush1.msra.mxu0 0.0
  %5008 = vmatprep.subr.mxu0 0.0
  %5009 = vmatpush1.msra.mxu0 0.0
  %5010 = vmatprep.subr.mxu0 0.0
  %5011 = vmatpush1.msra.mxu0 0.0
  %5012 = vmatprep.subr.mxu0 0.0
  %5013 = vmatpush1.msra.mxu0 0.0
  %5014 = vmatprep.subr.mxu0 0.0
  %5015 = vmatpush1.msra.mxu0 0.0
  %5016 = vmatprep.subr.mxu0 0.0
  %5017 = vmatpush1.msra.mxu0 0.0
  %5018 = vmatprep.subr.mxu0 0.0
  %5019 = vmatpush1.msra.mxu0 0.0
  %5020 = vmatprep.subr.mxu0 0.0
  %5021 = vmatpush1.msra.mxu0 0.0
  %5022 = vmatprep.subr.mxu0 0.0
  %5023 = vmatpush1.msra.mxu0 0.0
  %5024 = vmatprep.subr.mxu0 0.0
  %5025 = vmatpush1.msra.mxu0 0.0
  %5026 = vmatprep.subr.mxu0 0.0
  %5027 = vmatpush1.msra.mxu0 0.0
  %5028 = vmatprep.mubr.f32.mxu0 0.0
  %5029 = vmatmul.mubr.f32.gmra.mrb[0].mxu0 %v4564
  %v5030 = vpop.f32.mrb[0].mxu0
  %v5031 = vadd.f32 %v62, %v5030
  %v5032 = vpop.f32.mrb[0].mxu0
  %5033 = vdwg.mxu0
  %v5034 = vadd.f32 %v4891, %v4961
  %v5035 = vmul.f32 %v5034, 0.5
  %v5036 = vtanh.pop %v5035
  %v5037 = vadd.f32 %v5036, 1.0
  %v5038 = vmul.f32 %v5037, 0.5
  %v5039 = vmul.f32 %v5038, %v5031
  %v5040 = vadd.f32 %v4893, %v5039
  %v5041 = vtanh.pop %v5040
  %v5042 = vsub.f32 1.0, %v5038
  %5044 = vrot.lane.b32.xlu0 %v5041, 32
  %v5045 = vpop.permute.xlu0 %5044
  %v5047 = vmul.f32 %v5042, %v5045
  %v5048 = vmul.f32 %v5038, %v4560
  %v5049 = vadd.f32 %v5047, %v5048
  %5051 = vrot.lane.b32.xlu0 %v5049, 96
  %v5052 = vpop.permute.xlu0 %5051
  %v5053 = vsel %vm277, %v5052, 0
  %5055 = vmatprep.subr.mxu0 0.0
  %5056 = vmatpush1.msra.mxu0 %v43
  %5057 = vmatprep.subr.mxu0 0.0
  %5058 = vmatpush1.msra.mxu0 %v44
  %5059 = vmatprep.subr.mxu0 0.0
  %5060 = vmatpush1.msra.mxu0 %v45
  %5061 = vmatprep.subr.mxu0 0.0
  %5062 = vmatpush1.msra.mxu0 %v46
  %5063 = vmatprep.subr.mxu0 0.0
  %5064 = vmatpush1.msra.mxu0 0.0
  %5065 = vmatprep.subr.mxu0 0.0
  %5066 = vmatpush1.msra.mxu0 0.0
  %5067 = vmatprep.subr.mxu0 0.0
  %5068 = vmatpush1.msra.mxu0 0.0
  %5069 = vmatprep.subr.mxu0 0.0
  %5070 = vmatpush1.msra.mxu0 0.0
  %5071 = vmatprep.subr.mxu0 0.0
  %5072 = vmatpush1.msra.mxu0 0.0
  %5073 = vmatprep.subr.mxu0 0.0
  %5074 = vmatpush1.msra.mxu0 0.0
  %5075 = vmatprep.subr.mxu0 0.0
  %5076 = vmatpush1.msra.mxu0 0.0
  %5077 = vmatprep.subr.mxu0 0.0
  %5078 = vmatpush1.msra.mxu0 0.0
  %5079 = vmatprep.subr.mxu0 0.0
  %5080 = vmatpush1.msra.mxu0 0.0
  %5081 = vmatprep.subr.mxu0 0.0
  %5082 = vmatpush1.msra.mxu0 0.0
  %5083 = vmatprep.subr.mxu0 0.0
  %5084 = vmatpush1.msra.mxu0 0.0
  %5085 = vmatprep.subr.mxu0 0.0
  %5086 = vmatpush1.msra.mxu0 0.0
  %5087 = vmatprep.subr.mxu0 0.0
  %5088 = vmatpush1.msra.mxu0 0.0
  %5089 = vmatprep.subr.mxu0 0.0
  %5090 = vmatpush1.msra.mxu0 0.0
  %5091 = vmatprep.subr.mxu0 0.0
  %5092 = vmatpush1.msra.mxu0 0.0
  %5093 = vmatprep.subr.mxu0 0.0
  %5094 = vmatpush1.msra.mxu0 0.0
  %5095 = vmatprep.subr.mxu0 0.0
  %5096 = vmatpush1.msra.mxu0 0.0
  %5097 = vmatprep.subr.mxu0 0.0
  %5098 = vmatpush1.msra.mxu0 0.0
  %5099 = vmatprep.subr.mxu0 0.0
  %5100 = vmatpush1.msra.mxu0 0.0
  %5101 = vmatprep.subr.mxu0 0.0
  %5102 = vmatpush1.msra.mxu0 0.0
  %5103 = vmatprep.subr.mxu0 0.0
  %5104 = vmatpush1.msra.mxu0 0.0
  %5105 = vmatprep.subr.mxu0 0.0
  %5106 = vmatpush1.msra.mxu0 0.0
  %5107 = vmatprep.subr.mxu0 0.0
  %5108 = vmatpush1.msra.mxu0 0.0
  %5109 = vmatprep.subr.mxu0 0.0
  %5110 = vmatpush1.msra.mxu0 0.0
  %5111 = vmatprep.subr.mxu0 0.0
  %5112 = vmatpush1.msra.mxu0 0.0
  %5113 = vmatprep.subr.mxu0 0.0
  %5114 = vmatpush1.msra.mxu0 0.0
  %5115 = vmatprep.subr.mxu0 0.0
  %5116 = vmatpush1.msra.mxu0 0.0
  %5117 = vmatprep.subr.mxu0 0.0
  %5118 = vmatpush1.msra.mxu0 0.0
  %5119 = vmatprep.mubr.f32.mxu0 0.0
  %5120 = vmatmul.mubr.f32.gmra.mrb[0].mxu0 %v5053
  %v5121 = vpop.f32.mrb[0].mxu0
  %v5122 = vadd.f32 %v67, %v5121
  %v5123 = vpop.f32.mrb[0].mxu0
  %5124 = vdwg.mxu0
  %v5125 = vsel %vm1694, %v5122, 0.0
  %5126 = vadd.xlane.f32.xlu0 %v5125
  %v5127 = vpop.xlane.xlu0 %5126
  %v5128 = vmul.f32 %v5122, %v5122
  %v5129 = vsel %vm1694, %v5128, 0.0
  %5130 = vadd.xlane.f32.xlu0 %v5129
  %v5131 = vpop.xlane.xlu0 %5130
  %v5132 = vmul.f32 %v5127, 0.03125
  %v5133 = vmul.f32 %v5131, 0.03125
  %v5134 = vmul.f32 %v5132, %v5132
  %v5135 = vsub.f32 %v5133, %v5134
  %v5136 = vsub.f32 %v5122, %v5132
  %v5137 = vadd.f32 %v5135, 1e-05
  %v5138 = vrsqrt.pop %v5137
  %v5139 = vmul.f32 %v5136, %v5138
  %v5140 = vmul.f32 %v5139, %v72
  %v5141 = vadd.f32 %v5140, %v77
  %v5142 = vmul.f32 %v5141, 0.5
  %v5143 = vmul.f32 %v5141, 0.044715
  %v5144 = vmul.f32 %v5143, %v5141
  %v5145 = vmul.f32 %v5144, %v5141
  %v5146 = vadd.f32 %v5141, %v5145
  %v5147 = vmul.f32 %v5146, 0.7978846
  %v5148 = vtanh.pop %v5147
  %v5149 = vadd.f32 %v5148, 1.0
  %v5150 = vmul.f32 %v5142, %v5149
  %v5152 = vsel %vm277, %v5150, 0
  %5154 = vmatprep.subr.mxu0 0.0
  %5155 = vmatpush1.msra.mxu0 %v78
  %5156 = vmatprep.subr.mxu0 0.0
  %5157 = vmatpush1.msra.mxu0 %v79
  %5158 = vmatprep.subr.mxu0 0.0
  %5159 = vmatpush1.msra.mxu0 %v80
  %5160 = vmatprep.subr.mxu0 0.0
  %5161 = vmatpush1.msra.mxu0 %v81
  %5162 = vmatprep.subr.mxu0 0.0
  %5163 = vmatpush1.msra.mxu0 0.0
  %5164 = vmatprep.subr.mxu0 0.0
  %5165 = vmatpush1.msra.mxu0 0.0
  %5166 = vmatprep.subr.mxu0 0.0
  %5167 = vmatpush1.msra.mxu0 0.0
  %5168 = vmatprep.subr.mxu0 0.0
  %5169 = vmatpush1.msra.mxu0 0.0
  %5170 = vmatprep.subr.mxu0 0.0
  %5171 = vmatpush1.msra.mxu0 0.0
  %5172 = vmatprep.subr.mxu0 0.0
  %5173 = vmatpush1.msra.mxu0 0.0
  %5174 = vmatprep.subr.mxu0 0.0
  %5175 = vmatpush1.msra.mxu0 0.0
  %5176 = vmatprep.subr.mxu0 0.0
  %5177 = vmatpush1.msra.mxu0 0.0
  %5178 = vmatprep.subr.mxu0 0.0
  %5179 = vmatpush1.msra.mxu0 0.0
  %5180 = vmatprep.subr.mxu0 0.0
  %5181 = vmatpush1.msra.mxu0 0.0
  %5182 = vmatprep.subr.mxu0 0.0
  %5183 = vmatpush1.msra.mxu0 0.0
  %5184 = vmatprep.subr.mxu0 0.0
  %5185 = vmatpush1.msra.mxu0 0.0
  %5186 = vmatprep.subr.mxu0 0.0
  %5187 = vmatpush1.msra.mxu0 0.0
  %5188 = vmatprep.subr.mxu0 0.0
  %5189 = vmatpush1.msra.mxu0 0.0
  %5190 = vmatprep.subr.mxu0 0.0
  %5191 = vmatpush1.msra.mxu0 0.0
  %5192 = vmatprep.subr.mxu0 0.0
  %5193 = vmatpush1.msra.mxu0 0.0
  %5194 = vmatprep.subr.mxu0 0.0
  %5195 = vmatpush1.msra.mxu0 0.0
  %5196 = vmatprep.subr.mxu0 0.0
  %5197 = vmatpush1.msra.mxu0 0.0
  %5198 = vmatprep.subr.mxu0 0.0
  %5199 = vmatpush1.msra.mxu0 0.0
  %5200 = vmatprep.subr.mxu0 0.0
  %5201 = vmatpush1.msra.mxu0 0.0
  %5202 = vmatprep.subr.mxu0 0.0
  %5203 = vmatpush1.msra.mxu0 0.0
  %5204 = vmatprep.subr.mxu0 0.0
  %5205 = vmatpush1.msra.mxu0 0.0
  %5206 = vmatprep.subr.mxu0 0.0
  %5207 = vmatpush1.msra.mxu0 0.0
  %5208 = vmatprep.subr.mxu0 0.0
  %5209 = vmatpush1.msra.mxu0 0.0
  %5210 = vmatprep.subr.mxu0 0.0
  %5211 = vmatpush1.msra.mxu0 0.0
  %5212 = vmatprep.subr.mxu0 0.0
  %5213 = vmatpush1.msra.mxu0 0.0
  %5214 = vmatprep.subr.mxu0 0.0
  %5215 = vmatpush1.msra.mxu0 0.0
  %5216 = vmatprep.subr.mxu0 0.0
  %5217 = vmatpush1.msra.mxu0 0.0
  %5218 = vmatprep.mubr.f32.mxu0 0.0
  %5219 = vmatmul.mubr.f32.gmra.mrb[0].mxu0 %v5152
  %v5220 = vpop.f32.mrb[0].mxu0
  %v5221 = vadd.f32 %v86, %v5220
  %v5222 = vpop.f32.mrb[0].mxu0
  %5223 = vdwg.mxu0
  %v5224 = vsel %vm1794, %v5221, -inf
  %5225 = vmax.xlane.f32.xlu0 %v5224
  %v5226 = vpop.xlane.xlu0 %5225
  %v5227 = vsub.f32 %v5221, %v5226
  %v5228 = vmul.f32 %v5227, 1.442695
  %v5229 = vpow.pop %v5228
  %v5230 = vsel %vm1794, %v5229, 0.0
  %5231 = vadd.xlane.f32.xlu0 %v5230
  %v5232 = vpop.xlane.xlu0 %5231
  %v5233 = vrcp.pop %v5232
  %v5234 = vmul.f32 1.0, %v5233
  %v5235 = vmul.f32 %v5229, %v5234
  %5236 = vst.msk [vmem:[%s4] sm:$0x3] %vm1794, %v1806
  %5237 = vst.msk [vmem:[%s4 + $0x2] sm:$0x3] %vm1794, %v2301
  %5238 = vst.msk [vmem:[%s4 + $0x4] sm:$0x3] %vm1794, %v2790
  %5239 = vst.msk [vmem:[%s4 + $0x6] sm:$0x3] %vm1794, %v3279
  %5240 = vst.msk [vmem:[%s4 + $0x8] sm:$0x3] %vm1794, %v3768
  %5241 = vst.msk [vmem:[%s4 + $0xa] sm:$0x3] %vm1794, %v4257
  %5242 = vst.msk [vmem:[%s4 + $0xc] sm:$0x3] %vm1794, %v4746
  %5243 = vst.msk [vmem:[%s4 + $0xe] sm:$0x3] %vm1794, %v5235
  // Predicated region
  $region18: #{covsf_forward.1} parent=0 // pred_check
    _
  $region19: #{covsf_forward.1} parent=0 // pred_check_branch
    %5245 = sbr.rel (0) target = $region21
  $region20: #{covsf_forward.1} parent=0 // pred_region
    _
  $region21: #{covsf_forward.1} parent=0 // pred_fallthru
    _
  // Predicated region
  $region22: #{covsf_forward.1} parent=0 // pred_check
    _
  $region23: #{covsf_forward.1} parent=0 // pred_check_branch
    %5247 = sbr.rel (0) target = $region25
  $region24: #{covsf_forward.1} parent=0 // pred_region
    _
  $region25: #{covsf_forward.1} parent=0 // pred_fallthru
    _

</llo_original>
